<compile_context>
chip_gen: v5e
topology: v5e:2x2
jax: 0.10.0
libtpu: 0.0.40
codegen_flags: <defaults>
</compile_context>

<pallas_src>
import functools

import jax
import jax.numpy as jnp
from jax.experimental import pallas as pl
from jax.experimental.pallas import tpu as pltpu

# --- small, module-consistent sizes -----------------------------------------
B = 8            # batch (BatchNorm1d in train mode needs B > 1)
C_IN = 3         # input channels (images)
H = W = 16       # spatial
REPR = 32        # representation size produced by the backbone stem
MLP_SPEC = "64-64-32"   # projector dims [REPR, 64, 64, 32]; num_features = 32
BN_EPS = 1e-5    # PyTorch BatchNorm default eps

FPAD = 128       # every feature axis is zero-padded to one full lane tile
F_DIMS = (REPR,) + tuple(int(d) for d in MLP_SPEC.split("-"))   # (32, 64, 64, 32)


# --- fused Pallas kernel (entire forward; activations never leave VMEM) ------
def _ssl_fused_kernel(xp_ref, wconv_ref,
                      w1_ref, b1_ref, g1_ref, be1_ref,
                      w2_ref, b2_ref, g2_ref, be2_ref,
                      wf_ref,
                      rep_ref, h1_ref, h2_ref, emb_ref):
    """conv3x3 stem -> ReLU -> GAP, then (Linear+BN+ReLU) x2, then Linear."""
    bhw = B * H * W
    xp = xp_ref[...]                      # (B, H+2, W+2, C) padded NHWC image
    wc = wconv_ref[...]                   # (9, C, FPAD) conv taps, lane-padded

    # Backbone stem: shift-and-matmul convolution (in-kernel "im2col").
    y = jnp.zeros((bhw, FPAD), jnp.float32)
    for t in range(9):                    # static unroll over the 3x3 taps
        di, dj = t // 3, t % 3
        patch = xp[:, di:di + H, dj:dj + W, :]                 # (B, H, W, C)
        y = y + jnp.dot(patch.reshape(bhw, C_IN), wc[t],
                        preferred_element_type=jnp.float32)    # (B*H*W, FPAD)
    y = jnp.maximum(y, 0.0)                                    # ReLU
    # Global average pool as a spatial reduce (replaces the old pool matmul).
    rep = jnp.mean(y.reshape(B, H * W, FPAD), axis=1)          # (B, FPAD)
    rep_ref[...] = rep

    def linear_bn_relu(x, w, b, gamma, beta):
        """nn.Sequential(Linear, BatchNorm1d(train batch stats), ReLU)."""
        z = jnp.dot(x, w, preferred_element_type=jnp.float32) + b
        mean = jnp.mean(z, axis=0, keepdims=True)
        var = jnp.mean(z * z, axis=0, keepdims=True) - mean * mean   # one-pass
        var = jnp.maximum(var, 0.0)                                  # rounding guard
        z_hat = (z - mean) * jax.lax.rsqrt(var + BN_EPS)             # rsqrt -> EUP
        return jnp.maximum(z_hat * gamma + beta, 0.0)

    h1 = linear_bn_relu(rep, w1_ref[...], b1_ref[...], g1_ref[...], be1_ref[...])
    h1_ref[...] = h1
    h2 = linear_bn_relu(h1, w2_ref[...], b2_ref[...], g2_ref[...], be2_ref[...])
    h2_ref[...] = h2
    # Final projector layer: nn.Linear(f[-2], f[-1], bias=False).
    emb_ref[...] = jnp.dot(h2, wf_ref[...], preferred_element_type=jnp.float32)


def _fused_ssl_call(xp, params):
    l1, l2 = params["proj_hidden"]
    args = (xp, params["conv_w"],
            l1["w"], l1["b"], l1["gamma"], l1["beta"],
            l2["w"], l2["b"], l2["gamma"], l2["beta"],
            params["proj_final_w"])
    vmem = lambda: pl.BlockSpec(memory_space=pltpu.MemorySpace.VMEM)
    flops = 2 * B * H * W * 9 * C_IN * FPAD + 3 * (2 * B * FPAD * FPAD)
    bytes_accessed = sum(a.size * 4 for a in args) + 4 * B * FPAD * 4
    # No grid needed at these sizes (<2 MiB live in VMEM on v5e/v6e/v7x); only
    # real-image scales would warrant a row-tiled "parallel" grid over B*H*W.
    return pl.pallas_call(
        _ssl_fused_kernel,
        out_shape=tuple(jax.ShapeDtypeStruct((B, FPAD), jnp.float32)
                        for _ in range(4)),
        in_specs=[vmem() for _ in args],
        out_specs=tuple(vmem() for _ in range(4)),
        cost_estimate=pl.CostEstimate(flops=flops, transcendentals=2 * FPAD,
                                      bytes_accessed=bytes_accessed),
    )(*args)


# --- parameters (pre-padded to 128 lanes; all packing hoisted out of forward) -
def _pad_mat(w):
    return jnp.zeros((FPAD, FPAD), jnp.float32).at[:w.shape[0], :w.shape[1]].set(w)


def _pad_row(v):
    return jnp.zeros((1, FPAD), jnp.float32).at[0, :v.shape[0]].set(v)


def init_params(key):
    """Deterministic synthetic parameters matching the module's shapes."""
    f = list(F_DIMS)                                      # [32, 64, 64, 32]
    kconv, k0, k1, k2 = jax.random.split(key, 4)

    conv_w = jax.random.normal(kconv, (3, 3, C_IN, REPR), jnp.float32) * 0.1
    conv_w_pad = jnp.zeros((9, C_IN, FPAD), jnp.float32)
    conv_w_pad = conv_w_pad.at[:, :, :REPR].set(conv_w.reshape(9, C_IN, REPR))

    hidden = []
    for i, k in zip(range(len(f) - 2), [k0, k1]):
        kw, kb = jax.random.split(k)
        w = jax.random.normal(kw, (f[i], f[i + 1]), jnp.float32) / jnp.sqrt(
            jnp.float32(f[i]))
        b = jax.random.normal(kb, (f[i + 1],), jnp.float32) * 0.01
        hidden.append({
            "w": _pad_mat(w),
            "b": _pad_row(b),
            "gamma": jnp.ones((1, FPAD), jnp.float32),    # PyTorch BN default init
            "beta": jnp.zeros((1, FPAD), jnp.float32),
        })

    wf = jax.random.normal(k2, (f[-2], f[-1]), jnp.float32) / jnp.sqrt(
        jnp.float32(f[-2]))
    return {
        "conv_w": conv_w_pad,
        "proj_hidden": hidden,
        "proj_final_w": _pad_mat(wf),
    }


# --- forward (mirrors SSLNetwork.forward, loss='barlow') ----------------------
def ssl_forward(params, x_nchw, embedding=False, predictor=False):
    x = jnp.transpose(x_nchw, (0, 2, 3, 1)).astype(jnp.float32)   # NCHW -> NHWC
    xp = jnp.pad(x, ((0, 0), (1, 1), (1, 1), (0, 0)))             # pad=1 for 3x3

    rep_p, h1_p, h2_p, emb_p = _fused_ssl_call(xp, params)
    representation = rep_p[:, :F_DIMS[0]]
    if embedding:
        return representation

    h1 = h1_p[:, :F_DIMS[1]]
    h2 = h2_p[:, :F_DIMS[2]]
    embeddings = emb_p[:, :F_DIMS[3]]

    # BatchNorm runs in training mode (batch stats), so the detached re-pass in
    # the PyTorch forward yields numerically identical activations; keep
    # stop_gradient copies of the values already computed in the fused kernel.
    list_outputs = [jax.lax.stop_gradient(representation),
                    jax.lax.stop_gradient(h1),
                    jax.lax.stop_gradient(h2),
                    jax.lax.stop_gradient(embeddings)]

    # TODO(synk): loss == 'byol' with predictor=True would apply another MLP
    # here; not exercised for loss='barlow'.
    return embeddings, list_outputs


if __name__ == "__main__":
    key = jax.random.PRNGKey(0)
    kp, kx = jax.random.split(key)
    params = init_params(kp)
    x = jax.random.normal(kx, (B, C_IN, H, W), jnp.float32)   # NCHW, like PyTorch

    fwd = jax.jit(functools.partial(ssl_forward, embedding=False, predictor=False))
    embeddings, list_outputs = fwd(params, x)
    jax.block_until_ready(embeddings)
    jax.block_until_ready(list_outputs)

    assert embeddings.shape == (B, F_DIMS[-1])
    assert len(list_outputs) == 1 + 3        # representation + 3 projector layers
    assert list_outputs[0].shape == (B, REPR)
    print("KERNEL_OK")
</pallas_src>

<mosaic_0001>
module attributes {stable_mosaic.version = 11 : i64} {
  func.func @_ssl_fused_kernel(%arg0: memref<8x18x18x3xf32, #tpu.memory_space<vmem>>, %arg1: memref<9x3x128xf32, #tpu.memory_space<vmem>>, %arg2: memref<128x128xf32, #tpu.memory_space<vmem>>, %arg3: memref<1x128xf32, #tpu.memory_space<vmem>>, %arg4: memref<1x128xf32, #tpu.memory_space<vmem>>, %arg5: memref<1x128xf32, #tpu.memory_space<vmem>>, %arg6: memref<128x128xf32, #tpu.memory_space<vmem>>, %arg7: memref<1x128xf32, #tpu.memory_space<vmem>>, %arg8: memref<1x128xf32, #tpu.memory_space<vmem>>, %arg9: memref<1x128xf32, #tpu.memory_space<vmem>>, %arg10: memref<128x128xf32, #tpu.memory_space<vmem>>, %arg11: memref<8x128xf32, #tpu.memory_space<vmem>>, %arg12: memref<8x128xf32, #tpu.memory_space<vmem>>, %arg13: memref<8x128xf32, #tpu.memory_space<vmem>>, %arg14: memref<8x128xf32, #tpu.memory_space<vmem>>) attributes {dimension_semantics = [], scalar_prefetch = 0 : i64, scratch_operands = 0 : i64, tpu.core_type = #tpu.core_type<tc>} {
    %c0 = arith.constant 0 : index
    %c0_0 = arith.constant 0 : index
    %c0_1 = arith.constant 0 : index
    %c0_2 = arith.constant 0 : index
    %0 = vector.load %arg0[%c0, %c0_0, %c0_1, %c0_2] : memref<8x18x18x3xf32, #tpu.memory_space<vmem>>, vector<8x18x18x3xf32>
    %c0_3 = arith.constant 0 : index
    %c0_4 = arith.constant 0 : index
    %c0_5 = arith.constant 0 : index
    %1 = vector.load %arg1[%c0_3, %c0_4, %c0_5] : memref<9x3x128xf32, #tpu.memory_space<vmem>>, vector<9x3x128xf32>
    %cst = arith.constant 0.000000e+00 : f32
    %2 = vector.broadcast %cst : f32 to vector<2048x128xf32>
    %3 = vector.extract_strided_slice %0 {offsets = [0, 0, 0, 0], sizes = [8, 16, 16, 3], strides = [1, 1, 1, 1]} : vector<8x18x18x3xf32> to vector<8x16x16x3xf32>
    %4 = vector.shape_cast %3 : vector<8x16x16x3xf32> to vector<2048x3xf32>
    %5 = vector.extract_strided_slice %1 {offsets = [0, 0, 0], sizes = [1, 3, 128], strides = [1, 1, 1]} : vector<9x3x128xf32> to vector<1x3x128xf32>
    %6 = vector.shape_cast %5 : vector<1x3x128xf32> to vector<3x128xf32>
    %cst_6 = arith.constant dense<0.000000e+00> : vector<2048x128xf32>
    %7 = tpu.matmul %4, %6, %cst_6 {dimension_numbers = #tpu.dot_dimension_numbers<[1], [0], [0], [1], [0, 0, 1, 1], [], []>} : vector<2048x3xf32>, vector<3x128xf32>, vector<2048x128xf32> -> vector<2048x128xf32>
    %8 = arith.addf %2, %7 : vector<2048x128xf32>
    %9 = vector.extract_strided_slice %0 {offsets = [0, 0, 1, 0], sizes = [8, 16, 16, 3], strides = [1, 1, 1, 1]} : vector<8x18x18x3xf32> to vector<8x16x16x3xf32>
    %10 = vector.shape_cast %9 : vector<8x16x16x3xf32> to vector<2048x3xf32>
    %11 = vector.extract_strided_slice %1 {offsets = [1, 0, 0], sizes = [1, 3, 128], strides = [1, 1, 1]} : vector<9x3x128xf32> to vector<1x3x128xf32>
    %12 = vector.shape_cast %11 : vector<1x3x128xf32> to vector<3x128xf32>
    %cst_7 = arith.constant dense<0.000000e+00> : vector<2048x128xf32>
    %13 = tpu.matmul %10, %12, %cst_7 {dimension_numbers = #tpu.dot_dimension_numbers<[1], [0], [0], [1], [0, 0, 1, 1], [], []>} : vector<2048x3xf32>, vector<3x128xf32>, vector<2048x128xf32> -> vector<2048x128xf32>
    %14 = arith.addf %8, %13 : vector<2048x128xf32>
    %15 = vector.extract_strided_slice %0 {offsets = [0, 0, 2, 0], sizes = [8, 16, 16, 3], strides = [1, 1, 1, 1]} : vector<8x18x18x3xf32> to vector<8x16x16x3xf32>
    %16 = vector.shape_cast %15 : vector<8x16x16x3xf32> to vector<2048x3xf32>
    %17 = vector.extract_strided_slice %1 {offsets = [2, 0, 0], sizes = [1, 3, 128], strides = [1, 1, 1]} : vector<9x3x128xf32> to vector<1x3x128xf32>
    %18 = vector.shape_cast %17 : vector<1x3x128xf32> to vector<3x128xf32>
    %cst_8 = arith.constant dense<0.000000e+00> : vector<2048x128xf32>
    %19 = tpu.matmul %16, %18, %cst_8 {dimension_numbers = #tpu.dot_dimension_numbers<[1], [0], [0], [1], [0, 0, 1, 1], [], []>} : vector<2048x3xf32>, vector<3x128xf32>, vector<2048x128xf32> -> vector<2048x128xf32>
    %20 = arith.addf %14, %19 : vector<2048x128xf32>
    %21 = vector.extract_strided_slice %0 {offsets = [0, 1, 0, 0], sizes = [8, 16, 16, 3], strides = [1, 1, 1, 1]} : vector<8x18x18x3xf32> to vector<8x16x16x3xf32>
    %22 = vector.shape_cast %21 : vector<8x16x16x3xf32> to vector<2048x3xf32>
    %23 = vector.extract_strided_slice %1 {offsets = [3, 0, 0], sizes = [1, 3, 128], strides = [1, 1, 1]} : vector<9x3x128xf32> to vector<1x3x128xf32>
    %24 = vector.shape_cast %23 : vector<1x3x128xf32> to vector<3x128xf32>
    %cst_9 = arith.constant dense<0.000000e+00> : vector<2048x128xf32>
    %25 = tpu.matmul %22, %24, %cst_9 {dimension_numbers = #tpu.dot_dimension_numbers<[1], [0], [0], [1], [0, 0, 1, 1], [], []>} : vector<2048x3xf32>, vector<3x128xf32>, vector<2048x128xf32> -> vector<2048x128xf32>
    %26 = arith.addf %20, %25 : vector<2048x128xf32>
    %27 = vector.extract_strided_slice %0 {offsets = [0, 1, 1, 0], sizes = [8, 16, 16, 3], strides = [1, 1, 1, 1]} : vector<8x18x18x3xf32> to vector<8x16x16x3xf32>
    %28 = vector.shape_cast %27 : vector<8x16x16x3xf32> to vector<2048x3xf32>
    %29 = vector.extract_strided_slice %1 {offsets = [4, 0, 0], sizes = [1, 3, 128], strides = [1, 1, 1]} : vector<9x3x128xf32> to vector<1x3x128xf32>
    %30 = vector.shape_cast %29 : vector<1x3x128xf32> to vector<3x128xf32>
    %cst_10 = arith.constant dense<0.000000e+00> : vector<2048x128xf32>
    %31 = tpu.matmul %28, %30, %cst_10 {dimension_numbers = #tpu.dot_dimension_numbers<[1], [0], [0], [1], [0, 0, 1, 1], [], []>} : vector<2048x3xf32>, vector<3x128xf32>, vector<2048x128xf32> -> vector<2048x128xf32>
    %32 = arith.addf %26, %31 : vector<2048x128xf32>
    %33 = vector.extract_strided_slice %0 {offsets = [0, 1, 2, 0], sizes = [8, 16, 16, 3], strides = [1, 1, 1, 1]} : vector<8x18x18x3xf32> to vector<8x16x16x3xf32>
    %34 = vector.shape_cast %33 : vector<8x16x16x3xf32> to vector<2048x3xf32>
    %35 = vector.extract_strided_slice %1 {offsets = [5, 0, 0], sizes = [1, 3, 128], strides = [1, 1, 1]} : vector<9x3x128xf32> to vector<1x3x128xf32>
    %36 = vector.shape_cast %35 : vector<1x3x128xf32> to vector<3x128xf32>
    %cst_11 = arith.constant dense<0.000000e+00> : vector<2048x128xf32>
    %37 = tpu.matmul %34, %36, %cst_11 {dimension_numbers = #tpu.dot_dimension_numbers<[1], [0], [0], [1], [0, 0, 1, 1], [], []>} : vector<2048x3xf32>, vector<3x128xf32>, vector<2048x128xf32> -> vector<2048x128xf32>
    %38 = arith.addf %32, %37 : vector<2048x128xf32>
    %39 = vector.extract_strided_slice %0 {offsets = [0, 2, 0, 0], sizes = [8, 16, 16, 3], strides = [1, 1, 1, 1]} : vector<8x18x18x3xf32> to vector<8x16x16x3xf32>
    %40 = vector.shape_cast %39 : vector<8x16x16x3xf32> to vector<2048x3xf32>
    %41 = vector.extract_strided_slice %1 {offsets = [6, 0, 0], sizes = [1, 3, 128], strides = [1, 1, 1]} : vector<9x3x128xf32> to vector<1x3x128xf32>
    %42 = vector.shape_cast %41 : vector<1x3x128xf32> to vector<3x128xf32>
    %cst_12 = arith.constant dense<0.000000e+00> : vector<2048x128xf32>
    %43 = tpu.matmul %40, %42, %cst_12 {dimension_numbers = #tpu.dot_dimension_numbers<[1], [0], [0], [1], [0, 0, 1, 1], [], []>} : vector<2048x3xf32>, vector<3x128xf32>, vector<2048x128xf32> -> vector<2048x128xf32>
    %44 = arith.addf %38, %43 : vector<2048x128xf32>
    %45 = vector.extract_strided_slice %0 {offsets = [0, 2, 1, 0], sizes = [8, 16, 16, 3], strides = [1, 1, 1, 1]} : vector<8x18x18x3xf32> to vector<8x16x16x3xf32>
    %46 = vector.shape_cast %45 : vector<8x16x16x3xf32> to vector<2048x3xf32>
    %47 = vector.extract_strided_slice %1 {offsets = [7, 0, 0], sizes = [1, 3, 128], strides = [1, 1, 1]} : vector<9x3x128xf32> to vector<1x3x128xf32>
    %48 = vector.shape_cast %47 : vector<1x3x128xf32> to vector<3x128xf32>
    %cst_13 = arith.constant dense<0.000000e+00> : vector<2048x128xf32>
    %49 = tpu.matmul %46, %48, %cst_13 {dimension_numbers = #tpu.dot_dimension_numbers<[1], [0], [0], [1], [0, 0, 1, 1], [], []>} : vector<2048x3xf32>, vector<3x128xf32>, vector<2048x128xf32> -> vector<2048x128xf32>
    %50 = arith.addf %44, %49 : vector<2048x128xf32>
    %51 = vector.extract_strided_slice %0 {offsets = [0, 2, 2, 0], sizes = [8, 16, 16, 3], strides = [1, 1, 1, 1]} : vector<8x18x18x3xf32> to vector<8x16x16x3xf32>
    %52 = vector.shape_cast %51 : vector<8x16x16x3xf32> to vector<2048x3xf32>
    %53 = vector.extract_strided_slice %1 {offsets = [8, 0, 0], sizes = [1, 3, 128], strides = [1, 1, 1]} : vector<9x3x128xf32> to vector<1x3x128xf32>
    %54 = vector.shape_cast %53 : vector<1x3x128xf32> to vector<3x128xf32>
    %cst_14 = arith.constant dense<0.000000e+00> : vector<2048x128xf32>
    %55 = tpu.matmul %52, %54, %cst_14 {dimension_numbers = #tpu.dot_dimension_numbers<[1], [0], [0], [1], [0, 0, 1, 1], [], []>} : vector<2048x3xf32>, vector<3x128xf32>, vector<2048x128xf32> -> vector<2048x128xf32>
    %56 = arith.addf %50, %55 : vector<2048x128xf32>
    %cst_15 = arith.constant 0.000000e+00 : f32
    %57 = vector.broadcast %cst_15 : f32 to vector<2048x128xf32>
    %58 = arith.maximumf %56, %57 : vector<2048x128xf32>
    %59 = vector.shape_cast %58 : vector<2048x128xf32> to vector<8x256x128xf32>
    %cst_16 = arith.constant dense<0.000000e+00> : vector<8x128xf32>
    %60 = vector.multi_reduction <add>, %59, %cst_16 [1] : vector<8x256x128xf32> to vector<8x128xf32>
    %cst_17 = arith.constant 2.560000e+02 : f32
    %61 = vector.broadcast %cst_17 : f32 to vector<8x128xf32>
    %62 = arith.divf %60, %61 : vector<8x128xf32>
    %c0_18 = arith.constant 0 : index
    %c0_19 = arith.constant 0 : index
    %63 = vector.load %arg11[%c0_18, %c0_19] : memref<8x128xf32, #tpu.memory_space<vmem>>, vector<8x128xf32>
    tpu.vector_store %arg11[%c0_18, %c0_19], %62 {strides = array<i32>} : memref<8x128xf32, #tpu.memory_space<vmem>>, vector<8x128xf32>,
    %c0_20 = arith.constant 0 : index
    %c0_21 = arith.constant 0 : index
    %64 = vector.load %arg2[%c0_20, %c0_21] : memref<128x128xf32, #tpu.memory_space<vmem>>, vector<128x128xf32>
    %c0_22 = arith.constant 0 : index
    %c0_23 = arith.constant 0 : index
    %65 = vector.load %arg3[%c0_22, %c0_23] : memref<1x128xf32, #tpu.memory_space<vmem>>, vector<1x128xf32>
    %c0_24 = arith.constant 0 : index
    %c0_25 = arith.constant 0 : index
    %66 = vector.load %arg4[%c0_24, %c0_25] : memref<1x128xf32, #tpu.memory_space<vmem>>, vector<1x128xf32>
    %c0_26 = arith.constant 0 : index
    %c0_27 = arith.constant 0 : index
    %67 = vector.load %arg5[%c0_26, %c0_27] : memref<1x128xf32, #tpu.memory_space<vmem>>, vector<1x128xf32>
    %cst_28 = arith.constant dense<0.000000e+00> : vector<8x128xf32>
    %68 = tpu.matmul %62, %64, %cst_28 {dimension_numbers = #tpu.dot_dimension_numbers<[1], [0], [0], [1], [0, 0, 1, 1], [], []>} : vector<8x128xf32>, vector<128x128xf32>, vector<8x128xf32> -> vector<8x128xf32>
    %69 = vector.broadcast %65 : vector<1x128xf32> to vector<8x128xf32>
    %70 = arith.addf %68, %69 : vector<8x128xf32>
    %cst_29 = arith.constant dense<0.000000e+00> : vector<128xf32>
    %71 = vector.multi_reduction <add>, %70, %cst_29 [0] : vector<8x128xf32> to vector<128xf32>
    %72 = vector.shape_cast %71 : vector<128xf32> to vector<1x128xf32>
    %cst_30 = arith.constant 8.000000e+00 : f32
    %73 = vector.broadcast %cst_30 : f32 to vector<1x128xf32>
    %74 = arith.divf %72, %73 : vector<1x128xf32>
    %75 = arith.mulf %70, %70 : vector<8x128xf32>
    %cst_31 = arith.constant dense<0.000000e+00> : vector<128xf32>
    %76 = vector.multi_reduction <add>, %75, %cst_31 [0] : vector<8x128xf32> to vector<128xf32>
    %77 = vector.shape_cast %76 : vector<128xf32> to vector<1x128xf32>
    %cst_32 = arith.constant 8.000000e+00 : f32
    %78 = vector.broadcast %cst_32 : f32 to vector<1x128xf32>
    %79 = arith.divf %77, %78 : vector<1x128xf32>
    %80 = arith.mulf %74, %74 : vector<1x128xf32>
    %81 = arith.subf %79, %80 : vector<1x128xf32>
    %cst_33 = arith.constant 0.000000e+00 : f32
    %82 = vector.broadcast %cst_33 : f32 to vector<1x128xf32>
    %83 = arith.maximumf %81, %82 : vector<1x128xf32>
    %84 = vector.broadcast %74 : vector<1x128xf32> to vector<8x128xf32>
    %85 = arith.subf %70, %84 : vector<8x128xf32>
    %cst_34 = arith.constant 9.99999974E-6 : f32
    %86 = vector.broadcast %cst_34 : f32 to vector<1x128xf32>
    %87 = arith.addf %83, %86 : vector<1x128xf32>
    %88 = math.rsqrt %87 : vector<1x128xf32>
    %89 = vector.broadcast %88 : vector<1x128xf32> to vector<8x128xf32>
    %90 = arith.mulf %85, %89 : vector<8x128xf32>
    %91 = vector.broadcast %66 : vector<1x128xf32> to vector<8x128xf32>
    %92 = arith.mulf %90, %91 : vector<8x128xf32>
    %93 = vector.broadcast %67 : vector<1x128xf32> to vector<8x128xf32>
    %94 = arith.addf %92, %93 : vector<8x128xf32>
    %cst_35 = arith.constant 0.000000e+00 : f32
    %95 = vector.broadcast %cst_35 : f32 to vector<8x128xf32>
    %96 = arith.maximumf %94, %95 : vector<8x128xf32>
    %c0_36 = arith.constant 0 : index
    %c0_37 = arith.constant 0 : index
    %97 = vector.load %arg12[%c0_36, %c0_37] : memref<8x128xf32, #tpu.memory_space<vmem>>, vector<8x128xf32>
    tpu.vector_store %arg12[%c0_36, %c0_37], %96 {strides = array<i32>} : memref<8x128xf32, #tpu.memory_space<vmem>>, vector<8x128xf32>,
    %c0_38 = arith.constant 0 : index
    %c0_39 = arith.constant 0 : index
    %98 = vector.load %arg6[%c0_38, %c0_39] : memref<128x128xf32, #tpu.memory_space<vmem>>, vector<128x128xf32>
    %c0_40 = arith.constant 0 : index
    %c0_41 = arith.constant 0 : index
    %99 = vector.load %arg7[%c0_40, %c0_41] : memref<1x128xf32, #tpu.memory_space<vmem>>, vector<1x128xf32>
    %c0_42 = arith.constant 0 : index
    %c0_43 = arith.constant 0 : index
    %100 = vector.load %arg8[%c0_42, %c0_43] : memref<1x128xf32, #tpu.memory_space<vmem>>, vector<1x128xf32>
    %c0_44 = arith.constant 0 : index
    %c0_45 = arith.constant 0 : index
    %101 = vector.load %arg9[%c0_44, %c0_45] : memref<1x128xf32, #tpu.memory_space<vmem>>, vector<1x128xf32>
    %cst_46 = arith.constant dense<0.000000e+00> : vector<8x128xf32>
    %102 = tpu.matmul %96, %98, %cst_46 {dimension_numbers = #tpu.dot_dimension_numbers<[1], [0], [0], [1], [0, 0, 1, 1], [], []>} : vector<8x128xf32>, vector<128x128xf32>, vector<8x128xf32> -> vector<8x128xf32>
    %103 = vector.broadcast %99 : vector<1x128xf32> to vector<8x128xf32>
    %104 = arith.addf %102, %103 : vector<8x128xf32>
    %cst_47 = arith.constant dense<0.000000e+00> : vector<128xf32>
    %105 = vector.multi_reduction <add>, %104, %cst_47 [0] : vector<8x128xf32> to vector<128xf32>
    %106 = vector.shape_cast %105 : vector<128xf32> to vector<1x128xf32>
    %cst_48 = arith.constant 8.000000e+00 : f32
    %107 = vector.broadcast %cst_48 : f32 to vector<1x128xf32>
    %108 = arith.divf %106, %107 : vector<1x128xf32>
    %109 = arith.mulf %104, %104 : vector<8x128xf32>
    %cst_49 = arith.constant dense<0.000000e+00> : vector<128xf32>
    %110 = vector.multi_reduction <add>, %109, %cst_49 [0] : vector<8x128xf32> to vector<128xf32>
    %111 = vector.shape_cast %110 : vector<128xf32> to vector<1x128xf32>
    %cst_50 = arith.constant 8.000000e+00 : f32
    %112 = vector.broadcast %cst_50 : f32 to vector<1x128xf32>
    %113 = arith.divf %111, %112 : vector<1x128xf32>
    %114 = arith.mulf %108, %108 : vector<1x128xf32>
    %115 = arith.subf %113, %114 : vector<1x128xf32>
    %cst_51 = arith.constant 0.000000e+00 : f32
    %116 = vector.broadcast %cst_51 : f32 to vector<1x128xf32>
    %117 = arith.maximumf %115, %116 : vector<1x128xf32>
    %118 = vector.broadcast %108 : vector<1x128xf32> to vector<8x128xf32>
    %119 = arith.subf %104, %118 : vector<8x128xf32>
    %cst_52 = arith.constant 9.99999974E-6 : f32
    %120 = vector.broadcast %cst_52 : f32 to vector<1x128xf32>
    %121 = arith.addf %117, %120 : vector<1x128xf32>
    %122 = math.rsqrt %121 : vector<1x128xf32>
    %123 = vector.broadcast %122 : vector<1x128xf32> to vector<8x128xf32>
    %124 = arith.mulf %119, %123 : vector<8x128xf32>
    %125 = vector.broadcast %100 : vector<1x128xf32> to vector<8x128xf32>
    %126 = arith.mulf %124, %125 : vector<8x128xf32>
    %127 = vector.broadcast %101 : vector<1x128xf32> to vector<8x128xf32>
    %128 = arith.addf %126, %127 : vector<8x128xf32>
    %cst_53 = arith.constant 0.000000e+00 : f32
    %129 = vector.broadcast %cst_53 : f32 to vector<8x128xf32>
    %130 = arith.maximumf %128, %129 : vector<8x128xf32>
    %c0_54 = arith.constant 0 : index
    %c0_55 = arith.constant 0 : index
    %131 = vector.load %arg13[%c0_54, %c0_55] : memref<8x128xf32, #tpu.memory_space<vmem>>, vector<8x128xf32>
    tpu.vector_store %arg13[%c0_54, %c0_55], %130 {strides = array<i32>} : memref<8x128xf32, #tpu.memory_space<vmem>>, vector<8x128xf32>,
    %c0_56 = arith.constant 0 : index
    %c0_57 = arith.constant 0 : index
    %132 = vector.load %arg10[%c0_56, %c0_57] : memref<128x128xf32, #tpu.memory_space<vmem>>, vector<128x128xf32>
    %cst_58 = arith.constant dense<0.000000e+00> : vector<8x128xf32>
    %133 = tpu.matmul %130, %132, %cst_58 {dimension_numbers = #tpu.dot_dimension_numbers<[1], [0], [0], [1], [0, 0, 1, 1], [], []>} : vector<8x128xf32>, vector<128x128xf32>, vector<8x128xf32> -> vector<8x128xf32>
    %c0_59 = arith.constant 0 : index
    %c0_60 = arith.constant 0 : index
    %134 = vector.load %arg14[%c0_59, %c0_60] : memref<8x128xf32, #tpu.memory_space<vmem>>, vector<8x128xf32>
    tpu.vector_store %arg14[%c0_59, %c0_60], %133 {strides = array<i32>} : memref<8x128xf32, #tpu.memory_space<vmem>>, vector<8x128xf32>,
    return
  }
}

</mosaic_0001>

<llo_original>
// kernel: ssl_forward.1
$region0: #{ssl_forward.1}
  #allocation0 [shape = 'u32[]', space=smem, size = 0x4, offset = 0x4, fixed_abs, tag = 'smem constant byte address 0x4 - core index']
  #allocation1 [shape = 'u32[72,128]{1,0:T(1,128)}', space=vmem, size = 0x9000, scoped, tag = 'internal scratch']
  %s0 = inlined_call_operand.vmem [shape: f32[8,18,18,3], index: 0, kind: input, shape index: {}]
  %s1 = inlined_call_operand.vmem [shape: f32[9,3,128], index: 1, kind: input, shape index: {}]
  %s2 = inlined_call_operand.vmem [shape: f32[128,128], index: 2, kind: input, shape index: {}]
  %s3 = inlined_call_operand.vmem [shape: f32[1,128], index: 3, kind: input, shape index: {}]
  %s4 = inlined_call_operand.vmem [shape: f32[1,128], index: 4, kind: input, shape index: {}]
  %s5 = inlined_call_operand.vmem [shape: f32[1,128], index: 5, kind: input, shape index: {}]
  %s6 = inlined_call_operand.vmem [shape: f32[128,128], index: 6, kind: input, shape index: {}]
  %s7 = inlined_call_operand.vmem [shape: f32[1,128], index: 7, kind: input, shape index: {}]
  %s8 = inlined_call_operand.vmem [shape: f32[1,128], index: 8, kind: input, shape index: {}]
  %s9 = inlined_call_operand.vmem [shape: f32[1,128], index: 9, kind: input, shape index: {}]
  %s10 = inlined_call_operand.vmem [shape: f32[128,128], index: 10, kind: input, shape index: {}]
  %s11 = inlined_call_operand.hbm [shape: f32[8,128], index: 11, kind: output, shape index: {0}]
  %s12 = inlined_call_operand.hbm [shape: f32[8,128], index: 12, kind: output, shape index: {1}]
  %s13 = inlined_call_operand.hbm [shape: f32[8,128], index: 13, kind: output, shape index: {2}]
  %s14 = inlined_call_operand.vmem [shape: f32[8,128], index: 14, kind: output, shape index: {3}]
  %15 = xla_tuple %s11, %s12, %s13, %s14
  %s16 = sld [smem:[#allocation0]]
  $region78: #{ssl_forward.1} parent=0
    _
  %s18 = ssub.s32 1, %s16
  %s19 = scalar_select 0, %s18, %s16
  $region1: #{ssl_forward.1} parent=0
    #allocation2 [shape = 'u8[4096]{0}', space=vmem, size = 0x1000, scoped, tag = 'output window, operand 0, single buffered']
    #allocation3 [shape = 's32[1]{0}', space=sflag, size = 0x4, scoped, tag = 'scoped memory for ssl_forward.1']
    #allocation4 [shape = 'u8[4096]{0}', space=vmem, size = 0x1000, scoped, tag = 'output window, operand 1, single buffered']
    #allocation5 [shape = 's32[1]{0}', space=sflag, size = 0x4, scoped, tag = 'scoped memory for ssl_forward.1']
    #allocation6 [shape = 'u8[4096]{0}', space=vmem, size = 0x1000, scoped, tag = 'output window, operand 2, single buffered']
    %20 = vsyncpa [#allocation3], 0
    %21 = vsyncpa [#allocation5], 0
    // Predicated region
    $region2: #{ssl_forward.1} parent=1 // pred_check
      _
    $region3: #{ssl_forward.1} parent=1 // pred_check_branch
      %23 = sbr.rel (0) target = $region5
    $region4: #{ssl_forward.1} parent=1 // pred_region
      _
    $region5: #{ssl_forward.1} parent=1 // pred_fallthru
      _
    // Predicated region
    $region6: #{ssl_forward.1} parent=1 // pred_check
      _
    $region7: #{ssl_forward.1} parent=1 // pred_check_branch
      %25 = sbr.rel (0) target = $region9
    $region8: #{ssl_forward.1} parent=1 // pred_region
      _
    $region9: #{ssl_forward.1} parent=1 // pred_fallthru
      _
    // Predicated region
    $region10: #{ssl_forward.1} parent=1 // pred_check
      _
    $region11: #{ssl_forward.1} parent=1 // pred_check_branch
      %27 = sbr.rel (0) target = $region13
    $region12: #{ssl_forward.1} parent=1 // pred_region
      _
    $region13: #{ssl_forward.1} parent=1 // pred_fallthru
      _
    // Predicated region
    $region14: #{ssl_forward.1} parent=1 // pred_check
      _
    $region15: #{ssl_forward.1} parent=1 // pred_check_branch
      %29 = sbr.rel (0) target = $region17
    $region16: #{ssl_forward.1} parent=1 // pred_region
      _
    $region17: #{ssl_forward.1} parent=1 // pred_fallthru
      _
    // Predicated region
    $region18: #{ssl_forward.1} parent=1 // pred_check
      _
    $region19: #{ssl_forward.1} parent=1 // pred_check_branch
      %31 = sbr.rel (0) target = $region21
    $region20: #{ssl_forward.1} parent=1 // pred_region
      _
    $region21: #{ssl_forward.1} parent=1 // pred_fallthru
      _
    // Predicated region
    $region22: #{ssl_forward.1} parent=1 // pred_check
      _
    $region23: #{ssl_forward.1} parent=1 // pred_check_branch
      %33 = sbr.rel (0) target = $region25
    $region24: #{ssl_forward.1} parent=1 // pred_region
      _
    $region25: #{ssl_forward.1} parent=1 // pred_fallthru
      _
    // Predicated region
    $region26: #{ssl_forward.1} parent=1 // pred_check
      _
    $region27: #{ssl_forward.1} parent=1 // pred_check_branch
      %35 = sbr.rel (0) target = $region29
    $region28: #{ssl_forward.1} parent=1 // pred_region
      _
    $region29: #{ssl_forward.1} parent=1 // pred_fallthru
      _
    // Predicated region
    $region30: #{ssl_forward.1} parent=1 // pred_check
      _
    $region31: #{ssl_forward.1} parent=1 // pred_check_branch
      %37 = sbr.rel (0) target = $region33
    $region32: #{ssl_forward.1} parent=1 // pred_region
      _
    $region33: #{ssl_forward.1} parent=1 // pred_fallthru
      _
    // Predicated region
    $region34: #{ssl_forward.1} parent=1 // pred_check
      _
    $region35: #{ssl_forward.1} parent=1 // pred_check_branch
      %39 = sbr.rel (0) target = $region37
    $region36: #{ssl_forward.1} parent=1 // pred_region
      _
    $region37: #{ssl_forward.1} parent=1 // pred_fallthru
      _
    // Predicated region
    $region38: #{ssl_forward.1} parent=1 // pred_check
      _
    $region39: #{ssl_forward.1} parent=1 // pred_check_branch
      %41 = sbr.rel (0) target = $region41
    $region40: #{ssl_forward.1} parent=1 // pred_region
      _
    $region41: #{ssl_forward.1} parent=1 // pred_fallthru
      _
    // Predicated region
    $region42: #{ssl_forward.1} parent=1 // pred_check
      _
    $region43: #{ssl_forward.1} parent=1 // pred_check_branch
      %43 = sbr.rel (0) target = $region45
    $region44: #{ssl_forward.1} parent=1 // pred_region
      _
    $region45: #{ssl_forward.1} parent=1 // pred_fallthru
      _
    %v44 = vld [vmem:[%s0] sm:$0xff]
    %v45 = vld [vmem:[%s0 + $0x8] sm:$0xff]
    %v46 = vld [vmem:[%s0 + $0x10] sm:$0x3]
    %v47 = vld [vmem:[%s0 + $0x18] sm:$0xff]
    %v48 = vld [vmem:[%s0 + $0x20] sm:$0xff]
    %v49 = vld [vmem:[%s0 + $0x28] sm:$0x3]
    %v50 = vld [vmem:[%s0 + $0x30] sm:$0xff]
    %v51 = vld [vmem:[%s0 + $0x38] sm:$0xff]
    %v52 = vld [vmem:[%s0 + $0x40] sm:$0x3]
    %v53 = vld [vmem:[%s0 + $0x48] sm:$0xff]
    %v54 = vld [vmem:[%s0 + $0x50] sm:$0xff]
    %v55 = vld [vmem:[%s0 + $0x58] sm:$0x3]
    %v56 = vld [vmem:[%s0 + $0x60] sm:$0xff]
    %v57 = vld [vmem:[%s0 + $0x68] sm:$0xff]
    %v58 = vld [vmem:[%s0 + $0x70] sm:$0x3]
    %v59 = vld [vmem:[%s0 + $0x78] sm:$0xff]
    %v60 = vld [vmem:[%s0 + $0x80] sm:$0xff]
    %v61 = vld [vmem:[%s0 + $0x88] sm:$0x3]
    %v62 = vld [vmem:[%s0 + $0x90] sm:$0xff]
    %v63 = vld [vmem:[%s0 + $0x98] sm:$0xff]
    %v64 = vld [vmem:[%s0 + $0xa0] sm:$0x3]
    %v65 = vld [vmem:[%s0 + $0xa8] sm:$0xff]
    %v66 = vld [vmem:[%s0 + $0xb0] sm:$0xff]
    %v67 = vld [vmem:[%s0 + $0xb8] sm:$0x3]
    %v68 = vld [vmem:[%s0 + $0xc0] sm:$0xff]
    %v69 = vld [vmem:[%s0 + $0xc8] sm:$0xff]
    %v70 = vld [vmem:[%s0 + $0xd0] sm:$0x3]
    %v71 = vld [vmem:[%s0 + $0xd8] sm:$0xff]
    %v72 = vld [vmem:[%s0 + $0xe0] sm:$0xff]
    %v73 = vld [vmem:[%s0 + $0xe8] sm:$0x3]
    %v74 = vld [vmem:[%s0 + $0xf0] sm:$0xff]
    %v75 = vld [vmem:[%s0 + $0xf8] sm:$0xff]
    %v76 = vld [vmem:[%s0 + $0x100] sm:$0x3]
    %v77 = vld [vmem:[%s0 + $0x108] sm:$0xff]
    %v78 = vld [vmem:[%s0 + $0x110] sm:$0xff]
    %v79 = vld [vmem:[%s0 + $0x118] sm:$0x3]
    %v80 = vld [vmem:[%s0 + $0x120] sm:$0xff]
    %v81 = vld [vmem:[%s0 + $0x128] sm:$0xff]
    %v82 = vld [vmem:[%s0 + $0x130] sm:$0x3]
    %v83 = vld [vmem:[%s0 + $0x138] sm:$0xff]
    %v84 = vld [vmem:[%s0 + $0x140] sm:$0xff]
    %v85 = vld [vmem:[%s0 + $0x148] sm:$0x3]
    %v86 = vld [vmem:[%s0 + $0x150] sm:$0xff]
    %v87 = vld [vmem:[%s0 + $0x158] sm:$0xff]
    %v88 = vld [vmem:[%s0 + $0x160] sm:$0x3]
    %v89 = vld [vmem:[%s0 + $0x168] sm:$0xff]
    %v90 = vld [vmem:[%s0 + $0x170] sm:$0xff]
    %v91 = vld [vmem:[%s0 + $0x178] sm:$0x3]
    %v92 = vld [vmem:[%s0 + $0x180] sm:$0xff]
    %v93 = vld [vmem:[%s0 + $0x188] sm:$0xff]
    %v94 = vld [vmem:[%s0 + $0x190] sm:$0x3]
    %v95 = vld [vmem:[%s0 + $0x198] sm:$0xff]
    %v96 = vld [vmem:[%s0 + $0x1a0] sm:$0xff]
    %v97 = vld [vmem:[%s0 + $0x1a8] sm:$0x3]
    %v98 = vld [vmem:[%s0 + $0x1b0] sm:$0xff]
    %v99 = vld [vmem:[%s0 + $0x1b8] sm:$0xff]
    %v100 = vld [vmem:[%s0 + $0x1c0] sm:$0x3]
    %v101 = vld [vmem:[%s0 + $0x1c8] sm:$0xff]
    %v102 = vld [vmem:[%s0 + $0x1d0] sm:$0xff]
    %v103 = vld [vmem:[%s0 + $0x1d8] sm:$0x3]
    %v104 = vld [vmem:[%s0 + $0x1e0] sm:$0xff]
    %v105 = vld [vmem:[%s0 + $0x1e8] sm:$0xff]
    %v106 = vld [vmem:[%s0 + $0x1f0] sm:$0x3]
    %v107 = vld [vmem:[%s0 + $0x1f8] sm:$0xff]
    %v108 = vld [vmem:[%s0 + $0x200] sm:$0xff]
    %v109 = vld [vmem:[%s0 + $0x208] sm:$0x3]
    %v110 = vld [vmem:[%s0 + $0x210] sm:$0xff]
    %v111 = vld [vmem:[%s0 + $0x218] sm:$0xff]
    %v112 = vld [vmem:[%s0 + $0x220] sm:$0x3]
    %v113 = vld [vmem:[%s0 + $0x228] sm:$0xff]
    %v114 = vld [vmem:[%s0 + $0x230] sm:$0xff]
    %v115 = vld [vmem:[%s0 + $0x238] sm:$0x3]
    %v116 = vld [vmem:[%s0 + $0x240] sm:$0xff]
    %v117 = vld [vmem:[%s0 + $0x248] sm:$0xff]
    %v118 = vld [vmem:[%s0 + $0x250] sm:$0x3]
    %v119 = vld [vmem:[%s0 + $0x258] sm:$0xff]
    %v120 = vld [vmem:[%s0 + $0x260] sm:$0xff]
    %v121 = vld [vmem:[%s0 + $0x268] sm:$0x3]
    %v122 = vld [vmem:[%s0 + $0x270] sm:$0xff]
    %v123 = vld [vmem:[%s0 + $0x278] sm:$0xff]
    %v124 = vld [vmem:[%s0 + $0x280] sm:$0x3]
    %v125 = vld [vmem:[%s0 + $0x288] sm:$0xff]
    %v126 = vld [vmem:[%s0 + $0x290] sm:$0xff]
    %v127 = vld [vmem:[%s0 + $0x298] sm:$0x3]
    %v128 = vld [vmem:[%s0 + $0x2a0] sm:$0xff]
    %v129 = vld [vmem:[%s0 + $0x2a8] sm:$0xff]
    %v130 = vld [vmem:[%s0 + $0x2b0] sm:$0x3]
    %v131 = vld [vmem:[%s0 + $0x2b8] sm:$0xff]
    %v132 = vld [vmem:[%s0 + $0x2c0] sm:$0xff]
    %v133 = vld [vmem:[%s0 + $0x2c8] sm:$0x3]
    %v134 = vld [vmem:[%s0 + $0x2d0] sm:$0xff]
    %v135 = vld [vmem:[%s0 + $0x2d8] sm:$0xff]
    %v136 = vld [vmem:[%s0 + $0x2e0] sm:$0x3]
    %v137 = vld [vmem:[%s0 + $0x2e8] sm:$0xff]
    %v138 = vld [vmem:[%s0 + $0x2f0] sm:$0xff]
    %v139 = vld [vmem:[%s0 + $0x2f8] sm:$0x3]
    %v140 = vld [vmem:[%s0 + $0x300] sm:$0xff]
    %v141 = vld [vmem:[%s0 + $0x308] sm:$0xff]
    %v142 = vld [vmem:[%s0 + $0x310] sm:$0x3]
    %v143 = vld [vmem:[%s0 + $0x318] sm:$0xff]
    %v144 = vld [vmem:[%s0 + $0x320] sm:$0xff]
    %v145 = vld [vmem:[%s0 + $0x328] sm:$0x3]
    %v146 = vld [vmem:[%s0 + $0x330] sm:$0xff]
    %v147 = vld [vmem:[%s0 + $0x338] sm:$0xff]
    %v148 = vld [vmem:[%s0 + $0x340] sm:$0x3]
    %v149 = vld [vmem:[%s0 + $0x348] sm:$0xff]
    %v150 = vld [vmem:[%s0 + $0x350] sm:$0xff]
    %v151 = vld [vmem:[%s0 + $0x358] sm:$0x3]
    %v152 = vld [vmem:[%s0 + $0x360] sm:$0xff]
    %v153 = vld [vmem:[%s0 + $0x368] sm:$0xff]
    %v154 = vld [vmem:[%s0 + $0x370] sm:$0x3]
    %v155 = vld [vmem:[%s0 + $0x378] sm:$0xff]
    %v156 = vld [vmem:[%s0 + $0x380] sm:$0xff]
    %v157 = vld [vmem:[%s0 + $0x388] sm:$0x3]
    %v158 = vld [vmem:[%s0 + $0x390] sm:$0xff]
    %v159 = vld [vmem:[%s0 + $0x398] sm:$0xff]
    %v160 = vld [vmem:[%s0 + $0x3a0] sm:$0x3]
    %v161 = vld [vmem:[%s0 + $0x3a8] sm:$0xff]
    %v162 = vld [vmem:[%s0 + $0x3b0] sm:$0xff]
    %v163 = vld [vmem:[%s0 + $0x3b8] sm:$0x3]
    %v164 = vld [vmem:[%s0 + $0x3c0] sm:$0xff]
    %v165 = vld [vmem:[%s0 + $0x3c8] sm:$0xff]
    %v166 = vld [vmem:[%s0 + $0x3d0] sm:$0x3]
    %v167 = vld [vmem:[%s0 + $0x3d8] sm:$0xff]
    %v168 = vld [vmem:[%s0 + $0x3e0] sm:$0xff]
    %v169 = vld [vmem:[%s0 + $0x3e8] sm:$0x3]
    %v170 = vld [vmem:[%s0 + $0x3f0] sm:$0xff]
    %v171 = vld [vmem:[%s0 + $0x3f8] sm:$0xff]
    %v172 = vld [vmem:[%s0 + $0x400] sm:$0x3]
    %v173 = vld [vmem:[%s0 + $0x408] sm:$0xff]
    %v174 = vld [vmem:[%s0 + $0x410] sm:$0xff]
    %v175 = vld [vmem:[%s0 + $0x418] sm:$0x3]
    %v176 = vld [vmem:[%s0 + $0x420] sm:$0xff]
    %v177 = vld [vmem:[%s0 + $0x428] sm:$0xff]
    %v178 = vld [vmem:[%s0 + $0x430] sm:$0x3]
    %v179 = vld [vmem:[%s0 + $0x438] sm:$0xff]
    %v180 = vld [vmem:[%s0 + $0x440] sm:$0xff]
    %v181 = vld [vmem:[%s0 + $0x448] sm:$0x3]
    %v182 = vld [vmem:[%s0 + $0x450] sm:$0xff]
    %v183 = vld [vmem:[%s0 + $0x458] sm:$0xff]
    %v184 = vld [vmem:[%s0 + $0x460] sm:$0x3]
    %v185 = vld [vmem:[%s0 + $0x468] sm:$0xff]
    %v186 = vld [vmem:[%s0 + $0x470] sm:$0xff]
    %v187 = vld [vmem:[%s0 + $0x478] sm:$0x3]
    %v188 = vld [vmem:[%s0 + $0x480] sm:$0xff]
    %v189 = vld [vmem:[%s0 + $0x488] sm:$0xff]
    %v190 = vld [vmem:[%s0 + $0x490] sm:$0x3]
    %v191 = vld [vmem:[%s0 + $0x498] sm:$0xff]
    %v192 = vld [vmem:[%s0 + $0x4a0] sm:$0xff]
    %v193 = vld [vmem:[%s0 + $0x4a8] sm:$0x3]
    %v194 = vld [vmem:[%s0 + $0x4b0] sm:$0xff]
    %v195 = vld [vmem:[%s0 + $0x4b8] sm:$0xff]
    %v196 = vld [vmem:[%s0 + $0x4c0] sm:$0x3]
    %v197 = vld [vmem:[%s0 + $0x4c8] sm:$0xff]
    %v198 = vld [vmem:[%s0 + $0x4d0] sm:$0xff]
    %v199 = vld [vmem:[%s0 + $0x4d8] sm:$0x3]
    %v200 = vld [vmem:[%s0 + $0x4e0] sm:$0xff]
    %v201 = vld [vmem:[%s0 + $0x4e8] sm:$0xff]
    %v202 = vld [vmem:[%s0 + $0x4f0] sm:$0x3]
    %v203 = vld [vmem:[%s0 + $0x4f8] sm:$0xff]
    %v204 = vld [vmem:[%s0 + $0x500] sm:$0xff]
    %v205 = vld [vmem:[%s0 + $0x508] sm:$0x3]
    %v206 = vld [vmem:[%s0 + $0x510] sm:$0xff]
    %v207 = vld [vmem:[%s0 + $0x518] sm:$0xff]
    %v208 = vld [vmem:[%s0 + $0x520] sm:$0x3]
    %v209 = vld [vmem:[%s0 + $0x528] sm:$0xff]
    %v210 = vld [vmem:[%s0 + $0x530] sm:$0xff]
    %v211 = vld [vmem:[%s0 + $0x538] sm:$0x3]
    %v212 = vld [vmem:[%s0 + $0x540] sm:$0xff]
    %v213 = vld [vmem:[%s0 + $0x548] sm:$0xff]
    %v214 = vld [vmem:[%s0 + $0x550] sm:$0x3]
    %v215 = vld [vmem:[%s0 + $0x558] sm:$0xff]
    %v216 = vld [vmem:[%s0 + $0x560] sm:$0xff]
    %v217 = vld [vmem:[%s0 + $0x568] sm:$0x3]
    %v218 = vld [vmem:[%s0 + $0x570] sm:$0xff]
    %v219 = vld [vmem:[%s0 + $0x578] sm:$0xff]
    %v220 = vld [vmem:[%s0 + $0x580] sm:$0x3]
    %v221 = vld [vmem:[%s0 + $0x588] sm:$0xff]
    %v222 = vld [vmem:[%s0 + $0x590] sm:$0xff]
    %v223 = vld [vmem:[%s0 + $0x598] sm:$0x3]
    %v224 = vld [vmem:[%s0 + $0x5a0] sm:$0xff]
    %v225 = vld [vmem:[%s0 + $0x5a8] sm:$0xff]
    %v226 = vld [vmem:[%s0 + $0x5b0] sm:$0x3]
    %v227 = vld [vmem:[%s0 + $0x5b8] sm:$0xff]
    %v228 = vld [vmem:[%s0 + $0x5c0] sm:$0xff]
    %v229 = vld [vmem:[%s0 + $0x5c8] sm:$0x3]
    %v230 = vld [vmem:[%s0 + $0x5d0] sm:$0xff]
    %v231 = vld [vmem:[%s0 + $0x5d8] sm:$0xff]
    %v232 = vld [vmem:[%s0 + $0x5e0] sm:$0x3]
    %v233 = vld [vmem:[%s0 + $0x5e8] sm:$0xff]
    %v234 = vld [vmem:[%s0 + $0x5f0] sm:$0xff]
    %v235 = vld [vmem:[%s0 + $0x5f8] sm:$0x3]
    %v236 = vld [vmem:[%s0 + $0x600] sm:$0xff]
    %v237 = vld [vmem:[%s0 + $0x608] sm:$0xff]
    %v238 = vld [vmem:[%s0 + $0x610] sm:$0x3]
    %v239 = vld [vmem:[%s0 + $0x618] sm:$0xff]
    %v240 = vld [vmem:[%s0 + $0x620] sm:$0xff]
    %v241 = vld [vmem:[%s0 + $0x628] sm:$0x3]
    %v242 = vld [vmem:[%s0 + $0x630] sm:$0xff]
    %v243 = vld [vmem:[%s0 + $0x638] sm:$0xff]
    %v244 = vld [vmem:[%s0 + $0x640] sm:$0x3]
    %v245 = vld [vmem:[%s0 + $0x648] sm:$0xff]
    %v246 = vld [vmem:[%s0 + $0x650] sm:$0xff]
    %v247 = vld [vmem:[%s0 + $0x658] sm:$0x3]
    %v248 = vld [vmem:[%s0 + $0x660] sm:$0xff]
    %v249 = vld [vmem:[%s0 + $0x668] sm:$0xff]
    %v250 = vld [vmem:[%s0 + $0x670] sm:$0x3]
    %v251 = vld [vmem:[%s0 + $0x678] sm:$0xff]
    %v252 = vld [vmem:[%s0 + $0x680] sm:$0xff]
    %v253 = vld [vmem:[%s0 + $0x688] sm:$0x3]
    %v254 = vld [vmem:[%s0 + $0x690] sm:$0xff]
    %v255 = vld [vmem:[%s0 + $0x698] sm:$0xff]
    %v256 = vld [vmem:[%s0 + $0x6a0] sm:$0x3]
    %v257 = vld [vmem:[%s0 + $0x6a8] sm:$0xff]
    %v258 = vld [vmem:[%s0 + $0x6b0] sm:$0xff]
    %v259 = vld [vmem:[%s0 + $0x6b8] sm:$0x3]
    %v260 = vld [vmem:[%s0 + $0x6c0] sm:$0xff]
    %v261 = vld [vmem:[%s0 + $0x6c8] sm:$0xff]
    %v262 = vld [vmem:[%s0 + $0x6d0] sm:$0x3]
    %v263 = vld [vmem:[%s0 + $0x6d8] sm:$0xff]
    %v264 = vld [vmem:[%s0 + $0x6e0] sm:$0xff]
    %v265 = vld [vmem:[%s0 + $0x6e8] sm:$0x3]
    %v266 = vld [vmem:[%s0 + $0x6f0] sm:$0xff]
    %v267 = vld [vmem:[%s0 + $0x6f8] sm:$0xff]
    %v268 = vld [vmem:[%s0 + $0x700] sm:$0x3]
    %v269 = vld [vmem:[%s0 + $0x708] sm:$0xff]
    %v270 = vld [vmem:[%s0 + $0x710] sm:$0xff]
    %v271 = vld [vmem:[%s0 + $0x718] sm:$0x3]
    %v272 = vld [vmem:[%s0 + $0x720] sm:$0xff]
    %v273 = vld [vmem:[%s0 + $0x728] sm:$0xff]
    %v274 = vld [vmem:[%s0 + $0x730] sm:$0x3]
    %v275 = vld [vmem:[%s0 + $0x738] sm:$0xff]
    %v276 = vld [vmem:[%s0 + $0x740] sm:$0xff]
    %v277 = vld [vmem:[%s0 + $0x748] sm:$0x3]
    %v278 = vld [vmem:[%s0 + $0x750] sm:$0xff]
    %v279 = vld [vmem:[%s0 + $0x758] sm:$0xff]
    %v280 = vld [vmem:[%s0 + $0x760] sm:$0x3]
    %v281 = vld [vmem:[%s0 + $0x768] sm:$0xff]
    %v282 = vld [vmem:[%s0 + $0x770] sm:$0xff]
    %v283 = vld [vmem:[%s0 + $0x778] sm:$0x3]
    %v284 = vld [vmem:[%s0 + $0x780] sm:$0xff]
    %v285 = vld [vmem:[%s0 + $0x788] sm:$0xff]
    %v286 = vld [vmem:[%s0 + $0x790] sm:$0x3]
    %v287 = vld [vmem:[%s0 + $0x798] sm:$0xff]
    %v288 = vld [vmem:[%s0 + $0x7a0] sm:$0xff]
    %v289 = vld [vmem:[%s0 + $0x7a8] sm:$0x3]
    %v290 = vld [vmem:[%s0 + $0x7b0] sm:$0xff]
    %v291 = vld [vmem:[%s0 + $0x7b8] sm:$0xff]
    %v292 = vld [vmem:[%s0 + $0x7c0] sm:$0x3]
    %v293 = vld [vmem:[%s0 + $0x7c8] sm:$0xff]
    %v294 = vld [vmem:[%s0 + $0x7d0] sm:$0xff]
    %v295 = vld [vmem:[%s0 + $0x7d8] sm:$0x3]
    %v296 = vld [vmem:[%s0 + $0x7e0] sm:$0xff]
    %v297 = vld [vmem:[%s0 + $0x7e8] sm:$0xff]
    %v298 = vld [vmem:[%s0 + $0x7f0] sm:$0x3]
    %v299 = vld [vmem:[%s0 + $0x7f8] sm:$0xff]
    %v300 = vld [vmem:[%s0 + $0x800] sm:$0xff]
    %v301 = vld [vmem:[%s0 + $0x808] sm:$0x3]
    %v302 = vld [vmem:[%s0 + $0x810] sm:$0xff]
    %v303 = vld [vmem:[%s0 + $0x818] sm:$0xff]
    %v304 = vld [vmem:[%s0 + $0x820] sm:$0x3]
    %v305 = vld [vmem:[%s0 + $0x828] sm:$0xff]
    %v306 = vld [vmem:[%s0 + $0x830] sm:$0xff]
    %v307 = vld [vmem:[%s0 + $0x838] sm:$0x3]
    %v308 = vld [vmem:[%s0 + $0x840] sm:$0xff]
    %v309 = vld [vmem:[%s0 + $0x848] sm:$0xff]
    %v310 = vld [vmem:[%s0 + $0x850] sm:$0x3]
    %v311 = vld [vmem:[%s0 + $0x858] sm:$0xff]
    %v312 = vld [vmem:[%s0 + $0x860] sm:$0xff]
    %v313 = vld [vmem:[%s0 + $0x868] sm:$0x3]
    %v314 = vld [vmem:[%s0 + $0x870] sm:$0xff]
    %v315 = vld [vmem:[%s0 + $0x878] sm:$0xff]
    %v316 = vld [vmem:[%s0 + $0x880] sm:$0x3]
    %v317 = vld [vmem:[%s0 + $0x888] sm:$0xff]
    %v318 = vld [vmem:[%s0 + $0x890] sm:$0xff]
    %v319 = vld [vmem:[%s0 + $0x898] sm:$0x3]
    %v320 = vld [vmem:[%s0 + $0x8a0] sm:$0xff]
    %v321 = vld [vmem:[%s0 + $0x8a8] sm:$0xff]
    %v322 = vld [vmem:[%s0 + $0x8b0] sm:$0x3]
    %v323 = vld [vmem:[%s0 + $0x8b8] sm:$0xff]
    %v324 = vld [vmem:[%s0 + $0x8c0] sm:$0xff]
    %v325 = vld [vmem:[%s0 + $0x8c8] sm:$0x3]
    %v326 = vld [vmem:[%s0 + $0x8d0] sm:$0xff]
    %v327 = vld [vmem:[%s0 + $0x8d8] sm:$0xff]
    %v328 = vld [vmem:[%s0 + $0x8e0] sm:$0x3]
    %v329 = vld [vmem:[%s0 + $0x8e8] sm:$0xff]
    %v330 = vld [vmem:[%s0 + $0x8f0] sm:$0xff]
    %v331 = vld [vmem:[%s0 + $0x8f8] sm:$0x3]
    %v332 = vld [vmem:[%s0 + $0x900] sm:$0xff]
    %v333 = vld [vmem:[%s0 + $0x908] sm:$0xff]
    %v334 = vld [vmem:[%s0 + $0x910] sm:$0x3]
    %v335 = vld [vmem:[%s0 + $0x918] sm:$0xff]
    %v336 = vld [vmem:[%s0 + $0x920] sm:$0xff]
    %v337 = vld [vmem:[%s0 + $0x928] sm:$0x3]
    %v338 = vld [vmem:[%s0 + $0x930] sm:$0xff]
    %v339 = vld [vmem:[%s0 + $0x938] sm:$0xff]
    %v340 = vld [vmem:[%s0 + $0x940] sm:$0x3]
    %v341 = vld [vmem:[%s0 + $0x948] sm:$0xff]
    %v342 = vld [vmem:[%s0 + $0x950] sm:$0xff]
    %v343 = vld [vmem:[%s0 + $0x958] sm:$0x3]
    %v344 = vld [vmem:[%s0 + $0x960] sm:$0xff]
    %v345 = vld [vmem:[%s0 + $0x968] sm:$0xff]
    %v346 = vld [vmem:[%s0 + $0x970] sm:$0x3]
    %v347 = vld [vmem:[%s0 + $0x978] sm:$0xff]
    %v348 = vld [vmem:[%s0 + $0x980] sm:$0xff]
    %v349 = vld [vmem:[%s0 + $0x988] sm:$0x3]
    %v350 = vld [vmem:[%s0 + $0x990] sm:$0xff]
    %v351 = vld [vmem:[%s0 + $0x998] sm:$0xff]
    %v352 = vld [vmem:[%s0 + $0x9a0] sm:$0x3]
    %v353 = vld [vmem:[%s0 + $0x9a8] sm:$0xff]
    %v354 = vld [vmem:[%s0 + $0x9b0] sm:$0xff]
    %v355 = vld [vmem:[%s0 + $0x9b8] sm:$0x3]
    %v356 = vld [vmem:[%s0 + $0x9c0] sm:$0xff]
    %v357 = vld [vmem:[%s0 + $0x9c8] sm:$0xff]
    %v358 = vld [vmem:[%s0 + $0x9d0] sm:$0x3]
    %v359 = vld [vmem:[%s0 + $0x9d8] sm:$0xff]
    %v360 = vld [vmem:[%s0 + $0x9e0] sm:$0xff]
    %v361 = vld [vmem:[%s0 + $0x9e8] sm:$0x3]
    %v362 = vld [vmem:[%s0 + $0x9f0] sm:$0xff]
    %v363 = vld [vmem:[%s0 + $0x9f8] sm:$0xff]
    %v364 = vld [vmem:[%s0 + $0xa00] sm:$0x3]
    %v365 = vld [vmem:[%s0 + $0xa08] sm:$0xff]
    %v366 = vld [vmem:[%s0 + $0xa10] sm:$0xff]
    %v367 = vld [vmem:[%s0 + $0xa18] sm:$0x3]
    %v368 = vld [vmem:[%s0 + $0xa20] sm:$0xff]
    %v369 = vld [vmem:[%s0 + $0xa28] sm:$0xff]
    %v370 = vld [vmem:[%s0 + $0xa30] sm:$0x3]
    %v371 = vld [vmem:[%s0 + $0xa38] sm:$0xff]
    %v372 = vld [vmem:[%s0 + $0xa40] sm:$0xff]
    %v373 = vld [vmem:[%s0 + $0xa48] sm:$0x3]
    %v374 = vld [vmem:[%s0 + $0xa50] sm:$0xff]
    %v375 = vld [vmem:[%s0 + $0xa58] sm:$0xff]
    %v376 = vld [vmem:[%s0 + $0xa60] sm:$0x3]
    %v377 = vld [vmem:[%s0 + $0xa68] sm:$0xff]
    %v378 = vld [vmem:[%s0 + $0xa70] sm:$0xff]
    %v379 = vld [vmem:[%s0 + $0xa78] sm:$0x3]
    %v380 = vld [vmem:[%s0 + $0xa80] sm:$0xff]
    %v381 = vld [vmem:[%s0 + $0xa88] sm:$0xff]
    %v382 = vld [vmem:[%s0 + $0xa90] sm:$0x3]
    %v383 = vld [vmem:[%s0 + $0xa98] sm:$0xff]
    %v384 = vld [vmem:[%s0 + $0xaa0] sm:$0xff]
    %v385 = vld [vmem:[%s0 + $0xaa8] sm:$0x3]
    %v386 = vld [vmem:[%s0 + $0xab0] sm:$0xff]
    %v387 = vld [vmem:[%s0 + $0xab8] sm:$0xff]
    %v388 = vld [vmem:[%s0 + $0xac0] sm:$0x3]
    %v389 = vld [vmem:[%s0 + $0xac8] sm:$0xff]
    %v390 = vld [vmem:[%s0 + $0xad0] sm:$0xff]
    %v391 = vld [vmem:[%s0 + $0xad8] sm:$0x3]
    %v392 = vld [vmem:[%s0 + $0xae0] sm:$0xff]
    %v393 = vld [vmem:[%s0 + $0xae8] sm:$0xff]
    %v394 = vld [vmem:[%s0 + $0xaf0] sm:$0x3]
    %v395 = vld [vmem:[%s0 + $0xaf8] sm:$0xff]
    %v396 = vld [vmem:[%s0 + $0xb00] sm:$0xff]
    %v397 = vld [vmem:[%s0 + $0xb08] sm:$0x3]
    %v398 = vld [vmem:[%s0 + $0xb10] sm:$0xff]
    %v399 = vld [vmem:[%s0 + $0xb18] sm:$0xff]
    %v400 = vld [vmem:[%s0 + $0xb20] sm:$0x3]
    %v401 = vld [vmem:[%s0 + $0xb28] sm:$0xff]
    %v402 = vld [vmem:[%s0 + $0xb30] sm:$0xff]
    %v403 = vld [vmem:[%s0 + $0xb38] sm:$0x3]
    %v404 = vld [vmem:[%s0 + $0xb40] sm:$0xff]
    %v405 = vld [vmem:[%s0 + $0xb48] sm:$0xff]
    %v406 = vld [vmem:[%s0 + $0xb50] sm:$0x3]
    %v407 = vld [vmem:[%s0 + $0xb58] sm:$0xff]
    %v408 = vld [vmem:[%s0 + $0xb60] sm:$0xff]
    %v409 = vld [vmem:[%s0 + $0xb68] sm:$0x3]
    %v410 = vld [vmem:[%s0 + $0xb70] sm:$0xff]
    %v411 = vld [vmem:[%s0 + $0xb78] sm:$0xff]
    %v412 = vld [vmem:[%s0 + $0xb80] sm:$0x3]
    %v413 = vld [vmem:[%s0 + $0xb88] sm:$0xff]
    %v414 = vld [vmem:[%s0 + $0xb90] sm:$0xff]
    %v415 = vld [vmem:[%s0 + $0xb98] sm:$0x3]
    %v416 = vld [vmem:[%s0 + $0xba0] sm:$0xff]
    %v417 = vld [vmem:[%s0 + $0xba8] sm:$0xff]
    %v418 = vld [vmem:[%s0 + $0xbb0] sm:$0x3]
    %v419 = vld [vmem:[%s0 + $0xbb8] sm:$0xff]
    %v420 = vld [vmem:[%s0 + $0xbc0] sm:$0xff]
    %v421 = vld [vmem:[%s0 + $0xbc8] sm:$0x3]
    %v422 = vld [vmem:[%s0 + $0xbd0] sm:$0xff]
    %v423 = vld [vmem:[%s0 + $0xbd8] sm:$0xff]
    %v424 = vld [vmem:[%s0 + $0xbe0] sm:$0x3]
    %v425 = vld [vmem:[%s0 + $0xbe8] sm:$0xff]
    %v426 = vld [vmem:[%s0 + $0xbf0] sm:$0xff]
    %v427 = vld [vmem:[%s0 + $0xbf8] sm:$0x3]
    %v428 = vld [vmem:[%s0 + $0xc00] sm:$0xff]
    %v429 = vld [vmem:[%s0 + $0xc08] sm:$0xff]
    %v430 = vld [vmem:[%s0 + $0xc10] sm:$0x3]
    %v431 = vld [vmem:[%s0 + $0xc18] sm:$0xff]
    %v432 = vld [vmem:[%s0 + $0xc20] sm:$0xff]
    %v433 = vld [vmem:[%s0 + $0xc28] sm:$0x3]
    %v434 = vld [vmem:[%s0 + $0xc30] sm:$0xff]
    %v435 = vld [vmem:[%s0 + $0xc38] sm:$0xff]
    %v436 = vld [vmem:[%s0 + $0xc40] sm:$0x3]
    %v437 = vld [vmem:[%s0 + $0xc48] sm:$0xff]
    %v438 = vld [vmem:[%s0 + $0xc50] sm:$0xff]
    %v439 = vld [vmem:[%s0 + $0xc58] sm:$0x3]
    %v440 = vld [vmem:[%s0 + $0xc60] sm:$0xff]
    %v441 = vld [vmem:[%s0 + $0xc68] sm:$0xff]
    %v442 = vld [vmem:[%s0 + $0xc70] sm:$0x3]
    %v443 = vld [vmem:[%s0 + $0xc78] sm:$0xff]
    %v444 = vld [vmem:[%s0 + $0xc80] sm:$0xff]
    %v445 = vld [vmem:[%s0 + $0xc88] sm:$0x3]
    %v446 = vld [vmem:[%s0 + $0xc90] sm:$0xff]
    %v447 = vld [vmem:[%s0 + $0xc98] sm:$0xff]
    %v448 = vld [vmem:[%s0 + $0xca0] sm:$0x3]
    %v449 = vld [vmem:[%s0 + $0xca8] sm:$0xff]
    %v450 = vld [vmem:[%s0 + $0xcb0] sm:$0xff]
    %v451 = vld [vmem:[%s0 + $0xcb8] sm:$0x3]
    %v452 = vld [vmem:[%s0 + $0xcc0] sm:$0xff]
    %v453 = vld [vmem:[%s0 + $0xcc8] sm:$0xff]
    %v454 = vld [vmem:[%s0 + $0xcd0] sm:$0x3]
    %v455 = vld [vmem:[%s0 + $0xcd8] sm:$0xff]
    %v456 = vld [vmem:[%s0 + $0xce0] sm:$0xff]
    %v457 = vld [vmem:[%s0 + $0xce8] sm:$0x3]
    %v458 = vld [vmem:[%s0 + $0xcf0] sm:$0xff]
    %v459 = vld [vmem:[%s0 + $0xcf8] sm:$0xff]
    %v460 = vld [vmem:[%s0 + $0xd00] sm:$0x3]
    %v461 = vld [vmem:[%s0 + $0xd08] sm:$0xff]
    %v462 = vld [vmem:[%s0 + $0xd10] sm:$0xff]
    %v463 = vld [vmem:[%s0 + $0xd18] sm:$0x3]
    %v464 = vld [vmem:[%s0 + $0xd20] sm:$0xff]
    %v465 = vld [vmem:[%s0 + $0xd28] sm:$0xff]
    %v466 = vld [vmem:[%s0 + $0xd30] sm:$0x3]
    %v467 = vld [vmem:[%s0 + $0xd38] sm:$0xff]
    %v468 = vld [vmem:[%s0 + $0xd40] sm:$0xff]
    %v469 = vld [vmem:[%s0 + $0xd48] sm:$0x3]
    %v470 = vld [vmem:[%s0 + $0xd50] sm:$0xff]
    %v471 = vld [vmem:[%s0 + $0xd58] sm:$0xff]
    %v472 = vld [vmem:[%s0 + $0xd60] sm:$0x3]
    %v473 = vld [vmem:[%s0 + $0xd68] sm:$0xff]
    %v474 = vld [vmem:[%s0 + $0xd70] sm:$0xff]
    %v475 = vld [vmem:[%s0 + $0xd78] sm:$0x3]
    %v476 = vld [vmem:[%s1] sm:$0x7]
    %v477 = vld [vmem:[%s1 + $0x4] sm:$0x7]
    %v478 = vld [vmem:[%s1 + $0x8] sm:$0x7]
    %v479 = vld [vmem:[%s1 + $0xc] sm:$0x7]
    %v480 = vld [vmem:[%s1 + $0x10] sm:$0x7]
    %v481 = vld [vmem:[%s1 + $0x14] sm:$0x7]
    %v482 = vld [vmem:[%s1 + $0x18] sm:$0x7]
    %v483 = vld [vmem:[%s1 + $0x1c] sm:$0x7]
    %v484 = vld [vmem:[%s1 + $0x20] sm:$0x7]
    %vm869 = vcmask 1046528
    %v870 = vrot.slane %v44, 1
    %v871 = vrot.slane %v45, 1
    %v872 = vsel %vm869, %v870, %v871
    %v873 = vrot.slane %v46, 1
    %v874 = vsel %vm869, %v871, %v873
    %v875 = vrot.slane %v47, 1
    %v876 = vrot.slane %v48, 1
    %v877 = vsel %vm869, %v875, %v876
    %v878 = vrot.slane %v49, 1
    %v879 = vsel %vm869, %v876, %v878
    %v880 = vrot.slane %v50, 1
    %v881 = vrot.slane %v51, 1
    %v882 = vsel %vm869, %v880, %v881
    %v883 = vrot.slane %v52, 1
    %v884 = vsel %vm869, %v881, %v883
    %v885 = vrot.slane %v53, 1
    %v886 = vrot.slane %v54, 1
    %v887 = vsel %vm869, %v885, %v886
    %v888 = vrot.slane %v55, 1
    %v889 = vsel %vm869, %v886, %v888
    %v890 = vrot.slane %v56, 1
    %v891 = vrot.slane %v57, 1
    %v892 = vsel %vm869, %v890, %v891
    %v893 = vrot.slane %v58, 1
    %v894 = vsel %vm869, %v891, %v893
    %v895 = vrot.slane %v59, 1
    %v896 = vrot.slane %v60, 1
    %v897 = vsel %vm869, %v895, %v896
    %v898 = vrot.slane %v61, 1
    %v899 = vsel %vm869, %v896, %v898
    %v900 = vrot.slane %v62, 1
    %v901 = vrot.slane %v63, 1
    %v902 = vsel %vm869, %v900, %v901
    %v903 = vrot.slane %v64, 1
    %v904 = vsel %vm869, %v901, %v903
    %v905 = vrot.slane %v65, 1
    %v906 = vrot.slane %v66, 1
    %v907 = vsel %vm869, %v905, %v906
    %v908 = vrot.slane %v67, 1
    %v909 = vsel %vm869, %v906, %v908
    %v910 = vrot.slane %v68, 1
    %v911 = vrot.slane %v69, 1
    %v912 = vsel %vm869, %v910, %v911
    %v913 = vrot.slane %v70, 1
    %v914 = vsel %vm869, %v911, %v913
    %v915 = vrot.slane %v71, 1
    %v916 = vrot.slane %v72, 1
    %v917 = vsel %vm869, %v915, %v916
    %v918 = vrot.slane %v73, 1
    %v919 = vsel %vm869, %v916, %v918
    %v920 = vrot.slane %v74, 1
    %v921 = vrot.slane %v75, 1
    %v922 = vsel %vm869, %v920, %v921
    %v923 = vrot.slane %v76, 1
    %v924 = vsel %vm869, %v921, %v923
    %v925 = vrot.slane %v77, 1
    %v926 = vrot.slane %v78, 1
    %v927 = vsel %vm869, %v925, %v926
    %v928 = vrot.slane %v79, 1
    %v929 = vsel %vm869, %v926, %v928
    %v930 = vrot.slane %v80, 1
    %v931 = vrot.slane %v81, 1
    %v932 = vsel %vm869, %v930, %v931
    %v933 = vrot.slane %v82, 1
    %v934 = vsel %vm869, %v931, %v933
    %v935 = vrot.slane %v83, 1
    %v936 = vrot.slane %v84, 1
    %v937 = vsel %vm869, %v935, %v936
    %v938 = vrot.slane %v85, 1
    %v939 = vsel %vm869, %v936, %v938
    %v940 = vrot.slane %v86, 1
    %v941 = vrot.slane %v87, 1
    %v942 = vsel %vm869, %v940, %v941
    %v943 = vrot.slane %v88, 1
    %v944 = vsel %vm869, %v941, %v943
    %v945 = vrot.slane %v89, 1
    %v946 = vrot.slane %v90, 1
    %v947 = vsel %vm869, %v945, %v946
    %v948 = vrot.slane %v91, 1
    %v949 = vsel %vm869, %v946, %v948
    %v950 = vrot.slane %v98, 1
    %v951 = vrot.slane %v99, 1
    %v952 = vsel %vm869, %v950, %v951
    %v953 = vrot.slane %v100, 1
    %v954 = vsel %vm869, %v951, %v953
    %v955 = vrot.slane %v101, 1
    %v956 = vrot.slane %v102, 1
    %v957 = vsel %vm869, %v955, %v956
    %v958 = vrot.slane %v103, 1
    %v959 = vsel %vm869, %v956, %v958
    %v960 = vrot.slane %v104, 1
    %v961 = vrot.slane %v105, 1
    %v962 = vsel %vm869, %v960, %v961
    %v963 = vrot.slane %v106, 1
    %v964 = vsel %vm869, %v961, %v963
    %v965 = vrot.slane %v107, 1
    %v966 = vrot.slane %v108, 1
    %v967 = vsel %vm869, %v965, %v966
    %v968 = vrot.slane %v109, 1
    %v969 = vsel %vm869, %v966, %v968
    %v970 = vrot.slane %v110, 1
    %v971 = vrot.slane %v111, 1
    %v972 = vsel %vm869, %v970, %v971
    %v973 = vrot.slane %v112, 1
    %v974 = vsel %vm869, %v971, %v973
    %v975 = vrot.slane %v113, 1
    %v976 = vrot.slane %v114, 1
    %v977 = vsel %vm869, %v975, %v976
    %v978 = vrot.slane %v115, 1
    %v979 = vsel %vm869, %v976, %v978
    %v980 = vrot.slane %v116, 1
    %v981 = vrot.slane %v117, 1
    %v982 = vsel %vm869, %v980, %v981
    %v983 = vrot.slane %v118, 1
    %v984 = vsel %vm869, %v981, %v983
    %v985 = vrot.slane %v119, 1
    %v986 = vrot.slane %v120, 1
    %v987 = vsel %vm869, %v985, %v986
    %v988 = vrot.slane %v121, 1
    %v989 = vsel %vm869, %v986, %v988
    %v990 = vrot.slane %v122, 1
    %v991 = vrot.slane %v123, 1
    %v992 = vsel %vm869, %v990, %v991
    %v993 = vrot.slane %v124, 1
    %v994 = vsel %vm869, %v991, %v993
    %v995 = vrot.slane %v125, 1
    %v996 = vrot.slane %v126, 1
    %v997 = vsel %vm869, %v995, %v996
    %v998 = vrot.slane %v127, 1
    %v999 = vsel %vm869, %v996, %v998
    %v1000 = vrot.slane %v128, 1
    %v1001 = vrot.slane %v129, 1
    %v1002 = vsel %vm869, %v1000, %v1001
    %v1003 = vrot.slane %v130, 1
    %v1004 = vsel %vm869, %v1001, %v1003
    %v1005 = vrot.slane %v131, 1
    %v1006 = vrot.slane %v132, 1
    %v1007 = vsel %vm869, %v1005, %v1006
    %v1008 = vrot.slane %v133, 1
    %v1009 = vsel %vm869, %v1006, %v1008
    %v1010 = vrot.slane %v134, 1
    %v1011 = vrot.slane %v135, 1
    %v1012 = vsel %vm869, %v1010, %v1011
    %v1013 = vrot.slane %v136, 1
    %v1014 = vsel %vm869, %v1011, %v1013
    %v1015 = vrot.slane %v137, 1
    %v1016 = vrot.slane %v138, 1
    %v1017 = vsel %vm869, %v1015, %v1016
    %v1018 = vrot.slane %v139, 1
    %v1019 = vsel %vm869, %v1016, %v1018
    %v1020 = vrot.slane %v140, 1
    %v1021 = vrot.slane %v141, 1
    %v1022 = vsel %vm869, %v1020, %v1021
    %v1023 = vrot.slane %v142, 1
    %v1024 = vsel %vm869, %v1021, %v1023
    %v1025 = vrot.slane %v143, 1
    %v1026 = vrot.slane %v144, 1
    %v1027 = vsel %vm869, %v1025, %v1026
    %v1028 = vrot.slane %v145, 1
    %v1029 = vsel %vm869, %v1026, %v1028
    %v1030 = vrot.slane %v152, 1
    %v1031 = vrot.slane %v153, 1
    %v1032 = vsel %vm869, %v1030, %v1031
    %v1033 = vrot.slane %v154, 1
    %v1034 = vsel %vm869, %v1031, %v1033
    %v1035 = vrot.slane %v155, 1
    %v1036 = vrot.slane %v156, 1
    %v1037 = vsel %vm869, %v1035, %v1036
    %v1038 = vrot.slane %v157, 1
    %v1039 = vsel %vm869, %v1036, %v1038
    %v1040 = vrot.slane %v158, 1
    %v1041 = vrot.slane %v159, 1
    %v1042 = vsel %vm869, %v1040, %v1041
    %v1043 = vrot.slane %v160, 1
    %v1044 = vsel %vm869, %v1041, %v1043
    %v1045 = vrot.slane %v161, 1
    %v1046 = vrot.slane %v162, 1
    %v1047 = vsel %vm869, %v1045, %v1046
    %v1048 = vrot.slane %v163, 1
    %v1049 = vsel %vm869, %v1046, %v1048
    %v1050 = vrot.slane %v164, 1
    %v1051 = vrot.slane %v165, 1
    %v1052 = vsel %vm869, %v1050, %v1051
    %v1053 = vrot.slane %v166, 1
    %v1054 = vsel %vm869, %v1051, %v1053
    %v1055 = vrot.slane %v167, 1
    %v1056 = vrot.slane %v168, 1
    %v1057 = vsel %vm869, %v1055, %v1056
    %v1058 = vrot.slane %v169, 1
    %v1059 = vsel %vm869, %v1056, %v1058
    %v1060 = vrot.slane %v170, 1
    %v1061 = vrot.slane %v171, 1
    %v1062 = vsel %vm869, %v1060, %v1061
    %v1063 = vrot.slane %v172, 1
    %v1064 = vsel %vm869, %v1061, %v1063
    %v1065 = vrot.slane %v173, 1
    %v1066 = vrot.slane %v174, 1
    %v1067 = vsel %vm869, %v1065, %v1066
    %v1068 = vrot.slane %v175, 1
    %v1069 = vsel %vm869, %v1066, %v1068
    %v1070 = vrot.slane %v176, 1
    %v1071 = vrot.slane %v177, 1
    %v1072 = vsel %vm869, %v1070, %v1071
    %v1073 = vrot.slane %v178, 1
    %v1074 = vsel %vm869, %v1071, %v1073
    %v1075 = vrot.slane %v179, 1
    %v1076 = vrot.slane %v180, 1
    %v1077 = vsel %vm869, %v1075, %v1076
    %v1078 = vrot.slane %v181, 1
    %v1079 = vsel %vm869, %v1076, %v1078
    %v1080 = vrot.slane %v182, 1
    %v1081 = vrot.slane %v183, 1
    %v1082 = vsel %vm869, %v1080, %v1081
    %v1083 = vrot.slane %v184, 1
    %v1084 = vsel %vm869, %v1081, %v1083
    %v1085 = vrot.slane %v185, 1
    %v1086 = vrot.slane %v186, 1
    %v1087 = vsel %vm869, %v1085, %v1086
    %v1088 = vrot.slane %v187, 1
    %v1089 = vsel %vm869, %v1086, %v1088
    %v1090 = vrot.slane %v188, 1
    %v1091 = vrot.slane %v189, 1
    %v1092 = vsel %vm869, %v1090, %v1091
    %v1093 = vrot.slane %v190, 1
    %v1094 = vsel %vm869, %v1091, %v1093
    %v1095 = vrot.slane %v191, 1
    %v1096 = vrot.slane %v192, 1
    %v1097 = vsel %vm869, %v1095, %v1096
    %v1098 = vrot.slane %v193, 1
    %v1099 = vsel %vm869, %v1096, %v1098
    %v1100 = vrot.slane %v194, 1
    %v1101 = vrot.slane %v195, 1
    %v1102 = vsel %vm869, %v1100, %v1101
    %v1103 = vrot.slane %v196, 1
    %v1104 = vsel %vm869, %v1101, %v1103
    %v1105 = vrot.slane %v197, 1
    %v1106 = vrot.slane %v198, 1
    %v1107 = vsel %vm869, %v1105, %v1106
    %v1108 = vrot.slane %v199, 1
    %v1109 = vsel %vm869, %v1106, %v1108
    %v1110 = vrot.slane %v206, 1
    %v1111 = vrot.slane %v207, 1
    %v1112 = vsel %vm869, %v1110, %v1111
    %v1113 = vrot.slane %v208, 1
    %v1114 = vsel %vm869, %v1111, %v1113
    %v1115 = vrot.slane %v209, 1
    %v1116 = vrot.slane %v210, 1
    %v1117 = vsel %vm869, %v1115, %v1116
    %v1118 = vrot.slane %v211, 1
    %v1119 = vsel %vm869, %v1116, %v1118
    %v1120 = vrot.slane %v212, 1
    %v1121 = vrot.slane %v213, 1
    %v1122 = vsel %vm869, %v1120, %v1121
    %v1123 = vrot.slane %v214, 1
    %v1124 = vsel %vm869, %v1121, %v1123
    %v1125 = vrot.slane %v215, 1
    %v1126 = vrot.slane %v216, 1
    %v1127 = vsel %vm869, %v1125, %v1126
    %v1128 = vrot.slane %v217, 1
    %v1129 = vsel %vm869, %v1126, %v1128
    %v1130 = vrot.slane %v218, 1
    %v1131 = vrot.slane %v219, 1
    %v1132 = vsel %vm869, %v1130, %v1131
    %v1133 = vrot.slane %v220, 1
    %v1134 = vsel %vm869, %v1131, %v1133
    %v1135 = vrot.slane %v221, 1
    %v1136 = vrot.slane %v222, 1
    %v1137 = vsel %vm869, %v1135, %v1136
    %v1138 = vrot.slane %v223, 1
    %v1139 = vsel %vm869, %v1136, %v1138
    %v1140 = vrot.slane %v224, 1
    %v1141 = vrot.slane %v225, 1
    %v1142 = vsel %vm869, %v1140, %v1141
    %v1143 = vrot.slane %v226, 1
    %v1144 = vsel %vm869, %v1141, %v1143
    %v1145 = vrot.slane %v227, 1
    %v1146 = vrot.slane %v228, 1
    %v1147 = vsel %vm869, %v1145, %v1146
    %v1148 = vrot.slane %v229, 1
    %v1149 = vsel %vm869, %v1146, %v1148
    %v1150 = vrot.slane %v230, 1
    %v1151 = vrot.slane %v231, 1
    %v1152 = vsel %vm869, %v1150, %v1151
    %v1153 = vrot.slane %v232, 1
    %v1154 = vsel %vm869, %v1151, %v1153
    %v1155 = vrot.slane %v233, 1
    %v1156 = vrot.slane %v234, 1
    %v1157 = vsel %vm869, %v1155, %v1156
    %v1158 = vrot.slane %v235, 1
    %v1159 = vsel %vm869, %v1156, %v1158
    %v1160 = vrot.slane %v236, 1
    %v1161 = vrot.slane %v237, 1
    %v1162 = vsel %vm869, %v1160, %v1161
    %v1163 = vrot.slane %v238, 1
    %v1164 = vsel %vm869, %v1161, %v1163
    %v1165 = vrot.slane %v239, 1
    %v1166 = vrot.slane %v240, 1
    %v1167 = vsel %vm869, %v1165, %v1166
    %v1168 = vrot.slane %v241, 1
    %v1169 = vsel %vm869, %v1166, %v1168
    %v1170 = vrot.slane %v242, 1
    %v1171 = vrot.slane %v243, 1
    %v1172 = vsel %vm869, %v1170, %v1171
    %v1173 = vrot.slane %v244, 1
    %v1174 = vsel %vm869, %v1171, %v1173
    %v1175 = vrot.slane %v245, 1
    %v1176 = vrot.slane %v246, 1
    %v1177 = vsel %vm869, %v1175, %v1176
    %v1178 = vrot.slane %v247, 1
    %v1179 = vsel %vm869, %v1176, %v1178
    %v1180 = vrot.slane %v248, 1
    %v1181 = vrot.slane %v249, 1
    %v1182 = vsel %vm869, %v1180, %v1181
    %v1183 = vrot.slane %v250, 1
    %v1184 = vsel %vm869, %v1181, %v1183
    %v1185 = vrot.slane %v251, 1
    %v1186 = vrot.slane %v252, 1
    %v1187 = vsel %vm869, %v1185, %v1186
    %v1188 = vrot.slane %v253, 1
    %v1189 = vsel %vm869, %v1186, %v1188
    %v1190 = vrot.slane %v260, 1
    %v1191 = vrot.slane %v261, 1
    %v1192 = vsel %vm869, %v1190, %v1191
    %v1193 = vrot.slane %v262, 1
    %v1194 = vsel %vm869, %v1191, %v1193
    %v1195 = vrot.slane %v263, 1
    %v1196 = vrot.slane %v264, 1
    %v1197 = vsel %vm869, %v1195, %v1196
    %v1198 = vrot.slane %v265, 1
    %v1199 = vsel %vm869, %v1196, %v1198
    %v1200 = vrot.slane %v266, 1
    %v1201 = vrot.slane %v267, 1
    %v1202 = vsel %vm869, %v1200, %v1201
    %v1203 = vrot.slane %v268, 1
    %v1204 = vsel %vm869, %v1201, %v1203
    %v1205 = vrot.slane %v269, 1
    %v1206 = vrot.slane %v270, 1
    %v1207 = vsel %vm869, %v1205, %v1206
    %v1208 = vrot.slane %v271, 1
    %v1209 = vsel %vm869, %v1206, %v1208
    %v1210 = vrot.slane %v272, 1
    %v1211 = vrot.slane %v273, 1
    %v1212 = vsel %vm869, %v1210, %v1211
    %v1213 = vrot.slane %v274, 1
    %v1214 = vsel %vm869, %v1211, %v1213
    %v1215 = vrot.slane %v275, 1
    %v1216 = vrot.slane %v276, 1
    %v1217 = vsel %vm869, %v1215, %v1216
    %v1218 = vrot.slane %v277, 1
    %v1219 = vsel %vm869, %v1216, %v1218
    %v1220 = vrot.slane %v278, 1
    %v1221 = vrot.slane %v279, 1
    %v1222 = vsel %vm869, %v1220, %v1221
    %v1223 = vrot.slane %v280, 1
    %v1224 = vsel %vm869, %v1221, %v1223
    %v1225 = vrot.slane %v281, 1
    %v1226 = vrot.slane %v282, 1
    %v1227 = vsel %vm869, %v1225, %v1226
    %v1228 = vrot.slane %v283, 1
    %v1229 = vsel %vm869, %v1226, %v1228
    %v1230 = vrot.slane %v284, 1
    %v1231 = vrot.slane %v285, 1
    %v1232 = vsel %vm869, %v1230, %v1231
    %v1233 = vrot.slane %v286, 1
    %v1234 = vsel %vm869, %v1231, %v1233
    %v1235 = vrot.slane %v287, 1
    %v1236 = vrot.slane %v288, 1
    %v1237 = vsel %vm869, %v1235, %v1236
    %v1238 = vrot.slane %v289, 1
    %v1239 = vsel %vm869, %v1236, %v1238
    %v1240 = vrot.slane %v290, 1
    %v1241 = vrot.slane %v291, 1
    %v1242 = vsel %vm869, %v1240, %v1241
    %v1243 = vrot.slane %v292, 1
    %v1244 = vsel %vm869, %v1241, %v1243
    %v1245 = vrot.slane %v293, 1
    %v1246 = vrot.slane %v294, 1
    %v1247 = vsel %vm869, %v1245, %v1246
    %v1248 = vrot.slane %v295, 1
    %v1249 = vsel %vm869, %v1246, %v1248
    %v1250 = vrot.slane %v296, 1
    %v1251 = vrot.slane %v297, 1
    %v1252 = vsel %vm869, %v1250, %v1251
    %v1253 = vrot.slane %v298, 1
    %v1254 = vsel %vm869, %v1251, %v1253
    %v1255 = vrot.slane %v299, 1
    %v1256 = vrot.slane %v300, 1
    %v1257 = vsel %vm869, %v1255, %v1256
    %v1258 = vrot.slane %v301, 1
    %v1259 = vsel %vm869, %v1256, %v1258
    %v1260 = vrot.slane %v302, 1
    %v1261 = vrot.slane %v303, 1
    %v1262 = vsel %vm869, %v1260, %v1261
    %v1263 = vrot.slane %v304, 1
    %v1264 = vsel %vm869, %v1261, %v1263
    %v1265 = vrot.slane %v305, 1
    %v1266 = vrot.slane %v306, 1
    %v1267 = vsel %vm869, %v1265, %v1266
    %v1268 = vrot.slane %v307, 1
    %v1269 = vsel %vm869, %v1266, %v1268
    %v1270 = vrot.slane %v314, 1
    %v1271 = vrot.slane %v315, 1
    %v1272 = vsel %vm869, %v1270, %v1271
    %v1273 = vrot.slane %v316, 1
    %v1274 = vsel %vm869, %v1271, %v1273
    %v1275 = vrot.slane %v317, 1
    %v1276 = vrot.slane %v318, 1
    %v1277 = vsel %vm869, %v1275, %v1276
    %v1278 = vrot.slane %v319, 1
    %v1279 = vsel %vm869, %v1276, %v1278
    %v1280 = vrot.slane %v320, 1
    %v1281 = vrot.slane %v321, 1
    %v1282 = vsel %vm869, %v1280, %v1281
    %v1283 = vrot.slane %v322, 1
    %v1284 = vsel %vm869, %v1281, %v1283
    %v1285 = vrot.slane %v323, 1
    %v1286 = vrot.slane %v324, 1
    %v1287 = vsel %vm869, %v1285, %v1286
    %v1288 = vrot.slane %v325, 1
    %v1289 = vsel %vm869, %v1286, %v1288
    %v1290 = vrot.slane %v326, 1
    %v1291 = vrot.slane %v327, 1
    %v1292 = vsel %vm869, %v1290, %v1291
    %v1293 = vrot.slane %v328, 1
    %v1294 = vsel %vm869, %v1291, %v1293
    %v1295 = vrot.slane %v329, 1
    %v1296 = vrot.slane %v330, 1
    %v1297 = vsel %vm869, %v1295, %v1296
    %v1298 = vrot.slane %v331, 1
    %v1299 = vsel %vm869, %v1296, %v1298
    %v1300 = vrot.slane %v332, 1
    %v1301 = vrot.slane %v333, 1
    %v1302 = vsel %vm869, %v1300, %v1301
    %v1303 = vrot.slane %v334, 1
    %v1304 = vsel %vm869, %v1301, %v1303
    %v1305 = vrot.slane %v335, 1
    %v1306 = vrot.slane %v336, 1
    %v1307 = vsel %vm869, %v1305, %v1306
    %v1308 = vrot.slane %v337, 1
    %v1309 = vsel %vm869, %v1306, %v1308
    %v1310 = vrot.slane %v338, 1
    %v1311 = vrot.slane %v339, 1
    %v1312 = vsel %vm869, %v1310, %v1311
    %v1313 = vrot.slane %v340, 1
    %v1314 = vsel %vm869, %v1311, %v1313
    %v1315 = vrot.slane %v341, 1
    %v1316 = vrot.slane %v342, 1
    %v1317 = vsel %vm869, %v1315, %v1316
    %v1318 = vrot.slane %v343, 1
    %v1319 = vsel %vm869, %v1316, %v1318
    %v1320 = vrot.slane %v344, 1
    %v1321 = vrot.slane %v345, 1
    %v1322 = vsel %vm869, %v1320, %v1321
    %v1323 = vrot.slane %v346, 1
    %v1324 = vsel %vm869, %v1321, %v1323
    %v1325 = vrot.slane %v347, 1
    %v1326 = vrot.slane %v348, 1
    %v1327 = vsel %vm869, %v1325, %v1326
    %v1328 = vrot.slane %v349, 1
    %v1329 = vsel %vm869, %v1326, %v1328
    %v1330 = vrot.slane %v350, 1
    %v1331 = vrot.slane %v351, 1
    %v1332 = vsel %vm869, %v1330, %v1331
    %v1333 = vrot.slane %v352, 1
    %v1334 = vsel %vm869, %v1331, %v1333
    %v1335 = vrot.slane %v353, 1
    %v1336 = vrot.slane %v354, 1
    %v1337 = vsel %vm869, %v1335, %v1336
    %v1338 = vrot.slane %v355, 1
    %v1339 = vsel %vm869, %v1336, %v1338
    %v1340 = vrot.slane %v356, 1
    %v1341 = vrot.slane %v357, 1
    %v1342 = vsel %vm869, %v1340, %v1341
    %v1343 = vrot.slane %v358, 1
    %v1344 = vsel %vm869, %v1341, %v1343
    %v1345 = vrot.slane %v359, 1
    %v1346 = vrot.slane %v360, 1
    %v1347 = vsel %vm869, %v1345, %v1346
    %v1348 = vrot.slane %v361, 1
    %v1349 = vsel %vm869, %v1346, %v1348
    %v1350 = vrot.slane %v368, 1
    %v1351 = vrot.slane %v369, 1
    %v1352 = vsel %vm869, %v1350, %v1351
    %v1353 = vrot.slane %v370, 1
    %v1354 = vsel %vm869, %v1351, %v1353
    %v1355 = vrot.slane %v371, 1
    %v1356 = vrot.slane %v372, 1
    %v1357 = vsel %vm869, %v1355, %v1356
    %v1358 = vrot.slane %v373, 1
    %v1359 = vsel %vm869, %v1356, %v1358
    %v1360 = vrot.slane %v374, 1
    %v1361 = vrot.slane %v375, 1
    %v1362 = vsel %vm869, %v1360, %v1361
    %v1363 = vrot.slane %v376, 1
    %v1364 = vsel %vm869, %v1361, %v1363
    %v1365 = vrot.slane %v377, 1
    %v1366 = vrot.slane %v378, 1
    %v1367 = vsel %vm869, %v1365, %v1366
    %v1368 = vrot.slane %v379, 1
    %v1369 = vsel %vm869, %v1366, %v1368
    %v1370 = vrot.slane %v380, 1
    %v1371 = vrot.slane %v381, 1
    %v1372 = vsel %vm869, %v1370, %v1371
    %v1373 = vrot.slane %v382, 1
    %v1374 = vsel %vm869, %v1371, %v1373
    %v1375 = vrot.slane %v383, 1
    %v1376 = vrot.slane %v384, 1
    %v1377 = vsel %vm869, %v1375, %v1376
    %v1378 = vrot.slane %v385, 1
    %v1379 = vsel %vm869, %v1376, %v1378
    %v1380 = vrot.slane %v386, 1
    %v1381 = vrot.slane %v387, 1
    %v1382 = vsel %vm869, %v1380, %v1381
    %v1383 = vrot.slane %v388, 1
    %v1384 = vsel %vm869, %v1381, %v1383
    %v1385 = vrot.slane %v389, 1
    %v1386 = vrot.slane %v390, 1
    %v1387 = vsel %vm869, %v1385, %v1386
    %v1388 = vrot.slane %v391, 1
    %v1389 = vsel %vm869, %v1386, %v1388
    %v1390 = vrot.slane %v392, 1
    %v1391 = vrot.slane %v393, 1
    %v1392 = vsel %vm869, %v1390, %v1391
    %v1393 = vrot.slane %v394, 1
    %v1394 = vsel %vm869, %v1391, %v1393
    %v1395 = vrot.slane %v395, 1
    %v1396 = vrot.slane %v396, 1
    %v1397 = vsel %vm869, %v1395, %v1396
    %v1398 = vrot.slane %v397, 1
    %v1399 = vsel %vm869, %v1396, %v1398
    %v1400 = vrot.slane %v398, 1
    %v1401 = vrot.slane %v399, 1
    %v1402 = vsel %vm869, %v1400, %v1401
    %v1403 = vrot.slane %v400, 1
    %v1404 = vsel %vm869, %v1401, %v1403
    %v1405 = vrot.slane %v401, 1
    %v1406 = vrot.slane %v402, 1
    %v1407 = vsel %vm869, %v1405, %v1406
    %v1408 = vrot.slane %v403, 1
    %v1409 = vsel %vm869, %v1406, %v1408
    %v1410 = vrot.slane %v404, 1
    %v1411 = vrot.slane %v405, 1
    %v1412 = vsel %vm869, %v1410, %v1411
    %v1413 = vrot.slane %v406, 1
    %v1414 = vsel %vm869, %v1411, %v1413
    %v1415 = vrot.slane %v407, 1
    %v1416 = vrot.slane %v408, 1
    %v1417 = vsel %vm869, %v1415, %v1416
    %v1418 = vrot.slane %v409, 1
    %v1419 = vsel %vm869, %v1416, %v1418
    %v1420 = vrot.slane %v410, 1
    %v1421 = vrot.slane %v411, 1
    %v1422 = vsel %vm869, %v1420, %v1421
    %v1423 = vrot.slane %v412, 1
    %v1424 = vsel %vm869, %v1421, %v1423
    %v1425 = vrot.slane %v413, 1
    %v1426 = vrot.slane %v414, 1
    %v1427 = vsel %vm869, %v1425, %v1426
    %v1428 = vrot.slane %v415, 1
    %v1429 = vsel %vm869, %v1426, %v1428
    %v1430 = vrot.slane %v422, 1
    %v1431 = vrot.slane %v423, 1
    %v1432 = vsel %vm869, %v1430, %v1431
    %v1433 = vrot.slane %v424, 1
    %v1434 = vsel %vm869, %v1431, %v1433
    %v1435 = vrot.slane %v425, 1
    %v1436 = vrot.slane %v426, 1
    %v1437 = vsel %vm869, %v1435, %v1436
    %v1438 = vrot.slane %v427, 1
    %v1439 = vsel %vm869, %v1436, %v1438
    %v1440 = vrot.slane %v428, 1
    %v1441 = vrot.slane %v429, 1
    %v1442 = vsel %vm869, %v1440, %v1441
    %v1443 = vrot.slane %v430, 1
    %v1444 = vsel %vm869, %v1441, %v1443
    %v1445 = vrot.slane %v431, 1
    %v1446 = vrot.slane %v432, 1
    %v1447 = vsel %vm869, %v1445, %v1446
    %v1448 = vrot.slane %v433, 1
    %v1449 = vsel %vm869, %v1446, %v1448
    %v1450 = vrot.slane %v434, 1
    %v1451 = vrot.slane %v435, 1
    %v1452 = vsel %vm869, %v1450, %v1451
    %v1453 = vrot.slane %v436, 1
    %v1454 = vsel %vm869, %v1451, %v1453
    %v1455 = vrot.slane %v437, 1
    %v1456 = vrot.slane %v438, 1
    %v1457 = vsel %vm869, %v1455, %v1456
    %v1458 = vrot.slane %v439, 1
    %v1459 = vsel %vm869, %v1456, %v1458
    %v1460 = vrot.slane %v440, 1
    %v1461 = vrot.slane %v441, 1
    %v1462 = vsel %vm869, %v1460, %v1461
    %v1463 = vrot.slane %v442, 1
    %v1464 = vsel %vm869, %v1461, %v1463
    %v1465 = vrot.slane %v443, 1
    %v1466 = vrot.slane %v444, 1
    %v1467 = vsel %vm869, %v1465, %v1466
    %v1468 = vrot.slane %v445, 1
    %v1469 = vsel %vm869, %v1466, %v1468
    %v1470 = vrot.slane %v446, 1
    %v1471 = vrot.slane %v447, 1
    %v1472 = vsel %vm869, %v1470, %v1471
    %v1473 = vrot.slane %v448, 1
    %v1474 = vsel %vm869, %v1471, %v1473
    %v1475 = vrot.slane %v449, 1
    %v1476 = vrot.slane %v450, 1
    %v1477 = vsel %vm869, %v1475, %v1476
    %v1478 = vrot.slane %v451, 1
    %v1479 = vsel %vm869, %v1476, %v1478
    %v1480 = vrot.slane %v452, 1
    %v1481 = vrot.slane %v453, 1
    %v1482 = vsel %vm869, %v1480, %v1481
    %v1483 = vrot.slane %v454, 1
    %v1484 = vsel %vm869, %v1481, %v1483
    %v1485 = vrot.slane %v455, 1
    %v1486 = vrot.slane %v456, 1
    %v1487 = vsel %vm869, %v1485, %v1486
    %v1488 = vrot.slane %v457, 1
    %v1489 = vsel %vm869, %v1486, %v1488
    %v1490 = vrot.slane %v458, 1
    %v1491 = vrot.slane %v459, 1
    %v1492 = vsel %vm869, %v1490, %v1491
    %v1493 = vrot.slane %v460, 1
    %v1494 = vsel %vm869, %v1491, %v1493
    %v1495 = vrot.slane %v461, 1
    %v1496 = vrot.slane %v462, 1
    %v1497 = vsel %vm869, %v1495, %v1496
    %v1498 = vrot.slane %v463, 1
    %v1499 = vsel %vm869, %v1496, %v1498
    %v1500 = vrot.slane %v464, 1
    %v1501 = vrot.slane %v465, 1
    %v1502 = vsel %vm869, %v1500, %v1501
    %v1503 = vrot.slane %v466, 1
    %v1504 = vsel %vm869, %v1501, %v1503
    %v1505 = vrot.slane %v467, 1
    %v1506 = vrot.slane %v468, 1
    %v1507 = vsel %vm869, %v1505, %v1506
    %v1508 = vrot.slane %v469, 1
    %v1509 = vsel %vm869, %v1506, %v1508
    %vm1510 = vcmask 23552
    %v1511 = vsel %vm1510, %v872, 0
    %v1513 = vsel %vm1510, %v874, 0
    %v1515 = vsel %vm1510, %v877, 0
    %v1517 = vsel %vm1510, %v879, 0
    %v1519 = vsel %vm1510, %v882, 0
    %v1521 = vsel %vm1510, %v884, 0
    %v1523 = vsel %vm1510, %v887, 0
    %v1525 = vsel %vm1510, %v889, 0
    %v1527 = vsel %vm1510, %v892, 0
    %v1529 = vsel %vm1510, %v894, 0
    %v1531 = vsel %vm1510, %v897, 0
    %v1533 = vsel %vm1510, %v899, 0
    %v1535 = vsel %vm1510, %v902, 0
    %v1537 = vsel %vm1510, %v904, 0
    %v1539 = vsel %vm1510, %v907, 0
    %v1541 = vsel %vm1510, %v909, 0
    %v1543 = vsel %vm1510, %v912, 0
    %v1545 = vsel %vm1510, %v914, 0
    %v1547 = vsel %vm1510, %v917, 0
    %v1549 = vsel %vm1510, %v919, 0
    %v1551 = vsel %vm1510, %v922, 0
    %v1553 = vsel %vm1510, %v924, 0
    %v1555 = vsel %vm1510, %v927, 0
    %v1557 = vsel %vm1510, %v929, 0
    %v1559 = vsel %vm1510, %v932, 0
    %v1561 = vsel %vm1510, %v934, 0
    %v1563 = vsel %vm1510, %v937, 0
    %v1565 = vsel %vm1510, %v939, 0
    %v1567 = vsel %vm1510, %v942, 0
    %v1569 = vsel %vm1510, %v944, 0
    %v1571 = vsel %vm1510, %v947, 0
    %v1573 = vsel %vm1510, %v949, 0
    %v1575 = vsel %vm1510, %v952, 0
    %v1577 = vsel %vm1510, %v954, 0
    %v1579 = vsel %vm1510, %v957, 0
    %v1581 = vsel %vm1510, %v959, 0
    %v1583 = vsel %vm1510, %v962, 0
    %v1585 = vsel %vm1510, %v964, 0
    %v1587 = vsel %vm1510, %v967, 0
    %v1589 = vsel %vm1510, %v969, 0
    %v1591 = vsel %vm1510, %v972, 0
    %v1593 = vsel %vm1510, %v974, 0
    %v1595 = vsel %vm1510, %v977, 0
    %v1597 = vsel %vm1510, %v979, 0
    %v1599 = vsel %vm1510, %v982, 0
    %v1601 = vsel %vm1510, %v984, 0
    %v1603 = vsel %vm1510, %v987, 0
    %v1605 = vsel %vm1510, %v989, 0
    %v1607 = vsel %vm1510, %v992, 0
    %v1609 = vsel %vm1510, %v994, 0
    %v1611 = vsel %vm1510, %v997, 0
    %v1613 = vsel %vm1510, %v999, 0
    %v1615 = vsel %vm1510, %v1002, 0
    %v1617 = vsel %vm1510, %v1004, 0
    %v1619 = vsel %vm1510, %v1007, 0
    %v1621 = vsel %vm1510, %v1009, 0
    %v1623 = vsel %vm1510, %v1012, 0
    %v1625 = vsel %vm1510, %v1014, 0
    %v1627 = vsel %vm1510, %v1017, 0
    %v1629 = vsel %vm1510, %v1019, 0
    %v1631 = vsel %vm1510, %v1022, 0
    %v1633 = vsel %vm1510, %v1024, 0
    %v1635 = vsel %vm1510, %v1027, 0
    %v1637 = vsel %vm1510, %v1029, 0
    %v1639 = vsel %vm1510, %v1032, 0
    %v1641 = vsel %vm1510, %v1034, 0
    %v1643 = vsel %vm1510, %v1037, 0
    %v1645 = vsel %vm1510, %v1039, 0
    %v1647 = vsel %vm1510, %v1042, 0
    %v1649 = vsel %vm1510, %v1044, 0
    %v1651 = vsel %vm1510, %v1047, 0
    %v1653 = vsel %vm1510, %v1049, 0
    %v1655 = vsel %vm1510, %v1052, 0
    %v1657 = vsel %vm1510, %v1054, 0
    %v1659 = vsel %vm1510, %v1057, 0
    %v1661 = vsel %vm1510, %v1059, 0
    %v1663 = vsel %vm1510, %v1062, 0
    %v1665 = vsel %vm1510, %v1064, 0
    %v1667 = vsel %vm1510, %v1067, 0
    %v1669 = vsel %vm1510, %v1069, 0
    %v1671 = vsel %vm1510, %v1072, 0
    %v1673 = vsel %vm1510, %v1074, 0
    %v1675 = vsel %vm1510, %v1077, 0
    %v1677 = vsel %vm1510, %v1079, 0
    %v1679 = vsel %vm1510, %v1082, 0
    %v1681 = vsel %vm1510, %v1084, 0
    %v1683 = vsel %vm1510, %v1087, 0
    %v1685 = vsel %vm1510, %v1089, 0
    %v1687 = vsel %vm1510, %v1092, 0
    %v1689 = vsel %vm1510, %v1094, 0
    %v1691 = vsel %vm1510, %v1097, 0
    %v1693 = vsel %vm1510, %v1099, 0
    %v1695 = vsel %vm1510, %v1102, 0
    %v1697 = vsel %vm1510, %v1104, 0
    %v1699 = vsel %vm1510, %v1107, 0
    %v1701 = vsel %vm1510, %v1109, 0
    %v1703 = vsel %vm1510, %v1112, 0
    %v1705 = vsel %vm1510, %v1114, 0
    %v1707 = vsel %vm1510, %v1117, 0
    %v1709 = vsel %vm1510, %v1119, 0
    %v1711 = vsel %vm1510, %v1122, 0
    %v1713 = vsel %vm1510, %v1124, 0
    %v1715 = vsel %vm1510, %v1127, 0
    %v1717 = vsel %vm1510, %v1129, 0
    %v1719 = vsel %vm1510, %v1132, 0
    %v1721 = vsel %vm1510, %v1134, 0
    %v1723 = vsel %vm1510, %v1137, 0
    %v1725 = vsel %vm1510, %v1139, 0
    %v1727 = vsel %vm1510, %v1142, 0
    %v1729 = vsel %vm1510, %v1144, 0
    %v1731 = vsel %vm1510, %v1147, 0
    %v1733 = vsel %vm1510, %v1149, 0
    %v1735 = vsel %vm1510, %v1152, 0
    %v1737 = vsel %vm1510, %v1154, 0
    %v1739 = vsel %vm1510, %v1157, 0
    %v1741 = vsel %vm1510, %v1159, 0
    %v1743 = vsel %vm1510, %v1162, 0
    %v1745 = vsel %vm1510, %v1164, 0
    %v1747 = vsel %vm1510, %v1167, 0
    %v1749 = vsel %vm1510, %v1169, 0
    %v1751 = vsel %vm1510, %v1172, 0
    %v1753 = vsel %vm1510, %v1174, 0
    %v1755 = vsel %vm1510, %v1177, 0
    %v1757 = vsel %vm1510, %v1179, 0
    %v1759 = vsel %vm1510, %v1182, 0
    %v1761 = vsel %vm1510, %v1184, 0
    %v1763 = vsel %vm1510, %v1187, 0
    %v1765 = vsel %vm1510, %v1189, 0
    %v1767 = vsel %vm1510, %v1192, 0
    %v1769 = vsel %vm1510, %v1194, 0
    %v1771 = vsel %vm1510, %v1197, 0
    %v1773 = vsel %vm1510, %v1199, 0
    %v1775 = vsel %vm1510, %v1202, 0
    %v1777 = vsel %vm1510, %v1204, 0
    %v1779 = vsel %vm1510, %v1207, 0
    %v1781 = vsel %vm1510, %v1209, 0
    %v1783 = vsel %vm1510, %v1212, 0
    %v1785 = vsel %vm1510, %v1214, 0
    %v1787 = vsel %vm1510, %v1217, 0
    %v1789 = vsel %vm1510, %v1219, 0
    %v1791 = vsel %vm1510, %v1222, 0
    %v1793 = vsel %vm1510, %v1224, 0
    %v1795 = vsel %vm1510, %v1227, 0
    %v1797 = vsel %vm1510, %v1229, 0
    %v1799 = vsel %vm1510, %v1232, 0
    %v1801 = vsel %vm1510, %v1234, 0
    %v1803 = vsel %vm1510, %v1237, 0
    %v1805 = vsel %vm1510, %v1239, 0
    %v1807 = vsel %vm1510, %v1242, 0
    %v1809 = vsel %vm1510, %v1244, 0
    %v1811 = vsel %vm1510, %v1247, 0
    %v1813 = vsel %vm1510, %v1249, 0
    %v1815 = vsel %vm1510, %v1252, 0
    %v1817 = vsel %vm1510, %v1254, 0
    %v1819 = vsel %vm1510, %v1257, 0
    %v1821 = vsel %vm1510, %v1259, 0
    %v1823 = vsel %vm1510, %v1262, 0
    %v1825 = vsel %vm1510, %v1264, 0
    %v1827 = vsel %vm1510, %v1267, 0
    %v1829 = vsel %vm1510, %v1269, 0
    %v1831 = vsel %vm1510, %v1272, 0
    %v1833 = vsel %vm1510, %v1274, 0
    %v1835 = vsel %vm1510, %v1277, 0
    %v1837 = vsel %vm1510, %v1279, 0
    %v1839 = vsel %vm1510, %v1282, 0
    %v1841 = vsel %vm1510, %v1284, 0
    %v1843 = vsel %vm1510, %v1287, 0
    %v1845 = vsel %vm1510, %v1289, 0
    %v1847 = vsel %vm1510, %v1292, 0
    %v1849 = vsel %vm1510, %v1294, 0
    %v1851 = vsel %vm1510, %v1297, 0
    %v1853 = vsel %vm1510, %v1299, 0
    %v1855 = vsel %vm1510, %v1302, 0
    %v1857 = vsel %vm1510, %v1304, 0
    %v1859 = vsel %vm1510, %v1307, 0
    %v1861 = vsel %vm1510, %v1309, 0
    %v1863 = vsel %vm1510, %v1312, 0
    %v1865 = vsel %vm1510, %v1314, 0
    %v1867 = vsel %vm1510, %v1317, 0
    %v1869 = vsel %vm1510, %v1319, 0
    %v1871 = vsel %vm1510, %v1322, 0
    %v1873 = vsel %vm1510, %v1324, 0
    %v1875 = vsel %vm1510, %v1327, 0
    %v1877 = vsel %vm1510, %v1329, 0
    %v1879 = vsel %vm1510, %v1332, 0
    %v1881 = vsel %vm1510, %v1334, 0
    %v1883 = vsel %vm1510, %v1337, 0
    %v1885 = vsel %vm1510, %v1339, 0
    %v1887 = vsel %vm1510, %v1342, 0
    %v1889 = vsel %vm1510, %v1344, 0
    %v1891 = vsel %vm1510, %v1347, 0
    %v1893 = vsel %vm1510, %v1349, 0
    %v1895 = vsel %vm1510, %v1352, 0
    %v1897 = vsel %vm1510, %v1354, 0
    %v1899 = vsel %vm1510, %v1357, 0
    %v1901 = vsel %vm1510, %v1359, 0
    %v1903 = vsel %vm1510, %v1362, 0
    %v1905 = vsel %vm1510, %v1364, 0
    %v1907 = vsel %vm1510, %v1367, 0
    %v1909 = vsel %vm1510, %v1369, 0
    %v1911 = vsel %vm1510, %v1372, 0
    %v1913 = vsel %vm1510, %v1374, 0
    %v1915 = vsel %vm1510, %v1377, 0
    %v1917 = vsel %vm1510, %v1379, 0
    %v1919 = vsel %vm1510, %v1382, 0
    %v1921 = vsel %vm1510, %v1384, 0
    %v1923 = vsel %vm1510, %v1387, 0
    %v1925 = vsel %vm1510, %v1389, 0
    %v1927 = vsel %vm1510, %v1392, 0
    %v1929 = vsel %vm1510, %v1394, 0
    %v1931 = vsel %vm1510, %v1397, 0
    %v1933 = vsel %vm1510, %v1399, 0
    %v1935 = vsel %vm1510, %v1402, 0
    %v1937 = vsel %vm1510, %v1404, 0
    %v1939 = vsel %vm1510, %v1407, 0
    %v1941 = vsel %vm1510, %v1409, 0
    %v1943 = vsel %vm1510, %v1412, 0
    %v1945 = vsel %vm1510, %v1414, 0
    %v1947 = vsel %vm1510, %v1417, 0
    %v1949 = vsel %vm1510, %v1419, 0
    %v1951 = vsel %vm1510, %v1422, 0
    %v1953 = vsel %vm1510, %v1424, 0
    %v1955 = vsel %vm1510, %v1427, 0
    %v1957 = vsel %vm1510, %v1429, 0
    %v1959 = vsel %vm1510, %v1432, 0
    %v1961 = vsel %vm1510, %v1434, 0
    %v1963 = vsel %vm1510, %v1437, 0
    %v1965 = vsel %vm1510, %v1439, 0
    %v1967 = vsel %vm1510, %v1442, 0
    %v1969 = vsel %vm1510, %v1444, 0
    %v1971 = vsel %vm1510, %v1447, 0
    %v1973 = vsel %vm1510, %v1449, 0
    %v1975 = vsel %vm1510, %v1452, 0
    %v1977 = vsel %vm1510, %v1454, 0
    %v1979 = vsel %vm1510, %v1457, 0
    %v1981 = vsel %vm1510, %v1459, 0
    %v1983 = vsel %vm1510, %v1462, 0
    %v1985 = vsel %vm1510, %v1464, 0
    %v1987 = vsel %vm1510, %v1467, 0
    %v1989 = vsel %vm1510, %v1469, 0
    %v1991 = vsel %vm1510, %v1472, 0
    %v1993 = vsel %vm1510, %v1474, 0
    %v1995 = vsel %vm1510, %v1477, 0
    %v1997 = vsel %vm1510, %v1479, 0
    %v1999 = vsel %vm1510, %v1482, 0
    %v2001 = vsel %vm1510, %v1484, 0
    %v2003 = vsel %vm1510, %v1487, 0
    %v2005 = vsel %vm1510, %v1489, 0
    %v2007 = vsel %vm1510, %v1492, 0
    %v2009 = vsel %vm1510, %v1494, 0
    %v2011 = vsel %vm1510, %v1497, 0
    %v2013 = vsel %vm1510, %v1499, 0
    %v2015 = vsel %vm1510, %v1502, 0
    %v2017 = vsel %vm1510, %v1504, 0
    %v2019 = vsel %vm1510, %v1507, 0
    %v2021 = vsel %vm1510, %v1509, 0
    %vm2023 = vcmask 1042432
    %v2025 = vsel %vm2023, %v477, 0
    %2027 = vmatpush.msra.mxu0 0.0
    %2028 = vmatpush.msra.mxu0 0.0
    %2029 = vmatpush.msra.mxu0 0.0
    %2030 = vmatpush.msra.mxu0 0.0
    %2031 = vmatpush.msra.mxu0 0.0
    %2032 = vmatpush.msra.mxu0 0.0
    %2033 = vmatpush.msra.mxu0 0.0
    %2034 = vmatpush.msra.mxu0 0.0
    %2035 = vmatpush.msra.mxu0 0.0
    %2036 = vmatpush.msra.mxu0 0.0
    %2037 = vmatpush.msra.mxu0 0.0
    %2038 = vmatpush.msra.mxu0 0.0
    %2039 = vmatpush.msra.mxu0 0.0
    %2040 = vmatpush.msra.mxu0 0.0
    %2041 = vmatpush.msra.mxu0 0.0
    %2042 = vmatpush.msra.mxu0 %v2025
    %2043 = vmatmul.f32.gmra.mxu0 %v1511
    %v2044 = vpop.f32.mrf.mxu0
    %v2045 = vadd.f32 0.0, %v2044
    %2046 = vmatmul.f32.gmra.mxu0 %v1513
    %v2047 = vpop.f32.mrf.mxu0
    %v2048 = vadd.f32 0.0, %v2047
    %2049 = vmatmul.f32.gmra.mxu0 %v1515
    %v2050 = vpop.f32.mrf.mxu0
    %v2051 = vadd.f32 0.0, %v2050
    %2052 = vmatmul.f32.gmra.mxu0 %v1517
    %v2053 = vpop.f32.mrf.mxu0
    %v2054 = vadd.f32 0.0, %v2053
    %2055 = vmatmul.f32.gmra.mxu0 %v1519
    %v2056 = vpop.f32.mrf.mxu0
    %v2057 = vadd.f32 0.0, %v2056
    %2058 = vmatmul.f32.gmra.mxu0 %v1521
    %v2059 = vpop.f32.mrf.mxu0
    %v2060 = vadd.f32 0.0, %v2059
    %2061 = vmatmul.f32.gmra.mxu0 %v1523
    %v2062 = vpop.f32.mrf.mxu0
    %v2063 = vadd.f32 0.0, %v2062
    %2064 = vmatmul.f32.gmra.mxu0 %v1525
    %v2065 = vpop.f32.mrf.mxu0
    %v2066 = vadd.f32 0.0, %v2065
    %2067 = vmatmul.f32.gmra.mxu0 %v1527
    %v2068 = vpop.f32.mrf.mxu0
    %v2069 = vadd.f32 0.0, %v2068
    %2070 = vmatmul.f32.gmra.mxu0 %v1529
    %v2071 = vpop.f32.mrf.mxu0
    %v2072 = vadd.f32 0.0, %v2071
    %2073 = vmatmul.f32.gmra.mxu0 %v1531
    %v2074 = vpop.f32.mrf.mxu0
    %v2075 = vadd.f32 0.0, %v2074
    %2076 = vmatmul.f32.gmra.mxu0 %v1533
    %v2077 = vpop.f32.mrf.mxu0
    %v2078 = vadd.f32 0.0, %v2077
    %2079 = vmatmul.f32.gmra.mxu0 %v1535
    %v2080 = vpop.f32.mrf.mxu0
    %v2081 = vadd.f32 0.0, %v2080
    %2082 = vmatmul.f32.gmra.mxu0 %v1537
    %v2083 = vpop.f32.mrf.mxu0
    %v2084 = vadd.f32 0.0, %v2083
    %2085 = vmatmul.f32.gmra.mxu0 %v1539
    %v2086 = vpop.f32.mrf.mxu0
    %v2087 = vadd.f32 0.0, %v2086
    %2088 = vmatmul.f32.gmra.mxu0 %v1541
    %v2089 = vpop.f32.mrf.mxu0
    %v2090 = vadd.f32 0.0, %v2089
    %2091 = vmatmul.f32.gmra.mxu0 %v1543
    %v2092 = vpop.f32.mrf.mxu0
    %v2093 = vadd.f32 0.0, %v2092
    %2094 = vmatmul.f32.gmra.mxu0 %v1545
    %v2095 = vpop.f32.mrf.mxu0
    %v2096 = vadd.f32 0.0, %v2095
    %2097 = vmatmul.f32.gmra.mxu0 %v1547
    %v2098 = vpop.f32.mrf.mxu0
    %v2099 = vadd.f32 0.0, %v2098
    %2100 = vmatmul.f32.gmra.mxu0 %v1549
    %v2101 = vpop.f32.mrf.mxu0
    %v2102 = vadd.f32 0.0, %v2101
    %2103 = vmatmul.f32.gmra.mxu0 %v1551
    %v2104 = vpop.f32.mrf.mxu0
    %v2105 = vadd.f32 0.0, %v2104
    %2106 = vmatmul.f32.gmra.mxu0 %v1553
    %v2107 = vpop.f32.mrf.mxu0
    %v2108 = vadd.f32 0.0, %v2107
    %2109 = vmatmul.f32.gmra.mxu0 %v1555
    %v2110 = vpop.f32.mrf.mxu0
    %v2111 = vadd.f32 0.0, %v2110
    %2112 = vmatmul.f32.gmra.mxu0 %v1557
    %v2113 = vpop.f32.mrf.mxu0
    %v2114 = vadd.f32 0.0, %v2113
    %2115 = vmatmul.f32.gmra.mxu0 %v1559
    %v2116 = vpop.f32.mrf.mxu0
    %v2117 = vadd.f32 0.0, %v2116
    %2118 = vmatmul.f32.gmra.mxu0 %v1561
    %v2119 = vpop.f32.mrf.mxu0
    %v2120 = vadd.f32 0.0, %v2119
    %2121 = vmatmul.f32.gmra.mxu0 %v1563
    %v2122 = vpop.f32.mrf.mxu0
    %v2123 = vadd.f32 0.0, %v2122
    %2124 = vmatmul.f32.gmra.mxu0 %v1565
    %v2125 = vpop.f32.mrf.mxu0
    %v2126 = vadd.f32 0.0, %v2125
    %2127 = vmatmul.f32.gmra.mxu0 %v1567
    %v2128 = vpop.f32.mrf.mxu0
    %v2129 = vadd.f32 0.0, %v2128
    %2130 = vmatmul.f32.gmra.mxu0 %v1569
    %v2131 = vpop.f32.mrf.mxu0
    %v2132 = vadd.f32 0.0, %v2131
    %2133 = vmatmul.f32.gmra.mxu0 %v1571
    %v2134 = vpop.f32.mrf.mxu0
    %v2135 = vadd.f32 0.0, %v2134
    %2136 = vmatmul.f32.gmra.mxu0 %v1573
    %v2137 = vpop.f32.mrf.mxu0
    %v2138 = vadd.f32 0.0, %v2137
    %2139 = vmatmul.f32.gmra.mxu0 %v1575
    %v2140 = vpop.f32.mrf.mxu0
    %v2141 = vadd.f32 0.0, %v2140
    %2142 = vmatmul.f32.gmra.mxu0 %v1577
    %v2143 = vpop.f32.mrf.mxu0
    %v2144 = vadd.f32 0.0, %v2143
    %2145 = vmatmul.f32.gmra.mxu0 %v1579
    %v2146 = vpop.f32.mrf.mxu0
    %v2147 = vadd.f32 0.0, %v2146
    %2148 = vmatmul.f32.gmra.mxu0 %v1581
    %v2149 = vpop.f32.mrf.mxu0
    %v2150 = vadd.f32 0.0, %v2149
    %2151 = vmatmul.f32.gmra.mxu0 %v1583
    %v2152 = vpop.f32.mrf.mxu0
    %v2153 = vadd.f32 0.0, %v2152
    %2154 = vmatmul.f32.gmra.mxu0 %v1585
    %v2155 = vpop.f32.mrf.mxu0
    %v2156 = vadd.f32 0.0, %v2155
    %2157 = vmatmul.f32.gmra.mxu0 %v1587
    %v2158 = vpop.f32.mrf.mxu0
    %v2159 = vadd.f32 0.0, %v2158
    %2160 = vmatmul.f32.gmra.mxu0 %v1589
    %v2161 = vpop.f32.mrf.mxu0
    %v2162 = vadd.f32 0.0, %v2161
    %2163 = vmatmul.f32.gmra.mxu0 %v1591
    %v2164 = vpop.f32.mrf.mxu0
    %v2165 = vadd.f32 0.0, %v2164
    %2166 = vmatmul.f32.gmra.mxu0 %v1593
    %v2167 = vpop.f32.mrf.mxu0
    %v2168 = vadd.f32 0.0, %v2167
    %2169 = vmatmul.f32.gmra.mxu0 %v1595
    %v2170 = vpop.f32.mrf.mxu0
    %v2171 = vadd.f32 0.0, %v2170
    %2172 = vmatmul.f32.gmra.mxu0 %v1597
    %v2173 = vpop.f32.mrf.mxu0
    %v2174 = vadd.f32 0.0, %v2173
    %2175 = vmatmul.f32.gmra.mxu0 %v1599
    %v2176 = vpop.f32.mrf.mxu0
    %v2177 = vadd.f32 0.0, %v2176
    %2178 = vmatmul.f32.gmra.mxu0 %v1601
    %v2179 = vpop.f32.mrf.mxu0
    %v2180 = vadd.f32 0.0, %v2179
    %2181 = vmatmul.f32.gmra.mxu0 %v1603
    %v2182 = vpop.f32.mrf.mxu0
    %v2183 = vadd.f32 0.0, %v2182
    %2184 = vmatmul.f32.gmra.mxu0 %v1605
    %v2185 = vpop.f32.mrf.mxu0
    %v2186 = vadd.f32 0.0, %v2185
    %2187 = vmatmul.f32.gmra.mxu0 %v1607
    %v2188 = vpop.f32.mrf.mxu0
    %v2189 = vadd.f32 0.0, %v2188
    %2190 = vmatmul.f32.gmra.mxu0 %v1609
    %v2191 = vpop.f32.mrf.mxu0
    %v2192 = vadd.f32 0.0, %v2191
    %2193 = vmatmul.f32.gmra.mxu0 %v1611
    %v2194 = vpop.f32.mrf.mxu0
    %v2195 = vadd.f32 0.0, %v2194
    %2196 = vmatmul.f32.gmra.mxu0 %v1613
    %v2197 = vpop.f32.mrf.mxu0
    %v2198 = vadd.f32 0.0, %v2197
    %2199 = vmatmul.f32.gmra.mxu0 %v1615
    %v2200 = vpop.f32.mrf.mxu0
    %v2201 = vadd.f32 0.0, %v2200
    %2202 = vmatmul.f32.gmra.mxu0 %v1617
    %v2203 = vpop.f32.mrf.mxu0
    %v2204 = vadd.f32 0.0, %v2203
    %2205 = vmatmul.f32.gmra.mxu0 %v1619
    %v2206 = vpop.f32.mrf.mxu0
    %v2207 = vadd.f32 0.0, %v2206
    %2208 = vmatmul.f32.gmra.mxu0 %v1621
    %v2209 = vpop.f32.mrf.mxu0
    %v2210 = vadd.f32 0.0, %v2209
    %2211 = vmatmul.f32.gmra.mxu0 %v1623
    %v2212 = vpop.f32.mrf.mxu0
    %v2213 = vadd.f32 0.0, %v2212
    %2214 = vmatmul.f32.gmra.mxu0 %v1625
    %v2215 = vpop.f32.mrf.mxu0
    %v2216 = vadd.f32 0.0, %v2215
    %2217 = vmatmul.f32.gmra.mxu0 %v1627
    %v2218 = vpop.f32.mrf.mxu0
    %v2219 = vadd.f32 0.0, %v2218
    %2220 = vmatmul.f32.gmra.mxu0 %v1629
    %v2221 = vpop.f32.mrf.mxu0
    %v2222 = vadd.f32 0.0, %v2221
    %2223 = vmatmul.f32.gmra.mxu0 %v1631
    %v2224 = vpop.f32.mrf.mxu0
    %v2225 = vadd.f32 0.0, %v2224
    %2226 = vmatmul.f32.gmra.mxu0 %v1633
    %v2227 = vpop.f32.mrf.mxu0
    %v2228 = vadd.f32 0.0, %v2227
    %2229 = vmatmul.f32.gmra.mxu0 %v1635
    %v2230 = vpop.f32.mrf.mxu0
    %v2231 = vadd.f32 0.0, %v2230
    %2232 = vmatmul.f32.gmra.mxu0 %v1637
    %v2233 = vpop.f32.mrf.mxu0
    %v2234 = vadd.f32 0.0, %v2233
    %2235 = vmatmul.f32.gmra.mxu0 %v1639
    %v2236 = vpop.f32.mrf.mxu0
    %v2237 = vadd.f32 0.0, %v2236
    %2238 = vmatmul.f32.gmra.mxu0 %v1641
    %v2239 = vpop.f32.mrf.mxu0
    %v2240 = vadd.f32 0.0, %v2239
    %2241 = vmatmul.f32.gmra.mxu0 %v1643
    %v2242 = vpop.f32.mrf.mxu0
    %v2243 = vadd.f32 0.0, %v2242
    %2244 = vmatmul.f32.gmra.mxu0 %v1645
    %v2245 = vpop.f32.mrf.mxu0
    %v2246 = vadd.f32 0.0, %v2245
    %2247 = vmatmul.f32.gmra.mxu0 %v1647
    %v2248 = vpop.f32.mrf.mxu0
    %v2249 = vadd.f32 0.0, %v2248
    %2250 = vmatmul.f32.gmra.mxu0 %v1649
    %v2251 = vpop.f32.mrf.mxu0
    %v2252 = vadd.f32 0.0, %v2251
    %2253 = vmatmul.f32.gmra.mxu0 %v1651
    %v2254 = vpop.f32.mrf.mxu0
    %v2255 = vadd.f32 0.0, %v2254
    %2256 = vmatmul.f32.gmra.mxu0 %v1653
    %v2257 = vpop.f32.mrf.mxu0
    %v2258 = vadd.f32 0.0, %v2257
    %2259 = vmatmul.f32.gmra.mxu0 %v1655
    %v2260 = vpop.f32.mrf.mxu0
    %v2261 = vadd.f32 0.0, %v2260
    %2262 = vmatmul.f32.gmra.mxu0 %v1657
    %v2263 = vpop.f32.mrf.mxu0
    %v2264 = vadd.f32 0.0, %v2263
    %2265 = vmatmul.f32.gmra.mxu0 %v1659
    %v2266 = vpop.f32.mrf.mxu0
    %v2267 = vadd.f32 0.0, %v2266
    %2268 = vmatmul.f32.gmra.mxu0 %v1661
    %v2269 = vpop.f32.mrf.mxu0
    %v2270 = vadd.f32 0.0, %v2269
    %2271 = vmatmul.f32.gmra.mxu0 %v1663
    %v2272 = vpop.f32.mrf.mxu0
    %v2273 = vadd.f32 0.0, %v2272
    %2274 = vmatmul.f32.gmra.mxu0 %v1665
    %v2275 = vpop.f32.mrf.mxu0
    %v2276 = vadd.f32 0.0, %v2275
    %2277 = vmatmul.f32.gmra.mxu0 %v1667
    %v2278 = vpop.f32.mrf.mxu0
    %v2279 = vadd.f32 0.0, %v2278
    %2280 = vmatmul.f32.gmra.mxu0 %v1669
    %v2281 = vpop.f32.mrf.mxu0
    %v2282 = vadd.f32 0.0, %v2281
    %2283 = vmatmul.f32.gmra.mxu0 %v1671
    %v2284 = vpop.f32.mrf.mxu0
    %v2285 = vadd.f32 0.0, %v2284
    %2286 = vmatmul.f32.gmra.mxu0 %v1673
    %v2287 = vpop.f32.mrf.mxu0
    %v2288 = vadd.f32 0.0, %v2287
    %2289 = vmatmul.f32.gmra.mxu0 %v1675
    %v2290 = vpop.f32.mrf.mxu0
    %v2291 = vadd.f32 0.0, %v2290
    %2292 = vmatmul.f32.gmra.mxu0 %v1677
    %v2293 = vpop.f32.mrf.mxu0
    %v2294 = vadd.f32 0.0, %v2293
    %2295 = vmatmul.f32.gmra.mxu0 %v1679
    %v2296 = vpop.f32.mrf.mxu0
    %v2297 = vadd.f32 0.0, %v2296
    %2298 = vmatmul.f32.gmra.mxu0 %v1681
    %v2299 = vpop.f32.mrf.mxu0
    %v2300 = vadd.f32 0.0, %v2299
    %2301 = vmatmul.f32.gmra.mxu0 %v1683
    %v2302 = vpop.f32.mrf.mxu0
    %v2303 = vadd.f32 0.0, %v2302
    %2304 = vmatmul.f32.gmra.mxu0 %v1685
    %v2305 = vpop.f32.mrf.mxu0
    %v2306 = vadd.f32 0.0, %v2305
    %2307 = vmatmul.f32.gmra.mxu0 %v1687
    %v2308 = vpop.f32.mrf.mxu0
    %v2309 = vadd.f32 0.0, %v2308
    %2310 = vmatmul.f32.gmra.mxu0 %v1689
    %v2311 = vpop.f32.mrf.mxu0
    %v2312 = vadd.f32 0.0, %v2311
    %2313 = vmatmul.f32.gmra.mxu0 %v1691
    %v2314 = vpop.f32.mrf.mxu0
    %v2315 = vadd.f32 0.0, %v2314
    %2316 = vmatmul.f32.gmra.mxu0 %v1693
    %v2317 = vpop.f32.mrf.mxu0
    %v2318 = vadd.f32 0.0, %v2317
    %2319 = vmatmul.f32.gmra.mxu0 %v1695
    %v2320 = vpop.f32.mrf.mxu0
    %v2321 = vadd.f32 0.0, %v2320
    %2322 = vmatmul.f32.gmra.mxu0 %v1697
    %v2323 = vpop.f32.mrf.mxu0
    %v2324 = vadd.f32 0.0, %v2323
    %2325 = vmatmul.f32.gmra.mxu0 %v1699
    %v2326 = vpop.f32.mrf.mxu0
    %v2327 = vadd.f32 0.0, %v2326
    %2328 = vmatmul.f32.gmra.mxu0 %v1701
    %v2329 = vpop.f32.mrf.mxu0
    %v2330 = vadd.f32 0.0, %v2329
    %2331 = vmatmul.f32.gmra.mxu0 %v1703
    %v2332 = vpop.f32.mrf.mxu0
    %v2333 = vadd.f32 0.0, %v2332
    %2334 = vmatmul.f32.gmra.mxu0 %v1705
    %v2335 = vpop.f32.mrf.mxu0
    %v2336 = vadd.f32 0.0, %v2335
    %2337 = vmatmul.f32.gmra.mxu0 %v1707
    %v2338 = vpop.f32.mrf.mxu0
    %v2339 = vadd.f32 0.0, %v2338
    %2340 = vmatmul.f32.gmra.mxu0 %v1709
    %v2341 = vpop.f32.mrf.mxu0
    %v2342 = vadd.f32 0.0, %v2341
    %2343 = vmatmul.f32.gmra.mxu0 %v1711
    %v2344 = vpop.f32.mrf.mxu0
    %v2345 = vadd.f32 0.0, %v2344
    %2346 = vmatmul.f32.gmra.mxu0 %v1713
    %v2347 = vpop.f32.mrf.mxu0
    %v2348 = vadd.f32 0.0, %v2347
    %2349 = vmatmul.f32.gmra.mxu0 %v1715
    %v2350 = vpop.f32.mrf.mxu0
    %v2351 = vadd.f32 0.0, %v2350
    %2352 = vmatmul.f32.gmra.mxu0 %v1717
    %v2353 = vpop.f32.mrf.mxu0
    %v2354 = vadd.f32 0.0, %v2353
    %2355 = vmatmul.f32.gmra.mxu0 %v1719
    %v2356 = vpop.f32.mrf.mxu0
    %v2357 = vadd.f32 0.0, %v2356
    %2358 = vmatmul.f32.gmra.mxu0 %v1721
    %v2359 = vpop.f32.mrf.mxu0
    %v2360 = vadd.f32 0.0, %v2359
    %2361 = vmatmul.f32.gmra.mxu0 %v1723
    %v2362 = vpop.f32.mrf.mxu0
    %v2363 = vadd.f32 0.0, %v2362
    %2364 = vmatmul.f32.gmra.mxu0 %v1725
    %v2365 = vpop.f32.mrf.mxu0
    %v2366 = vadd.f32 0.0, %v2365
    %2367 = vmatmul.f32.gmra.mxu0 %v1727
    %v2368 = vpop.f32.mrf.mxu0
    %v2369 = vadd.f32 0.0, %v2368
    %2370 = vmatmul.f32.gmra.mxu0 %v1729
    %v2371 = vpop.f32.mrf.mxu0
    %v2372 = vadd.f32 0.0, %v2371
    %2373 = vmatmul.f32.gmra.mxu0 %v1731
    %v2374 = vpop.f32.mrf.mxu0
    %v2375 = vadd.f32 0.0, %v2374
    %2376 = vmatmul.f32.gmra.mxu0 %v1733
    %v2377 = vpop.f32.mrf.mxu0
    %v2378 = vadd.f32 0.0, %v2377
    %2379 = vmatmul.f32.gmra.mxu0 %v1735
    %v2380 = vpop.f32.mrf.mxu0
    %v2381 = vadd.f32 0.0, %v2380
    %2382 = vmatmul.f32.gmra.mxu0 %v1737
    %v2383 = vpop.f32.mrf.mxu0
    %v2384 = vadd.f32 0.0, %v2383
    %2385 = vmatmul.f32.gmra.mxu0 %v1739
    %v2386 = vpop.f32.mrf.mxu0
    %v2387 = vadd.f32 0.0, %v2386
    %2388 = vmatmul.f32.gmra.mxu0 %v1741
    %v2389 = vpop.f32.mrf.mxu0
    %v2390 = vadd.f32 0.0, %v2389
    %2391 = vmatmul.f32.gmra.mxu0 %v1743
    %v2392 = vpop.f32.mrf.mxu0
    %v2393 = vadd.f32 0.0, %v2392
    %2394 = vmatmul.f32.gmra.mxu0 %v1745
    %v2395 = vpop.f32.mrf.mxu0
    %v2396 = vadd.f32 0.0, %v2395
    %2397 = vmatmul.f32.gmra.mxu0 %v1747
    %v2398 = vpop.f32.mrf.mxu0
    %v2399 = vadd.f32 0.0, %v2398
    %2400 = vmatmul.f32.gmra.mxu0 %v1749
    %v2401 = vpop.f32.mrf.mxu0
    %v2402 = vadd.f32 0.0, %v2401
    %2403 = vmatmul.f32.gmra.mxu0 %v1751
    %v2404 = vpop.f32.mrf.mxu0
    %v2405 = vadd.f32 0.0, %v2404
    %2406 = vmatmul.f32.gmra.mxu0 %v1753
    %v2407 = vpop.f32.mrf.mxu0
    %v2408 = vadd.f32 0.0, %v2407
    %2409 = vmatmul.f32.gmra.mxu0 %v1755
    %v2410 = vpop.f32.mrf.mxu0
    %v2411 = vadd.f32 0.0, %v2410
    %2412 = vmatmul.f32.gmra.mxu0 %v1757
    %v2413 = vpop.f32.mrf.mxu0
    %v2414 = vadd.f32 0.0, %v2413
    %2415 = vmatmul.f32.gmra.mxu0 %v1759
    %v2416 = vpop.f32.mrf.mxu0
    %v2417 = vadd.f32 0.0, %v2416
    %2418 = vmatmul.f32.gmra.mxu0 %v1761
    %v2419 = vpop.f32.mrf.mxu0
    %v2420 = vadd.f32 0.0, %v2419
    %2421 = vmatmul.f32.gmra.mxu0 %v1763
    %v2422 = vpop.f32.mrf.mxu0
    %v2423 = vadd.f32 0.0, %v2422
    %2424 = vmatmul.f32.gmra.mxu0 %v1765
    %v2425 = vpop.f32.mrf.mxu0
    %v2426 = vadd.f32 0.0, %v2425
    %2427 = vmatmul.f32.gmra.mxu0 %v1767
    %v2428 = vpop.f32.mrf.mxu0
    %v2429 = vadd.f32 0.0, %v2428
    %2430 = vmatmul.f32.gmra.mxu0 %v1769
    %v2431 = vpop.f32.mrf.mxu0
    %v2432 = vadd.f32 0.0, %v2431
    %2433 = vmatmul.f32.gmra.mxu0 %v1771
    %v2434 = vpop.f32.mrf.mxu0
    %v2435 = vadd.f32 0.0, %v2434
    %2436 = vmatmul.f32.gmra.mxu0 %v1773
    %v2437 = vpop.f32.mrf.mxu0
    %v2438 = vadd.f32 0.0, %v2437
    %2439 = vmatmul.f32.gmra.mxu0 %v1775
    %v2440 = vpop.f32.mrf.mxu0
    %v2441 = vadd.f32 0.0, %v2440
    %2442 = vmatmul.f32.gmra.mxu0 %v1777
    %v2443 = vpop.f32.mrf.mxu0
    %v2444 = vadd.f32 0.0, %v2443
    %2445 = vmatmul.f32.gmra.mxu0 %v1779
    %v2446 = vpop.f32.mrf.mxu0
    %v2447 = vadd.f32 0.0, %v2446
    %2448 = vmatmul.f32.gmra.mxu0 %v1781
    %v2449 = vpop.f32.mrf.mxu0
    %v2450 = vadd.f32 0.0, %v2449
    %2451 = vmatmul.f32.gmra.mxu0 %v1783
    %v2452 = vpop.f32.mrf.mxu0
    %v2453 = vadd.f32 0.0, %v2452
    %2454 = vmatmul.f32.gmra.mxu0 %v1785
    %v2455 = vpop.f32.mrf.mxu0
    %v2456 = vadd.f32 0.0, %v2455
    %2457 = vmatmul.f32.gmra.mxu0 %v1787
    %v2458 = vpop.f32.mrf.mxu0
    %v2459 = vadd.f32 0.0, %v2458
    %2460 = vmatmul.f32.gmra.mxu0 %v1789
    %v2461 = vpop.f32.mrf.mxu0
    %v2462 = vadd.f32 0.0, %v2461
    %2463 = vmatmul.f32.gmra.mxu0 %v1791
    %v2464 = vpop.f32.mrf.mxu0
    %v2465 = vadd.f32 0.0, %v2464
    %2466 = vmatmul.f32.gmra.mxu0 %v1793
    %v2467 = vpop.f32.mrf.mxu0
    %v2468 = vadd.f32 0.0, %v2467
    %2469 = vmatmul.f32.gmra.mxu0 %v1795
    %v2470 = vpop.f32.mrf.mxu0
    %v2471 = vadd.f32 0.0, %v2470
    %2472 = vmatmul.f32.gmra.mxu0 %v1797
    %v2473 = vpop.f32.mrf.mxu0
    %v2474 = vadd.f32 0.0, %v2473
    %2475 = vmatmul.f32.gmra.mxu0 %v1799
    %v2476 = vpop.f32.mrf.mxu0
    %v2477 = vadd.f32 0.0, %v2476
    %2478 = vmatmul.f32.gmra.mxu0 %v1801
    %v2479 = vpop.f32.mrf.mxu0
    %v2480 = vadd.f32 0.0, %v2479
    %2481 = vmatmul.f32.gmra.mxu0 %v1803
    %v2482 = vpop.f32.mrf.mxu0
    %v2483 = vadd.f32 0.0, %v2482
    %2484 = vmatmul.f32.gmra.mxu0 %v1805
    %v2485 = vpop.f32.mrf.mxu0
    %v2486 = vadd.f32 0.0, %v2485
    %2487 = vmatmul.f32.gmra.mxu0 %v1807
    %v2488 = vpop.f32.mrf.mxu0
    %v2489 = vadd.f32 0.0, %v2488
    %2490 = vmatmul.f32.gmra.mxu0 %v1809
    %v2491 = vpop.f32.mrf.mxu0
    %v2492 = vadd.f32 0.0, %v2491
    %2493 = vmatmul.f32.gmra.mxu0 %v1811
    %v2494 = vpop.f32.mrf.mxu0
    %v2495 = vadd.f32 0.0, %v2494
    %2496 = vmatmul.f32.gmra.mxu0 %v1813
    %v2497 = vpop.f32.mrf.mxu0
    %v2498 = vadd.f32 0.0, %v2497
    %2499 = vmatmul.f32.gmra.mxu0 %v1815
    %v2500 = vpop.f32.mrf.mxu0
    %v2501 = vadd.f32 0.0, %v2500
    %2502 = vmatmul.f32.gmra.mxu0 %v1817
    %v2503 = vpop.f32.mrf.mxu0
    %v2504 = vadd.f32 0.0, %v2503
    %2505 = vmatmul.f32.gmra.mxu0 %v1819
    %v2506 = vpop.f32.mrf.mxu0
    %v2507 = vadd.f32 0.0, %v2506
    %2508 = vmatmul.f32.gmra.mxu0 %v1821
    %v2509 = vpop.f32.mrf.mxu0
    %v2510 = vadd.f32 0.0, %v2509
    %2511 = vmatmul.f32.gmra.mxu0 %v1823
    %v2512 = vpop.f32.mrf.mxu0
    %v2513 = vadd.f32 0.0, %v2512
    %2514 = vmatmul.f32.gmra.mxu0 %v1825
    %v2515 = vpop.f32.mrf.mxu0
    %v2516 = vadd.f32 0.0, %v2515
    %2517 = vmatmul.f32.gmra.mxu0 %v1827
    %v2518 = vpop.f32.mrf.mxu0
    %v2519 = vadd.f32 0.0, %v2518
    %2520 = vmatmul.f32.gmra.mxu0 %v1829
    %v2521 = vpop.f32.mrf.mxu0
    %v2522 = vadd.f32 0.0, %v2521
    %2523 = vmatmul.f32.gmra.mxu0 %v1831
    %v2524 = vpop.f32.mrf.mxu0
    %v2525 = vadd.f32 0.0, %v2524
    %2526 = vmatmul.f32.gmra.mxu0 %v1833
    %v2527 = vpop.f32.mrf.mxu0
    %v2528 = vadd.f32 0.0, %v2527
    %2529 = vmatmul.f32.gmra.mxu0 %v1835
    %v2530 = vpop.f32.mrf.mxu0
    %v2531 = vadd.f32 0.0, %v2530
    %2532 = vmatmul.f32.gmra.mxu0 %v1837
    %v2533 = vpop.f32.mrf.mxu0
    %v2534 = vadd.f32 0.0, %v2533
    %2535 = vmatmul.f32.gmra.mxu0 %v1839
    %v2536 = vpop.f32.mrf.mxu0
    %v2537 = vadd.f32 0.0, %v2536
    %2538 = vmatmul.f32.gmra.mxu0 %v1841
    %v2539 = vpop.f32.mrf.mxu0
    %v2540 = vadd.f32 0.0, %v2539
    %2541 = vmatmul.f32.gmra.mxu0 %v1843
    %v2542 = vpop.f32.mrf.mxu0
    %v2543 = vadd.f32 0.0, %v2542
    %2544 = vmatmul.f32.gmra.mxu0 %v1845
    %v2545 = vpop.f32.mrf.mxu0
    %v2546 = vadd.f32 0.0, %v2545
    %2547 = vmatmul.f32.gmra.mxu0 %v1847
    %v2548 = vpop.f32.mrf.mxu0
    %v2549 = vadd.f32 0.0, %v2548
    %2550 = vmatmul.f32.gmra.mxu0 %v1849
    %v2551 = vpop.f32.mrf.mxu0
    %v2552 = vadd.f32 0.0, %v2551
    %2553 = vmatmul.f32.gmra.mxu0 %v1851
    %v2554 = vpop.f32.mrf.mxu0
    %v2555 = vadd.f32 0.0, %v2554
    %2556 = vmatmul.f32.gmra.mxu0 %v1853
    %v2557 = vpop.f32.mrf.mxu0
    %v2558 = vadd.f32 0.0, %v2557
    %2559 = vmatmul.f32.gmra.mxu0 %v1855
    %v2560 = vpop.f32.mrf.mxu0
    %v2561 = vadd.f32 0.0, %v2560
    %2562 = vmatmul.f32.gmra.mxu0 %v1857
    %v2563 = vpop.f32.mrf.mxu0
    %v2564 = vadd.f32 0.0, %v2563
    %2565 = vmatmul.f32.gmra.mxu0 %v1859
    %v2566 = vpop.f32.mrf.mxu0
    %v2567 = vadd.f32 0.0, %v2566
    %2568 = vmatmul.f32.gmra.mxu0 %v1861
    %v2569 = vpop.f32.mrf.mxu0
    %v2570 = vadd.f32 0.0, %v2569
    %2571 = vmatmul.f32.gmra.mxu0 %v1863
    %v2572 = vpop.f32.mrf.mxu0
    %v2573 = vadd.f32 0.0, %v2572
    %2574 = vmatmul.f32.gmra.mxu0 %v1865
    %v2575 = vpop.f32.mrf.mxu0
    %v2576 = vadd.f32 0.0, %v2575
    %2577 = vmatmul.f32.gmra.mxu0 %v1867
    %v2578 = vpop.f32.mrf.mxu0
    %v2579 = vadd.f32 0.0, %v2578
    %2580 = vmatmul.f32.gmra.mxu0 %v1869
    %v2581 = vpop.f32.mrf.mxu0
    %v2582 = vadd.f32 0.0, %v2581
    %2583 = vmatmul.f32.gmra.mxu0 %v1871
    %v2584 = vpop.f32.mrf.mxu0
    %v2585 = vadd.f32 0.0, %v2584
    %2586 = vmatmul.f32.gmra.mxu0 %v1873
    %v2587 = vpop.f32.mrf.mxu0
    %v2588 = vadd.f32 0.0, %v2587
    %2589 = vmatmul.f32.gmra.mxu0 %v1875
    %v2590 = vpop.f32.mrf.mxu0
    %v2591 = vadd.f32 0.0, %v2590
    %2592 = vmatmul.f32.gmra.mxu0 %v1877
    %v2593 = vpop.f32.mrf.mxu0
    %v2594 = vadd.f32 0.0, %v2593
    %2595 = vmatmul.f32.gmra.mxu0 %v1879
    %v2596 = vpop.f32.mrf.mxu0
    %v2597 = vadd.f32 0.0, %v2596
    %2598 = vmatmul.f32.gmra.mxu0 %v1881
    %v2599 = vpop.f32.mrf.mxu0
    %v2600 = vadd.f32 0.0, %v2599
    %2601 = vmatmul.f32.gmra.mxu0 %v1883
    %v2602 = vpop.f32.mrf.mxu0
    %v2603 = vadd.f32 0.0, %v2602
    %2604 = vmatmul.f32.gmra.mxu0 %v1885
    %v2605 = vpop.f32.mrf.mxu0
    %v2606 = vadd.f32 0.0, %v2605
    %2607 = vmatmul.f32.gmra.mxu0 %v1887
    %v2608 = vpop.f32.mrf.mxu0
    %v2609 = vadd.f32 0.0, %v2608
    %2610 = vmatmul.f32.gmra.mxu0 %v1889
    %v2611 = vpop.f32.mrf.mxu0
    %v2612 = vadd.f32 0.0, %v2611
    %2613 = vmatmul.f32.gmra.mxu0 %v1891
    %v2614 = vpop.f32.mrf.mxu0
    %v2615 = vadd.f32 0.0, %v2614
    %2616 = vmatmul.f32.gmra.mxu0 %v1893
    %v2617 = vpop.f32.mrf.mxu0
    %v2618 = vadd.f32 0.0, %v2617
    %2619 = vmatmul.f32.gmra.mxu0 %v1895
    %v2620 = vpop.f32.mrf.mxu0
    %v2621 = vadd.f32 0.0, %v2620
    %2622 = vmatmul.f32.gmra.mxu0 %v1897
    %v2623 = vpop.f32.mrf.mxu0
    %v2624 = vadd.f32 0.0, %v2623
    %2625 = vmatmul.f32.gmra.mxu0 %v1899
    %v2626 = vpop.f32.mrf.mxu0
    %v2627 = vadd.f32 0.0, %v2626
    %2628 = vmatmul.f32.gmra.mxu0 %v1901
    %v2629 = vpop.f32.mrf.mxu0
    %v2630 = vadd.f32 0.0, %v2629
    %2631 = vmatmul.f32.gmra.mxu0 %v1903
    %v2632 = vpop.f32.mrf.mxu0
    %v2633 = vadd.f32 0.0, %v2632
    %2634 = vmatmul.f32.gmra.mxu0 %v1905
    %v2635 = vpop.f32.mrf.mxu0
    %v2636 = vadd.f32 0.0, %v2635
    %2637 = vmatmul.f32.gmra.mxu0 %v1907
    %v2638 = vpop.f32.mrf.mxu0
    %v2639 = vadd.f32 0.0, %v2638
    %2640 = vmatmul.f32.gmra.mxu0 %v1909
    %v2641 = vpop.f32.mrf.mxu0
    %v2642 = vadd.f32 0.0, %v2641
    %2643 = vmatmul.f32.gmra.mxu0 %v1911
    %v2644 = vpop.f32.mrf.mxu0
    %v2645 = vadd.f32 0.0, %v2644
    %2646 = vmatmul.f32.gmra.mxu0 %v1913
    %v2647 = vpop.f32.mrf.mxu0
    %v2648 = vadd.f32 0.0, %v2647
    %2649 = vmatmul.f32.gmra.mxu0 %v1915
    %v2650 = vpop.f32.mrf.mxu0
    %v2651 = vadd.f32 0.0, %v2650
    %2652 = vmatmul.f32.gmra.mxu0 %v1917
    %v2653 = vpop.f32.mrf.mxu0
    %v2654 = vadd.f32 0.0, %v2653
    %2655 = vmatmul.f32.gmra.mxu0 %v1919
    %v2656 = vpop.f32.mrf.mxu0
    %v2657 = vadd.f32 0.0, %v2656
    %2658 = vmatmul.f32.gmra.mxu0 %v1921
    %v2659 = vpop.f32.mrf.mxu0
    %v2660 = vadd.f32 0.0, %v2659
    %2661 = vmatmul.f32.gmra.mxu0 %v1923
    %v2662 = vpop.f32.mrf.mxu0
    %v2663 = vadd.f32 0.0, %v2662
    %2664 = vmatmul.f32.gmra.mxu0 %v1925
    %v2665 = vpop.f32.mrf.mxu0
    %v2666 = vadd.f32 0.0, %v2665
    %2667 = vmatmul.f32.gmra.mxu0 %v1927
    %v2668 = vpop.f32.mrf.mxu0
    %v2669 = vadd.f32 0.0, %v2668
    %2670 = vmatmul.f32.gmra.mxu0 %v1929
    %v2671 = vpop.f32.mrf.mxu0
    %v2672 = vadd.f32 0.0, %v2671
    %2673 = vmatmul.f32.gmra.mxu0 %v1931
    %v2674 = vpop.f32.mrf.mxu0
    %v2675 = vadd.f32 0.0, %v2674
    %2676 = vmatmul.f32.gmra.mxu0 %v1933
    %v2677 = vpop.f32.mrf.mxu0
    %v2678 = vadd.f32 0.0, %v2677
    %2679 = vmatmul.f32.gmra.mxu0 %v1935
    %v2680 = vpop.f32.mrf.mxu0
    %v2681 = vadd.f32 0.0, %v2680
    %2682 = vmatmul.f32.gmra.mxu0 %v1937
    %v2683 = vpop.f32.mrf.mxu0
    %v2684 = vadd.f32 0.0, %v2683
    %2685 = vmatmul.f32.gmra.mxu0 %v1939
    %v2686 = vpop.f32.mrf.mxu0
    %v2687 = vadd.f32 0.0, %v2686
    %2688 = vmatmul.f32.gmra.mxu0 %v1941
    %v2689 = vpop.f32.mrf.mxu0
    %v2690 = vadd.f32 0.0, %v2689
    %2691 = vmatmul.f32.gmra.mxu0 %v1943
    %v2692 = vpop.f32.mrf.mxu0
    %v2693 = vadd.f32 0.0, %v2692
    %2694 = vmatmul.f32.gmra.mxu0 %v1945
    %v2695 = vpop.f32.mrf.mxu0
    %v2696 = vadd.f32 0.0, %v2695
    %2697 = vmatmul.f32.gmra.mxu0 %v1947
    %v2698 = vpop.f32.mrf.mxu0
    %v2699 = vadd.f32 0.0, %v2698
    %2700 = vmatmul.f32.gmra.mxu0 %v1949
    %v2701 = vpop.f32.mrf.mxu0
    %v2702 = vadd.f32 0.0, %v2701
    %2703 = vmatmul.f32.gmra.mxu0 %v1951
    %v2704 = vpop.f32.mrf.mxu0
    %v2705 = vadd.f32 0.0, %v2704
    %2706 = vmatmul.f32.gmra.mxu0 %v1953
    %v2707 = vpop.f32.mrf.mxu0
    %v2708 = vadd.f32 0.0, %v2707
    %2709 = vmatmul.f32.gmra.mxu0 %v1955
    %v2710 = vpop.f32.mrf.mxu0
    %v2711 = vadd.f32 0.0, %v2710
    %2712 = vmatmul.f32.gmra.mxu0 %v1957
    %v2713 = vpop.f32.mrf.mxu0
    %v2714 = vadd.f32 0.0, %v2713
    %2715 = vmatmul.f32.gmra.mxu0 %v1959
    %v2716 = vpop.f32.mrf.mxu0
    %v2717 = vadd.f32 0.0, %v2716
    %2718 = vmatmul.f32.gmra.mxu0 %v1961
    %v2719 = vpop.f32.mrf.mxu0
    %v2720 = vadd.f32 0.0, %v2719
    %2721 = vmatmul.f32.gmra.mxu0 %v1963
    %v2722 = vpop.f32.mrf.mxu0
    %v2723 = vadd.f32 0.0, %v2722
    %2724 = vmatmul.f32.gmra.mxu0 %v1965
    %v2725 = vpop.f32.mrf.mxu0
    %v2726 = vadd.f32 0.0, %v2725
    %2727 = vmatmul.f32.gmra.mxu0 %v1967
    %v2728 = vpop.f32.mrf.mxu0
    %v2729 = vadd.f32 0.0, %v2728
    %2730 = vmatmul.f32.gmra.mxu0 %v1969
    %v2731 = vpop.f32.mrf.mxu0
    %v2732 = vadd.f32 0.0, %v2731
    %2733 = vmatmul.f32.gmra.mxu0 %v1971
    %v2734 = vpop.f32.mrf.mxu0
    %v2735 = vadd.f32 0.0, %v2734
    %2736 = vmatmul.f32.gmra.mxu0 %v1973
    %v2737 = vpop.f32.mrf.mxu0
    %v2738 = vadd.f32 0.0, %v2737
    %2739 = vmatmul.f32.gmra.mxu0 %v1975
    %v2740 = vpop.f32.mrf.mxu0
    %v2741 = vadd.f32 0.0, %v2740
    %2742 = vmatmul.f32.gmra.mxu0 %v1977
    %v2743 = vpop.f32.mrf.mxu0
    %v2744 = vadd.f32 0.0, %v2743
    %2745 = vmatmul.f32.gmra.mxu0 %v1979
    %v2746 = vpop.f32.mrf.mxu0
    %v2747 = vadd.f32 0.0, %v2746
    %2748 = vmatmul.f32.gmra.mxu0 %v1981
    %v2749 = vpop.f32.mrf.mxu0
    %v2750 = vadd.f32 0.0, %v2749
    %2751 = vmatmul.f32.gmra.mxu0 %v1983
    %v2752 = vpop.f32.mrf.mxu0
    %v2753 = vadd.f32 0.0, %v2752
    %2754 = vmatmul.f32.gmra.mxu0 %v1985
    %v2755 = vpop.f32.mrf.mxu0
    %v2756 = vadd.f32 0.0, %v2755
    %2757 = vmatmul.f32.gmra.mxu0 %v1987
    %v2758 = vpop.f32.mrf.mxu0
    %v2759 = vadd.f32 0.0, %v2758
    %2760 = vmatmul.f32.gmra.mxu0 %v1989
    %v2761 = vpop.f32.mrf.mxu0
    %v2762 = vadd.f32 0.0, %v2761
    %2763 = vmatmul.f32.gmra.mxu0 %v1991
    %v2764 = vpop.f32.mrf.mxu0
    %v2765 = vadd.f32 0.0, %v2764
    %2766 = vmatmul.f32.gmra.mxu0 %v1993
    %v2767 = vpop.f32.mrf.mxu0
    %v2768 = vadd.f32 0.0, %v2767
    %2769 = vmatmul.f32.gmra.mxu0 %v1995
    %v2770 = vpop.f32.mrf.mxu0
    %v2771 = vadd.f32 0.0, %v2770
    %2772 = vmatmul.f32.gmra.mxu0 %v1997
    %v2773 = vpop.f32.mrf.mxu0
    %v2774 = vadd.f32 0.0, %v2773
    %2775 = vmatmul.f32.gmra.mxu0 %v1999
    %v2776 = vpop.f32.mrf.mxu0
    %v2777 = vadd.f32 0.0, %v2776
    %2778 = vmatmul.f32.gmra.mxu0 %v2001
    %v2779 = vpop.f32.mrf.mxu0
    %v2780 = vadd.f32 0.0, %v2779
    %2781 = vmatmul.f32.gmra.mxu0 %v2003
    %v2782 = vpop.f32.mrf.mxu0
    %v2783 = vadd.f32 0.0, %v2782
    %2784 = vmatmul.f32.gmra.mxu0 %v2005
    %v2785 = vpop.f32.mrf.mxu0
    %v2786 = vadd.f32 0.0, %v2785
    %2787 = vmatmul.f32.gmra.mxu0 %v2007
    %v2788 = vpop.f32.mrf.mxu0
    %v2789 = vadd.f32 0.0, %v2788
    %2790 = vmatmul.f32.gmra.mxu0 %v2009
    %v2791 = vpop.f32.mrf.mxu0
    %v2792 = vadd.f32 0.0, %v2791
    %2793 = vmatmul.f32.gmra.mxu0 %v2011
    %v2794 = vpop.f32.mrf.mxu0
    %v2795 = vadd.f32 0.0, %v2794
    %2796 = vmatmul.f32.gmra.mxu0 %v2013
    %v2797 = vpop.f32.mrf.mxu0
    %v2798 = vadd.f32 0.0, %v2797
    %2799 = vmatmul.f32.gmra.mxu0 %v2015
    %v2800 = vpop.f32.mrf.mxu0
    %v2801 = vadd.f32 0.0, %v2800
    %2802 = vmatmul.f32.gmra.mxu0 %v2017
    %v2803 = vpop.f32.mrf.mxu0
    %v2804 = vadd.f32 0.0, %v2803
    %2805 = vmatmul.f32.gmra.mxu0 %v2019
    %v2806 = vpop.f32.mrf.mxu0
    %v2807 = vadd.f32 0.0, %v2806
    %2808 = vmatmul.f32.gmra.mxu0 %v2021
    %v2809 = vpop.f32.mrf.mxu0
    %v2810 = vadd.f32 0.0, %v2809
    %2811 = vdwg.mxu0
    %v2812 = vsel %vm1510, %v44, 0
    %v2814 = vsel %vm1510, %v45, 0
    %v2816 = vsel %vm1510, %v47, 0
    %v2818 = vsel %vm1510, %v48, 0
    %v2820 = vsel %vm1510, %v50, 0
    %v2822 = vsel %vm1510, %v51, 0
    %v2824 = vsel %vm1510, %v53, 0
    %v2826 = vsel %vm1510, %v54, 0
    %v2828 = vsel %vm1510, %v56, 0
    %v2830 = vsel %vm1510, %v57, 0
    %v2832 = vsel %vm1510, %v59, 0
    %v2834 = vsel %vm1510, %v60, 0
    %v2836 = vsel %vm1510, %v62, 0
    %v2838 = vsel %vm1510, %v63, 0
    %v2840 = vsel %vm1510, %v65, 0
    %v2842 = vsel %vm1510, %v66, 0
    %v2844 = vsel %vm1510, %v68, 0
    %v2846 = vsel %vm1510, %v69, 0
    %v2848 = vsel %vm1510, %v71, 0
    %v2850 = vsel %vm1510, %v72, 0
    %v2852 = vsel %vm1510, %v74, 0
    %v2854 = vsel %vm1510, %v75, 0
    %v2856 = vsel %vm1510, %v77, 0
    %v2858 = vsel %vm1510, %v78, 0
    %v2860 = vsel %vm1510, %v80, 0
    %v2862 = vsel %vm1510, %v81, 0
    %v2864 = vsel %vm1510, %v83, 0
    %v2866 = vsel %vm1510, %v84, 0
    %v2868 = vsel %vm1510, %v86, 0
    %v2870 = vsel %vm1510, %v87, 0
    %v2872 = vsel %vm1510, %v89, 0
    %v2874 = vsel %vm1510, %v90, 0
    %v2876 = vsel %vm1510, %v98, 0
    %v2878 = vsel %vm1510, %v99, 0
    %v2880 = vsel %vm1510, %v101, 0
    %v2882 = vsel %vm1510, %v102, 0
    %v2884 = vsel %vm1510, %v104, 0
    %v2886 = vsel %vm1510, %v105, 0
    %v2888 = vsel %vm1510, %v107, 0
    %v2890 = vsel %vm1510, %v108, 0
    %v2892 = vsel %vm1510, %v110, 0
    %v2894 = vsel %vm1510, %v111, 0
    %v2896 = vsel %vm1510, %v113, 0
    %v2898 = vsel %vm1510, %v114, 0
    %v2900 = vsel %vm1510, %v116, 0
    %v2902 = vsel %vm1510, %v117, 0
    %v2904 = vsel %vm1510, %v119, 0
    %v2906 = vsel %vm1510, %v120, 0
    %v2908 = vsel %vm1510, %v122, 0
    %v2910 = vsel %vm1510, %v123, 0
    %v2912 = vsel %vm1510, %v125, 0
    %v2914 = vsel %vm1510, %v126, 0
    %v2916 = vsel %vm1510, %v128, 0
    %v2918 = vsel %vm1510, %v129, 0
    %v2920 = vsel %vm1510, %v131, 0
    %v2922 = vsel %vm1510, %v132, 0
    %v2924 = vsel %vm1510, %v134, 0
    %v2926 = vsel %vm1510, %v135, 0
    %v2928 = vsel %vm1510, %v137, 0
    %v2930 = vsel %vm1510, %v138, 0
    %v2932 = vsel %vm1510, %v140, 0
    %v2934 = vsel %vm1510, %v141, 0
    %v2936 = vsel %vm1510, %v143, 0
    %v2938 = vsel %vm1510, %v144, 0
    %v2940 = vsel %vm1510, %v152, 0
    %v2942 = vsel %vm1510, %v153, 0
    %v2944 = vsel %vm1510, %v155, 0
    %v2946 = vsel %vm1510, %v156, 0
    %v2948 = vsel %vm1510, %v158, 0
    %v2950 = vsel %vm1510, %v159, 0
    %v2952 = vsel %vm1510, %v161, 0
    %v2954 = vsel %vm1510, %v162, 0
    %v2956 = vsel %vm1510, %v164, 0
    %v2958 = vsel %vm1510, %v165, 0
    %v2960 = vsel %vm1510, %v167, 0
    %v2962 = vsel %vm1510, %v168, 0
    %v2964 = vsel %vm1510, %v170, 0
    %v2966 = vsel %vm1510, %v171, 0
    %v2968 = vsel %vm1510, %v173, 0
    %v2970 = vsel %vm1510, %v174, 0
    %v2972 = vsel %vm1510, %v176, 0
    %v2974 = vsel %vm1510, %v177, 0
    %v2976 = vsel %vm1510, %v179, 0
    %v2978 = vsel %vm1510, %v180, 0
    %v2980 = vsel %vm1510, %v182, 0
    %v2982 = vsel %vm1510, %v183, 0
    %v2984 = vsel %vm1510, %v185, 0
    %v2986 = vsel %vm1510, %v186, 0
    %v2988 = vsel %vm1510, %v188, 0
    %v2990 = vsel %vm1510, %v189, 0
    %v2992 = vsel %vm1510, %v191, 0
    %v2994 = vsel %vm1510, %v192, 0
    %v2996 = vsel %vm1510, %v194, 0
    %v2998 = vsel %vm1510, %v195, 0
    %v3000 = vsel %vm1510, %v197, 0
    %v3002 = vsel %vm1510, %v198, 0
    %v3004 = vsel %vm1510, %v206, 0
    %v3006 = vsel %vm1510, %v207, 0
    %v3008 = vsel %vm1510, %v209, 0
    %v3010 = vsel %vm1510, %v210, 0
    %v3012 = vsel %vm1510, %v212, 0
    %v3014 = vsel %vm1510, %v213, 0
    %v3016 = vsel %vm1510, %v215, 0
    %v3018 = vsel %vm1510, %v216, 0
    %v3020 = vsel %vm1510, %v218, 0
    %v3022 = vsel %vm1510, %v219, 0
    %v3024 = vsel %vm1510, %v221, 0
    %v3026 = vsel %vm1510, %v222, 0
    %v3028 = vsel %vm1510, %v224, 0
    %v3030 = vsel %vm1510, %v225, 0
    %v3032 = vsel %vm1510, %v227, 0
    %v3034 = vsel %vm1510, %v228, 0
    %v3036 = vsel %vm1510, %v230, 0
    %v3038 = vsel %vm1510, %v231, 0
    %v3040 = vsel %vm1510, %v233, 0
    %v3042 = vsel %vm1510, %v234, 0
    %v3044 = vsel %vm1510, %v236, 0
    %v3046 = vsel %vm1510, %v237, 0
    %v3048 = vsel %vm1510, %v239, 0
    %v3050 = vsel %vm1510, %v240, 0
    %v3052 = vsel %vm1510, %v242, 0
    %v3054 = vsel %vm1510, %v243, 0
    %v3056 = vsel %vm1510, %v245, 0
    %v3058 = vsel %vm1510, %v246, 0
    %v3060 = vsel %vm1510, %v248, 0
    %v3062 = vsel %vm1510, %v249, 0
    %v3064 = vsel %vm1510, %v251, 0
    %v3066 = vsel %vm1510, %v252, 0
    %v3068 = vsel %vm1510, %v260, 0
    %v3070 = vsel %vm1510, %v261, 0
    %v3072 = vsel %vm1510, %v263, 0
    %v3074 = vsel %vm1510, %v264, 0
    %v3076 = vsel %vm1510, %v266, 0
    %v3078 = vsel %vm1510, %v267, 0
    %v3080 = vsel %vm1510, %v269, 0
    %v3082 = vsel %vm1510, %v270, 0
    %v3084 = vsel %vm1510, %v272, 0
    %v3086 = vsel %vm1510, %v273, 0
    %v3088 = vsel %vm1510, %v275, 0
    %v3090 = vsel %vm1510, %v276, 0
    %v3092 = vsel %vm1510, %v278, 0
    %v3094 = vsel %vm1510, %v279, 0
    %v3096 = vsel %vm1510, %v281, 0
    %v3098 = vsel %vm1510, %v282, 0
    %v3100 = vsel %vm1510, %v284, 0
    %v3102 = vsel %vm1510, %v285, 0
    %v3104 = vsel %vm1510, %v287, 0
    %v3106 = vsel %vm1510, %v288, 0
    %v3108 = vsel %vm1510, %v290, 0
    %v3110 = vsel %vm1510, %v291, 0
    %v3112 = vsel %vm1510, %v293, 0
    %v3114 = vsel %vm1510, %v294, 0
    %v3116 = vsel %vm1510, %v296, 0
    %v3118 = vsel %vm1510, %v297, 0
    %v3120 = vsel %vm1510, %v299, 0
    %v3122 = vsel %vm1510, %v300, 0
    %v3124 = vsel %vm1510, %v302, 0
    %v3126 = vsel %vm1510, %v303, 0
    %v3128 = vsel %vm1510, %v305, 0
    %v3130 = vsel %vm1510, %v306, 0
    %v3132 = vsel %vm1510, %v314, 0
    %v3134 = vsel %vm1510, %v315, 0
    %v3136 = vsel %vm1510, %v317, 0
    %v3138 = vsel %vm1510, %v318, 0
    %v3140 = vsel %vm1510, %v320, 0
    %v3142 = vsel %vm1510, %v321, 0
    %v3144 = vsel %vm1510, %v323, 0
    %v3146 = vsel %vm1510, %v324, 0
    %v3148 = vsel %vm1510, %v326, 0
    %v3150 = vsel %vm1510, %v327, 0
    %v3152 = vsel %vm1510, %v329, 0
    %v3154 = vsel %vm1510, %v330, 0
    %v3156 = vsel %vm1510, %v332, 0
    %v3158 = vsel %vm1510, %v333, 0
    %v3160 = vsel %vm1510, %v335, 0
    %v3162 = vsel %vm1510, %v336, 0
    %v3164 = vsel %vm1510, %v338, 0
    %v3166 = vsel %vm1510, %v339, 0
    %v3168 = vsel %vm1510, %v341, 0
    %v3170 = vsel %vm1510, %v342, 0
    %v3172 = vsel %vm1510, %v344, 0
    %v3174 = vsel %vm1510, %v345, 0
    %v3176 = vsel %vm1510, %v347, 0
    %v3178 = vsel %vm1510, %v348, 0
    %v3180 = vsel %vm1510, %v350, 0
    %v3182 = vsel %vm1510, %v351, 0
    %v3184 = vsel %vm1510, %v353, 0
    %v3186 = vsel %vm1510, %v354, 0
    %v3188 = vsel %vm1510, %v356, 0
    %v3190 = vsel %vm1510, %v357, 0
    %v3192 = vsel %vm1510, %v359, 0
    %v3194 = vsel %vm1510, %v360, 0
    %v3196 = vsel %vm1510, %v368, 0
    %v3198 = vsel %vm1510, %v369, 0
    %v3200 = vsel %vm1510, %v371, 0
    %v3202 = vsel %vm1510, %v372, 0
    %v3204 = vsel %vm1510, %v374, 0
    %v3206 = vsel %vm1510, %v375, 0
    %v3208 = vsel %vm1510, %v377, 0
    %v3210 = vsel %vm1510, %v378, 0
    %v3212 = vsel %vm1510, %v380, 0
    %v3214 = vsel %vm1510, %v381, 0
    %v3216 = vsel %vm1510, %v383, 0
    %v3218 = vsel %vm1510, %v384, 0
    %v3220 = vsel %vm1510, %v386, 0
    %v3222 = vsel %vm1510, %v387, 0
    %v3224 = vsel %vm1510, %v389, 0
    %v3226 = vsel %vm1510, %v390, 0
    %v3228 = vsel %vm1510, %v392, 0
    %v3230 = vsel %vm1510, %v393, 0
    %v3232 = vsel %vm1510, %v395, 0
    %v3234 = vsel %vm1510, %v396, 0
    %v3236 = vsel %vm1510, %v398, 0
    %v3238 = vsel %vm1510, %v399, 0
    %v3240 = vsel %vm1510, %v401, 0
    %v3242 = vsel %vm1510, %v402, 0
    %v3244 = vsel %vm1510, %v404, 0
    %v3246 = vsel %vm1510, %v405, 0
    %v3248 = vsel %vm1510, %v407, 0
    %v3250 = vsel %vm1510, %v408, 0
    %v3252 = vsel %vm1510, %v410, 0
    %v3254 = vsel %vm1510, %v411, 0
    %v3256 = vsel %vm1510, %v413, 0
    %v3258 = vsel %vm1510, %v414, 0
    %v3260 = vsel %vm1510, %v422, 0
    %v3262 = vsel %vm1510, %v423, 0
    %v3264 = vsel %vm1510, %v425, 0
    %v3266 = vsel %vm1510, %v426, 0
    %v3268 = vsel %vm1510, %v428, 0
    %v3270 = vsel %vm1510, %v429, 0
    %v3272 = vsel %vm1510, %v431, 0
    %v3274 = vsel %vm1510, %v432, 0
    %v3276 = vsel %vm1510, %v434, 0
    %v3278 = vsel %vm1510, %v435, 0
    %v3280 = vsel %vm1510, %v437, 0
    %v3282 = vsel %vm1510, %v438, 0
    %v3284 = vsel %vm1510, %v440, 0
    %v3286 = vsel %vm1510, %v441, 0
    %v3288 = vsel %vm1510, %v443, 0
    %v3290 = vsel %vm1510, %v444, 0
    %v3292 = vsel %vm1510, %v446, 0
    %v3294 = vsel %vm1510, %v447, 0
    %v3296 = vsel %vm1510, %v449, 0
    %v3298 = vsel %vm1510, %v450, 0
    %v3300 = vsel %vm1510, %v452, 0
    %v3302 = vsel %vm1510, %v453, 0
    %v3304 = vsel %vm1510, %v455, 0
    %v3306 = vsel %vm1510, %v456, 0
    %v3308 = vsel %vm1510, %v458, 0
    %v3310 = vsel %vm1510, %v459, 0
    %v3312 = vsel %vm1510, %v461, 0
    %v3314 = vsel %vm1510, %v462, 0
    %v3316 = vsel %vm1510, %v464, 0
    %v3318 = vsel %vm1510, %v465, 0
    %v3320 = vsel %vm1510, %v467, 0
    %v3322 = vsel %vm1510, %v468, 0
    %v3325 = vsel %vm2023, %v476, 0
    %3327 = vmatpush.msra.mxu0 0.0
    %3328 = vmatpush.msra.mxu0 0.0
    %3329 = vmatpush.msra.mxu0 0.0
    %3330 = vmatpush.msra.mxu0 0.0
    %3331 = vmatpush.msra.mxu0 0.0
    %3332 = vmatpush.msra.mxu0 0.0
    %3333 = vmatpush.msra.mxu0 0.0
    %3334 = vmatpush.msra.mxu0 0.0
    %3335 = vmatpush.msra.mxu0 0.0
    %3336 = vmatpush.msra.mxu0 0.0
    %3337 = vmatpush.msra.mxu0 0.0
    %3338 = vmatpush.msra.mxu0 0.0
    %3339 = vmatpush.msra.mxu0 0.0
    %3340 = vmatpush.msra.mxu0 0.0
    %3341 = vmatpush.msra.mxu0 0.0
    %3342 = vmatpush.msra.mxu0 %v3325
    %3343 = vmatmul.f32.gmra.mxu0 %v2812
    %v3344 = vpop.f32.mrf.mxu0
    %v3345 = vadd.f32 %v2045, %v3344
    %3346 = vmatmul.f32.gmra.mxu0 %v2814
    %v3347 = vpop.f32.mrf.mxu0
    %v3348 = vadd.f32 %v2048, %v3347
    %3349 = vmatmul.f32.gmra.mxu0 %v2816
    %v3350 = vpop.f32.mrf.mxu0
    %v3351 = vadd.f32 %v2051, %v3350
    %3352 = vmatmul.f32.gmra.mxu0 %v2818
    %v3353 = vpop.f32.mrf.mxu0
    %v3354 = vadd.f32 %v2054, %v3353
    %3355 = vmatmul.f32.gmra.mxu0 %v2820
    %v3356 = vpop.f32.mrf.mxu0
    %v3357 = vadd.f32 %v2057, %v3356
    %3358 = vmatmul.f32.gmra.mxu0 %v2822
    %v3359 = vpop.f32.mrf.mxu0
    %v3360 = vadd.f32 %v2060, %v3359
    %3361 = vmatmul.f32.gmra.mxu0 %v2824
    %v3362 = vpop.f32.mrf.mxu0
    %v3363 = vadd.f32 %v2063, %v3362
    %3364 = vmatmul.f32.gmra.mxu0 %v2826
    %v3365 = vpop.f32.mrf.mxu0
    %v3366 = vadd.f32 %v2066, %v3365
    %3367 = vmatmul.f32.gmra.mxu0 %v2828
    %v3368 = vpop.f32.mrf.mxu0
    %v3369 = vadd.f32 %v2069, %v3368
    %3370 = vmatmul.f32.gmra.mxu0 %v2830
    %v3371 = vpop.f32.mrf.mxu0
    %v3372 = vadd.f32 %v2072, %v3371
    %3373 = vmatmul.f32.gmra.mxu0 %v2832
    %v3374 = vpop.f32.mrf.mxu0
    %v3375 = vadd.f32 %v2075, %v3374
    %3376 = vmatmul.f32.gmra.mxu0 %v2834
    %v3377 = vpop.f32.mrf.mxu0
    %v3378 = vadd.f32 %v2078, %v3377
    %3379 = vmatmul.f32.gmra.mxu0 %v2836
    %v3380 = vpop.f32.mrf.mxu0
    %v3381 = vadd.f32 %v2081, %v3380
    %3382 = vmatmul.f32.gmra.mxu0 %v2838
    %v3383 = vpop.f32.mrf.mxu0
    %v3384 = vadd.f32 %v2084, %v3383
    %3385 = vmatmul.f32.gmra.mxu0 %v2840
    %v3386 = vpop.f32.mrf.mxu0
    %v3387 = vadd.f32 %v2087, %v3386
    %3388 = vmatmul.f32.gmra.mxu0 %v2842
    %v3389 = vpop.f32.mrf.mxu0
    %v3390 = vadd.f32 %v2090, %v3389
    %3391 = vmatmul.f32.gmra.mxu0 %v2844
    %v3392 = vpop.f32.mrf.mxu0
    %v3393 = vadd.f32 %v2093, %v3392
    %3394 = vmatmul.f32.gmra.mxu0 %v2846
    %v3395 = vpop.f32.mrf.mxu0
    %v3396 = vadd.f32 %v2096, %v3395
    %3397 = vmatmul.f32.gmra.mxu0 %v2848
    %v3398 = vpop.f32.mrf.mxu0
    %v3399 = vadd.f32 %v2099, %v3398
    %3400 = vmatmul.f32.gmra.mxu0 %v2850
    %v3401 = vpop.f32.mrf.mxu0
    %v3402 = vadd.f32 %v2102, %v3401
    %3403 = vmatmul.f32.gmra.mxu0 %v2852
    %v3404 = vpop.f32.mrf.mxu0
    %v3405 = vadd.f32 %v2105, %v3404
    %3406 = vmatmul.f32.gmra.mxu0 %v2854
    %v3407 = vpop.f32.mrf.mxu0
    %v3408 = vadd.f32 %v2108, %v3407
    %3409 = vmatmul.f32.gmra.mxu0 %v2856
    %v3410 = vpop.f32.mrf.mxu0
    %v3411 = vadd.f32 %v2111, %v3410
    %3412 = vmatmul.f32.gmra.mxu0 %v2858
    %v3413 = vpop.f32.mrf.mxu0
    %v3414 = vadd.f32 %v2114, %v3413
    %3415 = vmatmul.f32.gmra.mxu0 %v2860
    %v3416 = vpop.f32.mrf.mxu0
    %v3417 = vadd.f32 %v2117, %v3416
    %3418 = vmatmul.f32.gmra.mxu0 %v2862
    %v3419 = vpop.f32.mrf.mxu0
    %v3420 = vadd.f32 %v2120, %v3419
    %3421 = vmatmul.f32.gmra.mxu0 %v2864
    %v3422 = vpop.f32.mrf.mxu0
    %v3423 = vadd.f32 %v2123, %v3422
    %3424 = vmatmul.f32.gmra.mxu0 %v2866
    %v3425 = vpop.f32.mrf.mxu0
    %v3426 = vadd.f32 %v2126, %v3425
    %3427 = vmatmul.f32.gmra.mxu0 %v2868
    %v3428 = vpop.f32.mrf.mxu0
    %v3429 = vadd.f32 %v2129, %v3428
    %3430 = vmatmul.f32.gmra.mxu0 %v2870
    %v3431 = vpop.f32.mrf.mxu0
    %v3432 = vadd.f32 %v2132, %v3431
    %3433 = vmatmul.f32.gmra.mxu0 %v2872
    %v3434 = vpop.f32.mrf.mxu0
    %v3435 = vadd.f32 %v2135, %v3434
    %3436 = vmatmul.f32.gmra.mxu0 %v2874
    %v3437 = vpop.f32.mrf.mxu0
    %v3438 = vadd.f32 %v2138, %v3437
    %3439 = vmatmul.f32.gmra.mxu0 %v2876
    %v3440 = vpop.f32.mrf.mxu0
    %v3441 = vadd.f32 %v2141, %v3440
    %3442 = vmatmul.f32.gmra.mxu0 %v2878
    %v3443 = vpop.f32.mrf.mxu0
    %v3444 = vadd.f32 %v2144, %v3443
    %3445 = vmatmul.f32.gmra.mxu0 %v2880
    %v3446 = vpop.f32.mrf.mxu0
    %v3447 = vadd.f32 %v2147, %v3446
    %3448 = vmatmul.f32.gmra.mxu0 %v2882
    %v3449 = vpop.f32.mrf.mxu0
    %v3450 = vadd.f32 %v2150, %v3449
    %3451 = vmatmul.f32.gmra.mxu0 %v2884
    %v3452 = vpop.f32.mrf.mxu0
    %v3453 = vadd.f32 %v2153, %v3452
    %3454 = vmatmul.f32.gmra.mxu0 %v2886
    %v3455 = vpop.f32.mrf.mxu0
    %v3456 = vadd.f32 %v2156, %v3455
    %3457 = vmatmul.f32.gmra.mxu0 %v2888
    %v3458 = vpop.f32.mrf.mxu0
    %v3459 = vadd.f32 %v2159, %v3458
    %3460 = vmatmul.f32.gmra.mxu0 %v2890
    %v3461 = vpop.f32.mrf.mxu0
    %v3462 = vadd.f32 %v2162, %v3461
    %3463 = vmatmul.f32.gmra.mxu0 %v2892
    %v3464 = vpop.f32.mrf.mxu0
    %v3465 = vadd.f32 %v2165, %v3464
    %3466 = vmatmul.f32.gmra.mxu0 %v2894
    %v3467 = vpop.f32.mrf.mxu0
    %v3468 = vadd.f32 %v2168, %v3467
    %3469 = vmatmul.f32.gmra.mxu0 %v2896
    %v3470 = vpop.f32.mrf.mxu0
    %v3471 = vadd.f32 %v2171, %v3470
    %3472 = vmatmul.f32.gmra.mxu0 %v2898
    %v3473 = vpop.f32.mrf.mxu0
    %v3474 = vadd.f32 %v2174, %v3473
    %3475 = vmatmul.f32.gmra.mxu0 %v2900
    %v3476 = vpop.f32.mrf.mxu0
    %v3477 = vadd.f32 %v2177, %v3476
    %3478 = vmatmul.f32.gmra.mxu0 %v2902
    %v3479 = vpop.f32.mrf.mxu0
    %v3480 = vadd.f32 %v2180, %v3479
    %3481 = vmatmul.f32.gmra.mxu0 %v2904
    %v3482 = vpop.f32.mrf.mxu0
    %v3483 = vadd.f32 %v2183, %v3482
    %3484 = vmatmul.f32.gmra.mxu0 %v2906
    %v3485 = vpop.f32.mrf.mxu0
    %v3486 = vadd.f32 %v2186, %v3485
    %3487 = vmatmul.f32.gmra.mxu0 %v2908
    %v3488 = vpop.f32.mrf.mxu0
    %v3489 = vadd.f32 %v2189, %v3488
    %3490 = vmatmul.f32.gmra.mxu0 %v2910
    %v3491 = vpop.f32.mrf.mxu0
    %v3492 = vadd.f32 %v2192, %v3491
    %3493 = vmatmul.f32.gmra.mxu0 %v2912
    %v3494 = vpop.f32.mrf.mxu0
    %v3495 = vadd.f32 %v2195, %v3494
    %3496 = vmatmul.f32.gmra.mxu0 %v2914
    %v3497 = vpop.f32.mrf.mxu0
    %v3498 = vadd.f32 %v2198, %v3497
    %3499 = vmatmul.f32.gmra.mxu0 %v2916
    %v3500 = vpop.f32.mrf.mxu0
    %v3501 = vadd.f32 %v2201, %v3500
    %3502 = vmatmul.f32.gmra.mxu0 %v2918
    %v3503 = vpop.f32.mrf.mxu0
    %v3504 = vadd.f32 %v2204, %v3503
    %3505 = vmatmul.f32.gmra.mxu0 %v2920
    %v3506 = vpop.f32.mrf.mxu0
    %v3507 = vadd.f32 %v2207, %v3506
    %3508 = vmatmul.f32.gmra.mxu0 %v2922
    %v3509 = vpop.f32.mrf.mxu0
    %v3510 = vadd.f32 %v2210, %v3509
    %3511 = vmatmul.f32.gmra.mxu0 %v2924
    %v3512 = vpop.f32.mrf.mxu0
    %v3513 = vadd.f32 %v2213, %v3512
    %3514 = vmatmul.f32.gmra.mxu0 %v2926
    %v3515 = vpop.f32.mrf.mxu0
    %v3516 = vadd.f32 %v2216, %v3515
    %3517 = vmatmul.f32.gmra.mxu0 %v2928
    %v3518 = vpop.f32.mrf.mxu0
    %v3519 = vadd.f32 %v2219, %v3518
    %3520 = vmatmul.f32.gmra.mxu0 %v2930
    %v3521 = vpop.f32.mrf.mxu0
    %v3522 = vadd.f32 %v2222, %v3521
    %3523 = vmatmul.f32.gmra.mxu0 %v2932
    %v3524 = vpop.f32.mrf.mxu0
    %v3525 = vadd.f32 %v2225, %v3524
    %3526 = vmatmul.f32.gmra.mxu0 %v2934
    %v3527 = vpop.f32.mrf.mxu0
    %v3528 = vadd.f32 %v2228, %v3527
    %3529 = vmatmul.f32.gmra.mxu0 %v2936
    %v3530 = vpop.f32.mrf.mxu0
    %v3531 = vadd.f32 %v2231, %v3530
    %3532 = vmatmul.f32.gmra.mxu0 %v2938
    %v3533 = vpop.f32.mrf.mxu0
    %v3534 = vadd.f32 %v2234, %v3533
    %3535 = vmatmul.f32.gmra.mxu0 %v2940
    %v3536 = vpop.f32.mrf.mxu0
    %v3537 = vadd.f32 %v2237, %v3536
    %3538 = vmatmul.f32.gmra.mxu0 %v2942
    %v3539 = vpop.f32.mrf.mxu0
    %v3540 = vadd.f32 %v2240, %v3539
    %3541 = vmatmul.f32.gmra.mxu0 %v2944
    %v3542 = vpop.f32.mrf.mxu0
    %v3543 = vadd.f32 %v2243, %v3542
    %3544 = vmatmul.f32.gmra.mxu0 %v2946
    %v3545 = vpop.f32.mrf.mxu0
    %v3546 = vadd.f32 %v2246, %v3545
    %3547 = vmatmul.f32.gmra.mxu0 %v2948
    %v3548 = vpop.f32.mrf.mxu0
    %v3549 = vadd.f32 %v2249, %v3548
    %3550 = vmatmul.f32.gmra.mxu0 %v2950
    %v3551 = vpop.f32.mrf.mxu0
    %v3552 = vadd.f32 %v2252, %v3551
    %3553 = vmatmul.f32.gmra.mxu0 %v2952
    %v3554 = vpop.f32.mrf.mxu0
    %v3555 = vadd.f32 %v2255, %v3554
    %3556 = vmatmul.f32.gmra.mxu0 %v2954
    %v3557 = vpop.f32.mrf.mxu0
    %v3558 = vadd.f32 %v2258, %v3557
    %3559 = vmatmul.f32.gmra.mxu0 %v2956
    %v3560 = vpop.f32.mrf.mxu0
    %v3561 = vadd.f32 %v2261, %v3560
    %3562 = vmatmul.f32.gmra.mxu0 %v2958
    %v3563 = vpop.f32.mrf.mxu0
    %v3564 = vadd.f32 %v2264, %v3563
    %3565 = vmatmul.f32.gmra.mxu0 %v2960
    %v3566 = vpop.f32.mrf.mxu0
    %v3567 = vadd.f32 %v2267, %v3566
    %3568 = vmatmul.f32.gmra.mxu0 %v2962
    %v3569 = vpop.f32.mrf.mxu0
    %v3570 = vadd.f32 %v2270, %v3569
    %3571 = vmatmul.f32.gmra.mxu0 %v2964
    %v3572 = vpop.f32.mrf.mxu0
    %v3573 = vadd.f32 %v2273, %v3572
    %3574 = vmatmul.f32.gmra.mxu0 %v2966
    %v3575 = vpop.f32.mrf.mxu0
    %v3576 = vadd.f32 %v2276, %v3575
    %3577 = vmatmul.f32.gmra.mxu0 %v2968
    %v3578 = vpop.f32.mrf.mxu0
    %v3579 = vadd.f32 %v2279, %v3578
    %3580 = vmatmul.f32.gmra.mxu0 %v2970
    %v3581 = vpop.f32.mrf.mxu0
    %v3582 = vadd.f32 %v2282, %v3581
    %3583 = vmatmul.f32.gmra.mxu0 %v2972
    %v3584 = vpop.f32.mrf.mxu0
    %v3585 = vadd.f32 %v2285, %v3584
    %3586 = vmatmul.f32.gmra.mxu0 %v2974
    %v3587 = vpop.f32.mrf.mxu0
    %v3588 = vadd.f32 %v2288, %v3587
    %3589 = vmatmul.f32.gmra.mxu0 %v2976
    %v3590 = vpop.f32.mrf.mxu0
    %v3591 = vadd.f32 %v2291, %v3590
    %3592 = vmatmul.f32.gmra.mxu0 %v2978
    %v3593 = vpop.f32.mrf.mxu0
    %v3594 = vadd.f32 %v2294, %v3593
    %3595 = vmatmul.f32.gmra.mxu0 %v2980
    %v3596 = vpop.f32.mrf.mxu0
    %v3597 = vadd.f32 %v2297, %v3596
    %3598 = vmatmul.f32.gmra.mxu0 %v2982
    %v3599 = vpop.f32.mrf.mxu0
    %v3600 = vadd.f32 %v2300, %v3599
    %3601 = vmatmul.f32.gmra.mxu0 %v2984
    %v3602 = vpop.f32.mrf.mxu0
    %v3603 = vadd.f32 %v2303, %v3602
    %3604 = vmatmul.f32.gmra.mxu0 %v2986
    %v3605 = vpop.f32.mrf.mxu0
    %v3606 = vadd.f32 %v2306, %v3605
    %3607 = vmatmul.f32.gmra.mxu0 %v2988
    %v3608 = vpop.f32.mrf.mxu0
    %v3609 = vadd.f32 %v2309, %v3608
    %3610 = vmatmul.f32.gmra.mxu0 %v2990
    %v3611 = vpop.f32.mrf.mxu0
    %v3612 = vadd.f32 %v2312, %v3611
    %3613 = vmatmul.f32.gmra.mxu0 %v2992
    %v3614 = vpop.f32.mrf.mxu0
    %v3615 = vadd.f32 %v2315, %v3614
    %3616 = vmatmul.f32.gmra.mxu0 %v2994
    %v3617 = vpop.f32.mrf.mxu0
    %v3618 = vadd.f32 %v2318, %v3617
    %3619 = vmatmul.f32.gmra.mxu0 %v2996
    %v3620 = vpop.f32.mrf.mxu0
    %v3621 = vadd.f32 %v2321, %v3620
    %3622 = vmatmul.f32.gmra.mxu0 %v2998
    %v3623 = vpop.f32.mrf.mxu0
    %v3624 = vadd.f32 %v2324, %v3623
    %3625 = vmatmul.f32.gmra.mxu0 %v3000
    %v3626 = vpop.f32.mrf.mxu0
    %v3627 = vadd.f32 %v2327, %v3626
    %3628 = vmatmul.f32.gmra.mxu0 %v3002
    %v3629 = vpop.f32.mrf.mxu0
    %v3630 = vadd.f32 %v2330, %v3629
    %3631 = vmatmul.f32.gmra.mxu0 %v3004
    %v3632 = vpop.f32.mrf.mxu0
    %v3633 = vadd.f32 %v2333, %v3632
    %3634 = vmatmul.f32.gmra.mxu0 %v3006
    %v3635 = vpop.f32.mrf.mxu0
    %v3636 = vadd.f32 %v2336, %v3635
    %3637 = vmatmul.f32.gmra.mxu0 %v3008
    %v3638 = vpop.f32.mrf.mxu0
    %v3639 = vadd.f32 %v2339, %v3638
    %3640 = vmatmul.f32.gmra.mxu0 %v3010
    %v3641 = vpop.f32.mrf.mxu0
    %v3642 = vadd.f32 %v2342, %v3641
    %3643 = vmatmul.f32.gmra.mxu0 %v3012
    %v3644 = vpop.f32.mrf.mxu0
    %v3645 = vadd.f32 %v2345, %v3644
    %3646 = vmatmul.f32.gmra.mxu0 %v3014
    %v3647 = vpop.f32.mrf.mxu0
    %v3648 = vadd.f32 %v2348, %v3647
    %3649 = vmatmul.f32.gmra.mxu0 %v3016
    %v3650 = vpop.f32.mrf.mxu0
    %v3651 = vadd.f32 %v2351, %v3650
    %3652 = vmatmul.f32.gmra.mxu0 %v3018
    %v3653 = vpop.f32.mrf.mxu0
    %v3654 = vadd.f32 %v2354, %v3653
    %3655 = vmatmul.f32.gmra.mxu0 %v3020
    %v3656 = vpop.f32.mrf.mxu0
    %v3657 = vadd.f32 %v2357, %v3656
    %3658 = vmatmul.f32.gmra.mxu0 %v3022
    %v3659 = vpop.f32.mrf.mxu0
    %v3660 = vadd.f32 %v2360, %v3659
    %3661 = vmatmul.f32.gmra.mxu0 %v3024
    %v3662 = vpop.f32.mrf.mxu0
    %v3663 = vadd.f32 %v2363, %v3662
    %3664 = vmatmul.f32.gmra.mxu0 %v3026
    %v3665 = vpop.f32.mrf.mxu0
    %v3666 = vadd.f32 %v2366, %v3665
    %3667 = vmatmul.f32.gmra.mxu0 %v3028
    %v3668 = vpop.f32.mrf.mxu0
    %v3669 = vadd.f32 %v2369, %v3668
    %3670 = vmatmul.f32.gmra.mxu0 %v3030
    %v3671 = vpop.f32.mrf.mxu0
    %v3672 = vadd.f32 %v2372, %v3671
    %3673 = vmatmul.f32.gmra.mxu0 %v3032
    %v3674 = vpop.f32.mrf.mxu0
    %v3675 = vadd.f32 %v2375, %v3674
    %3676 = vmatmul.f32.gmra.mxu0 %v3034
    %v3677 = vpop.f32.mrf.mxu0
    %v3678 = vadd.f32 %v2378, %v3677
    %3679 = vmatmul.f32.gmra.mxu0 %v3036
    %v3680 = vpop.f32.mrf.mxu0
    %v3681 = vadd.f32 %v2381, %v3680
    %3682 = vmatmul.f32.gmra.mxu0 %v3038
    %v3683 = vpop.f32.mrf.mxu0
    %v3684 = vadd.f32 %v2384, %v3683
    %3685 = vmatmul.f32.gmra.mxu0 %v3040
    %v3686 = vpop.f32.mrf.mxu0
    %v3687 = vadd.f32 %v2387, %v3686
    %3688 = vmatmul.f32.gmra.mxu0 %v3042
    %v3689 = vpop.f32.mrf.mxu0
    %v3690 = vadd.f32 %v2390, %v3689
    %3691 = vmatmul.f32.gmra.mxu0 %v3044
    %v3692 = vpop.f32.mrf.mxu0
    %v3693 = vadd.f32 %v2393, %v3692
    %3694 = vmatmul.f32.gmra.mxu0 %v3046
    %v3695 = vpop.f32.mrf.mxu0
    %v3696 = vadd.f32 %v2396, %v3695
    %3697 = vmatmul.f32.gmra.mxu0 %v3048
    %v3698 = vpop.f32.mrf.mxu0
    %v3699 = vadd.f32 %v2399, %v3698
    %3700 = vmatmul.f32.gmra.mxu0 %v3050
    %v3701 = vpop.f32.mrf.mxu0
    %v3702 = vadd.f32 %v2402, %v3701
    %3703 = vmatmul.f32.gmra.mxu0 %v3052
    %v3704 = vpop.f32.mrf.mxu0
    %v3705 = vadd.f32 %v2405, %v3704
    %3706 = vmatmul.f32.gmra.mxu0 %v3054
    %v3707 = vpop.f32.mrf.mxu0
    %v3708 = vadd.f32 %v2408, %v3707
    %3709 = vmatmul.f32.gmra.mxu0 %v3056
    %v3710 = vpop.f32.mrf.mxu0
    %v3711 = vadd.f32 %v2411, %v3710
    %3712 = vmatmul.f32.gmra.mxu0 %v3058
    %v3713 = vpop.f32.mrf.mxu0
    %v3714 = vadd.f32 %v2414, %v3713
    %3715 = vmatmul.f32.gmra.mxu0 %v3060
    %v3716 = vpop.f32.mrf.mxu0
    %v3717 = vadd.f32 %v2417, %v3716
    %3718 = vmatmul.f32.gmra.mxu0 %v3062
    %v3719 = vpop.f32.mrf.mxu0
    %v3720 = vadd.f32 %v2420, %v3719
    %3721 = vmatmul.f32.gmra.mxu0 %v3064
    %v3722 = vpop.f32.mrf.mxu0
    %v3723 = vadd.f32 %v2423, %v3722
    %3724 = vmatmul.f32.gmra.mxu0 %v3066
    %v3725 = vpop.f32.mrf.mxu0
    %v3726 = vadd.f32 %v2426, %v3725
    %3727 = vmatmul.f32.gmra.mxu0 %v3068
    %v3728 = vpop.f32.mrf.mxu0
    %v3729 = vadd.f32 %v2429, %v3728
    %3730 = vmatmul.f32.gmra.mxu0 %v3070
    %v3731 = vpop.f32.mrf.mxu0
    %v3732 = vadd.f32 %v2432, %v3731
    %3733 = vmatmul.f32.gmra.mxu0 %v3072
    %v3734 = vpop.f32.mrf.mxu0
    %v3735 = vadd.f32 %v2435, %v3734
    %3736 = vmatmul.f32.gmra.mxu0 %v3074
    %v3737 = vpop.f32.mrf.mxu0
    %v3738 = vadd.f32 %v2438, %v3737
    %3739 = vmatmul.f32.gmra.mxu0 %v3076
    %v3740 = vpop.f32.mrf.mxu0
    %v3741 = vadd.f32 %v2441, %v3740
    %3742 = vmatmul.f32.gmra.mxu0 %v3078
    %v3743 = vpop.f32.mrf.mxu0
    %v3744 = vadd.f32 %v2444, %v3743
    %3745 = vmatmul.f32.gmra.mxu0 %v3080
    %v3746 = vpop.f32.mrf.mxu0
    %v3747 = vadd.f32 %v2447, %v3746
    %3748 = vmatmul.f32.gmra.mxu0 %v3082
    %v3749 = vpop.f32.mrf.mxu0
    %v3750 = vadd.f32 %v2450, %v3749
    %3751 = vmatmul.f32.gmra.mxu0 %v3084
    %v3752 = vpop.f32.mrf.mxu0
    %v3753 = vadd.f32 %v2453, %v3752
    %3754 = vmatmul.f32.gmra.mxu0 %v3086
    %v3755 = vpop.f32.mrf.mxu0
    %v3756 = vadd.f32 %v2456, %v3755
    %3757 = vmatmul.f32.gmra.mxu0 %v3088
    %v3758 = vpop.f32.mrf.mxu0
    %v3759 = vadd.f32 %v2459, %v3758
    %3760 = vmatmul.f32.gmra.mxu0 %v3090
    %v3761 = vpop.f32.mrf.mxu0
    %v3762 = vadd.f32 %v2462, %v3761
    %3763 = vmatmul.f32.gmra.mxu0 %v3092
    %v3764 = vpop.f32.mrf.mxu0
    %v3765 = vadd.f32 %v2465, %v3764
    %3766 = vmatmul.f32.gmra.mxu0 %v3094
    %v3767 = vpop.f32.mrf.mxu0
    %v3768 = vadd.f32 %v2468, %v3767
    %3769 = vmatmul.f32.gmra.mxu0 %v3096
    %v3770 = vpop.f32.mrf.mxu0
    %v3771 = vadd.f32 %v2471, %v3770
    %3772 = vmatmul.f32.gmra.mxu0 %v3098
    %v3773 = vpop.f32.mrf.mxu0
    %v3774 = vadd.f32 %v2474, %v3773
    %3775 = vmatmul.f32.gmra.mxu0 %v3100
    %v3776 = vpop.f32.mrf.mxu0
    %v3777 = vadd.f32 %v2477, %v3776
    %3778 = vmatmul.f32.gmra.mxu0 %v3102
    %v3779 = vpop.f32.mrf.mxu0
    %v3780 = vadd.f32 %v2480, %v3779
    %3781 = vmatmul.f32.gmra.mxu0 %v3104
    %v3782 = vpop.f32.mrf.mxu0
    %v3783 = vadd.f32 %v2483, %v3782
    %3784 = vmatmul.f32.gmra.mxu0 %v3106
    %v3785 = vpop.f32.mrf.mxu0
    %v3786 = vadd.f32 %v2486, %v3785
    %3787 = vmatmul.f32.gmra.mxu0 %v3108
    %v3788 = vpop.f32.mrf.mxu0
    %v3789 = vadd.f32 %v2489, %v3788
    %3790 = vmatmul.f32.gmra.mxu0 %v3110
    %v3791 = vpop.f32.mrf.mxu0
    %v3792 = vadd.f32 %v2492, %v3791
    %3793 = vmatmul.f32.gmra.mxu0 %v3112
    %v3794 = vpop.f32.mrf.mxu0
    %v3795 = vadd.f32 %v2495, %v3794
    %3796 = vmatmul.f32.gmra.mxu0 %v3114
    %v3797 = vpop.f32.mrf.mxu0
    %v3798 = vadd.f32 %v2498, %v3797
    %3799 = vmatmul.f32.gmra.mxu0 %v3116
    %v3800 = vpop.f32.mrf.mxu0
    %v3801 = vadd.f32 %v2501, %v3800
    %3802 = vmatmul.f32.gmra.mxu0 %v3118
    %v3803 = vpop.f32.mrf.mxu0
    %v3804 = vadd.f32 %v2504, %v3803
    %3805 = vmatmul.f32.gmra.mxu0 %v3120
    %v3806 = vpop.f32.mrf.mxu0
    %v3807 = vadd.f32 %v2507, %v3806
    %3808 = vmatmul.f32.gmra.mxu0 %v3122
    %v3809 = vpop.f32.mrf.mxu0
    %v3810 = vadd.f32 %v2510, %v3809
    %3811 = vmatmul.f32.gmra.mxu0 %v3124
    %v3812 = vpop.f32.mrf.mxu0
    %v3813 = vadd.f32 %v2513, %v3812
    %3814 = vmatmul.f32.gmra.mxu0 %v3126
    %v3815 = vpop.f32.mrf.mxu0
    %v3816 = vadd.f32 %v2516, %v3815
    %3817 = vmatmul.f32.gmra.mxu0 %v3128
    %v3818 = vpop.f32.mrf.mxu0
    %v3819 = vadd.f32 %v2519, %v3818
    %3820 = vmatmul.f32.gmra.mxu0 %v3130
    %v3821 = vpop.f32.mrf.mxu0
    %v3822 = vadd.f32 %v2522, %v3821
    %3823 = vmatmul.f32.gmra.mxu0 %v3132
    %v3824 = vpop.f32.mrf.mxu0
    %v3825 = vadd.f32 %v2525, %v3824
    %3826 = vmatmul.f32.gmra.mxu0 %v3134
    %v3827 = vpop.f32.mrf.mxu0
    %v3828 = vadd.f32 %v2528, %v3827
    %3829 = vmatmul.f32.gmra.mxu0 %v3136
    %v3830 = vpop.f32.mrf.mxu0
    %v3831 = vadd.f32 %v2531, %v3830
    %3832 = vmatmul.f32.gmra.mxu0 %v3138
    %v3833 = vpop.f32.mrf.mxu0
    %v3834 = vadd.f32 %v2534, %v3833
    %3835 = vmatmul.f32.gmra.mxu0 %v3140
    %v3836 = vpop.f32.mrf.mxu0
    %v3837 = vadd.f32 %v2537, %v3836
    %3838 = vmatmul.f32.gmra.mxu0 %v3142
    %v3839 = vpop.f32.mrf.mxu0
    %v3840 = vadd.f32 %v2540, %v3839
    %3841 = vmatmul.f32.gmra.mxu0 %v3144
    %v3842 = vpop.f32.mrf.mxu0
    %v3843 = vadd.f32 %v2543, %v3842
    %3844 = vmatmul.f32.gmra.mxu0 %v3146
    %v3845 = vpop.f32.mrf.mxu0
    %v3846 = vadd.f32 %v2546, %v3845
    %3847 = vmatmul.f32.gmra.mxu0 %v3148
    %v3848 = vpop.f32.mrf.mxu0
    %v3849 = vadd.f32 %v2549, %v3848
    %3850 = vmatmul.f32.gmra.mxu0 %v3150
    %v3851 = vpop.f32.mrf.mxu0
    %v3852 = vadd.f32 %v2552, %v3851
    %3853 = vmatmul.f32.gmra.mxu0 %v3152
    %v3854 = vpop.f32.mrf.mxu0
    %v3855 = vadd.f32 %v2555, %v3854
    %3856 = vmatmul.f32.gmra.mxu0 %v3154
    %v3857 = vpop.f32.mrf.mxu0
    %v3858 = vadd.f32 %v2558, %v3857
    %3859 = vmatmul.f32.gmra.mxu0 %v3156
    %v3860 = vpop.f32.mrf.mxu0
    %v3861 = vadd.f32 %v2561, %v3860
    %3862 = vmatmul.f32.gmra.mxu0 %v3158
    %v3863 = vpop.f32.mrf.mxu0
    %v3864 = vadd.f32 %v2564, %v3863
    %3865 = vmatmul.f32.gmra.mxu0 %v3160
    %v3866 = vpop.f32.mrf.mxu0
    %v3867 = vadd.f32 %v2567, %v3866
    %3868 = vmatmul.f32.gmra.mxu0 %v3162
    %v3869 = vpop.f32.mrf.mxu0
    %v3870 = vadd.f32 %v2570, %v3869
    %3871 = vmatmul.f32.gmra.mxu0 %v3164
    %v3872 = vpop.f32.mrf.mxu0
    %v3873 = vadd.f32 %v2573, %v3872
    %3874 = vmatmul.f32.gmra.mxu0 %v3166
    %v3875 = vpop.f32.mrf.mxu0
    %v3876 = vadd.f32 %v2576, %v3875
    %3877 = vmatmul.f32.gmra.mxu0 %v3168
    %v3878 = vpop.f32.mrf.mxu0
    %v3879 = vadd.f32 %v2579, %v3878
    %3880 = vmatmul.f32.gmra.mxu0 %v3170
    %v3881 = vpop.f32.mrf.mxu0
    %v3882 = vadd.f32 %v2582, %v3881
    %3883 = vmatmul.f32.gmra.mxu0 %v3172
    %v3884 = vpop.f32.mrf.mxu0
    %v3885 = vadd.f32 %v2585, %v3884
    %3886 = vmatmul.f32.gmra.mxu0 %v3174
    %v3887 = vpop.f32.mrf.mxu0
    %v3888 = vadd.f32 %v2588, %v3887
    %3889 = vmatmul.f32.gmra.mxu0 %v3176
    %v3890 = vpop.f32.mrf.mxu0
    %v3891 = vadd.f32 %v2591, %v3890
    %3892 = vmatmul.f32.gmra.mxu0 %v3178
    %v3893 = vpop.f32.mrf.mxu0
    %v3894 = vadd.f32 %v2594, %v3893
    %3895 = vmatmul.f32.gmra.mxu0 %v3180
    %v3896 = vpop.f32.mrf.mxu0
    %v3897 = vadd.f32 %v2597, %v3896
    %3898 = vmatmul.f32.gmra.mxu0 %v3182
    %v3899 = vpop.f32.mrf.mxu0
    %v3900 = vadd.f32 %v2600, %v3899
    %3901 = vmatmul.f32.gmra.mxu0 %v3184
    %v3902 = vpop.f32.mrf.mxu0
    %v3903 = vadd.f32 %v2603, %v3902
    %3904 = vmatmul.f32.gmra.mxu0 %v3186
    %v3905 = vpop.f32.mrf.mxu0
    %v3906 = vadd.f32 %v2606, %v3905
    %3907 = vmatmul.f32.gmra.mxu0 %v3188
    %v3908 = vpop.f32.mrf.mxu0
    %v3909 = vadd.f32 %v2609, %v3908
    %3910 = vmatmul.f32.gmra.mxu0 %v3190
    %v3911 = vpop.f32.mrf.mxu0
    %v3912 = vadd.f32 %v2612, %v3911
    %3913 = vmatmul.f32.gmra.mxu0 %v3192
    %v3914 = vpop.f32.mrf.mxu0
    %v3915 = vadd.f32 %v2615, %v3914
    %3916 = vmatmul.f32.gmra.mxu0 %v3194
    %v3917 = vpop.f32.mrf.mxu0
    %v3918 = vadd.f32 %v2618, %v3917
    %3919 = vmatmul.f32.gmra.mxu0 %v3196
    %v3920 = vpop.f32.mrf.mxu0
    %v3921 = vadd.f32 %v2621, %v3920
    %3922 = vmatmul.f32.gmra.mxu0 %v3198
    %v3923 = vpop.f32.mrf.mxu0
    %v3924 = vadd.f32 %v2624, %v3923
    %3925 = vmatmul.f32.gmra.mxu0 %v3200
    %v3926 = vpop.f32.mrf.mxu0
    %v3927 = vadd.f32 %v2627, %v3926
    %3928 = vmatmul.f32.gmra.mxu0 %v3202
    %v3929 = vpop.f32.mrf.mxu0
    %v3930 = vadd.f32 %v2630, %v3929
    %3931 = vmatmul.f32.gmra.mxu0 %v3204
    %v3932 = vpop.f32.mrf.mxu0
    %v3933 = vadd.f32 %v2633, %v3932
    %3934 = vmatmul.f32.gmra.mxu0 %v3206
    %v3935 = vpop.f32.mrf.mxu0
    %v3936 = vadd.f32 %v2636, %v3935
    %3937 = vmatmul.f32.gmra.mxu0 %v3208
    %v3938 = vpop.f32.mrf.mxu0
    %v3939 = vadd.f32 %v2639, %v3938
    %3940 = vmatmul.f32.gmra.mxu0 %v3210
    %v3941 = vpop.f32.mrf.mxu0
    %v3942 = vadd.f32 %v2642, %v3941
    %3943 = vmatmul.f32.gmra.mxu0 %v3212
    %v3944 = vpop.f32.mrf.mxu0
    %v3945 = vadd.f32 %v2645, %v3944
    %3946 = vmatmul.f32.gmra.mxu0 %v3214
    %v3947 = vpop.f32.mrf.mxu0
    %v3948 = vadd.f32 %v2648, %v3947
    %3949 = vmatmul.f32.gmra.mxu0 %v3216
    %v3950 = vpop.f32.mrf.mxu0
    %v3951 = vadd.f32 %v2651, %v3950
    %3952 = vmatmul.f32.gmra.mxu0 %v3218
    %v3953 = vpop.f32.mrf.mxu0
    %v3954 = vadd.f32 %v2654, %v3953
    %3955 = vmatmul.f32.gmra.mxu0 %v3220
    %v3956 = vpop.f32.mrf.mxu0
    %v3957 = vadd.f32 %v2657, %v3956
    %3958 = vmatmul.f32.gmra.mxu0 %v3222
    %v3959 = vpop.f32.mrf.mxu0
    %v3960 = vadd.f32 %v2660, %v3959
    %3961 = vmatmul.f32.gmra.mxu0 %v3224
    %v3962 = vpop.f32.mrf.mxu0
    %v3963 = vadd.f32 %v2663, %v3962
    %3964 = vmatmul.f32.gmra.mxu0 %v3226
    %v3965 = vpop.f32.mrf.mxu0
    %v3966 = vadd.f32 %v2666, %v3965
    %3967 = vmatmul.f32.gmra.mxu0 %v3228
    %v3968 = vpop.f32.mrf.mxu0
    %v3969 = vadd.f32 %v2669, %v3968
    %3970 = vmatmul.f32.gmra.mxu0 %v3230
    %v3971 = vpop.f32.mrf.mxu0
    %v3972 = vadd.f32 %v2672, %v3971
    %3973 = vmatmul.f32.gmra.mxu0 %v3232
    %v3974 = vpop.f32.mrf.mxu0
    %v3975 = vadd.f32 %v2675, %v3974
    %3976 = vmatmul.f32.gmra.mxu0 %v3234
    %v3977 = vpop.f32.mrf.mxu0
    %v3978 = vadd.f32 %v2678, %v3977
    %3979 = vmatmul.f32.gmra.mxu0 %v3236
    %v3980 = vpop.f32.mrf.mxu0
    %v3981 = vadd.f32 %v2681, %v3980
    %3982 = vmatmul.f32.gmra.mxu0 %v3238
    %v3983 = vpop.f32.mrf.mxu0
    %v3984 = vadd.f32 %v2684, %v3983
    %3985 = vmatmul.f32.gmra.mxu0 %v3240
    %v3986 = vpop.f32.mrf.mxu0
    %v3987 = vadd.f32 %v2687, %v3986
    %3988 = vmatmul.f32.gmra.mxu0 %v3242
    %v3989 = vpop.f32.mrf.mxu0
    %v3990 = vadd.f32 %v2690, %v3989
    %3991 = vmatmul.f32.gmra.mxu0 %v3244
    %v3992 = vpop.f32.mrf.mxu0
    %v3993 = vadd.f32 %v2693, %v3992
    %3994 = vmatmul.f32.gmra.mxu0 %v3246
    %v3995 = vpop.f32.mrf.mxu0
    %v3996 = vadd.f32 %v2696, %v3995
    %3997 = vmatmul.f32.gmra.mxu0 %v3248
    %v3998 = vpop.f32.mrf.mxu0
    %v3999 = vadd.f32 %v2699, %v3998
    %4000 = vmatmul.f32.gmra.mxu0 %v3250
    %v4001 = vpop.f32.mrf.mxu0
    %v4002 = vadd.f32 %v2702, %v4001
    %4003 = vmatmul.f32.gmra.mxu0 %v3252
    %v4004 = vpop.f32.mrf.mxu0
    %v4005 = vadd.f32 %v2705, %v4004
    %4006 = vmatmul.f32.gmra.mxu0 %v3254
    %v4007 = vpop.f32.mrf.mxu0
    %v4008 = vadd.f32 %v2708, %v4007
    %4009 = vmatmul.f32.gmra.mxu0 %v3256
    %v4010 = vpop.f32.mrf.mxu0
    %v4011 = vadd.f32 %v2711, %v4010
    %4012 = vmatmul.f32.gmra.mxu0 %v3258
    %v4013 = vpop.f32.mrf.mxu0
    %v4014 = vadd.f32 %v2714, %v4013
    %4015 = vmatmul.f32.gmra.mxu0 %v3260
    %v4016 = vpop.f32.mrf.mxu0
    %v4017 = vadd.f32 %v2717, %v4016
    %4018 = vmatmul.f32.gmra.mxu0 %v3262
    %v4019 = vpop.f32.mrf.mxu0
    %v4020 = vadd.f32 %v2720, %v4019
    %4021 = vmatmul.f32.gmra.mxu0 %v3264
    %v4022 = vpop.f32.mrf.mxu0
    %v4023 = vadd.f32 %v2723, %v4022
    %4024 = vmatmul.f32.gmra.mxu0 %v3266
    %v4025 = vpop.f32.mrf.mxu0
    %v4026 = vadd.f32 %v2726, %v4025
    %4027 = vmatmul.f32.gmra.mxu0 %v3268
    %v4028 = vpop.f32.mrf.mxu0
    %v4029 = vadd.f32 %v2729, %v4028
    %4030 = vmatmul.f32.gmra.mxu0 %v3270
    %v4031 = vpop.f32.mrf.mxu0
    %v4032 = vadd.f32 %v2732, %v4031
    %4033 = vmatmul.f32.gmra.mxu0 %v3272
    %v4034 = vpop.f32.mrf.mxu0
    %v4035 = vadd.f32 %v2735, %v4034
    %4036 = vmatmul.f32.gmra.mxu0 %v3274
    %v4037 = vpop.f32.mrf.mxu0
    %v4038 = vadd.f32 %v2738, %v4037
    %4039 = vmatmul.f32.gmra.mxu0 %v3276
    %v4040 = vpop.f32.mrf.mxu0
    %v4041 = vadd.f32 %v2741, %v4040
    %4042 = vmatmul.f32.gmra.mxu0 %v3278
    %v4043 = vpop.f32.mrf.mxu0
    %v4044 = vadd.f32 %v2744, %v4043
    %4045 = vmatmul.f32.gmra.mxu0 %v3280
    %v4046 = vpop.f32.mrf.mxu0
    %v4047 = vadd.f32 %v2747, %v4046
    %4048 = vmatmul.f32.gmra.mxu0 %v3282
    %v4049 = vpop.f32.mrf.mxu0
    %v4050 = vadd.f32 %v2750, %v4049
    %4051 = vmatmul.f32.gmra.mxu0 %v3284
    %v4052 = vpop.f32.mrf.mxu0
    %v4053 = vadd.f32 %v2753, %v4052
    %4054 = vmatmul.f32.gmra.mxu0 %v3286
    %v4055 = vpop.f32.mrf.mxu0
    %v4056 = vadd.f32 %v2756, %v4055
    %4057 = vmatmul.f32.gmra.mxu0 %v3288
    %v4058 = vpop.f32.mrf.mxu0
    %v4059 = vadd.f32 %v2759, %v4058
    %4060 = vmatmul.f32.gmra.mxu0 %v3290
    %v4061 = vpop.f32.mrf.mxu0
    %v4062 = vadd.f32 %v2762, %v4061
    %4063 = vmatmul.f32.gmra.mxu0 %v3292
    %v4064 = vpop.f32.mrf.mxu0
    %v4065 = vadd.f32 %v2765, %v4064
    %4066 = vmatmul.f32.gmra.mxu0 %v3294
    %v4067 = vpop.f32.mrf.mxu0
    %v4068 = vadd.f32 %v2768, %v4067
    %4069 = vmatmul.f32.gmra.mxu0 %v3296
    %v4070 = vpop.f32.mrf.mxu0
    %v4071 = vadd.f32 %v2771, %v4070
    %4072 = vmatmul.f32.gmra.mxu0 %v3298
    %v4073 = vpop.f32.mrf.mxu0
    %v4074 = vadd.f32 %v2774, %v4073
    %4075 = vmatmul.f32.gmra.mxu0 %v3300
    %v4076 = vpop.f32.mrf.mxu0
    %v4077 = vadd.f32 %v2777, %v4076
    %4078 = vmatmul.f32.gmra.mxu0 %v3302
    %v4079 = vpop.f32.mrf.mxu0
    %v4080 = vadd.f32 %v2780, %v4079
    %4081 = vmatmul.f32.gmra.mxu0 %v3304
    %v4082 = vpop.f32.mrf.mxu0
    %v4083 = vadd.f32 %v2783, %v4082
    %4084 = vmatmul.f32.gmra.mxu0 %v3306
    %v4085 = vpop.f32.mrf.mxu0
    %v4086 = vadd.f32 %v2786, %v4085
    %4087 = vmatmul.f32.gmra.mxu0 %v3308
    %v4088 = vpop.f32.mrf.mxu0
    %v4089 = vadd.f32 %v2789, %v4088
    %4090 = vmatmul.f32.gmra.mxu0 %v3310
    %v4091 = vpop.f32.mrf.mxu0
    %v4092 = vadd.f32 %v2792, %v4091
    %4093 = vmatmul.f32.gmra.mxu0 %v3312
    %v4094 = vpop.f32.mrf.mxu0
    %v4095 = vadd.f32 %v2795, %v4094
    %4096 = vmatmul.f32.gmra.mxu0 %v3314
    %v4097 = vpop.f32.mrf.mxu0
    %v4098 = vadd.f32 %v2798, %v4097
    %4099 = vmatmul.f32.gmra.mxu0 %v3316
    %v4100 = vpop.f32.mrf.mxu0
    %v4101 = vadd.f32 %v2801, %v4100
    %4102 = vmatmul.f32.gmra.mxu0 %v3318
    %v4103 = vpop.f32.mrf.mxu0
    %v4104 = vadd.f32 %v2804, %v4103
    %4105 = vmatmul.f32.gmra.mxu0 %v3320
    %v4106 = vpop.f32.mrf.mxu0
    %v4107 = vadd.f32 %v2807, %v4106
    %4108 = vmatmul.f32.gmra.mxu0 %v3322
    %v4109 = vpop.f32.mrf.mxu0
    %v4110 = vadd.f32 %v2810, %v4109
    %4111 = vdwg.mxu0
    %vm4112 = vcmask 1045504
    %v4113 = vrot.slane %v44, 2
    %v4114 = vrot.slane %v45, 2
    %v4115 = vsel %vm4112, %v4113, %v4114
    %v4116 = vrot.slane %v46, 2
    %v4117 = vsel %vm4112, %v4114, %v4116
    %v4118 = vrot.slane %v47, 2
    %v4119 = vrot.slane %v48, 2
    %v4120 = vsel %vm4112, %v4118, %v4119
    %v4121 = vrot.slane %v49, 2
    %v4122 = vsel %vm4112, %v4119, %v4121
    %v4123 = vrot.slane %v50, 2
    %v4124 = vrot.slane %v51, 2
    %v4125 = vsel %vm4112, %v4123, %v4124
    %v4126 = vrot.slane %v52, 2
    %v4127 = vsel %vm4112, %v4124, %v4126
    %v4128 = vrot.slane %v53, 2
    %v4129 = vrot.slane %v54, 2
    %v4130 = vsel %vm4112, %v4128, %v4129
    %v4131 = vrot.slane %v55, 2
    %v4132 = vsel %vm4112, %v4129, %v4131
    %v4133 = vrot.slane %v56, 2
    %v4134 = vrot.slane %v57, 2
    %v4135 = vsel %vm4112, %v4133, %v4134
    %v4136 = vrot.slane %v58, 2
    %v4137 = vsel %vm4112, %v4134, %v4136
    %v4138 = vrot.slane %v59, 2
    %v4139 = vrot.slane %v60, 2
    %v4140 = vsel %vm4112, %v4138, %v4139
    %v4141 = vrot.slane %v61, 2
    %v4142 = vsel %vm4112, %v4139, %v4141
    %v4143 = vrot.slane %v62, 2
    %v4144 = vrot.slane %v63, 2
    %v4145 = vsel %vm4112, %v4143, %v4144
    %v4146 = vrot.slane %v64, 2
    %v4147 = vsel %vm4112, %v4144, %v4146
    %v4148 = vrot.slane %v65, 2
    %v4149 = vrot.slane %v66, 2
    %v4150 = vsel %vm4112, %v4148, %v4149
    %v4151 = vrot.slane %v67, 2
    %v4152 = vsel %vm4112, %v4149, %v4151
    %v4153 = vrot.slane %v68, 2
    %v4154 = vrot.slane %v69, 2
    %v4155 = vsel %vm4112, %v4153, %v4154
    %v4156 = vrot.slane %v70, 2
    %v4157 = vsel %vm4112, %v4154, %v4156
    %v4158 = vrot.slane %v71, 2
    %v4159 = vrot.slane %v72, 2
    %v4160 = vsel %vm4112, %v4158, %v4159
    %v4161 = vrot.slane %v73, 2
    %v4162 = vsel %vm4112, %v4159, %v4161
    %v4163 = vrot.slane %v74, 2
    %v4164 = vrot.slane %v75, 2
    %v4165 = vsel %vm4112, %v4163, %v4164
    %v4166 = vrot.slane %v76, 2
    %v4167 = vsel %vm4112, %v4164, %v4166
    %v4168 = vrot.slane %v77, 2
    %v4169 = vrot.slane %v78, 2
    %v4170 = vsel %vm4112, %v4168, %v4169
    %v4171 = vrot.slane %v79, 2
    %v4172 = vsel %vm4112, %v4169, %v4171
    %v4173 = vrot.slane %v80, 2
    %v4174 = vrot.slane %v81, 2
    %v4175 = vsel %vm4112, %v4173, %v4174
    %v4176 = vrot.slane %v82, 2
    %v4177 = vsel %vm4112, %v4174, %v4176
    %v4178 = vrot.slane %v83, 2
    %v4179 = vrot.slane %v84, 2
    %v4180 = vsel %vm4112, %v4178, %v4179
    %v4181 = vrot.slane %v85, 2
    %v4182 = vsel %vm4112, %v4179, %v4181
    %v4183 = vrot.slane %v86, 2
    %v4184 = vrot.slane %v87, 2
    %v4185 = vsel %vm4112, %v4183, %v4184
    %v4186 = vrot.slane %v88, 2
    %v4187 = vsel %vm4112, %v4184, %v4186
    %v4188 = vrot.slane %v89, 2
    %v4189 = vrot.slane %v90, 2
    %v4190 = vsel %vm4112, %v4188, %v4189
    %v4191 = vrot.slane %v91, 2
    %v4192 = vsel %vm4112, %v4189, %v4191
    %v4193 = vrot.slane %v98, 2
    %v4194 = vrot.slane %v99, 2
    %v4195 = vsel %vm4112, %v4193, %v4194
    %v4196 = vrot.slane %v100, 2
    %v4197 = vsel %vm4112, %v4194, %v4196
    %v4198 = vrot.slane %v101, 2
    %v4199 = vrot.slane %v102, 2
    %v4200 = vsel %vm4112, %v4198, %v4199
    %v4201 = vrot.slane %v103, 2
    %v4202 = vsel %vm4112, %v4199, %v4201
    %v4203 = vrot.slane %v104, 2
    %v4204 = vrot.slane %v105, 2
    %v4205 = vsel %vm4112, %v4203, %v4204
    %v4206 = vrot.slane %v106, 2
    %v4207 = vsel %vm4112, %v4204, %v4206
    %v4208 = vrot.slane %v107, 2
    %v4209 = vrot.slane %v108, 2
    %v4210 = vsel %vm4112, %v4208, %v4209
    %v4211 = vrot.slane %v109, 2
    %v4212 = vsel %vm4112, %v4209, %v4211
    %v4213 = vrot.slane %v110, 2
    %v4214 = vrot.slane %v111, 2
    %v4215 = vsel %vm4112, %v4213, %v4214
    %v4216 = vrot.slane %v112, 2
    %v4217 = vsel %vm4112, %v4214, %v4216
    %v4218 = vrot.slane %v113, 2
    %v4219 = vrot.slane %v114, 2
    %v4220 = vsel %vm4112, %v4218, %v4219
    %v4221 = vrot.slane %v115, 2
    %v4222 = vsel %vm4112, %v4219, %v4221
    %v4223 = vrot.slane %v116, 2
    %v4224 = vrot.slane %v117, 2
    %v4225 = vsel %vm4112, %v4223, %v4224
    %v4226 = vrot.slane %v118, 2
    %v4227 = vsel %vm4112, %v4224, %v4226
    %v4228 = vrot.slane %v119, 2
    %v4229 = vrot.slane %v120, 2
    %v4230 = vsel %vm4112, %v4228, %v4229
    %v4231 = vrot.slane %v121, 2
    %v4232 = vsel %vm4112, %v4229, %v4231
    %v4233 = vrot.slane %v122, 2
    %v4234 = vrot.slane %v123, 2
    %v4235 = vsel %vm4112, %v4233, %v4234
    %v4236 = vrot.slane %v124, 2
    %v4237 = vsel %vm4112, %v4234, %v4236
    %v4238 = vrot.slane %v125, 2
    %v4239 = vrot.slane %v126, 2
    %v4240 = vsel %vm4112, %v4238, %v4239
    %v4241 = vrot.slane %v127, 2
    %v4242 = vsel %vm4112, %v4239, %v4241
    %v4243 = vrot.slane %v128, 2
    %v4244 = vrot.slane %v129, 2
    %v4245 = vsel %vm4112, %v4243, %v4244
    %v4246 = vrot.slane %v130, 2
    %v4247 = vsel %vm4112, %v4244, %v4246
    %v4248 = vrot.slane %v131, 2
    %v4249 = vrot.slane %v132, 2
    %v4250 = vsel %vm4112, %v4248, %v4249
    %v4251 = vrot.slane %v133, 2
    %v4252 = vsel %vm4112, %v4249, %v4251
    %v4253 = vrot.slane %v134, 2
    %v4254 = vrot.slane %v135, 2
    %v4255 = vsel %vm4112, %v4253, %v4254
    %v4256 = vrot.slane %v136, 2
    %v4257 = vsel %vm4112, %v4254, %v4256
    %v4258 = vrot.slane %v137, 2
    %v4259 = vrot.slane %v138, 2
    %v4260 = vsel %vm4112, %v4258, %v4259
    %v4261 = vrot.slane %v139, 2
    %v4262 = vsel %vm4112, %v4259, %v4261
    %v4263 = vrot.slane %v140, 2
    %v4264 = vrot.slane %v141, 2
    %v4265 = vsel %vm4112, %v4263, %v4264
    %v4266 = vrot.slane %v142, 2
    %v4267 = vsel %vm4112, %v4264, %v4266
    %v4268 = vrot.slane %v143, 2
    %v4269 = vrot.slane %v144, 2
    %v4270 = vsel %vm4112, %v4268, %v4269
    %v4271 = vrot.slane %v145, 2
    %v4272 = vsel %vm4112, %v4269, %v4271
    %v4273 = vrot.slane %v152, 2
    %v4274 = vrot.slane %v153, 2
    %v4275 = vsel %vm4112, %v4273, %v4274
    %v4276 = vrot.slane %v154, 2
    %v4277 = vsel %vm4112, %v4274, %v4276
    %v4278 = vrot.slane %v155, 2
    %v4279 = vrot.slane %v156, 2
    %v4280 = vsel %vm4112, %v4278, %v4279
    %v4281 = vrot.slane %v157, 2
    %v4282 = vsel %vm4112, %v4279, %v4281
    %v4283 = vrot.slane %v158, 2
    %v4284 = vrot.slane %v159, 2
    %v4285 = vsel %vm4112, %v4283, %v4284
    %v4286 = vrot.slane %v160, 2
    %v4287 = vsel %vm4112, %v4284, %v4286
    %v4288 = vrot.slane %v161, 2
    %v4289 = vrot.slane %v162, 2
    %v4290 = vsel %vm4112, %v4288, %v4289
    %v4291 = vrot.slane %v163, 2
    %v4292 = vsel %vm4112, %v4289, %v4291
    %v4293 = vrot.slane %v164, 2
    %v4294 = vrot.slane %v165, 2
    %v4295 = vsel %vm4112, %v4293, %v4294
    %v4296 = vrot.slane %v166, 2
    %v4297 = vsel %vm4112, %v4294, %v4296
    %v4298 = vrot.slane %v167, 2
    %v4299 = vrot.slane %v168, 2
    %v4300 = vsel %vm4112, %v4298, %v4299
    %v4301 = vrot.slane %v169, 2
    %v4302 = vsel %vm4112, %v4299, %v4301
    %v4303 = vrot.slane %v170, 2
    %v4304 = vrot.slane %v171, 2
    %v4305 = vsel %vm4112, %v4303, %v4304
    %v4306 = vrot.slane %v172, 2
    %v4307 = vsel %vm4112, %v4304, %v4306
    %v4308 = vrot.slane %v173, 2
    %v4309 = vrot.slane %v174, 2
    %v4310 = vsel %vm4112, %v4308, %v4309
    %v4311 = vrot.slane %v175, 2
    %v4312 = vsel %vm4112, %v4309, %v4311
    %v4313 = vrot.slane %v176, 2
    %v4314 = vrot.slane %v177, 2
    %v4315 = vsel %vm4112, %v4313, %v4314
    %v4316 = vrot.slane %v178, 2
    %v4317 = vsel %vm4112, %v4314, %v4316
    %v4318 = vrot.slane %v179, 2
    %v4319 = vrot.slane %v180, 2
    %v4320 = vsel %vm4112, %v4318, %v4319
    %v4321 = vrot.slane %v181, 2
    %v4322 = vsel %vm4112, %v4319, %v4321
    %v4323 = vrot.slane %v182, 2
    %v4324 = vrot.slane %v183, 2
    %v4325 = vsel %vm4112, %v4323, %v4324
    %v4326 = vrot.slane %v184, 2
    %v4327 = vsel %vm4112, %v4324, %v4326
    %v4328 = vrot.slane %v185, 2
    %v4329 = vrot.slane %v186, 2
    %v4330 = vsel %vm4112, %v4328, %v4329
    %v4331 = vrot.slane %v187, 2
    %v4332 = vsel %vm4112, %v4329, %v4331
    %v4333 = vrot.slane %v188, 2
    %v4334 = vrot.slane %v189, 2
    %v4335 = vsel %vm4112, %v4333, %v4334
    %v4336 = vrot.slane %v190, 2
    %v4337 = vsel %vm4112, %v4334, %v4336
    %v4338 = vrot.slane %v191, 2
    %v4339 = vrot.slane %v192, 2
    %v4340 = vsel %vm4112, %v4338, %v4339
    %v4341 = vrot.slane %v193, 2
    %v4342 = vsel %vm4112, %v4339, %v4341
    %v4343 = vrot.slane %v194, 2
    %v4344 = vrot.slane %v195, 2
    %v4345 = vsel %vm4112, %v4343, %v4344
    %v4346 = vrot.slane %v196, 2
    %v4347 = vsel %vm4112, %v4344, %v4346
    %v4348 = vrot.slane %v197, 2
    %v4349 = vrot.slane %v198, 2
    %v4350 = vsel %vm4112, %v4348, %v4349
    %v4351 = vrot.slane %v199, 2
    %v4352 = vsel %vm4112, %v4349, %v4351
    %v4353 = vrot.slane %v206, 2
    %v4354 = vrot.slane %v207, 2
    %v4355 = vsel %vm4112, %v4353, %v4354
    %v4356 = vrot.slane %v208, 2
    %v4357 = vsel %vm4112, %v4354, %v4356
    %v4358 = vrot.slane %v209, 2
    %v4359 = vrot.slane %v210, 2
    %v4360 = vsel %vm4112, %v4358, %v4359
    %v4361 = vrot.slane %v211, 2
    %v4362 = vsel %vm4112, %v4359, %v4361
    %v4363 = vrot.slane %v212, 2
    %v4364 = vrot.slane %v213, 2
    %v4365 = vsel %vm4112, %v4363, %v4364
    %v4366 = vrot.slane %v214, 2
    %v4367 = vsel %vm4112, %v4364, %v4366
    %v4368 = vrot.slane %v215, 2
    %v4369 = vrot.slane %v216, 2
    %v4370 = vsel %vm4112, %v4368, %v4369
    %v4371 = vrot.slane %v217, 2
    %v4372 = vsel %vm4112, %v4369, %v4371
    %v4373 = vrot.slane %v218, 2
    %v4374 = vrot.slane %v219, 2
    %v4375 = vsel %vm4112, %v4373, %v4374
    %v4376 = vrot.slane %v220, 2
    %v4377 = vsel %vm4112, %v4374, %v4376
    %v4378 = vrot.slane %v221, 2
    %v4379 = vrot.slane %v222, 2
    %v4380 = vsel %vm4112, %v4378, %v4379
    %v4381 = vrot.slane %v223, 2
    %v4382 = vsel %vm4112, %v4379, %v4381
    %v4383 = vrot.slane %v224, 2
    %v4384 = vrot.slane %v225, 2
    %v4385 = vsel %vm4112, %v4383, %v4384
    %v4386 = vrot.slane %v226, 2
    %v4387 = vsel %vm4112, %v4384, %v4386
    %v4388 = vrot.slane %v227, 2
    %v4389 = vrot.slane %v228, 2
    %v4390 = vsel %vm4112, %v4388, %v4389
    %v4391 = vrot.slane %v229, 2
    %v4392 = vsel %vm4112, %v4389, %v4391
    %v4393 = vrot.slane %v230, 2
    %v4394 = vrot.slane %v231, 2
    %v4395 = vsel %vm4112, %v4393, %v4394
    %v4396 = vrot.slane %v232, 2
    %v4397 = vsel %vm4112, %v4394, %v4396
    %v4398 = vrot.slane %v233, 2
    %v4399 = vrot.slane %v234, 2
    %v4400 = vsel %vm4112, %v4398, %v4399
    %v4401 = vrot.slane %v235, 2
    %v4402 = vsel %vm4112, %v4399, %v4401
    %v4403 = vrot.slane %v236, 2
    %v4404 = vrot.slane %v237, 2
    %v4405 = vsel %vm4112, %v4403, %v4404
    %v4406 = vrot.slane %v238, 2
    %v4407 = vsel %vm4112, %v4404, %v4406
    %v4408 = vrot.slane %v239, 2
    %v4409 = vrot.slane %v240, 2
    %v4410 = vsel %vm4112, %v4408, %v4409
    %v4411 = vrot.slane %v241, 2
    %v4412 = vsel %vm4112, %v4409, %v4411
    %v4413 = vrot.slane %v242, 2
    %v4414 = vrot.slane %v243, 2
    %v4415 = vsel %vm4112, %v4413, %v4414
    %v4416 = vrot.slane %v244, 2
    %v4417 = vsel %vm4112, %v4414, %v4416
    %v4418 = vrot.slane %v245, 2
    %v4419 = vrot.slane %v246, 2
    %v4420 = vsel %vm4112, %v4418, %v4419
    %v4421 = vrot.slane %v247, 2
    %v4422 = vsel %vm4112, %v4419, %v4421
    %v4423 = vrot.slane %v248, 2
    %v4424 = vrot.slane %v249, 2
    %v4425 = vsel %vm4112, %v4423, %v4424
    %v4426 = vrot.slane %v250, 2
    %v4427 = vsel %vm4112, %v4424, %v4426
    %v4428 = vrot.slane %v251, 2
    %v4429 = vrot.slane %v252, 2
    %v4430 = vsel %vm4112, %v4428, %v4429
    %v4431 = vrot.slane %v253, 2
    %v4432 = vsel %vm4112, %v4429, %v4431
    %v4433 = vrot.slane %v260, 2
    %v4434 = vrot.slane %v261, 2
    %v4435 = vsel %vm4112, %v4433, %v4434
    %v4436 = vrot.slane %v262, 2
    %v4437 = vsel %vm4112, %v4434, %v4436
    %v4438 = vrot.slane %v263, 2
    %v4439 = vrot.slane %v264, 2
    %v4440 = vsel %vm4112, %v4438, %v4439
    %v4441 = vrot.slane %v265, 2
    %v4442 = vsel %vm4112, %v4439, %v4441
    %v4443 = vrot.slane %v266, 2
    %v4444 = vrot.slane %v267, 2
    %v4445 = vsel %vm4112, %v4443, %v4444
    %v4446 = vrot.slane %v268, 2
    %v4447 = vsel %vm4112, %v4444, %v4446
    %v4448 = vrot.slane %v269, 2
    %v4449 = vrot.slane %v270, 2
    %v4450 = vsel %vm4112, %v4448, %v4449
    %v4451 = vrot.slane %v271, 2
    %v4452 = vsel %vm4112, %v4449, %v4451
    %v4453 = vrot.slane %v272, 2
    %v4454 = vrot.slane %v273, 2
    %v4455 = vsel %vm4112, %v4453, %v4454
    %v4456 = vrot.slane %v274, 2
    %v4457 = vsel %vm4112, %v4454, %v4456
    %v4458 = vrot.slane %v275, 2
    %v4459 = vrot.slane %v276, 2
    %v4460 = vsel %vm4112, %v4458, %v4459
    %v4461 = vrot.slane %v277, 2
    %v4462 = vsel %vm4112, %v4459, %v4461
    %v4463 = vrot.slane %v278, 2
    %v4464 = vrot.slane %v279, 2
    %v4465 = vsel %vm4112, %v4463, %v4464
    %v4466 = vrot.slane %v280, 2
    %v4467 = vsel %vm4112, %v4464, %v4466
    %v4468 = vrot.slane %v281, 2
    %v4469 = vrot.slane %v282, 2
    %v4470 = vsel %vm4112, %v4468, %v4469
    %v4471 = vrot.slane %v283, 2
    %v4472 = vsel %vm4112, %v4469, %v4471
    %v4473 = vrot.slane %v284, 2
    %v4474 = vrot.slane %v285, 2
    %v4475 = vsel %vm4112, %v4473, %v4474
    %v4476 = vrot.slane %v286, 2
    %v4477 = vsel %vm4112, %v4474, %v4476
    %v4478 = vrot.slane %v287, 2
    %v4479 = vrot.slane %v288, 2
    %v4480 = vsel %vm4112, %v4478, %v4479
    %v4481 = vrot.slane %v289, 2
    %v4482 = vsel %vm4112, %v4479, %v4481
    %v4483 = vrot.slane %v290, 2
    %v4484 = vrot.slane %v291, 2
    %v4485 = vsel %vm4112, %v4483, %v4484
    %v4486 = vrot.slane %v292, 2
    %v4487 = vsel %vm4112, %v4484, %v4486
    %v4488 = vrot.slane %v293, 2
    %v4489 = vrot.slane %v294, 2
    %v4490 = vsel %vm4112, %v4488, %v4489
    %v4491 = vrot.slane %v295, 2
    %v4492 = vsel %vm4112, %v4489, %v4491
    %v4493 = vrot.slane %v296, 2
    %v4494 = vrot.slane %v297, 2
    %v4495 = vsel %vm4112, %v4493, %v4494
    %v4496 = vrot.slane %v298, 2
    %v4497 = vsel %vm4112, %v4494, %v4496
    %v4498 = vrot.slane %v299, 2
    %v4499 = vrot.slane %v300, 2
    %v4500 = vsel %vm4112, %v4498, %v4499
    %v4501 = vrot.slane %v301, 2
    %v4502 = vsel %vm4112, %v4499, %v4501
    %v4503 = vrot.slane %v302, 2
    %v4504 = vrot.slane %v303, 2
    %v4505 = vsel %vm4112, %v4503, %v4504
    %v4506 = vrot.slane %v304, 2
    %v4507 = vsel %vm4112, %v4504, %v4506
    %v4508 = vrot.slane %v305, 2
    %v4509 = vrot.slane %v306, 2
    %v4510 = vsel %vm4112, %v4508, %v4509
    %v4511 = vrot.slane %v307, 2
    %v4512 = vsel %vm4112, %v4509, %v4511
    %v4513 = vrot.slane %v314, 2
    %v4514 = vrot.slane %v315, 2
    %v4515 = vsel %vm4112, %v4513, %v4514
    %v4516 = vrot.slane %v316, 2
    %v4517 = vsel %vm4112, %v4514, %v4516
    %v4518 = vrot.slane %v317, 2
    %v4519 = vrot.slane %v318, 2
    %v4520 = vsel %vm4112, %v4518, %v4519
    %v4521 = vrot.slane %v319, 2
    %v4522 = vsel %vm4112, %v4519, %v4521
    %v4523 = vrot.slane %v320, 2
    %v4524 = vrot.slane %v321, 2
    %v4525 = vsel %vm4112, %v4523, %v4524
    %v4526 = vrot.slane %v322, 2
    %v4527 = vsel %vm4112, %v4524, %v4526
    %v4528 = vrot.slane %v323, 2
    %v4529 = vrot.slane %v324, 2
    %v4530 = vsel %vm4112, %v4528, %v4529
    %v4531 = vrot.slane %v325, 2
    %v4532 = vsel %vm4112, %v4529, %v4531
    %v4533 = vrot.slane %v326, 2
    %v4534 = vrot.slane %v327, 2
    %v4535 = vsel %vm4112, %v4533, %v4534
    %v4536 = vrot.slane %v328, 2
    %v4537 = vsel %vm4112, %v4534, %v4536
    %v4538 = vrot.slane %v329, 2
    %v4539 = vrot.slane %v330, 2
    %v4540 = vsel %vm4112, %v4538, %v4539
    %v4541 = vrot.slane %v331, 2
    %v4542 = vsel %vm4112, %v4539, %v4541
    %v4543 = vrot.slane %v332, 2
    %v4544 = vrot.slane %v333, 2
    %v4545 = vsel %vm4112, %v4543, %v4544
    %v4546 = vrot.slane %v334, 2
    %v4547 = vsel %vm4112, %v4544, %v4546
    %v4548 = vrot.slane %v335, 2
    %v4549 = vrot.slane %v336, 2
    %v4550 = vsel %vm4112, %v4548, %v4549
    %v4551 = vrot.slane %v337, 2
    %v4552 = vsel %vm4112, %v4549, %v4551
    %v4553 = vrot.slane %v338, 2
    %v4554 = vrot.slane %v339, 2
    %v4555 = vsel %vm4112, %v4553, %v4554
    %v4556 = vrot.slane %v340, 2
    %v4557 = vsel %vm4112, %v4554, %v4556
    %v4558 = vrot.slane %v341, 2
    %v4559 = vrot.slane %v342, 2
    %v4560 = vsel %vm4112, %v4558, %v4559
    %v4561 = vrot.slane %v343, 2
    %v4562 = vsel %vm4112, %v4559, %v4561
    %v4563 = vrot.slane %v344, 2
    %v4564 = vrot.slane %v345, 2
    %v4565 = vsel %vm4112, %v4563, %v4564
    %v4566 = vrot.slane %v346, 2
    %v4567 = vsel %vm4112, %v4564, %v4566
    %v4568 = vrot.slane %v347, 2
    %v4569 = vrot.slane %v348, 2
    %v4570 = vsel %vm4112, %v4568, %v4569
    %v4571 = vrot.slane %v349, 2
    %v4572 = vsel %vm4112, %v4569, %v4571
    %v4573 = vrot.slane %v350, 2
    %v4574 = vrot.slane %v351, 2
    %v4575 = vsel %vm4112, %v4573, %v4574
    %v4576 = vrot.slane %v352, 2
    %v4577 = vsel %vm4112, %v4574, %v4576
    %v4578 = vrot.slane %v353, 2
    %v4579 = vrot.slane %v354, 2
    %v4580 = vsel %vm4112, %v4578, %v4579
    %v4581 = vrot.slane %v355, 2
    %v4582 = vsel %vm4112, %v4579, %v4581
    %v4583 = vrot.slane %v356, 2
    %v4584 = vrot.slane %v357, 2
    %v4585 = vsel %vm4112, %v4583, %v4584
    %v4586 = vrot.slane %v358, 2
    %v4587 = vsel %vm4112, %v4584, %v4586
    %v4588 = vrot.slane %v359, 2
    %v4589 = vrot.slane %v360, 2
    %v4590 = vsel %vm4112, %v4588, %v4589
    %v4591 = vrot.slane %v361, 2
    %v4592 = vsel %vm4112, %v4589, %v4591
    %v4593 = vrot.slane %v368, 2
    %v4594 = vrot.slane %v369, 2
    %v4595 = vsel %vm4112, %v4593, %v4594
    %v4596 = vrot.slane %v370, 2
    %v4597 = vsel %vm4112, %v4594, %v4596
    %v4598 = vrot.slane %v371, 2
    %v4599 = vrot.slane %v372, 2
    %v4600 = vsel %vm4112, %v4598, %v4599
    %v4601 = vrot.slane %v373, 2
    %v4602 = vsel %vm4112, %v4599, %v4601
    %v4603 = vrot.slane %v374, 2
    %v4604 = vrot.slane %v375, 2
    %v4605 = vsel %vm4112, %v4603, %v4604
    %v4606 = vrot.slane %v376, 2
    %v4607 = vsel %vm4112, %v4604, %v4606
    %v4608 = vrot.slane %v377, 2
    %v4609 = vrot.slane %v378, 2
    %v4610 = vsel %vm4112, %v4608, %v4609
    %v4611 = vrot.slane %v379, 2
    %v4612 = vsel %vm4112, %v4609, %v4611
    %v4613 = vrot.slane %v380, 2
    %v4614 = vrot.slane %v381, 2
    %v4615 = vsel %vm4112, %v4613, %v4614
    %v4616 = vrot.slane %v382, 2
    %v4617 = vsel %vm4112, %v4614, %v4616
    %v4618 = vrot.slane %v383, 2
    %v4619 = vrot.slane %v384, 2
    %v4620 = vsel %vm4112, %v4618, %v4619
    %v4621 = vrot.slane %v385, 2
    %v4622 = vsel %vm4112, %v4619, %v4621
    %v4623 = vrot.slane %v386, 2
    %v4624 = vrot.slane %v387, 2
    %v4625 = vsel %vm4112, %v4623, %v4624
    %v4626 = vrot.slane %v388, 2
    %v4627 = vsel %vm4112, %v4624, %v4626
    %v4628 = vrot.slane %v389, 2
    %v4629 = vrot.slane %v390, 2
    %v4630 = vsel %vm4112, %v4628, %v4629
    %v4631 = vrot.slane %v391, 2
    %v4632 = vsel %vm4112, %v4629, %v4631
    %v4633 = vrot.slane %v392, 2
    %v4634 = vrot.slane %v393, 2
    %v4635 = vsel %vm4112, %v4633, %v4634
    %v4636 = vrot.slane %v394, 2
    %v4637 = vsel %vm4112, %v4634, %v4636
    %v4638 = vrot.slane %v395, 2
    %v4639 = vrot.slane %v396, 2
    %v4640 = vsel %vm4112, %v4638, %v4639
    %v4641 = vrot.slane %v397, 2
    %v4642 = vsel %vm4112, %v4639, %v4641
    %v4643 = vrot.slane %v398, 2
    %v4644 = vrot.slane %v399, 2
    %v4645 = vsel %vm4112, %v4643, %v4644
    %v4646 = vrot.slane %v400, 2
    %v4647 = vsel %vm4112, %v4644, %v4646
    %v4648 = vrot.slane %v401, 2
    %v4649 = vrot.slane %v402, 2
    %v4650 = vsel %vm4112, %v4648, %v4649
    %v4651 = vrot.slane %v403, 2
    %v4652 = vsel %vm4112, %v4649, %v4651
    %v4653 = vrot.slane %v404, 2
    %v4654 = vrot.slane %v405, 2
    %v4655 = vsel %vm4112, %v4653, %v4654
    %v4656 = vrot.slane %v406, 2
    %v4657 = vsel %vm4112, %v4654, %v4656
    %v4658 = vrot.slane %v407, 2
    %v4659 = vrot.slane %v408, 2
    %v4660 = vsel %vm4112, %v4658, %v4659
    %v4661 = vrot.slane %v409, 2
    %v4662 = vsel %vm4112, %v4659, %v4661
    %v4663 = vrot.slane %v410, 2
    %v4664 = vrot.slane %v411, 2
    %v4665 = vsel %vm4112, %v4663, %v4664
    %v4666 = vrot.slane %v412, 2
    %v4667 = vsel %vm4112, %v4664, %v4666
    %v4668 = vrot.slane %v413, 2
    %v4669 = vrot.slane %v414, 2
    %v4670 = vsel %vm4112, %v4668, %v4669
    %v4671 = vrot.slane %v415, 2
    %v4672 = vsel %vm4112, %v4669, %v4671
    %v4673 = vrot.slane %v422, 2
    %v4674 = vrot.slane %v423, 2
    %v4675 = vsel %vm4112, %v4673, %v4674
    %v4676 = vrot.slane %v424, 2
    %v4677 = vsel %vm4112, %v4674, %v4676
    %v4678 = vrot.slane %v425, 2
    %v4679 = vrot.slane %v426, 2
    %v4680 = vsel %vm4112, %v4678, %v4679
    %v4681 = vrot.slane %v427, 2
    %v4682 = vsel %vm4112, %v4679, %v4681
    %v4683 = vrot.slane %v428, 2
    %v4684 = vrot.slane %v429, 2
    %v4685 = vsel %vm4112, %v4683, %v4684
    %v4686 = vrot.slane %v430, 2
    %v4687 = vsel %vm4112, %v4684, %v4686
    %v4688 = vrot.slane %v431, 2
    %v4689 = vrot.slane %v432, 2
    %v4690 = vsel %vm4112, %v4688, %v4689
    %v4691 = vrot.slane %v433, 2
    %v4692 = vsel %vm4112, %v4689, %v4691
    %v4693 = vrot.slane %v434, 2
    %v4694 = vrot.slane %v435, 2
    %v4695 = vsel %vm4112, %v4693, %v4694
    %v4696 = vrot.slane %v436, 2
    %v4697 = vsel %vm4112, %v4694, %v4696
    %v4698 = vrot.slane %v437, 2
    %v4699 = vrot.slane %v438, 2
    %v4700 = vsel %vm4112, %v4698, %v4699
    %v4701 = vrot.slane %v439, 2
    %v4702 = vsel %vm4112, %v4699, %v4701
    %v4703 = vrot.slane %v440, 2
    %v4704 = vrot.slane %v441, 2
    %v4705 = vsel %vm4112, %v4703, %v4704
    %v4706 = vrot.slane %v442, 2
    %v4707 = vsel %vm4112, %v4704, %v4706
    %v4708 = vrot.slane %v443, 2
    %v4709 = vrot.slane %v444, 2
    %v4710 = vsel %vm4112, %v4708, %v4709
    %v4711 = vrot.slane %v445, 2
    %v4712 = vsel %vm4112, %v4709, %v4711
    %v4713 = vrot.slane %v446, 2
    %v4714 = vrot.slane %v447, 2
    %v4715 = vsel %vm4112, %v4713, %v4714
    %v4716 = vrot.slane %v448, 2
    %v4717 = vsel %vm4112, %v4714, %v4716
    %v4718 = vrot.slane %v449, 2
    %v4719 = vrot.slane %v450, 2
    %v4720 = vsel %vm4112, %v4718, %v4719
    %v4721 = vrot.slane %v451, 2
    %v4722 = vsel %vm4112, %v4719, %v4721
    %v4723 = vrot.slane %v452, 2
    %v4724 = vrot.slane %v453, 2
    %v4725 = vsel %vm4112, %v4723, %v4724
    %v4726 = vrot.slane %v454, 2
    %v4727 = vsel %vm4112, %v4724, %v4726
    %v4728 = vrot.slane %v455, 2
    %v4729 = vrot.slane %v456, 2
    %v4730 = vsel %vm4112, %v4728, %v4729
    %v4731 = vrot.slane %v457, 2
    %v4732 = vsel %vm4112, %v4729, %v4731
    %v4733 = vrot.slane %v458, 2
    %v4734 = vrot.slane %v459, 2
    %v4735 = vsel %vm4112, %v4733, %v4734
    %v4736 = vrot.slane %v460, 2
    %v4737 = vsel %vm4112, %v4734, %v4736
    %v4738 = vrot.slane %v461, 2
    %v4739 = vrot.slane %v462, 2
    %v4740 = vsel %vm4112, %v4738, %v4739
    %v4741 = vrot.slane %v463, 2
    %v4742 = vsel %vm4112, %v4739, %v4741
    %v4743 = vrot.slane %v464, 2
    %v4744 = vrot.slane %v465, 2
    %v4745 = vsel %vm4112, %v4743, %v4744
    %v4746 = vrot.slane %v466, 2
    %v4747 = vsel %vm4112, %v4744, %v4746
    %v4748 = vrot.slane %v467, 2
    %v4749 = vrot.slane %v468, 2
    %v4750 = vsel %vm4112, %v4748, %v4749
    %v4751 = vrot.slane %v469, 2
    %v4752 = vsel %vm4112, %v4749, %v4751
    %v4753 = vsel %vm1510, %v4115, 0
    %v4755 = vsel %vm1510, %v4117, 0
    %v4757 = vsel %vm1510, %v4120, 0
    %v4759 = vsel %vm1510, %v4122, 0
    %v4761 = vsel %vm1510, %v4125, 0
    %v4763 = vsel %vm1510, %v4127, 0
    %v4765 = vsel %vm1510, %v4130, 0
    %v4767 = vsel %vm1510, %v4132, 0
    %v4769 = vsel %vm1510, %v4135, 0
    %v4771 = vsel %vm1510, %v4137, 0
    %v4773 = vsel %vm1510, %v4140, 0
    %v4775 = vsel %vm1510, %v4142, 0
    %v4777 = vsel %vm1510, %v4145, 0
    %v4779 = vsel %vm1510, %v4147, 0
    %v4781 = vsel %vm1510, %v4150, 0
    %v4783 = vsel %vm1510, %v4152, 0
    %v4785 = vsel %vm1510, %v4155, 0
    %v4787 = vsel %vm1510, %v4157, 0
    %v4789 = vsel %vm1510, %v4160, 0
    %v4791 = vsel %vm1510, %v4162, 0
    %v4793 = vsel %vm1510, %v4165, 0
    %v4795 = vsel %vm1510, %v4167, 0
    %v4797 = vsel %vm1510, %v4170, 0
    %v4799 = vsel %vm1510, %v4172, 0
    %v4801 = vsel %vm1510, %v4175, 0
    %v4803 = vsel %vm1510, %v4177, 0
    %v4805 = vsel %vm1510, %v4180, 0
    %v4807 = vsel %vm1510, %v4182, 0
    %v4809 = vsel %vm1510, %v4185, 0
    %v4811 = vsel %vm1510, %v4187, 0
    %v4813 = vsel %vm1510, %v4190, 0
    %v4815 = vsel %vm1510, %v4192, 0
    %v4817 = vsel %vm1510, %v4195, 0
    %v4819 = vsel %vm1510, %v4197, 0
    %v4821 = vsel %vm1510, %v4200, 0
    %v4823 = vsel %vm1510, %v4202, 0
    %v4825 = vsel %vm1510, %v4205, 0
    %v4827 = vsel %vm1510, %v4207, 0
    %v4829 = vsel %vm1510, %v4210, 0
    %v4831 = vsel %vm1510, %v4212, 0
    %v4833 = vsel %vm1510, %v4215, 0
    %v4835 = vsel %vm1510, %v4217, 0
    %v4837 = vsel %vm1510, %v4220, 0
    %v4839 = vsel %vm1510, %v4222, 0
    %v4841 = vsel %vm1510, %v4225, 0
    %v4843 = vsel %vm1510, %v4227, 0
    %v4845 = vsel %vm1510, %v4230, 0
    %v4847 = vsel %vm1510, %v4232, 0
    %v4849 = vsel %vm1510, %v4235, 0
    %v4851 = vsel %vm1510, %v4237, 0
    %v4853 = vsel %vm1510, %v4240, 0
    %v4855 = vsel %vm1510, %v4242, 0
    %v4857 = vsel %vm1510, %v4245, 0
    %v4859 = vsel %vm1510, %v4247, 0
    %v4861 = vsel %vm1510, %v4250, 0
    %v4863 = vsel %vm1510, %v4252, 0
    %v4865 = vsel %vm1510, %v4255, 0
    %v4867 = vsel %vm1510, %v4257, 0
    %v4869 = vsel %vm1510, %v4260, 0
    %v4871 = vsel %vm1510, %v4262, 0
    %v4873 = vsel %vm1510, %v4265, 0
    %v4875 = vsel %vm1510, %v4267, 0
    %v4877 = vsel %vm1510, %v4270, 0
    %v4879 = vsel %vm1510, %v4272, 0
    %v4881 = vsel %vm1510, %v4275, 0
    %v4883 = vsel %vm1510, %v4277, 0
    %v4885 = vsel %vm1510, %v4280, 0
    %v4887 = vsel %vm1510, %v4282, 0
    %v4889 = vsel %vm1510, %v4285, 0
    %v4891 = vsel %vm1510, %v4287, 0
    %v4893 = vsel %vm1510, %v4290, 0
    %v4895 = vsel %vm1510, %v4292, 0
    %v4897 = vsel %vm1510, %v4295, 0
    %v4899 = vsel %vm1510, %v4297, 0
    %v4901 = vsel %vm1510, %v4300, 0
    %v4903 = vsel %vm1510, %v4302, 0
    %v4905 = vsel %vm1510, %v4305, 0
    %v4907 = vsel %vm1510, %v4307, 0
    %v4909 = vsel %vm1510, %v4310, 0
    %v4911 = vsel %vm1510, %v4312, 0
    %v4913 = vsel %vm1510, %v4315, 0
    %v4915 = vsel %vm1510, %v4317, 0
    %v4917 = vsel %vm1510, %v4320, 0
    %v4919 = vsel %vm1510, %v4322, 0
    %v4921 = vsel %vm1510, %v4325, 0
    %v4923 = vsel %vm1510, %v4327, 0
    %v4925 = vsel %vm1510, %v4330, 0
    %v4927 = vsel %vm1510, %v4332, 0
    %v4929 = vsel %vm1510, %v4335, 0
    %v4931 = vsel %vm1510, %v4337, 0
    %v4933 = vsel %vm1510, %v4340, 0
    %v4935 = vsel %vm1510, %v4342, 0
    %v4937 = vsel %vm1510, %v4345, 0
    %v4939 = vsel %vm1510, %v4347, 0
    %v4941 = vsel %vm1510, %v4350, 0
    %v4943 = vsel %vm1510, %v4352, 0
    %v4945 = vsel %vm1510, %v4355, 0
    %v4947 = vsel %vm1510, %v4357, 0
    %v4949 = vsel %vm1510, %v4360, 0
    %v4951 = vsel %vm1510, %v4362, 0
    %v4953 = vsel %vm1510, %v4365, 0
    %v4955 = vsel %vm1510, %v4367, 0
    %v4957 = vsel %vm1510, %v4370, 0
    %v4959 = vsel %vm1510, %v4372, 0
    %v4961 = vsel %vm1510, %v4375, 0
    %v4963 = vsel %vm1510, %v4377, 0
    %v4965 = vsel %vm1510, %v4380, 0
    %v4967 = vsel %vm1510, %v4382, 0
    %v4969 = vsel %vm1510, %v4385, 0
    %v4971 = vsel %vm1510, %v4387, 0
    %v4973 = vsel %vm1510, %v4390, 0
    %v4975 = vsel %vm1510, %v4392, 0
    %v4977 = vsel %vm1510, %v4395, 0
    %v4979 = vsel %vm1510, %v4397, 0
    %v4981 = vsel %vm1510, %v4400, 0
    %v4983 = vsel %vm1510, %v4402, 0
    %v4985 = vsel %vm1510, %v4405, 0
    %v4987 = vsel %vm1510, %v4407, 0
    %v4989 = vsel %vm1510, %v4410, 0
    %v4991 = vsel %vm1510, %v4412, 0
    %v4993 = vsel %vm1510, %v4415, 0
    %v4995 = vsel %vm1510, %v4417, 0
    %v4997 = vsel %vm1510, %v4420, 0
    %v4999 = vsel %vm1510, %v4422, 0
    %v5001 = vsel %vm1510, %v4425, 0
    %v5003 = vsel %vm1510, %v4427, 0
    %v5005 = vsel %vm1510, %v4430, 0
    %v5007 = vsel %vm1510, %v4432, 0
    %v5009 = vsel %vm1510, %v4435, 0
    %v5011 = vsel %vm1510, %v4437, 0
    %v5013 = vsel %vm1510, %v4440, 0
    %v5015 = vsel %vm1510, %v4442, 0
    %v5017 = vsel %vm1510, %v4445, 0
    %v5019 = vsel %vm1510, %v4447, 0
    %v5021 = vsel %vm1510, %v4450, 0
    %v5023 = vsel %vm1510, %v4452, 0
    %v5025 = vsel %vm1510, %v4455, 0
    %v5027 = vsel %vm1510, %v4457, 0
    %v5029 = vsel %vm1510, %v4460, 0
    %v5031 = vsel %vm1510, %v4462, 0
    %v5033 = vsel %vm1510, %v4465, 0
    %v5035 = vsel %vm1510, %v4467, 0
    %v5037 = vsel %vm1510, %v4470, 0
    %v5039 = vsel %vm1510, %v4472, 0
    %v5041 = vsel %vm1510, %v4475, 0
    %v5043 = vsel %vm1510, %v4477, 0
    %v5045 = vsel %vm1510, %v4480, 0
    %v5047 = vsel %vm1510, %v4482, 0
    %v5049 = vsel %vm1510, %v4485, 0
    %v5051 = vsel %vm1510, %v4487, 0
    %v5053 = vsel %vm1510, %v4490, 0
    %v5055 = vsel %vm1510, %v4492, 0
    %v5057 = vsel %vm1510, %v4495, 0
    %v5059 = vsel %vm1510, %v4497, 0
    %v5061 = vsel %vm1510, %v4500, 0
    %v5063 = vsel %vm1510, %v4502, 0
    %v5065 = vsel %vm1510, %v4505, 0
    %v5067 = vsel %vm1510, %v4507, 0
    %v5069 = vsel %vm1510, %v4510, 0
    %v5071 = vsel %vm1510, %v4512, 0
    %v5073 = vsel %vm1510, %v4515, 0
    %v5075 = vsel %vm1510, %v4517, 0
    %v5077 = vsel %vm1510, %v4520, 0
    %v5079 = vsel %vm1510, %v4522, 0
    %v5081 = vsel %vm1510, %v4525, 0
    %v5083 = vsel %vm1510, %v4527, 0
    %v5085 = vsel %vm1510, %v4530, 0
    %v5087 = vsel %vm1510, %v4532, 0
    %v5089 = vsel %vm1510, %v4535, 0
    %v5091 = vsel %vm1510, %v4537, 0
    %v5093 = vsel %vm1510, %v4540, 0
    %v5095 = vsel %vm1510, %v4542, 0
    %v5097 = vsel %vm1510, %v4545, 0
    %v5099 = vsel %vm1510, %v4547, 0
    %v5101 = vsel %vm1510, %v4550, 0
    %v5103 = vsel %vm1510, %v4552, 0
    %v5105 = vsel %vm1510, %v4555, 0
    %v5107 = vsel %vm1510, %v4557, 0
    %v5109 = vsel %vm1510, %v4560, 0
    %v5111 = vsel %vm1510, %v4562, 0
    %v5113 = vsel %vm1510, %v4565, 0
    %v5115 = vsel %vm1510, %v4567, 0
    %v5117 = vsel %vm1510, %v4570, 0
    %v5119 = vsel %vm1510, %v4572, 0
    %v5121 = vsel %vm1510, %v4575, 0
    %v5123 = vsel %vm1510, %v4577, 0
    %v5125 = vsel %vm1510, %v4580, 0
    %v5127 = vsel %vm1510, %v4582, 0
    %v5129 = vsel %vm1510, %v4585, 0
    %v5131 = vsel %vm1510, %v4587, 0
    %v5133 = vsel %vm1510, %v4590, 0
    %v5135 = vsel %vm1510, %v4592, 0
    %v5137 = vsel %vm1510, %v4595, 0
    %v5139 = vsel %vm1510, %v4597, 0
    %v5141 = vsel %vm1510, %v4600, 0
    %v5143 = vsel %vm1510, %v4602, 0
    %v5145 = vsel %vm1510, %v4605, 0
    %v5147 = vsel %vm1510, %v4607, 0
    %v5149 = vsel %vm1510, %v4610, 0
    %v5151 = vsel %vm1510, %v4612, 0
    %v5153 = vsel %vm1510, %v4615, 0
    %v5155 = vsel %vm1510, %v4617, 0
    %v5157 = vsel %vm1510, %v4620, 0
    %v5159 = vsel %vm1510, %v4622, 0
    %v5161 = vsel %vm1510, %v4625, 0
    %v5163 = vsel %vm1510, %v4627, 0
    %v5165 = vsel %vm1510, %v4630, 0
    %v5167 = vsel %vm1510, %v4632, 0
    %v5169 = vsel %vm1510, %v4635, 0
    %v5171 = vsel %vm1510, %v4637, 0
    %v5173 = vsel %vm1510, %v4640, 0
    %v5175 = vsel %vm1510, %v4642, 0
    %v5177 = vsel %vm1510, %v4645, 0
    %v5179 = vsel %vm1510, %v4647, 0
    %v5181 = vsel %vm1510, %v4650, 0
    %v5183 = vsel %vm1510, %v4652, 0
    %v5185 = vsel %vm1510, %v4655, 0
    %v5187 = vsel %vm1510, %v4657, 0
    %v5189 = vsel %vm1510, %v4660, 0
    %v5191 = vsel %vm1510, %v4662, 0
    %v5193 = vsel %vm1510, %v4665, 0
    %v5195 = vsel %vm1510, %v4667, 0
    %v5197 = vsel %vm1510, %v4670, 0
    %v5199 = vsel %vm1510, %v4672, 0
    %v5201 = vsel %vm1510, %v4675, 0
    %v5203 = vsel %vm1510, %v4677, 0
    %v5205 = vsel %vm1510, %v4680, 0
    %v5207 = vsel %vm1510, %v4682, 0
    %v5209 = vsel %vm1510, %v4685, 0
    %v5211 = vsel %vm1510, %v4687, 0
    %v5213 = vsel %vm1510, %v4690, 0
    %v5215 = vsel %vm1510, %v4692, 0
    %v5217 = vsel %vm1510, %v4695, 0
    %v5219 = vsel %vm1510, %v4697, 0
    %v5221 = vsel %vm1510, %v4700, 0
    %v5223 = vsel %vm1510, %v4702, 0
    %v5225 = vsel %vm1510, %v4705, 0
    %v5227 = vsel %vm1510, %v4707, 0
    %v5229 = vsel %vm1510, %v4710, 0
    %v5231 = vsel %vm1510, %v4712, 0
    %v5233 = vsel %vm1510, %v4715, 0
    %v5235 = vsel %vm1510, %v4717, 0
    %v5237 = vsel %vm1510, %v4720, 0
    %v5239 = vsel %vm1510, %v4722, 0
    %v5241 = vsel %vm1510, %v4725, 0
    %v5243 = vsel %vm1510, %v4727, 0
    %v5245 = vsel %vm1510, %v4730, 0
    %v5247 = vsel %vm1510, %v4732, 0
    %v5249 = vsel %vm1510, %v4735, 0
    %v5251 = vsel %vm1510, %v4737, 0
    %v5253 = vsel %vm1510, %v4740, 0
    %v5255 = vsel %vm1510, %v4742, 0
    %v5257 = vsel %vm1510, %v4745, 0
    %v5259 = vsel %vm1510, %v4747, 0
    %v5261 = vsel %vm1510, %v4750, 0
    %v5263 = vsel %vm1510, %v4752, 0
    %v5266 = vsel %vm2023, %v478, 0
    %5268 = vmatpush.msra.mxu0 0.0
    %5269 = vmatpush.msra.mxu0 0.0
    %5270 = vmatpush.msra.mxu0 0.0
    %5271 = vmatpush.msra.mxu0 0.0
    %5272 = vmatpush.msra.mxu0 0.0
    %5273 = vmatpush.msra.mxu0 0.0
    %5274 = vmatpush.msra.mxu0 0.0
    %5275 = vmatpush.msra.mxu0 0.0
    %5276 = vmatpush.msra.mxu0 0.0
    %5277 = vmatpush.msra.mxu0 0.0
    %5278 = vmatpush.msra.mxu0 0.0
    %5279 = vmatpush.msra.mxu0 0.0
    %5280 = vmatpush.msra.mxu0 0.0
    %5281 = vmatpush.msra.mxu0 0.0
    %5282 = vmatpush.msra.mxu0 0.0
    %5283 = vmatpush.msra.mxu0 %v5266
    %5284 = vmatmul.f32.gmra.mxu0 %v4753
    %v5285 = vpop.f32.mrf.mxu0
    %v5286 = vadd.f32 0.0, %v5285
    %5287 = vmatmul.f32.gmra.mxu0 %v4755
    %v5288 = vpop.f32.mrf.mxu0
    %v5289 = vadd.f32 0.0, %v5288
    %5290 = vmatmul.f32.gmra.mxu0 %v4757
    %v5291 = vpop.f32.mrf.mxu0
    %v5292 = vadd.f32 0.0, %v5291
    %5293 = vmatmul.f32.gmra.mxu0 %v4759
    %v5294 = vpop.f32.mrf.mxu0
    %v5295 = vadd.f32 0.0, %v5294
    %5296 = vmatmul.f32.gmra.mxu0 %v4761
    %v5297 = vpop.f32.mrf.mxu0
    %v5298 = vadd.f32 0.0, %v5297
    %5299 = vmatmul.f32.gmra.mxu0 %v4763
    %v5300 = vpop.f32.mrf.mxu0
    %v5301 = vadd.f32 0.0, %v5300
    %5302 = vmatmul.f32.gmra.mxu0 %v4765
    %v5303 = vpop.f32.mrf.mxu0
    %v5304 = vadd.f32 0.0, %v5303
    %5305 = vmatmul.f32.gmra.mxu0 %v4767
    %v5306 = vpop.f32.mrf.mxu0
    %v5307 = vadd.f32 0.0, %v5306
    %5308 = vmatmul.f32.gmra.mxu0 %v4769
    %v5309 = vpop.f32.mrf.mxu0
    %v5310 = vadd.f32 0.0, %v5309
    %5311 = vmatmul.f32.gmra.mxu0 %v4771
    %v5312 = vpop.f32.mrf.mxu0
    %v5313 = vadd.f32 0.0, %v5312
    %5314 = vmatmul.f32.gmra.mxu0 %v4773
    %v5315 = vpop.f32.mrf.mxu0
    %v5316 = vadd.f32 0.0, %v5315
    %5317 = vmatmul.f32.gmra.mxu0 %v4775
    %v5318 = vpop.f32.mrf.mxu0
    %v5319 = vadd.f32 0.0, %v5318
    %5320 = vmatmul.f32.gmra.mxu0 %v4777
    %v5321 = vpop.f32.mrf.mxu0
    %v5322 = vadd.f32 0.0, %v5321
    %5323 = vmatmul.f32.gmra.mxu0 %v4779
    %v5324 = vpop.f32.mrf.mxu0
    %v5325 = vadd.f32 0.0, %v5324
    %5326 = vmatmul.f32.gmra.mxu0 %v4781
    %v5327 = vpop.f32.mrf.mxu0
    %v5328 = vadd.f32 0.0, %v5327
    %5329 = vmatmul.f32.gmra.mxu0 %v4783
    %v5330 = vpop.f32.mrf.mxu0
    %v5331 = vadd.f32 0.0, %v5330
    %5332 = vmatmul.f32.gmra.mxu0 %v4785
    %v5333 = vpop.f32.mrf.mxu0
    %v5334 = vadd.f32 0.0, %v5333
    %5335 = vmatmul.f32.gmra.mxu0 %v4787
    %v5336 = vpop.f32.mrf.mxu0
    %v5337 = vadd.f32 0.0, %v5336
    %5338 = vmatmul.f32.gmra.mxu0 %v4789
    %v5339 = vpop.f32.mrf.mxu0
    %v5340 = vadd.f32 0.0, %v5339
    %5341 = vmatmul.f32.gmra.mxu0 %v4791
    %v5342 = vpop.f32.mrf.mxu0
    %v5343 = vadd.f32 0.0, %v5342
    %5344 = vmatmul.f32.gmra.mxu0 %v4793
    %v5345 = vpop.f32.mrf.mxu0
    %v5346 = vadd.f32 0.0, %v5345
    %5347 = vmatmul.f32.gmra.mxu0 %v4795
    %v5348 = vpop.f32.mrf.mxu0
    %v5349 = vadd.f32 0.0, %v5348
    %5350 = vmatmul.f32.gmra.mxu0 %v4797
    %v5351 = vpop.f32.mrf.mxu0
    %v5352 = vadd.f32 0.0, %v5351
    %5353 = vmatmul.f32.gmra.mxu0 %v4799
    %v5354 = vpop.f32.mrf.mxu0
    %v5355 = vadd.f32 0.0, %v5354
    %5356 = vmatmul.f32.gmra.mxu0 %v4801
    %v5357 = vpop.f32.mrf.mxu0
    %v5358 = vadd.f32 0.0, %v5357
    %5359 = vmatmul.f32.gmra.mxu0 %v4803
    %v5360 = vpop.f32.mrf.mxu0
    %v5361 = vadd.f32 0.0, %v5360
    %5362 = vmatmul.f32.gmra.mxu0 %v4805
    %v5363 = vpop.f32.mrf.mxu0
    %v5364 = vadd.f32 0.0, %v5363
    %5365 = vmatmul.f32.gmra.mxu0 %v4807
    %v5366 = vpop.f32.mrf.mxu0
    %v5367 = vadd.f32 0.0, %v5366
    %5368 = vmatmul.f32.gmra.mxu0 %v4809
    %v5369 = vpop.f32.mrf.mxu0
    %v5370 = vadd.f32 0.0, %v5369
    %5371 = vmatmul.f32.gmra.mxu0 %v4811
    %v5372 = vpop.f32.mrf.mxu0
    %v5373 = vadd.f32 0.0, %v5372
    %5374 = vmatmul.f32.gmra.mxu0 %v4813
    %v5375 = vpop.f32.mrf.mxu0
    %v5376 = vadd.f32 0.0, %v5375
    %5377 = vmatmul.f32.gmra.mxu0 %v4815
    %v5378 = vpop.f32.mrf.mxu0
    %v5379 = vadd.f32 0.0, %v5378
    %5380 = vmatmul.f32.gmra.mxu0 %v4817
    %v5381 = vpop.f32.mrf.mxu0
    %v5382 = vadd.f32 0.0, %v5381
    %5383 = vmatmul.f32.gmra.mxu0 %v4819
    %v5384 = vpop.f32.mrf.mxu0
    %v5385 = vadd.f32 0.0, %v5384
    %5386 = vmatmul.f32.gmra.mxu0 %v4821
    %v5387 = vpop.f32.mrf.mxu0
    %v5388 = vadd.f32 0.0, %v5387
    %5389 = vmatmul.f32.gmra.mxu0 %v4823
    %v5390 = vpop.f32.mrf.mxu0
    %v5391 = vadd.f32 0.0, %v5390
    %5392 = vmatmul.f32.gmra.mxu0 %v4825
    %v5393 = vpop.f32.mrf.mxu0
    %v5394 = vadd.f32 0.0, %v5393
    %5395 = vmatmul.f32.gmra.mxu0 %v4827
    %v5396 = vpop.f32.mrf.mxu0
    %v5397 = vadd.f32 0.0, %v5396
    %5398 = vmatmul.f32.gmra.mxu0 %v4829
    %v5399 = vpop.f32.mrf.mxu0
    %v5400 = vadd.f32 0.0, %v5399
    %5401 = vmatmul.f32.gmra.mxu0 %v4831
    %v5402 = vpop.f32.mrf.mxu0
    %v5403 = vadd.f32 0.0, %v5402
    %5404 = vmatmul.f32.gmra.mxu0 %v4833
    %v5405 = vpop.f32.mrf.mxu0
    %v5406 = vadd.f32 0.0, %v5405
    %5407 = vmatmul.f32.gmra.mxu0 %v4835
    %v5408 = vpop.f32.mrf.mxu0
    %v5409 = vadd.f32 0.0, %v5408
    %5410 = vmatmul.f32.gmra.mxu0 %v4837
    %v5411 = vpop.f32.mrf.mxu0
    %v5412 = vadd.f32 0.0, %v5411
    %5413 = vmatmul.f32.gmra.mxu0 %v4839
    %v5414 = vpop.f32.mrf.mxu0
    %v5415 = vadd.f32 0.0, %v5414
    %5416 = vmatmul.f32.gmra.mxu0 %v4841
    %v5417 = vpop.f32.mrf.mxu0
    %v5418 = vadd.f32 0.0, %v5417
    %5419 = vmatmul.f32.gmra.mxu0 %v4843
    %v5420 = vpop.f32.mrf.mxu0
    %v5421 = vadd.f32 0.0, %v5420
    %5422 = vmatmul.f32.gmra.mxu0 %v4845
    %v5423 = vpop.f32.mrf.mxu0
    %v5424 = vadd.f32 0.0, %v5423
    %5425 = vmatmul.f32.gmra.mxu0 %v4847
    %v5426 = vpop.f32.mrf.mxu0
    %v5427 = vadd.f32 0.0, %v5426
    %5428 = vmatmul.f32.gmra.mxu0 %v4849
    %v5429 = vpop.f32.mrf.mxu0
    %v5430 = vadd.f32 0.0, %v5429
    %5431 = vmatmul.f32.gmra.mxu0 %v4851
    %v5432 = vpop.f32.mrf.mxu0
    %v5433 = vadd.f32 0.0, %v5432
    %5434 = vmatmul.f32.gmra.mxu0 %v4853
    %v5435 = vpop.f32.mrf.mxu0
    %v5436 = vadd.f32 0.0, %v5435
    %5437 = vmatmul.f32.gmra.mxu0 %v4855
    %v5438 = vpop.f32.mrf.mxu0
    %v5439 = vadd.f32 0.0, %v5438
    %5440 = vmatmul.f32.gmra.mxu0 %v4857
    %v5441 = vpop.f32.mrf.mxu0
    %v5442 = vadd.f32 0.0, %v5441
    %5443 = vmatmul.f32.gmra.mxu0 %v4859
    %v5444 = vpop.f32.mrf.mxu0
    %v5445 = vadd.f32 0.0, %v5444
    %5446 = vmatmul.f32.gmra.mxu0 %v4861
    %v5447 = vpop.f32.mrf.mxu0
    %v5448 = vadd.f32 0.0, %v5447
    %5449 = vmatmul.f32.gmra.mxu0 %v4863
    %v5450 = vpop.f32.mrf.mxu0
    %v5451 = vadd.f32 0.0, %v5450
    %5452 = vmatmul.f32.gmra.mxu0 %v4865
    %v5453 = vpop.f32.mrf.mxu0
    %v5454 = vadd.f32 0.0, %v5453
    %5455 = vmatmul.f32.gmra.mxu0 %v4867
    %v5456 = vpop.f32.mrf.mxu0
    %v5457 = vadd.f32 0.0, %v5456
    %5458 = vmatmul.f32.gmra.mxu0 %v4869
    %v5459 = vpop.f32.mrf.mxu0
    %v5460 = vadd.f32 0.0, %v5459
    %5461 = vmatmul.f32.gmra.mxu0 %v4871
    %v5462 = vpop.f32.mrf.mxu0
    %v5463 = vadd.f32 0.0, %v5462
    %5464 = vmatmul.f32.gmra.mxu0 %v4873
    %v5465 = vpop.f32.mrf.mxu0
    %v5466 = vadd.f32 0.0, %v5465
    %5467 = vmatmul.f32.gmra.mxu0 %v4875
    %v5468 = vpop.f32.mrf.mxu0
    %v5469 = vadd.f32 0.0, %v5468
    %5470 = vmatmul.f32.gmra.mxu0 %v4877
    %v5471 = vpop.f32.mrf.mxu0
    %v5472 = vadd.f32 0.0, %v5471
    %5473 = vmatmul.f32.gmra.mxu0 %v4879
    %v5474 = vpop.f32.mrf.mxu0
    %v5475 = vadd.f32 0.0, %v5474
    %5476 = vmatmul.f32.gmra.mxu0 %v4881
    %v5477 = vpop.f32.mrf.mxu0
    %v5478 = vadd.f32 0.0, %v5477
    %5479 = vmatmul.f32.gmra.mxu0 %v4883
    %v5480 = vpop.f32.mrf.mxu0
    %v5481 = vadd.f32 0.0, %v5480
    %5482 = vmatmul.f32.gmra.mxu0 %v4885
    %v5483 = vpop.f32.mrf.mxu0
    %v5484 = vadd.f32 0.0, %v5483
    %5485 = vmatmul.f32.gmra.mxu0 %v4887
    %v5486 = vpop.f32.mrf.mxu0
    %v5487 = vadd.f32 0.0, %v5486
    %5488 = vmatmul.f32.gmra.mxu0 %v4889
    %v5489 = vpop.f32.mrf.mxu0
    %v5490 = vadd.f32 0.0, %v5489
    %5491 = vmatmul.f32.gmra.mxu0 %v4891
    %v5492 = vpop.f32.mrf.mxu0
    %v5493 = vadd.f32 0.0, %v5492
    %5494 = vmatmul.f32.gmra.mxu0 %v4893
    %v5495 = vpop.f32.mrf.mxu0
    %v5496 = vadd.f32 0.0, %v5495
    %5497 = vmatmul.f32.gmra.mxu0 %v4895
    %v5498 = vpop.f32.mrf.mxu0
    %v5499 = vadd.f32 0.0, %v5498
    %5500 = vmatmul.f32.gmra.mxu0 %v4897
    %v5501 = vpop.f32.mrf.mxu0
    %v5502 = vadd.f32 0.0, %v5501
    %5503 = vmatmul.f32.gmra.mxu0 %v4899
    %v5504 = vpop.f32.mrf.mxu0
    %v5505 = vadd.f32 0.0, %v5504
    %5506 = vmatmul.f32.gmra.mxu0 %v4901
    %v5507 = vpop.f32.mrf.mxu0
    %v5508 = vadd.f32 0.0, %v5507
    %5509 = vmatmul.f32.gmra.mxu0 %v4903
    %v5510 = vpop.f32.mrf.mxu0
    %v5511 = vadd.f32 0.0, %v5510
    %5512 = vmatmul.f32.gmra.mxu0 %v4905
    %v5513 = vpop.f32.mrf.mxu0
    %v5514 = vadd.f32 0.0, %v5513
    %5515 = vmatmul.f32.gmra.mxu0 %v4907
    %v5516 = vpop.f32.mrf.mxu0
    %v5517 = vadd.f32 0.0, %v5516
    %5518 = vmatmul.f32.gmra.mxu0 %v4909
    %v5519 = vpop.f32.mrf.mxu0
    %v5520 = vadd.f32 0.0, %v5519
    %5521 = vmatmul.f32.gmra.mxu0 %v4911
    %v5522 = vpop.f32.mrf.mxu0
    %v5523 = vadd.f32 0.0, %v5522
    %5524 = vmatmul.f32.gmra.mxu0 %v4913
    %v5525 = vpop.f32.mrf.mxu0
    %v5526 = vadd.f32 0.0, %v5525
    %5527 = vmatmul.f32.gmra.mxu0 %v4915
    %v5528 = vpop.f32.mrf.mxu0
    %v5529 = vadd.f32 0.0, %v5528
    %5530 = vmatmul.f32.gmra.mxu0 %v4917
    %v5531 = vpop.f32.mrf.mxu0
    %v5532 = vadd.f32 0.0, %v5531
    %5533 = vmatmul.f32.gmra.mxu0 %v4919
    %v5534 = vpop.f32.mrf.mxu0
    %v5535 = vadd.f32 0.0, %v5534
    %5536 = vmatmul.f32.gmra.mxu0 %v4921
    %v5537 = vpop.f32.mrf.mxu0
    %v5538 = vadd.f32 0.0, %v5537
    %5539 = vmatmul.f32.gmra.mxu0 %v4923
    %v5540 = vpop.f32.mrf.mxu0
    %v5541 = vadd.f32 0.0, %v5540
    %5542 = vmatmul.f32.gmra.mxu0 %v4925
    %v5543 = vpop.f32.mrf.mxu0
    %v5544 = vadd.f32 0.0, %v5543
    %5545 = vmatmul.f32.gmra.mxu0 %v4927
    %v5546 = vpop.f32.mrf.mxu0
    %v5547 = vadd.f32 0.0, %v5546
    %5548 = vmatmul.f32.gmra.mxu0 %v4929
    %v5549 = vpop.f32.mrf.mxu0
    %v5550 = vadd.f32 0.0, %v5549
    %5551 = vmatmul.f32.gmra.mxu0 %v4931
    %v5552 = vpop.f32.mrf.mxu0
    %v5553 = vadd.f32 0.0, %v5552
    %5554 = vmatmul.f32.gmra.mxu0 %v4933
    %v5555 = vpop.f32.mrf.mxu0
    %v5556 = vadd.f32 0.0, %v5555
    %5557 = vmatmul.f32.gmra.mxu0 %v4935
    %v5558 = vpop.f32.mrf.mxu0
    %v5559 = vadd.f32 0.0, %v5558
    %5560 = vmatmul.f32.gmra.mxu0 %v4937
    %v5561 = vpop.f32.mrf.mxu0
    %v5562 = vadd.f32 0.0, %v5561
    %5563 = vmatmul.f32.gmra.mxu0 %v4939
    %v5564 = vpop.f32.mrf.mxu0
    %v5565 = vadd.f32 0.0, %v5564
    %5566 = vmatmul.f32.gmra.mxu0 %v4941
    %v5567 = vpop.f32.mrf.mxu0
    %v5568 = vadd.f32 0.0, %v5567
    %5569 = vmatmul.f32.gmra.mxu0 %v4943
    %v5570 = vpop.f32.mrf.mxu0
    %v5571 = vadd.f32 0.0, %v5570
    %5572 = vmatmul.f32.gmra.mxu0 %v4945
    %v5573 = vpop.f32.mrf.mxu0
    %v5574 = vadd.f32 0.0, %v5573
    %5575 = vmatmul.f32.gmra.mxu0 %v4947
    %v5576 = vpop.f32.mrf.mxu0
    %v5577 = vadd.f32 0.0, %v5576
    %5578 = vmatmul.f32.gmra.mxu0 %v4949
    %v5579 = vpop.f32.mrf.mxu0
    %v5580 = vadd.f32 0.0, %v5579
    %5581 = vmatmul.f32.gmra.mxu0 %v4951
    %v5582 = vpop.f32.mrf.mxu0
    %v5583 = vadd.f32 0.0, %v5582
    %5584 = vmatmul.f32.gmra.mxu0 %v4953
    %v5585 = vpop.f32.mrf.mxu0
    %v5586 = vadd.f32 0.0, %v5585
    %5587 = vmatmul.f32.gmra.mxu0 %v4955
    %v5588 = vpop.f32.mrf.mxu0
    %v5589 = vadd.f32 0.0, %v5588
    %5590 = vmatmul.f32.gmra.mxu0 %v4957
    %v5591 = vpop.f32.mrf.mxu0
    %v5592 = vadd.f32 0.0, %v5591
    %5593 = vmatmul.f32.gmra.mxu0 %v4959
    %v5594 = vpop.f32.mrf.mxu0
    %v5595 = vadd.f32 0.0, %v5594
    %5596 = vmatmul.f32.gmra.mxu0 %v4961
    %v5597 = vpop.f32.mrf.mxu0
    %v5598 = vadd.f32 0.0, %v5597
    %5599 = vmatmul.f32.gmra.mxu0 %v4963
    %v5600 = vpop.f32.mrf.mxu0
    %v5601 = vadd.f32 0.0, %v5600
    %5602 = vmatmul.f32.gmra.mxu0 %v4965
    %v5603 = vpop.f32.mrf.mxu0
    %v5604 = vadd.f32 0.0, %v5603
    %5605 = vmatmul.f32.gmra.mxu0 %v4967
    %v5606 = vpop.f32.mrf.mxu0
    %v5607 = vadd.f32 0.0, %v5606
    %5608 = vmatmul.f32.gmra.mxu0 %v4969
    %v5609 = vpop.f32.mrf.mxu0
    %v5610 = vadd.f32 0.0, %v5609
    %5611 = vmatmul.f32.gmra.mxu0 %v4971
    %v5612 = vpop.f32.mrf.mxu0
    %v5613 = vadd.f32 0.0, %v5612
    %5614 = vmatmul.f32.gmra.mxu0 %v4973
    %v5615 = vpop.f32.mrf.mxu0
    %v5616 = vadd.f32 0.0, %v5615
    %5617 = vmatmul.f32.gmra.mxu0 %v4975
    %v5618 = vpop.f32.mrf.mxu0
    %v5619 = vadd.f32 0.0, %v5618
    %5620 = vmatmul.f32.gmra.mxu0 %v4977
    %v5621 = vpop.f32.mrf.mxu0
    %v5622 = vadd.f32 0.0, %v5621
    %5623 = vmatmul.f32.gmra.mxu0 %v4979
    %v5624 = vpop.f32.mrf.mxu0
    %v5625 = vadd.f32 0.0, %v5624
    %5626 = vmatmul.f32.gmra.mxu0 %v4981
    %v5627 = vpop.f32.mrf.mxu0
    %v5628 = vadd.f32 0.0, %v5627
    %5629 = vmatmul.f32.gmra.mxu0 %v4983
    %v5630 = vpop.f32.mrf.mxu0
    %v5631 = vadd.f32 0.0, %v5630
    %5632 = vmatmul.f32.gmra.mxu0 %v4985
    %v5633 = vpop.f32.mrf.mxu0
    %v5634 = vadd.f32 0.0, %v5633
    %5635 = vmatmul.f32.gmra.mxu0 %v4987
    %v5636 = vpop.f32.mrf.mxu0
    %v5637 = vadd.f32 0.0, %v5636
    %5638 = vmatmul.f32.gmra.mxu0 %v4989
    %v5639 = vpop.f32.mrf.mxu0
    %v5640 = vadd.f32 0.0, %v5639
    %5641 = vmatmul.f32.gmra.mxu0 %v4991
    %v5642 = vpop.f32.mrf.mxu0
    %v5643 = vadd.f32 0.0, %v5642
    %5644 = vmatmul.f32.gmra.mxu0 %v4993
    %v5645 = vpop.f32.mrf.mxu0
    %v5646 = vadd.f32 0.0, %v5645
    %5647 = vmatmul.f32.gmra.mxu0 %v4995
    %v5648 = vpop.f32.mrf.mxu0
    %v5649 = vadd.f32 0.0, %v5648
    %5650 = vmatmul.f32.gmra.mxu0 %v4997
    %v5651 = vpop.f32.mrf.mxu0
    %v5652 = vadd.f32 0.0, %v5651
    %5653 = vmatmul.f32.gmra.mxu0 %v4999
    %v5654 = vpop.f32.mrf.mxu0
    %v5655 = vadd.f32 0.0, %v5654
    %5656 = vmatmul.f32.gmra.mxu0 %v5001
    %v5657 = vpop.f32.mrf.mxu0
    %v5658 = vadd.f32 0.0, %v5657
    %5659 = vmatmul.f32.gmra.mxu0 %v5003
    %v5660 = vpop.f32.mrf.mxu0
    %v5661 = vadd.f32 0.0, %v5660
    %5662 = vmatmul.f32.gmra.mxu0 %v5005
    %v5663 = vpop.f32.mrf.mxu0
    %v5664 = vadd.f32 0.0, %v5663
    %5665 = vmatmul.f32.gmra.mxu0 %v5007
    %v5666 = vpop.f32.mrf.mxu0
    %v5667 = vadd.f32 0.0, %v5666
    %5668 = vmatmul.f32.gmra.mxu0 %v5009
    %v5669 = vpop.f32.mrf.mxu0
    %v5670 = vadd.f32 0.0, %v5669
    %5671 = vmatmul.f32.gmra.mxu0 %v5011
    %v5672 = vpop.f32.mrf.mxu0
    %v5673 = vadd.f32 0.0, %v5672
    %5674 = vmatmul.f32.gmra.mxu0 %v5013
    %v5675 = vpop.f32.mrf.mxu0
    %v5676 = vadd.f32 0.0, %v5675
    %5677 = vmatmul.f32.gmra.mxu0 %v5015
    %v5678 = vpop.f32.mrf.mxu0
    %v5679 = vadd.f32 0.0, %v5678
    %5680 = vmatmul.f32.gmra.mxu0 %v5017
    %v5681 = vpop.f32.mrf.mxu0
    %v5682 = vadd.f32 0.0, %v5681
    %5683 = vmatmul.f32.gmra.mxu0 %v5019
    %v5684 = vpop.f32.mrf.mxu0
    %v5685 = vadd.f32 0.0, %v5684
    %5686 = vmatmul.f32.gmra.mxu0 %v5021
    %v5687 = vpop.f32.mrf.mxu0
    %v5688 = vadd.f32 0.0, %v5687
    %5689 = vmatmul.f32.gmra.mxu0 %v5023
    %v5690 = vpop.f32.mrf.mxu0
    %v5691 = vadd.f32 0.0, %v5690
    %5692 = vmatmul.f32.gmra.mxu0 %v5025
    %v5693 = vpop.f32.mrf.mxu0
    %v5694 = vadd.f32 0.0, %v5693
    %5695 = vmatmul.f32.gmra.mxu0 %v5027
    %v5696 = vpop.f32.mrf.mxu0
    %v5697 = vadd.f32 0.0, %v5696
    %5698 = vmatmul.f32.gmra.mxu0 %v5029
    %v5699 = vpop.f32.mrf.mxu0
    %v5700 = vadd.f32 0.0, %v5699
    %5701 = vmatmul.f32.gmra.mxu0 %v5031
    %v5702 = vpop.f32.mrf.mxu0
    %v5703 = vadd.f32 0.0, %v5702
    %5704 = vmatmul.f32.gmra.mxu0 %v5033
    %v5705 = vpop.f32.mrf.mxu0
    %v5706 = vadd.f32 0.0, %v5705
    %5707 = vmatmul.f32.gmra.mxu0 %v5035
    %v5708 = vpop.f32.mrf.mxu0
    %v5709 = vadd.f32 0.0, %v5708
    %5710 = vmatmul.f32.gmra.mxu0 %v5037
    %v5711 = vpop.f32.mrf.mxu0
    %v5712 = vadd.f32 0.0, %v5711
    %5713 = vmatmul.f32.gmra.mxu0 %v5039
    %v5714 = vpop.f32.mrf.mxu0
    %v5715 = vadd.f32 0.0, %v5714
    %5716 = vmatmul.f32.gmra.mxu0 %v5041
    %v5717 = vpop.f32.mrf.mxu0
    %v5718 = vadd.f32 0.0, %v5717
    %5719 = vmatmul.f32.gmra.mxu0 %v5043
    %v5720 = vpop.f32.mrf.mxu0
    %v5721 = vadd.f32 0.0, %v5720
    %5722 = vmatmul.f32.gmra.mxu0 %v5045
    %v5723 = vpop.f32.mrf.mxu0
    %v5724 = vadd.f32 0.0, %v5723
    %5725 = vmatmul.f32.gmra.mxu0 %v5047
    %v5726 = vpop.f32.mrf.mxu0
    %v5727 = vadd.f32 0.0, %v5726
    %5728 = vmatmul.f32.gmra.mxu0 %v5049
    %v5729 = vpop.f32.mrf.mxu0
    %v5730 = vadd.f32 0.0, %v5729
    %5731 = vmatmul.f32.gmra.mxu0 %v5051
    %v5732 = vpop.f32.mrf.mxu0
    %v5733 = vadd.f32 0.0, %v5732
    %5734 = vmatmul.f32.gmra.mxu0 %v5053
    %v5735 = vpop.f32.mrf.mxu0
    %v5736 = vadd.f32 0.0, %v5735
    %5737 = vmatmul.f32.gmra.mxu0 %v5055
    %v5738 = vpop.f32.mrf.mxu0
    %v5739 = vadd.f32 0.0, %v5738
    %5740 = vmatmul.f32.gmra.mxu0 %v5057
    %v5741 = vpop.f32.mrf.mxu0
    %v5742 = vadd.f32 0.0, %v5741
    %5743 = vmatmul.f32.gmra.mxu0 %v5059
    %v5744 = vpop.f32.mrf.mxu0
    %v5745 = vadd.f32 0.0, %v5744
    %5746 = vmatmul.f32.gmra.mxu0 %v5061
    %v5747 = vpop.f32.mrf.mxu0
    %v5748 = vadd.f32 0.0, %v5747
    %5749 = vmatmul.f32.gmra.mxu0 %v5063
    %v5750 = vpop.f32.mrf.mxu0
    %v5751 = vadd.f32 0.0, %v5750
    %5752 = vmatmul.f32.gmra.mxu0 %v5065
    %v5753 = vpop.f32.mrf.mxu0
    %v5754 = vadd.f32 0.0, %v5753
    %5755 = vmatmul.f32.gmra.mxu0 %v5067
    %v5756 = vpop.f32.mrf.mxu0
    %v5757 = vadd.f32 0.0, %v5756
    %5758 = vmatmul.f32.gmra.mxu0 %v5069
    %v5759 = vpop.f32.mrf.mxu0
    %v5760 = vadd.f32 0.0, %v5759
    %5761 = vmatmul.f32.gmra.mxu0 %v5071
    %v5762 = vpop.f32.mrf.mxu0
    %v5763 = vadd.f32 0.0, %v5762
    %5764 = vmatmul.f32.gmra.mxu0 %v5073
    %v5765 = vpop.f32.mrf.mxu0
    %v5766 = vadd.f32 0.0, %v5765
    %5767 = vmatmul.f32.gmra.mxu0 %v5075
    %v5768 = vpop.f32.mrf.mxu0
    %v5769 = vadd.f32 0.0, %v5768
    %5770 = vmatmul.f32.gmra.mxu0 %v5077
    %v5771 = vpop.f32.mrf.mxu0
    %v5772 = vadd.f32 0.0, %v5771
    %5773 = vmatmul.f32.gmra.mxu0 %v5079
    %v5774 = vpop.f32.mrf.mxu0
    %v5775 = vadd.f32 0.0, %v5774
    %5776 = vmatmul.f32.gmra.mxu0 %v5081
    %v5777 = vpop.f32.mrf.mxu0
    %v5778 = vadd.f32 0.0, %v5777
    %5779 = vmatmul.f32.gmra.mxu0 %v5083
    %v5780 = vpop.f32.mrf.mxu0
    %v5781 = vadd.f32 0.0, %v5780
    %5782 = vmatmul.f32.gmra.mxu0 %v5085
    %v5783 = vpop.f32.mrf.mxu0
    %v5784 = vadd.f32 0.0, %v5783
    %5785 = vmatmul.f32.gmra.mxu0 %v5087
    %v5786 = vpop.f32.mrf.mxu0
    %v5787 = vadd.f32 0.0, %v5786
    %5788 = vmatmul.f32.gmra.mxu0 %v5089
    %v5789 = vpop.f32.mrf.mxu0
    %v5790 = vadd.f32 0.0, %v5789
    %5791 = vmatmul.f32.gmra.mxu0 %v5091
    %v5792 = vpop.f32.mrf.mxu0
    %v5793 = vadd.f32 0.0, %v5792
    %5794 = vmatmul.f32.gmra.mxu0 %v5093
    %v5795 = vpop.f32.mrf.mxu0
    %v5796 = vadd.f32 0.0, %v5795
    %5797 = vmatmul.f32.gmra.mxu0 %v5095
    %v5798 = vpop.f32.mrf.mxu0
    %v5799 = vadd.f32 0.0, %v5798
    %5800 = vmatmul.f32.gmra.mxu0 %v5097
    %v5801 = vpop.f32.mrf.mxu0
    %v5802 = vadd.f32 0.0, %v5801
    %5803 = vmatmul.f32.gmra.mxu0 %v5099
    %v5804 = vpop.f32.mrf.mxu0
    %v5805 = vadd.f32 0.0, %v5804
    %5806 = vmatmul.f32.gmra.mxu0 %v5101
    %v5807 = vpop.f32.mrf.mxu0
    %v5808 = vadd.f32 0.0, %v5807
    %5809 = vmatmul.f32.gmra.mxu0 %v5103
    %v5810 = vpop.f32.mrf.mxu0
    %v5811 = vadd.f32 0.0, %v5810
    %5812 = vmatmul.f32.gmra.mxu0 %v5105
    %v5813 = vpop.f32.mrf.mxu0
    %v5814 = vadd.f32 0.0, %v5813
    %5815 = vmatmul.f32.gmra.mxu0 %v5107
    %v5816 = vpop.f32.mrf.mxu0
    %v5817 = vadd.f32 0.0, %v5816
    %5818 = vmatmul.f32.gmra.mxu0 %v5109
    %v5819 = vpop.f32.mrf.mxu0
    %v5820 = vadd.f32 0.0, %v5819
    %5821 = vmatmul.f32.gmra.mxu0 %v5111
    %v5822 = vpop.f32.mrf.mxu0
    %v5823 = vadd.f32 0.0, %v5822
    %5824 = vmatmul.f32.gmra.mxu0 %v5113
    %v5825 = vpop.f32.mrf.mxu0
    %v5826 = vadd.f32 0.0, %v5825
    %5827 = vmatmul.f32.gmra.mxu0 %v5115
    %v5828 = vpop.f32.mrf.mxu0
    %v5829 = vadd.f32 0.0, %v5828
    %5830 = vmatmul.f32.gmra.mxu0 %v5117
    %v5831 = vpop.f32.mrf.mxu0
    %v5832 = vadd.f32 0.0, %v5831
    %5833 = vmatmul.f32.gmra.mxu0 %v5119
    %v5834 = vpop.f32.mrf.mxu0
    %v5835 = vadd.f32 0.0, %v5834
    %5836 = vmatmul.f32.gmra.mxu0 %v5121
    %v5837 = vpop.f32.mrf.mxu0
    %v5838 = vadd.f32 0.0, %v5837
    %5839 = vmatmul.f32.gmra.mxu0 %v5123
    %v5840 = vpop.f32.mrf.mxu0
    %v5841 = vadd.f32 0.0, %v5840
    %5842 = vmatmul.f32.gmra.mxu0 %v5125
    %v5843 = vpop.f32.mrf.mxu0
    %v5844 = vadd.f32 0.0, %v5843
    %5845 = vmatmul.f32.gmra.mxu0 %v5127
    %v5846 = vpop.f32.mrf.mxu0
    %v5847 = vadd.f32 0.0, %v5846
    %5848 = vmatmul.f32.gmra.mxu0 %v5129
    %v5849 = vpop.f32.mrf.mxu0
    %v5850 = vadd.f32 0.0, %v5849
    %5851 = vmatmul.f32.gmra.mxu0 %v5131
    %v5852 = vpop.f32.mrf.mxu0
    %v5853 = vadd.f32 0.0, %v5852
    %5854 = vmatmul.f32.gmra.mxu0 %v5133
    %v5855 = vpop.f32.mrf.mxu0
    %v5856 = vadd.f32 0.0, %v5855
    %5857 = vmatmul.f32.gmra.mxu0 %v5135
    %v5858 = vpop.f32.mrf.mxu0
    %v5859 = vadd.f32 0.0, %v5858
    %5860 = vmatmul.f32.gmra.mxu0 %v5137
    %v5861 = vpop.f32.mrf.mxu0
    %v5862 = vadd.f32 0.0, %v5861
    %5863 = vmatmul.f32.gmra.mxu0 %v5139
    %v5864 = vpop.f32.mrf.mxu0
    %v5865 = vadd.f32 0.0, %v5864
    %5866 = vmatmul.f32.gmra.mxu0 %v5141
    %v5867 = vpop.f32.mrf.mxu0
    %v5868 = vadd.f32 0.0, %v5867
    %5869 = vmatmul.f32.gmra.mxu0 %v5143
    %v5870 = vpop.f32.mrf.mxu0
    %v5871 = vadd.f32 0.0, %v5870
    %5872 = vmatmul.f32.gmra.mxu0 %v5145
    %v5873 = vpop.f32.mrf.mxu0
    %v5874 = vadd.f32 0.0, %v5873
    %5875 = vmatmul.f32.gmra.mxu0 %v5147
    %v5876 = vpop.f32.mrf.mxu0
    %v5877 = vadd.f32 0.0, %v5876
    %5878 = vmatmul.f32.gmra.mxu0 %v5149
    %v5879 = vpop.f32.mrf.mxu0
    %v5880 = vadd.f32 0.0, %v5879
    %5881 = vmatmul.f32.gmra.mxu0 %v5151
    %v5882 = vpop.f32.mrf.mxu0
    %v5883 = vadd.f32 0.0, %v5882
    %5884 = vmatmul.f32.gmra.mxu0 %v5153
    %v5885 = vpop.f32.mrf.mxu0
    %v5886 = vadd.f32 0.0, %v5885
    %5887 = vmatmul.f32.gmra.mxu0 %v5155
    %v5888 = vpop.f32.mrf.mxu0
    %v5889 = vadd.f32 0.0, %v5888
    %5890 = vmatmul.f32.gmra.mxu0 %v5157
    %v5891 = vpop.f32.mrf.mxu0
    %v5892 = vadd.f32 0.0, %v5891
    %5893 = vmatmul.f32.gmra.mxu0 %v5159
    %v5894 = vpop.f32.mrf.mxu0
    %v5895 = vadd.f32 0.0, %v5894
    %5896 = vmatmul.f32.gmra.mxu0 %v5161
    %v5897 = vpop.f32.mrf.mxu0
    %v5898 = vadd.f32 0.0, %v5897
    %5899 = vmatmul.f32.gmra.mxu0 %v5163
    %v5900 = vpop.f32.mrf.mxu0
    %v5901 = vadd.f32 0.0, %v5900
    %5902 = vmatmul.f32.gmra.mxu0 %v5165
    %v5903 = vpop.f32.mrf.mxu0
    %v5904 = vadd.f32 0.0, %v5903
    %5905 = vmatmul.f32.gmra.mxu0 %v5167
    %v5906 = vpop.f32.mrf.mxu0
    %v5907 = vadd.f32 0.0, %v5906
    %5908 = vmatmul.f32.gmra.mxu0 %v5169
    %v5909 = vpop.f32.mrf.mxu0
    %v5910 = vadd.f32 0.0, %v5909
    %5911 = vmatmul.f32.gmra.mxu0 %v5171
    %v5912 = vpop.f32.mrf.mxu0
    %v5913 = vadd.f32 0.0, %v5912
    %5914 = vmatmul.f32.gmra.mxu0 %v5173
    %v5915 = vpop.f32.mrf.mxu0
    %v5916 = vadd.f32 0.0, %v5915
    %5917 = vmatmul.f32.gmra.mxu0 %v5175
    %v5918 = vpop.f32.mrf.mxu0
    %v5919 = vadd.f32 0.0, %v5918
    %5920 = vmatmul.f32.gmra.mxu0 %v5177
    %v5921 = vpop.f32.mrf.mxu0
    %v5922 = vadd.f32 0.0, %v5921
    %5923 = vmatmul.f32.gmra.mxu0 %v5179
    %v5924 = vpop.f32.mrf.mxu0
    %v5925 = vadd.f32 0.0, %v5924
    %5926 = vmatmul.f32.gmra.mxu0 %v5181
    %v5927 = vpop.f32.mrf.mxu0
    %v5928 = vadd.f32 0.0, %v5927
    %5929 = vmatmul.f32.gmra.mxu0 %v5183
    %v5930 = vpop.f32.mrf.mxu0
    %v5931 = vadd.f32 0.0, %v5930
    %5932 = vmatmul.f32.gmra.mxu0 %v5185
    %v5933 = vpop.f32.mrf.mxu0
    %v5934 = vadd.f32 0.0, %v5933
    %5935 = vmatmul.f32.gmra.mxu0 %v5187
    %v5936 = vpop.f32.mrf.mxu0
    %v5937 = vadd.f32 0.0, %v5936
    %5938 = vmatmul.f32.gmra.mxu0 %v5189
    %v5939 = vpop.f32.mrf.mxu0
    %v5940 = vadd.f32 0.0, %v5939
    %5941 = vmatmul.f32.gmra.mxu0 %v5191
    %v5942 = vpop.f32.mrf.mxu0
    %v5943 = vadd.f32 0.0, %v5942
    %5944 = vmatmul.f32.gmra.mxu0 %v5193
    %v5945 = vpop.f32.mrf.mxu0
    %v5946 = vadd.f32 0.0, %v5945
    %5947 = vmatmul.f32.gmra.mxu0 %v5195
    %v5948 = vpop.f32.mrf.mxu0
    %v5949 = vadd.f32 0.0, %v5948
    %5950 = vmatmul.f32.gmra.mxu0 %v5197
    %v5951 = vpop.f32.mrf.mxu0
    %v5952 = vadd.f32 0.0, %v5951
    %5953 = vmatmul.f32.gmra.mxu0 %v5199
    %v5954 = vpop.f32.mrf.mxu0
    %v5955 = vadd.f32 0.0, %v5954
    %5956 = vmatmul.f32.gmra.mxu0 %v5201
    %v5957 = vpop.f32.mrf.mxu0
    %v5958 = vadd.f32 0.0, %v5957
    %5959 = vmatmul.f32.gmra.mxu0 %v5203
    %v5960 = vpop.f32.mrf.mxu0
    %v5961 = vadd.f32 0.0, %v5960
    %5962 = vmatmul.f32.gmra.mxu0 %v5205
    %v5963 = vpop.f32.mrf.mxu0
    %v5964 = vadd.f32 0.0, %v5963
    %5965 = vmatmul.f32.gmra.mxu0 %v5207
    %v5966 = vpop.f32.mrf.mxu0
    %v5967 = vadd.f32 0.0, %v5966
    %5968 = vmatmul.f32.gmra.mxu0 %v5209
    %v5969 = vpop.f32.mrf.mxu0
    %v5970 = vadd.f32 0.0, %v5969
    %5971 = vmatmul.f32.gmra.mxu0 %v5211
    %v5972 = vpop.f32.mrf.mxu0
    %v5973 = vadd.f32 0.0, %v5972
    %5974 = vmatmul.f32.gmra.mxu0 %v5213
    %v5975 = vpop.f32.mrf.mxu0
    %v5976 = vadd.f32 0.0, %v5975
    %5977 = vmatmul.f32.gmra.mxu0 %v5215
    %v5978 = vpop.f32.mrf.mxu0
    %v5979 = vadd.f32 0.0, %v5978
    %5980 = vmatmul.f32.gmra.mxu0 %v5217
    %v5981 = vpop.f32.mrf.mxu0
    %v5982 = vadd.f32 0.0, %v5981
    %5983 = vmatmul.f32.gmra.mxu0 %v5219
    %v5984 = vpop.f32.mrf.mxu0
    %v5985 = vadd.f32 0.0, %v5984
    %5986 = vmatmul.f32.gmra.mxu0 %v5221
    %v5987 = vpop.f32.mrf.mxu0
    %v5988 = vadd.f32 0.0, %v5987
    %5989 = vmatmul.f32.gmra.mxu0 %v5223
    %v5990 = vpop.f32.mrf.mxu0
    %v5991 = vadd.f32 0.0, %v5990
    %5992 = vmatmul.f32.gmra.mxu0 %v5225
    %v5993 = vpop.f32.mrf.mxu0
    %v5994 = vadd.f32 0.0, %v5993
    %5995 = vmatmul.f32.gmra.mxu0 %v5227
    %v5996 = vpop.f32.mrf.mxu0
    %v5997 = vadd.f32 0.0, %v5996
    %5998 = vmatmul.f32.gmra.mxu0 %v5229
    %v5999 = vpop.f32.mrf.mxu0
    %v6000 = vadd.f32 0.0, %v5999
    %6001 = vmatmul.f32.gmra.mxu0 %v5231
    %v6002 = vpop.f32.mrf.mxu0
    %v6003 = vadd.f32 0.0, %v6002
    %6004 = vmatmul.f32.gmra.mxu0 %v5233
    %v6005 = vpop.f32.mrf.mxu0
    %v6006 = vadd.f32 0.0, %v6005
    %6007 = vmatmul.f32.gmra.mxu0 %v5235
    %v6008 = vpop.f32.mrf.mxu0
    %v6009 = vadd.f32 0.0, %v6008
    %6010 = vmatmul.f32.gmra.mxu0 %v5237
    %v6011 = vpop.f32.mrf.mxu0
    %v6012 = vadd.f32 0.0, %v6011
    %6013 = vmatmul.f32.gmra.mxu0 %v5239
    %v6014 = vpop.f32.mrf.mxu0
    %v6015 = vadd.f32 0.0, %v6014
    %6016 = vmatmul.f32.gmra.mxu0 %v5241
    %v6017 = vpop.f32.mrf.mxu0
    %v6018 = vadd.f32 0.0, %v6017
    %6019 = vmatmul.f32.gmra.mxu0 %v5243
    %v6020 = vpop.f32.mrf.mxu0
    %v6021 = vadd.f32 0.0, %v6020
    %6022 = vmatmul.f32.gmra.mxu0 %v5245
    %v6023 = vpop.f32.mrf.mxu0
    %v6024 = vadd.f32 0.0, %v6023
    %6025 = vmatmul.f32.gmra.mxu0 %v5247
    %v6026 = vpop.f32.mrf.mxu0
    %v6027 = vadd.f32 0.0, %v6026
    %6028 = vmatmul.f32.gmra.mxu0 %v5249
    %v6029 = vpop.f32.mrf.mxu0
    %v6030 = vadd.f32 0.0, %v6029
    %6031 = vmatmul.f32.gmra.mxu0 %v5251
    %v6032 = vpop.f32.mrf.mxu0
    %v6033 = vadd.f32 0.0, %v6032
    %6034 = vmatmul.f32.gmra.mxu0 %v5253
    %v6035 = vpop.f32.mrf.mxu0
    %v6036 = vadd.f32 0.0, %v6035
    %6037 = vmatmul.f32.gmra.mxu0 %v5255
    %v6038 = vpop.f32.mrf.mxu0
    %v6039 = vadd.f32 0.0, %v6038
    %6040 = vmatmul.f32.gmra.mxu0 %v5257
    %v6041 = vpop.f32.mrf.mxu0
    %v6042 = vadd.f32 0.0, %v6041
    %6043 = vmatmul.f32.gmra.mxu0 %v5259
    %v6044 = vpop.f32.mrf.mxu0
    %v6045 = vadd.f32 0.0, %v6044
    %6046 = vmatmul.f32.gmra.mxu0 %v5261
    %v6047 = vpop.f32.mrf.mxu0
    %v6048 = vadd.f32 0.0, %v6047
    %6049 = vmatmul.f32.gmra.mxu0 %v5263
    %v6050 = vpop.f32.mrf.mxu0
    %v6051 = vadd.f32 0.0, %v6050
    %6052 = vdwg.mxu0
    %v6053 = vadd.f32 %v3345, %v5286
    %v6054 = vadd.f32 %v3348, %v5289
    %v6055 = vadd.f32 %v3351, %v5292
    %v6056 = vadd.f32 %v3354, %v5295
    %v6057 = vadd.f32 %v3357, %v5298
    %v6058 = vadd.f32 %v3360, %v5301
    %v6059 = vadd.f32 %v3363, %v5304
    %v6060 = vadd.f32 %v3366, %v5307
    %v6061 = vadd.f32 %v3369, %v5310
    %v6062 = vadd.f32 %v3372, %v5313
    %v6063 = vadd.f32 %v3375, %v5316
    %v6064 = vadd.f32 %v3378, %v5319
    %v6065 = vadd.f32 %v3381, %v5322
    %v6066 = vadd.f32 %v3384, %v5325
    %v6067 = vadd.f32 %v3387, %v5328
    %v6068 = vadd.f32 %v3390, %v5331
    %v6069 = vadd.f32 %v3393, %v5334
    %v6070 = vadd.f32 %v3396, %v5337
    %v6071 = vadd.f32 %v3399, %v5340
    %v6072 = vadd.f32 %v3402, %v5343
    %v6073 = vadd.f32 %v3405, %v5346
    %v6074 = vadd.f32 %v3408, %v5349
    %v6075 = vadd.f32 %v3411, %v5352
    %v6076 = vadd.f32 %v3414, %v5355
    %v6077 = vadd.f32 %v3417, %v5358
    %v6078 = vadd.f32 %v3420, %v5361
    %v6079 = vadd.f32 %v3423, %v5364
    %v6080 = vadd.f32 %v3426, %v5367
    %v6081 = vadd.f32 %v3429, %v5370
    %v6082 = vadd.f32 %v3432, %v5373
    %v6083 = vadd.f32 %v3435, %v5376
    %v6084 = vadd.f32 %v3438, %v5379
    %v6085 = vadd.f32 %v3441, %v5382
    %v6086 = vadd.f32 %v3444, %v5385
    %v6087 = vadd.f32 %v3447, %v5388
    %v6088 = vadd.f32 %v3450, %v5391
    %v6089 = vadd.f32 %v3453, %v5394
    %v6090 = vadd.f32 %v3456, %v5397
    %v6091 = vadd.f32 %v3459, %v5400
    %v6092 = vadd.f32 %v3462, %v5403
    %v6093 = vadd.f32 %v3465, %v5406
    %v6094 = vadd.f32 %v3468, %v5409
    %v6095 = vadd.f32 %v3471, %v5412
    %v6096 = vadd.f32 %v3474, %v5415
    %v6097 = vadd.f32 %v3477, %v5418
    %v6098 = vadd.f32 %v3480, %v5421
    %v6099 = vadd.f32 %v3483, %v5424
    %v6100 = vadd.f32 %v3486, %v5427
    %v6101 = vadd.f32 %v3489, %v5430
    %v6102 = vadd.f32 %v3492, %v5433
    %v6103 = vadd.f32 %v3495, %v5436
    %v6104 = vadd.f32 %v3498, %v5439
    %v6105 = vadd.f32 %v3501, %v5442
    %v6106 = vadd.f32 %v3504, %v5445
    %v6107 = vadd.f32 %v3507, %v5448
    %v6108 = vadd.f32 %v3510, %v5451
    %v6109 = vadd.f32 %v3513, %v5454
    %v6110 = vadd.f32 %v3516, %v5457
    %v6111 = vadd.f32 %v3519, %v5460
    %v6112 = vadd.f32 %v3522, %v5463
    %v6113 = vadd.f32 %v3525, %v5466
    %v6114 = vadd.f32 %v3528, %v5469
    %v6115 = vadd.f32 %v3531, %v5472
    %v6116 = vadd.f32 %v3534, %v5475
    %v6117 = vadd.f32 %v3537, %v5478
    %v6118 = vadd.f32 %v3540, %v5481
    %v6119 = vadd.f32 %v3543, %v5484
    %v6120 = vadd.f32 %v3546, %v5487
    %v6121 = vadd.f32 %v3549, %v5490
    %v6122 = vadd.f32 %v3552, %v5493
    %v6123 = vadd.f32 %v3555, %v5496
    %v6124 = vadd.f32 %v3558, %v5499
    %v6125 = vadd.f32 %v3561, %v5502
    %v6126 = vadd.f32 %v3564, %v5505
    %v6127 = vadd.f32 %v3567, %v5508
    %v6128 = vadd.f32 %v3570, %v5511
    %v6129 = vadd.f32 %v3573, %v5514
    %v6130 = vadd.f32 %v3576, %v5517
    %v6131 = vadd.f32 %v3579, %v5520
    %v6132 = vadd.f32 %v3582, %v5523
    %v6133 = vadd.f32 %v3585, %v5526
    %v6134 = vadd.f32 %v3588, %v5529
    %v6135 = vadd.f32 %v3591, %v5532
    %v6136 = vadd.f32 %v3594, %v5535
    %v6137 = vadd.f32 %v3597, %v5538
    %v6138 = vadd.f32 %v3600, %v5541
    %v6139 = vadd.f32 %v3603, %v5544
    %v6140 = vadd.f32 %v3606, %v5547
    %v6141 = vadd.f32 %v3609, %v5550
    %v6142 = vadd.f32 %v3612, %v5553
    %v6143 = vadd.f32 %v3615, %v5556
    %v6144 = vadd.f32 %v3618, %v5559
    %v6145 = vadd.f32 %v3621, %v5562
    %v6146 = vadd.f32 %v3624, %v5565
    %v6147 = vadd.f32 %v3627, %v5568
    %v6148 = vadd.f32 %v3630, %v5571
    %v6149 = vadd.f32 %v3633, %v5574
    %v6150 = vadd.f32 %v3636, %v5577
    %v6151 = vadd.f32 %v3639, %v5580
    %v6152 = vadd.f32 %v3642, %v5583
    %v6153 = vadd.f32 %v3645, %v5586
    %v6154 = vadd.f32 %v3648, %v5589
    %v6155 = vadd.f32 %v3651, %v5592
    %v6156 = vadd.f32 %v3654, %v5595
    %v6157 = vadd.f32 %v3657, %v5598
    %v6158 = vadd.f32 %v3660, %v5601
    %v6159 = vadd.f32 %v3663, %v5604
    %v6160 = vadd.f32 %v3666, %v5607
    %v6161 = vadd.f32 %v3669, %v5610
    %v6162 = vadd.f32 %v3672, %v5613
    %v6163 = vadd.f32 %v3675, %v5616
    %v6164 = vadd.f32 %v3678, %v5619
    %v6165 = vadd.f32 %v3681, %v5622
    %v6166 = vadd.f32 %v3684, %v5625
    %v6167 = vadd.f32 %v3687, %v5628
    %v6168 = vadd.f32 %v3690, %v5631
    %v6169 = vadd.f32 %v3693, %v5634
    %v6170 = vadd.f32 %v3696, %v5637
    %v6171 = vadd.f32 %v3699, %v5640
    %v6172 = vadd.f32 %v3702, %v5643
    %v6173 = vadd.f32 %v3705, %v5646
    %v6174 = vadd.f32 %v3708, %v5649
    %v6175 = vadd.f32 %v3711, %v5652
    %v6176 = vadd.f32 %v3714, %v5655
    %v6177 = vadd.f32 %v3717, %v5658
    %v6178 = vadd.f32 %v3720, %v5661
    %v6179 = vadd.f32 %v3723, %v5664
    %v6180 = vadd.f32 %v3726, %v5667
    %v6181 = vadd.f32 %v3729, %v5670
    %v6182 = vadd.f32 %v3732, %v5673
    %v6183 = vadd.f32 %v3735, %v5676
    %v6184 = vadd.f32 %v3738, %v5679
    %v6185 = vadd.f32 %v3741, %v5682
    %v6186 = vadd.f32 %v3744, %v5685
    %v6187 = vadd.f32 %v3747, %v5688
    %v6188 = vadd.f32 %v3750, %v5691
    %v6189 = vadd.f32 %v3753, %v5694
    %v6190 = vadd.f32 %v3756, %v5697
    %v6191 = vadd.f32 %v3759, %v5700
    %v6192 = vadd.f32 %v3762, %v5703
    %v6193 = vadd.f32 %v3765, %v5706
    %v6194 = vadd.f32 %v3768, %v5709
    %v6195 = vadd.f32 %v3771, %v5712
    %v6196 = vadd.f32 %v3774, %v5715
    %v6197 = vadd.f32 %v3777, %v5718
    %v6198 = vadd.f32 %v3780, %v5721
    %v6199 = vadd.f32 %v3783, %v5724
    %v6200 = vadd.f32 %v3786, %v5727
    %v6201 = vadd.f32 %v3789, %v5730
    %v6202 = vadd.f32 %v3792, %v5733
    %v6203 = vadd.f32 %v3795, %v5736
    %v6204 = vadd.f32 %v3798, %v5739
    %v6205 = vadd.f32 %v3801, %v5742
    %v6206 = vadd.f32 %v3804, %v5745
    %v6207 = vadd.f32 %v3807, %v5748
    %v6208 = vadd.f32 %v3810, %v5751
    %v6209 = vadd.f32 %v3813, %v5754
    %v6210 = vadd.f32 %v3816, %v5757
    %v6211 = vadd.f32 %v3819, %v5760
    %v6212 = vadd.f32 %v3822, %v5763
    %v6213 = vadd.f32 %v3825, %v5766
    %v6214 = vadd.f32 %v3828, %v5769
    %v6215 = vadd.f32 %v3831, %v5772
    %v6216 = vadd.f32 %v3834, %v5775
    %v6217 = vadd.f32 %v3837, %v5778
    %v6218 = vadd.f32 %v3840, %v5781
    %v6219 = vadd.f32 %v3843, %v5784
    %v6220 = vadd.f32 %v3846, %v5787
    %v6221 = vadd.f32 %v3849, %v5790
    %v6222 = vadd.f32 %v3852, %v5793
    %v6223 = vadd.f32 %v3855, %v5796
    %v6224 = vadd.f32 %v3858, %v5799
    %v6225 = vadd.f32 %v3861, %v5802
    %v6226 = vadd.f32 %v3864, %v5805
    %v6227 = vadd.f32 %v3867, %v5808
    %v6228 = vadd.f32 %v3870, %v5811
    %v6229 = vadd.f32 %v3873, %v5814
    %v6230 = vadd.f32 %v3876, %v5817
    %v6231 = vadd.f32 %v3879, %v5820
    %v6232 = vadd.f32 %v3882, %v5823
    %v6233 = vadd.f32 %v3885, %v5826
    %v6234 = vadd.f32 %v3888, %v5829
    %v6235 = vadd.f32 %v3891, %v5832
    %v6236 = vadd.f32 %v3894, %v5835
    %v6237 = vadd.f32 %v3897, %v5838
    %v6238 = vadd.f32 %v3900, %v5841
    %v6239 = vadd.f32 %v3903, %v5844
    %v6240 = vadd.f32 %v3906, %v5847
    %v6241 = vadd.f32 %v3909, %v5850
    %v6242 = vadd.f32 %v3912, %v5853
    %v6243 = vadd.f32 %v3915, %v5856
    %v6244 = vadd.f32 %v3918, %v5859
    %v6245 = vadd.f32 %v3921, %v5862
    %v6246 = vadd.f32 %v3924, %v5865
    %v6247 = vadd.f32 %v3927, %v5868
    %v6248 = vadd.f32 %v3930, %v5871
    %v6249 = vadd.f32 %v3933, %v5874
    %v6250 = vadd.f32 %v3936, %v5877
    %v6251 = vadd.f32 %v3939, %v5880
    %v6252 = vadd.f32 %v3942, %v5883
    %v6253 = vadd.f32 %v3945, %v5886
    %v6254 = vadd.f32 %v3948, %v5889
    %v6255 = vadd.f32 %v3951, %v5892
    %v6256 = vadd.f32 %v3954, %v5895
    %v6257 = vadd.f32 %v3957, %v5898
    %v6258 = vadd.f32 %v3960, %v5901
    %v6259 = vadd.f32 %v3963, %v5904
    %v6260 = vadd.f32 %v3966, %v5907
    %v6261 = vadd.f32 %v3969, %v5910
    %v6262 = vadd.f32 %v3972, %v5913
    %v6263 = vadd.f32 %v3975, %v5916
    %v6264 = vadd.f32 %v3978, %v5919
    %v6265 = vadd.f32 %v3981, %v5922
    %v6266 = vadd.f32 %v3984, %v5925
    %v6267 = vadd.f32 %v3987, %v5928
    %v6268 = vadd.f32 %v3990, %v5931
    %v6269 = vadd.f32 %v3993, %v5934
    %v6270 = vadd.f32 %v3996, %v5937
    %v6271 = vadd.f32 %v3999, %v5940
    %v6272 = vadd.f32 %v4002, %v5943
    %v6273 = vadd.f32 %v4005, %v5946
    %v6274 = vadd.f32 %v4008, %v5949
    %v6275 = vadd.f32 %v4011, %v5952
    %v6276 = vadd.f32 %v4014, %v5955
    %v6277 = vadd.f32 %v4017, %v5958
    %v6278 = vadd.f32 %v4020, %v5961
    %v6279 = vadd.f32 %v4023, %v5964
    %v6280 = vadd.f32 %v4026, %v5967
    %v6281 = vadd.f32 %v4029, %v5970
    %v6282 = vadd.f32 %v4032, %v5973
    %v6283 = vadd.f32 %v4035, %v5976
    %v6284 = vadd.f32 %v4038, %v5979
    %v6285 = vadd.f32 %v4041, %v5982
    %v6286 = vadd.f32 %v4044, %v5985
    %v6287 = vadd.f32 %v4047, %v5988
    %v6288 = vadd.f32 %v4050, %v5991
    %v6289 = vadd.f32 %v4053, %v5994
    %v6290 = vadd.f32 %v4056, %v5997
    %v6291 = vadd.f32 %v4059, %v6000
    %v6292 = vadd.f32 %v4062, %v6003
    %v6293 = vadd.f32 %v4065, %v6006
    %v6294 = vadd.f32 %v4068, %v6009
    %v6295 = vadd.f32 %v4071, %v6012
    %v6296 = vadd.f32 %v4074, %v6015
    %v6297 = vadd.f32 %v4077, %v6018
    %v6298 = vadd.f32 %v4080, %v6021
    %v6299 = vadd.f32 %v4083, %v6024
    %v6300 = vadd.f32 %v4086, %v6027
    %v6301 = vadd.f32 %v4089, %v6030
    %v6302 = vadd.f32 %v4092, %v6033
    %v6303 = vadd.f32 %v4095, %v6036
    %v6304 = vadd.f32 %v4098, %v6039
    %v6305 = vadd.f32 %v4101, %v6042
    %v6306 = vadd.f32 %v4104, %v6045
    %v6307 = vadd.f32 %v4107, %v6048
    %v6308 = vadd.f32 %v4110, %v6051
    %v6310 = vsel %vm1510, %v92, 0
    %v6313 = vsel %vm1510, %v93, 0
    %v6316 = vsel %vm1510, %v146, 0
    %v6319 = vsel %vm1510, %v147, 0
    %v6322 = vsel %vm1510, %v200, 0
    %v6325 = vsel %vm1510, %v201, 0
    %v6328 = vsel %vm1510, %v254, 0
    %v6331 = vsel %vm1510, %v255, 0
    %v6334 = vsel %vm1510, %v308, 0
    %v6337 = vsel %vm1510, %v309, 0
    %v6340 = vsel %vm1510, %v362, 0
    %v6343 = vsel %vm1510, %v363, 0
    %v6346 = vsel %vm1510, %v416, 0
    %v6349 = vsel %vm1510, %v417, 0
    %v6352 = vsel %vm1510, %v470, 0
    %v6355 = vsel %vm1510, %v471, 0
    %v6358 = vsel %vm2023, %v479, 0
    %6360 = vmatpush.msra.mxu0 0.0
    %6361 = vmatpush.msra.mxu0 0.0
    %6362 = vmatpush.msra.mxu0 0.0
    %6363 = vmatpush.msra.mxu0 0.0
    %6364 = vmatpush.msra.mxu0 0.0
    %6365 = vmatpush.msra.mxu0 0.0
    %6366 = vmatpush.msra.mxu0 0.0
    %6367 = vmatpush.msra.mxu0 0.0
    %6368 = vmatpush.msra.mxu0 0.0
    %6369 = vmatpush.msra.mxu0 0.0
    %6370 = vmatpush.msra.mxu0 0.0
    %6371 = vmatpush.msra.mxu0 0.0
    %6372 = vmatpush.msra.mxu0 0.0
    %6373 = vmatpush.msra.mxu0 0.0
    %6374 = vmatpush.msra.mxu0 0.0
    %6375 = vmatpush.msra.mxu0 %v6358
    %6376 = vmatmul.f32.gmra.mxu0 %v2816
    %v6377 = vpop.f32.mrf.mxu0
    %v6378 = vadd.f32 0.0, %v6377
    %6379 = vmatmul.f32.gmra.mxu0 %v2818
    %v6380 = vpop.f32.mrf.mxu0
    %v6381 = vadd.f32 0.0, %v6380
    %6382 = vmatmul.f32.gmra.mxu0 %v2820
    %v6383 = vpop.f32.mrf.mxu0
    %v6384 = vadd.f32 0.0, %v6383
    %6385 = vmatmul.f32.gmra.mxu0 %v2822
    %v6386 = vpop.f32.mrf.mxu0
    %v6387 = vadd.f32 0.0, %v6386
    %6388 = vmatmul.f32.gmra.mxu0 %v2824
    %v6389 = vpop.f32.mrf.mxu0
    %v6390 = vadd.f32 0.0, %v6389
    %6391 = vmatmul.f32.gmra.mxu0 %v2826
    %v6392 = vpop.f32.mrf.mxu0
    %v6393 = vadd.f32 0.0, %v6392
    %6394 = vmatmul.f32.gmra.mxu0 %v2828
    %v6395 = vpop.f32.mrf.mxu0
    %v6396 = vadd.f32 0.0, %v6395
    %6397 = vmatmul.f32.gmra.mxu0 %v2830
    %v6398 = vpop.f32.mrf.mxu0
    %v6399 = vadd.f32 0.0, %v6398
    %6400 = vmatmul.f32.gmra.mxu0 %v2832
    %v6401 = vpop.f32.mrf.mxu0
    %v6402 = vadd.f32 0.0, %v6401
    %6403 = vmatmul.f32.gmra.mxu0 %v2834
    %v6404 = vpop.f32.mrf.mxu0
    %v6405 = vadd.f32 0.0, %v6404
    %6406 = vmatmul.f32.gmra.mxu0 %v2836
    %v6407 = vpop.f32.mrf.mxu0
    %v6408 = vadd.f32 0.0, %v6407
    %6409 = vmatmul.f32.gmra.mxu0 %v2838
    %v6410 = vpop.f32.mrf.mxu0
    %v6411 = vadd.f32 0.0, %v6410
    %6412 = vmatmul.f32.gmra.mxu0 %v2840
    %v6413 = vpop.f32.mrf.mxu0
    %v6414 = vadd.f32 0.0, %v6413
    %6415 = vmatmul.f32.gmra.mxu0 %v2842
    %v6416 = vpop.f32.mrf.mxu0
    %v6417 = vadd.f32 0.0, %v6416
    %6418 = vmatmul.f32.gmra.mxu0 %v2844
    %v6419 = vpop.f32.mrf.mxu0
    %v6420 = vadd.f32 0.0, %v6419
    %6421 = vmatmul.f32.gmra.mxu0 %v2846
    %v6422 = vpop.f32.mrf.mxu0
    %v6423 = vadd.f32 0.0, %v6422
    %6424 = vmatmul.f32.gmra.mxu0 %v2848
    %v6425 = vpop.f32.mrf.mxu0
    %v6426 = vadd.f32 0.0, %v6425
    %6427 = vmatmul.f32.gmra.mxu0 %v2850
    %v6428 = vpop.f32.mrf.mxu0
    %v6429 = vadd.f32 0.0, %v6428
    %6430 = vmatmul.f32.gmra.mxu0 %v2852
    %v6431 = vpop.f32.mrf.mxu0
    %v6432 = vadd.f32 0.0, %v6431
    %6433 = vmatmul.f32.gmra.mxu0 %v2854
    %v6434 = vpop.f32.mrf.mxu0
    %v6435 = vadd.f32 0.0, %v6434
    %6436 = vmatmul.f32.gmra.mxu0 %v2856
    %v6437 = vpop.f32.mrf.mxu0
    %v6438 = vadd.f32 0.0, %v6437
    %6439 = vmatmul.f32.gmra.mxu0 %v2858
    %v6440 = vpop.f32.mrf.mxu0
    %v6441 = vadd.f32 0.0, %v6440
    %6442 = vmatmul.f32.gmra.mxu0 %v2860
    %v6443 = vpop.f32.mrf.mxu0
    %v6444 = vadd.f32 0.0, %v6443
    %6445 = vmatmul.f32.gmra.mxu0 %v2862
    %v6446 = vpop.f32.mrf.mxu0
    %v6447 = vadd.f32 0.0, %v6446
    %6448 = vmatmul.f32.gmra.mxu0 %v2864
    %v6449 = vpop.f32.mrf.mxu0
    %v6450 = vadd.f32 0.0, %v6449
    %6451 = vmatmul.f32.gmra.mxu0 %v2866
    %v6452 = vpop.f32.mrf.mxu0
    %v6453 = vadd.f32 0.0, %v6452
    %6454 = vmatmul.f32.gmra.mxu0 %v2868
    %v6455 = vpop.f32.mrf.mxu0
    %v6456 = vadd.f32 0.0, %v6455
    %6457 = vmatmul.f32.gmra.mxu0 %v2870
    %v6458 = vpop.f32.mrf.mxu0
    %v6459 = vadd.f32 0.0, %v6458
    %6460 = vmatmul.f32.gmra.mxu0 %v2872
    %v6461 = vpop.f32.mrf.mxu0
    %v6462 = vadd.f32 0.0, %v6461
    %6463 = vmatmul.f32.gmra.mxu0 %v2874
    %v6464 = vpop.f32.mrf.mxu0
    %v6465 = vadd.f32 0.0, %v6464
    %6466 = vmatmul.f32.gmra.mxu0 %v6310
    %v6467 = vpop.f32.mrf.mxu0
    %v6468 = vadd.f32 0.0, %v6467
    %6469 = vmatmul.f32.gmra.mxu0 %v6313
    %v6470 = vpop.f32.mrf.mxu0
    %v6471 = vadd.f32 0.0, %v6470
    %6472 = vmatmul.f32.gmra.mxu0 %v2880
    %v6473 = vpop.f32.mrf.mxu0
    %v6474 = vadd.f32 0.0, %v6473
    %6475 = vmatmul.f32.gmra.mxu0 %v2882
    %v6476 = vpop.f32.mrf.mxu0
    %v6477 = vadd.f32 0.0, %v6476
    %6478 = vmatmul.f32.gmra.mxu0 %v2884
    %v6479 = vpop.f32.mrf.mxu0
    %v6480 = vadd.f32 0.0, %v6479
    %6481 = vmatmul.f32.gmra.mxu0 %v2886
    %v6482 = vpop.f32.mrf.mxu0
    %v6483 = vadd.f32 0.0, %v6482
    %6484 = vmatmul.f32.gmra.mxu0 %v2888
    %v6485 = vpop.f32.mrf.mxu0
    %v6486 = vadd.f32 0.0, %v6485
    %6487 = vmatmul.f32.gmra.mxu0 %v2890
    %v6488 = vpop.f32.mrf.mxu0
    %v6489 = vadd.f32 0.0, %v6488
    %6490 = vmatmul.f32.gmra.mxu0 %v2892
    %v6491 = vpop.f32.mrf.mxu0
    %v6492 = vadd.f32 0.0, %v6491
    %6493 = vmatmul.f32.gmra.mxu0 %v2894
    %v6494 = vpop.f32.mrf.mxu0
    %v6495 = vadd.f32 0.0, %v6494
    %6496 = vmatmul.f32.gmra.mxu0 %v2896
    %v6497 = vpop.f32.mrf.mxu0
    %v6498 = vadd.f32 0.0, %v6497
    %6499 = vmatmul.f32.gmra.mxu0 %v2898
    %v6500 = vpop.f32.mrf.mxu0
    %v6501 = vadd.f32 0.0, %v6500
    %6502 = vmatmul.f32.gmra.mxu0 %v2900
    %v6503 = vpop.f32.mrf.mxu0
    %v6504 = vadd.f32 0.0, %v6503
    %6505 = vmatmul.f32.gmra.mxu0 %v2902
    %v6506 = vpop.f32.mrf.mxu0
    %v6507 = vadd.f32 0.0, %v6506
    %6508 = vmatmul.f32.gmra.mxu0 %v2904
    %v6509 = vpop.f32.mrf.mxu0
    %v6510 = vadd.f32 0.0, %v6509
    %6511 = vmatmul.f32.gmra.mxu0 %v2906
    %v6512 = vpop.f32.mrf.mxu0
    %v6513 = vadd.f32 0.0, %v6512
    %6514 = vmatmul.f32.gmra.mxu0 %v2908
    %v6515 = vpop.f32.mrf.mxu0
    %v6516 = vadd.f32 0.0, %v6515
    %6517 = vmatmul.f32.gmra.mxu0 %v2910
    %v6518 = vpop.f32.mrf.mxu0
    %v6519 = vadd.f32 0.0, %v6518
    %6520 = vmatmul.f32.gmra.mxu0 %v2912
    %v6521 = vpop.f32.mrf.mxu0
    %v6522 = vadd.f32 0.0, %v6521
    %6523 = vmatmul.f32.gmra.mxu0 %v2914
    %v6524 = vpop.f32.mrf.mxu0
    %v6525 = vadd.f32 0.0, %v6524
    %6526 = vmatmul.f32.gmra.mxu0 %v2916
    %v6527 = vpop.f32.mrf.mxu0
    %v6528 = vadd.f32 0.0, %v6527
    %6529 = vmatmul.f32.gmra.mxu0 %v2918
    %v6530 = vpop.f32.mrf.mxu0
    %v6531 = vadd.f32 0.0, %v6530
    %6532 = vmatmul.f32.gmra.mxu0 %v2920
    %v6533 = vpop.f32.mrf.mxu0
    %v6534 = vadd.f32 0.0, %v6533
    %6535 = vmatmul.f32.gmra.mxu0 %v2922
    %v6536 = vpop.f32.mrf.mxu0
    %v6537 = vadd.f32 0.0, %v6536
    %6538 = vmatmul.f32.gmra.mxu0 %v2924
    %v6539 = vpop.f32.mrf.mxu0
    %v6540 = vadd.f32 0.0, %v6539
    %6541 = vmatmul.f32.gmra.mxu0 %v2926
    %v6542 = vpop.f32.mrf.mxu0
    %v6543 = vadd.f32 0.0, %v6542
    %6544 = vmatmul.f32.gmra.mxu0 %v2928
    %v6545 = vpop.f32.mrf.mxu0
    %v6546 = vadd.f32 0.0, %v6545
    %6547 = vmatmul.f32.gmra.mxu0 %v2930
    %v6548 = vpop.f32.mrf.mxu0
    %v6549 = vadd.f32 0.0, %v6548
    %6550 = vmatmul.f32.gmra.mxu0 %v2932
    %v6551 = vpop.f32.mrf.mxu0
    %v6552 = vadd.f32 0.0, %v6551
    %6553 = vmatmul.f32.gmra.mxu0 %v2934
    %v6554 = vpop.f32.mrf.mxu0
    %v6555 = vadd.f32 0.0, %v6554
    %6556 = vmatmul.f32.gmra.mxu0 %v2936
    %v6557 = vpop.f32.mrf.mxu0
    %v6558 = vadd.f32 0.0, %v6557
    %6559 = vmatmul.f32.gmra.mxu0 %v2938
    %v6560 = vpop.f32.mrf.mxu0
    %v6561 = vadd.f32 0.0, %v6560
    %6562 = vmatmul.f32.gmra.mxu0 %v6316
    %v6563 = vpop.f32.mrf.mxu0
    %v6564 = vadd.f32 0.0, %v6563
    %6565 = vmatmul.f32.gmra.mxu0 %v6319
    %v6566 = vpop.f32.mrf.mxu0
    %v6567 = vadd.f32 0.0, %v6566
    %6568 = vmatmul.f32.gmra.mxu0 %v2944
    %v6569 = vpop.f32.mrf.mxu0
    %v6570 = vadd.f32 0.0, %v6569
    %6571 = vmatmul.f32.gmra.mxu0 %v2946
    %v6572 = vpop.f32.mrf.mxu0
    %v6573 = vadd.f32 0.0, %v6572
    %6574 = vmatmul.f32.gmra.mxu0 %v2948
    %v6575 = vpop.f32.mrf.mxu0
    %v6576 = vadd.f32 0.0, %v6575
    %6577 = vmatmul.f32.gmra.mxu0 %v2950
    %v6578 = vpop.f32.mrf.mxu0
    %v6579 = vadd.f32 0.0, %v6578
    %6580 = vmatmul.f32.gmra.mxu0 %v2952
    %v6581 = vpop.f32.mrf.mxu0
    %v6582 = vadd.f32 0.0, %v6581
    %6583 = vmatmul.f32.gmra.mxu0 %v2954
    %v6584 = vpop.f32.mrf.mxu0
    %v6585 = vadd.f32 0.0, %v6584
    %6586 = vmatmul.f32.gmra.mxu0 %v2956
    %v6587 = vpop.f32.mrf.mxu0
    %v6588 = vadd.f32 0.0, %v6587
    %6589 = vmatmul.f32.gmra.mxu0 %v2958
    %v6590 = vpop.f32.mrf.mxu0
    %v6591 = vadd.f32 0.0, %v6590
    %6592 = vmatmul.f32.gmra.mxu0 %v2960
    %v6593 = vpop.f32.mrf.mxu0
    %v6594 = vadd.f32 0.0, %v6593
    %6595 = vmatmul.f32.gmra.mxu0 %v2962
    %v6596 = vpop.f32.mrf.mxu0
    %v6597 = vadd.f32 0.0, %v6596
    %6598 = vmatmul.f32.gmra.mxu0 %v2964
    %v6599 = vpop.f32.mrf.mxu0
    %v6600 = vadd.f32 0.0, %v6599
    %6601 = vmatmul.f32.gmra.mxu0 %v2966
    %v6602 = vpop.f32.mrf.mxu0
    %v6603 = vadd.f32 0.0, %v6602
    %6604 = vmatmul.f32.gmra.mxu0 %v2968
    %v6605 = vpop.f32.mrf.mxu0
    %v6606 = vadd.f32 0.0, %v6605
    %6607 = vmatmul.f32.gmra.mxu0 %v2970
    %v6608 = vpop.f32.mrf.mxu0
    %v6609 = vadd.f32 0.0, %v6608
    %6610 = vmatmul.f32.gmra.mxu0 %v2972
    %v6611 = vpop.f32.mrf.mxu0
    %v6612 = vadd.f32 0.0, %v6611
    %6613 = vmatmul.f32.gmra.mxu0 %v2974
    %v6614 = vpop.f32.mrf.mxu0
    %v6615 = vadd.f32 0.0, %v6614
    %6616 = vmatmul.f32.gmra.mxu0 %v2976
    %v6617 = vpop.f32.mrf.mxu0
    %v6618 = vadd.f32 0.0, %v6617
    %6619 = vmatmul.f32.gmra.mxu0 %v2978
    %v6620 = vpop.f32.mrf.mxu0
    %v6621 = vadd.f32 0.0, %v6620
    %6622 = vmatmul.f32.gmra.mxu0 %v2980
    %v6623 = vpop.f32.mrf.mxu0
    %v6624 = vadd.f32 0.0, %v6623
    %6625 = vmatmul.f32.gmra.mxu0 %v2982
    %v6626 = vpop.f32.mrf.mxu0
    %v6627 = vadd.f32 0.0, %v6626
    %6628 = vmatmul.f32.gmra.mxu0 %v2984
    %v6629 = vpop.f32.mrf.mxu0
    %v6630 = vadd.f32 0.0, %v6629
    %6631 = vmatmul.f32.gmra.mxu0 %v2986
    %v6632 = vpop.f32.mrf.mxu0
    %v6633 = vadd.f32 0.0, %v6632
    %6634 = vmatmul.f32.gmra.mxu0 %v2988
    %v6635 = vpop.f32.mrf.mxu0
    %v6636 = vadd.f32 0.0, %v6635
    %6637 = vmatmul.f32.gmra.mxu0 %v2990
    %v6638 = vpop.f32.mrf.mxu0
    %v6639 = vadd.f32 0.0, %v6638
    %6640 = vmatmul.f32.gmra.mxu0 %v2992
    %v6641 = vpop.f32.mrf.mxu0
    %v6642 = vadd.f32 0.0, %v6641
    %6643 = vmatmul.f32.gmra.mxu0 %v2994
    %v6644 = vpop.f32.mrf.mxu0
    %v6645 = vadd.f32 0.0, %v6644
    %6646 = vmatmul.f32.gmra.mxu0 %v2996
    %v6647 = vpop.f32.mrf.mxu0
    %v6648 = vadd.f32 0.0, %v6647
    %6649 = vmatmul.f32.gmra.mxu0 %v2998
    %v6650 = vpop.f32.mrf.mxu0
    %v6651 = vadd.f32 0.0, %v6650
    %6652 = vmatmul.f32.gmra.mxu0 %v3000
    %v6653 = vpop.f32.mrf.mxu0
    %v6654 = vadd.f32 0.0, %v6653
    %6655 = vmatmul.f32.gmra.mxu0 %v3002
    %v6656 = vpop.f32.mrf.mxu0
    %v6657 = vadd.f32 0.0, %v6656
    %6658 = vmatmul.f32.gmra.mxu0 %v6322
    %v6659 = vpop.f32.mrf.mxu0
    %v6660 = vadd.f32 0.0, %v6659
    %6661 = vmatmul.f32.gmra.mxu0 %v6325
    %v6662 = vpop.f32.mrf.mxu0
    %v6663 = vadd.f32 0.0, %v6662
    %6664 = vmatmul.f32.gmra.mxu0 %v3008
    %v6665 = vpop.f32.mrf.mxu0
    %v6666 = vadd.f32 0.0, %v6665
    %6667 = vmatmul.f32.gmra.mxu0 %v3010
    %v6668 = vpop.f32.mrf.mxu0
    %v6669 = vadd.f32 0.0, %v6668
    %6670 = vmatmul.f32.gmra.mxu0 %v3012
    %v6671 = vpop.f32.mrf.mxu0
    %v6672 = vadd.f32 0.0, %v6671
    %6673 = vmatmul.f32.gmra.mxu0 %v3014
    %v6674 = vpop.f32.mrf.mxu0
    %v6675 = vadd.f32 0.0, %v6674
    %6676 = vmatmul.f32.gmra.mxu0 %v3016
    %v6677 = vpop.f32.mrf.mxu0
    %v6678 = vadd.f32 0.0, %v6677
    %6679 = vmatmul.f32.gmra.mxu0 %v3018
    %v6680 = vpop.f32.mrf.mxu0
    %v6681 = vadd.f32 0.0, %v6680
    %6682 = vmatmul.f32.gmra.mxu0 %v3020
    %v6683 = vpop.f32.mrf.mxu0
    %v6684 = vadd.f32 0.0, %v6683
    %6685 = vmatmul.f32.gmra.mxu0 %v3022
    %v6686 = vpop.f32.mrf.mxu0
    %v6687 = vadd.f32 0.0, %v6686
    %6688 = vmatmul.f32.gmra.mxu0 %v3024
    %v6689 = vpop.f32.mrf.mxu0
    %v6690 = vadd.f32 0.0, %v6689
    %6691 = vmatmul.f32.gmra.mxu0 %v3026
    %v6692 = vpop.f32.mrf.mxu0
    %v6693 = vadd.f32 0.0, %v6692
    %6694 = vmatmul.f32.gmra.mxu0 %v3028
    %v6695 = vpop.f32.mrf.mxu0
    %v6696 = vadd.f32 0.0, %v6695
    %6697 = vmatmul.f32.gmra.mxu0 %v3030
    %v6698 = vpop.f32.mrf.mxu0
    %v6699 = vadd.f32 0.0, %v6698
    %6700 = vmatmul.f32.gmra.mxu0 %v3032
    %v6701 = vpop.f32.mrf.mxu0
    %v6702 = vadd.f32 0.0, %v6701
    %6703 = vmatmul.f32.gmra.mxu0 %v3034
    %v6704 = vpop.f32.mrf.mxu0
    %v6705 = vadd.f32 0.0, %v6704
    %6706 = vmatmul.f32.gmra.mxu0 %v3036
    %v6707 = vpop.f32.mrf.mxu0
    %v6708 = vadd.f32 0.0, %v6707
    %6709 = vmatmul.f32.gmra.mxu0 %v3038
    %v6710 = vpop.f32.mrf.mxu0
    %v6711 = vadd.f32 0.0, %v6710
    %6712 = vmatmul.f32.gmra.mxu0 %v3040
    %v6713 = vpop.f32.mrf.mxu0
    %v6714 = vadd.f32 0.0, %v6713
    %6715 = vmatmul.f32.gmra.mxu0 %v3042
    %v6716 = vpop.f32.mrf.mxu0
    %v6717 = vadd.f32 0.0, %v6716
    %6718 = vmatmul.f32.gmra.mxu0 %v3044
    %v6719 = vpop.f32.mrf.mxu0
    %v6720 = vadd.f32 0.0, %v6719
    %6721 = vmatmul.f32.gmra.mxu0 %v3046
    %v6722 = vpop.f32.mrf.mxu0
    %v6723 = vadd.f32 0.0, %v6722
    %6724 = vmatmul.f32.gmra.mxu0 %v3048
    %v6725 = vpop.f32.mrf.mxu0
    %v6726 = vadd.f32 0.0, %v6725
    %6727 = vmatmul.f32.gmra.mxu0 %v3050
    %v6728 = vpop.f32.mrf.mxu0
    %v6729 = vadd.f32 0.0, %v6728
    %6730 = vmatmul.f32.gmra.mxu0 %v3052
    %v6731 = vpop.f32.mrf.mxu0
    %v6732 = vadd.f32 0.0, %v6731
    %6733 = vmatmul.f32.gmra.mxu0 %v3054
    %v6734 = vpop.f32.mrf.mxu0
    %v6735 = vadd.f32 0.0, %v6734
    %6736 = vmatmul.f32.gmra.mxu0 %v3056
    %v6737 = vpop.f32.mrf.mxu0
    %v6738 = vadd.f32 0.0, %v6737
    %6739 = vmatmul.f32.gmra.mxu0 %v3058
    %v6740 = vpop.f32.mrf.mxu0
    %v6741 = vadd.f32 0.0, %v6740
    %6742 = vmatmul.f32.gmra.mxu0 %v3060
    %v6743 = vpop.f32.mrf.mxu0
    %v6744 = vadd.f32 0.0, %v6743
    %6745 = vmatmul.f32.gmra.mxu0 %v3062
    %v6746 = vpop.f32.mrf.mxu0
    %v6747 = vadd.f32 0.0, %v6746
    %6748 = vmatmul.f32.gmra.mxu0 %v3064
    %v6749 = vpop.f32.mrf.mxu0
    %v6750 = vadd.f32 0.0, %v6749
    %6751 = vmatmul.f32.gmra.mxu0 %v3066
    %v6752 = vpop.f32.mrf.mxu0
    %v6753 = vadd.f32 0.0, %v6752
    %6754 = vmatmul.f32.gmra.mxu0 %v6328
    %v6755 = vpop.f32.mrf.mxu0
    %v6756 = vadd.f32 0.0, %v6755
    %6757 = vmatmul.f32.gmra.mxu0 %v6331
    %v6758 = vpop.f32.mrf.mxu0
    %v6759 = vadd.f32 0.0, %v6758
    %6760 = vmatmul.f32.gmra.mxu0 %v3072
    %v6761 = vpop.f32.mrf.mxu0
    %v6762 = vadd.f32 0.0, %v6761
    %6763 = vmatmul.f32.gmra.mxu0 %v3074
    %v6764 = vpop.f32.mrf.mxu0
    %v6765 = vadd.f32 0.0, %v6764
    %6766 = vmatmul.f32.gmra.mxu0 %v3076
    %v6767 = vpop.f32.mrf.mxu0
    %v6768 = vadd.f32 0.0, %v6767
    %6769 = vmatmul.f32.gmra.mxu0 %v3078
    %v6770 = vpop.f32.mrf.mxu0
    %v6771 = vadd.f32 0.0, %v6770
    %6772 = vmatmul.f32.gmra.mxu0 %v3080
    %v6773 = vpop.f32.mrf.mxu0
    %v6774 = vadd.f32 0.0, %v6773
    %6775 = vmatmul.f32.gmra.mxu0 %v3082
    %v6776 = vpop.f32.mrf.mxu0
    %v6777 = vadd.f32 0.0, %v6776
    %6778 = vmatmul.f32.gmra.mxu0 %v3084
    %v6779 = vpop.f32.mrf.mxu0
    %v6780 = vadd.f32 0.0, %v6779
    %6781 = vmatmul.f32.gmra.mxu0 %v3086
    %v6782 = vpop.f32.mrf.mxu0
    %v6783 = vadd.f32 0.0, %v6782
    %6784 = vmatmul.f32.gmra.mxu0 %v3088
    %v6785 = vpop.f32.mrf.mxu0
    %v6786 = vadd.f32 0.0, %v6785
    %6787 = vmatmul.f32.gmra.mxu0 %v3090
    %v6788 = vpop.f32.mrf.mxu0
    %v6789 = vadd.f32 0.0, %v6788
    %6790 = vmatmul.f32.gmra.mxu0 %v3092
    %v6791 = vpop.f32.mrf.mxu0
    %v6792 = vadd.f32 0.0, %v6791
    %6793 = vmatmul.f32.gmra.mxu0 %v3094
    %v6794 = vpop.f32.mrf.mxu0
    %v6795 = vadd.f32 0.0, %v6794
    %6796 = vmatmul.f32.gmra.mxu0 %v3096
    %v6797 = vpop.f32.mrf.mxu0
    %v6798 = vadd.f32 0.0, %v6797
    %6799 = vmatmul.f32.gmra.mxu0 %v3098
    %v6800 = vpop.f32.mrf.mxu0
    %v6801 = vadd.f32 0.0, %v6800
    %6802 = vmatmul.f32.gmra.mxu0 %v3100
    %v6803 = vpop.f32.mrf.mxu0
    %v6804 = vadd.f32 0.0, %v6803
    %6805 = vmatmul.f32.gmra.mxu0 %v3102
    %v6806 = vpop.f32.mrf.mxu0
    %v6807 = vadd.f32 0.0, %v6806
    %6808 = vmatmul.f32.gmra.mxu0 %v3104
    %v6809 = vpop.f32.mrf.mxu0
    %v6810 = vadd.f32 0.0, %v6809
    %6811 = vmatmul.f32.gmra.mxu0 %v3106
    %v6812 = vpop.f32.mrf.mxu0
    %v6813 = vadd.f32 0.0, %v6812
    %6814 = vmatmul.f32.gmra.mxu0 %v3108
    %v6815 = vpop.f32.mrf.mxu0
    %v6816 = vadd.f32 0.0, %v6815
    %6817 = vmatmul.f32.gmra.mxu0 %v3110
    %v6818 = vpop.f32.mrf.mxu0
    %v6819 = vadd.f32 0.0, %v6818
    %6820 = vmatmul.f32.gmra.mxu0 %v3112
    %v6821 = vpop.f32.mrf.mxu0
    %v6822 = vadd.f32 0.0, %v6821
    %6823 = vmatmul.f32.gmra.mxu0 %v3114
    %v6824 = vpop.f32.mrf.mxu0
    %v6825 = vadd.f32 0.0, %v6824
    %6826 = vmatmul.f32.gmra.mxu0 %v3116
    %v6827 = vpop.f32.mrf.mxu0
    %v6828 = vadd.f32 0.0, %v6827
    %6829 = vmatmul.f32.gmra.mxu0 %v3118
    %v6830 = vpop.f32.mrf.mxu0
    %v6831 = vadd.f32 0.0, %v6830
    %6832 = vmatmul.f32.gmra.mxu0 %v3120
    %v6833 = vpop.f32.mrf.mxu0
    %v6834 = vadd.f32 0.0, %v6833
    %6835 = vmatmul.f32.gmra.mxu0 %v3122
    %v6836 = vpop.f32.mrf.mxu0
    %v6837 = vadd.f32 0.0, %v6836
    %6838 = vmatmul.f32.gmra.mxu0 %v3124
    %v6839 = vpop.f32.mrf.mxu0
    %v6840 = vadd.f32 0.0, %v6839
    %6841 = vmatmul.f32.gmra.mxu0 %v3126
    %v6842 = vpop.f32.mrf.mxu0
    %v6843 = vadd.f32 0.0, %v6842
    %6844 = vmatmul.f32.gmra.mxu0 %v3128
    %v6845 = vpop.f32.mrf.mxu0
    %v6846 = vadd.f32 0.0, %v6845
    %6847 = vmatmul.f32.gmra.mxu0 %v3130
    %v6848 = vpop.f32.mrf.mxu0
    %v6849 = vadd.f32 0.0, %v6848
    %6850 = vmatmul.f32.gmra.mxu0 %v6334
    %v6851 = vpop.f32.mrf.mxu0
    %v6852 = vadd.f32 0.0, %v6851
    %6853 = vmatmul.f32.gmra.mxu0 %v6337
    %v6854 = vpop.f32.mrf.mxu0
    %v6855 = vadd.f32 0.0, %v6854
    %6856 = vmatmul.f32.gmra.mxu0 %v3136
    %v6857 = vpop.f32.mrf.mxu0
    %v6858 = vadd.f32 0.0, %v6857
    %6859 = vmatmul.f32.gmra.mxu0 %v3138
    %v6860 = vpop.f32.mrf.mxu0
    %v6861 = vadd.f32 0.0, %v6860
    %6862 = vmatmul.f32.gmra.mxu0 %v3140
    %v6863 = vpop.f32.mrf.mxu0
    %v6864 = vadd.f32 0.0, %v6863
    %6865 = vmatmul.f32.gmra.mxu0 %v3142
    %v6866 = vpop.f32.mrf.mxu0
    %v6867 = vadd.f32 0.0, %v6866
    %6868 = vmatmul.f32.gmra.mxu0 %v3144
    %v6869 = vpop.f32.mrf.mxu0
    %v6870 = vadd.f32 0.0, %v6869
    %6871 = vmatmul.f32.gmra.mxu0 %v3146
    %v6872 = vpop.f32.mrf.mxu0
    %v6873 = vadd.f32 0.0, %v6872
    %6874 = vmatmul.f32.gmra.mxu0 %v3148
    %v6875 = vpop.f32.mrf.mxu0
    %v6876 = vadd.f32 0.0, %v6875
    %6877 = vmatmul.f32.gmra.mxu0 %v3150
    %v6878 = vpop.f32.mrf.mxu0
    %v6879 = vadd.f32 0.0, %v6878
    %6880 = vmatmul.f32.gmra.mxu0 %v3152
    %v6881 = vpop.f32.mrf.mxu0
    %v6882 = vadd.f32 0.0, %v6881
    %6883 = vmatmul.f32.gmra.mxu0 %v3154
    %v6884 = vpop.f32.mrf.mxu0
    %v6885 = vadd.f32 0.0, %v6884
    %6886 = vmatmul.f32.gmra.mxu0 %v3156
    %v6887 = vpop.f32.mrf.mxu0
    %v6888 = vadd.f32 0.0, %v6887
    %6889 = vmatmul.f32.gmra.mxu0 %v3158
    %v6890 = vpop.f32.mrf.mxu0
    %v6891 = vadd.f32 0.0, %v6890
    %6892 = vmatmul.f32.gmra.mxu0 %v3160
    %v6893 = vpop.f32.mrf.mxu0
    %v6894 = vadd.f32 0.0, %v6893
    %6895 = vmatmul.f32.gmra.mxu0 %v3162
    %v6896 = vpop.f32.mrf.mxu0
    %v6897 = vadd.f32 0.0, %v6896
    %6898 = vmatmul.f32.gmra.mxu0 %v3164
    %v6899 = vpop.f32.mrf.mxu0
    %v6900 = vadd.f32 0.0, %v6899
    %6901 = vmatmul.f32.gmra.mxu0 %v3166
    %v6902 = vpop.f32.mrf.mxu0
    %v6903 = vadd.f32 0.0, %v6902
    %6904 = vmatmul.f32.gmra.mxu0 %v3168
    %v6905 = vpop.f32.mrf.mxu0
    %v6906 = vadd.f32 0.0, %v6905
    %6907 = vmatmul.f32.gmra.mxu0 %v3170
    %v6908 = vpop.f32.mrf.mxu0
    %v6909 = vadd.f32 0.0, %v6908
    %6910 = vmatmul.f32.gmra.mxu0 %v3172
    %v6911 = vpop.f32.mrf.mxu0
    %v6912 = vadd.f32 0.0, %v6911
    %6913 = vmatmul.f32.gmra.mxu0 %v3174
    %v6914 = vpop.f32.mrf.mxu0
    %v6915 = vadd.f32 0.0, %v6914
    %6916 = vmatmul.f32.gmra.mxu0 %v3176
    %v6917 = vpop.f32.mrf.mxu0
    %v6918 = vadd.f32 0.0, %v6917
    %6919 = vmatmul.f32.gmra.mxu0 %v3178
    %v6920 = vpop.f32.mrf.mxu0
    %v6921 = vadd.f32 0.0, %v6920
    %6922 = vmatmul.f32.gmra.mxu0 %v3180
    %v6923 = vpop.f32.mrf.mxu0
    %v6924 = vadd.f32 0.0, %v6923
    %6925 = vmatmul.f32.gmra.mxu0 %v3182
    %v6926 = vpop.f32.mrf.mxu0
    %v6927 = vadd.f32 0.0, %v6926
    %6928 = vmatmul.f32.gmra.mxu0 %v3184
    %v6929 = vpop.f32.mrf.mxu0
    %v6930 = vadd.f32 0.0, %v6929
    %6931 = vmatmul.f32.gmra.mxu0 %v3186
    %v6932 = vpop.f32.mrf.mxu0
    %v6933 = vadd.f32 0.0, %v6932
    %6934 = vmatmul.f32.gmra.mxu0 %v3188
    %v6935 = vpop.f32.mrf.mxu0
    %v6936 = vadd.f32 0.0, %v6935
    %6937 = vmatmul.f32.gmra.mxu0 %v3190
    %v6938 = vpop.f32.mrf.mxu0
    %v6939 = vadd.f32 0.0, %v6938
    %6940 = vmatmul.f32.gmra.mxu0 %v3192
    %v6941 = vpop.f32.mrf.mxu0
    %v6942 = vadd.f32 0.0, %v6941
    %6943 = vmatmul.f32.gmra.mxu0 %v3194
    %v6944 = vpop.f32.mrf.mxu0
    %v6945 = vadd.f32 0.0, %v6944
    %6946 = vmatmul.f32.gmra.mxu0 %v6340
    %v6947 = vpop.f32.mrf.mxu0
    %v6948 = vadd.f32 0.0, %v6947
    %6949 = vmatmul.f32.gmra.mxu0 %v6343
    %v6950 = vpop.f32.mrf.mxu0
    %v6951 = vadd.f32 0.0, %v6950
    %6952 = vmatmul.f32.gmra.mxu0 %v3200
    %v6953 = vpop.f32.mrf.mxu0
    %v6954 = vadd.f32 0.0, %v6953
    %6955 = vmatmul.f32.gmra.mxu0 %v3202
    %v6956 = vpop.f32.mrf.mxu0
    %v6957 = vadd.f32 0.0, %v6956
    %6958 = vmatmul.f32.gmra.mxu0 %v3204
    %v6959 = vpop.f32.mrf.mxu0
    %v6960 = vadd.f32 0.0, %v6959
    %6961 = vmatmul.f32.gmra.mxu0 %v3206
    %v6962 = vpop.f32.mrf.mxu0
    %v6963 = vadd.f32 0.0, %v6962
    %6964 = vmatmul.f32.gmra.mxu0 %v3208
    %v6965 = vpop.f32.mrf.mxu0
    %v6966 = vadd.f32 0.0, %v6965
    %6967 = vmatmul.f32.gmra.mxu0 %v3210
    %v6968 = vpop.f32.mrf.mxu0
    %v6969 = vadd.f32 0.0, %v6968
    %6970 = vmatmul.f32.gmra.mxu0 %v3212
    %v6971 = vpop.f32.mrf.mxu0
    %v6972 = vadd.f32 0.0, %v6971
    %6973 = vmatmul.f32.gmra.mxu0 %v3214
    %v6974 = vpop.f32.mrf.mxu0
    %v6975 = vadd.f32 0.0, %v6974
    %6976 = vmatmul.f32.gmra.mxu0 %v3216
    %v6977 = vpop.f32.mrf.mxu0
    %v6978 = vadd.f32 0.0, %v6977
    %6979 = vmatmul.f32.gmra.mxu0 %v3218
    %v6980 = vpop.f32.mrf.mxu0
    %v6981 = vadd.f32 0.0, %v6980
    %6982 = vmatmul.f32.gmra.mxu0 %v3220
    %v6983 = vpop.f32.mrf.mxu0
    %v6984 = vadd.f32 0.0, %v6983
    %6985 = vmatmul.f32.gmra.mxu0 %v3222
    %v6986 = vpop.f32.mrf.mxu0
    %v6987 = vadd.f32 0.0, %v6986
    %6988 = vmatmul.f32.gmra.mxu0 %v3224
    %v6989 = vpop.f32.mrf.mxu0
    %v6990 = vadd.f32 0.0, %v6989
    %6991 = vmatmul.f32.gmra.mxu0 %v3226
    %v6992 = vpop.f32.mrf.mxu0
    %v6993 = vadd.f32 0.0, %v6992
    %6994 = vmatmul.f32.gmra.mxu0 %v3228
    %v6995 = vpop.f32.mrf.mxu0
    %v6996 = vadd.f32 0.0, %v6995
    %6997 = vmatmul.f32.gmra.mxu0 %v3230
    %v6998 = vpop.f32.mrf.mxu0
    %v6999 = vadd.f32 0.0, %v6998
    %7000 = vmatmul.f32.gmra.mxu0 %v3232
    %v7001 = vpop.f32.mrf.mxu0
    %v7002 = vadd.f32 0.0, %v7001
    %7003 = vmatmul.f32.gmra.mxu0 %v3234
    %v7004 = vpop.f32.mrf.mxu0
    %v7005 = vadd.f32 0.0, %v7004
    %7006 = vmatmul.f32.gmra.mxu0 %v3236
    %v7007 = vpop.f32.mrf.mxu0
    %v7008 = vadd.f32 0.0, %v7007
    %7009 = vmatmul.f32.gmra.mxu0 %v3238
    %v7010 = vpop.f32.mrf.mxu0
    %v7011 = vadd.f32 0.0, %v7010
    %7012 = vmatmul.f32.gmra.mxu0 %v3240
    %v7013 = vpop.f32.mrf.mxu0
    %v7014 = vadd.f32 0.0, %v7013
    %7015 = vmatmul.f32.gmra.mxu0 %v3242
    %v7016 = vpop.f32.mrf.mxu0
    %v7017 = vadd.f32 0.0, %v7016
    %7018 = vmatmul.f32.gmra.mxu0 %v3244
    %v7019 = vpop.f32.mrf.mxu0
    %v7020 = vadd.f32 0.0, %v7019
    %7021 = vmatmul.f32.gmra.mxu0 %v3246
    %v7022 = vpop.f32.mrf.mxu0
    %v7023 = vadd.f32 0.0, %v7022
    %7024 = vmatmul.f32.gmra.mxu0 %v3248
    %v7025 = vpop.f32.mrf.mxu0
    %v7026 = vadd.f32 0.0, %v7025
    %7027 = vmatmul.f32.gmra.mxu0 %v3250
    %v7028 = vpop.f32.mrf.mxu0
    %v7029 = vadd.f32 0.0, %v7028
    %7030 = vmatmul.f32.gmra.mxu0 %v3252
    %v7031 = vpop.f32.mrf.mxu0
    %v7032 = vadd.f32 0.0, %v7031
    %7033 = vmatmul.f32.gmra.mxu0 %v3254
    %v7034 = vpop.f32.mrf.mxu0
    %v7035 = vadd.f32 0.0, %v7034
    %7036 = vmatmul.f32.gmra.mxu0 %v3256
    %v7037 = vpop.f32.mrf.mxu0
    %v7038 = vadd.f32 0.0, %v7037
    %7039 = vmatmul.f32.gmra.mxu0 %v3258
    %v7040 = vpop.f32.mrf.mxu0
    %v7041 = vadd.f32 0.0, %v7040
    %7042 = vmatmul.f32.gmra.mxu0 %v6346
    %v7043 = vpop.f32.mrf.mxu0
    %v7044 = vadd.f32 0.0, %v7043
    %7045 = vmatmul.f32.gmra.mxu0 %v6349
    %v7046 = vpop.f32.mrf.mxu0
    %v7047 = vadd.f32 0.0, %v7046
    %7048 = vmatmul.f32.gmra.mxu0 %v3264
    %v7049 = vpop.f32.mrf.mxu0
    %v7050 = vadd.f32 0.0, %v7049
    %7051 = vmatmul.f32.gmra.mxu0 %v3266
    %v7052 = vpop.f32.mrf.mxu0
    %v7053 = vadd.f32 0.0, %v7052
    %7054 = vmatmul.f32.gmra.mxu0 %v3268
    %v7055 = vpop.f32.mrf.mxu0
    %v7056 = vadd.f32 0.0, %v7055
    %7057 = vmatmul.f32.gmra.mxu0 %v3270
    %v7058 = vpop.f32.mrf.mxu0
    %v7059 = vadd.f32 0.0, %v7058
    %7060 = vmatmul.f32.gmra.mxu0 %v3272
    %v7061 = vpop.f32.mrf.mxu0
    %v7062 = vadd.f32 0.0, %v7061
    %7063 = vmatmul.f32.gmra.mxu0 %v3274
    %v7064 = vpop.f32.mrf.mxu0
    %v7065 = vadd.f32 0.0, %v7064
    %7066 = vmatmul.f32.gmra.mxu0 %v3276
    %v7067 = vpop.f32.mrf.mxu0
    %v7068 = vadd.f32 0.0, %v7067
    %7069 = vmatmul.f32.gmra.mxu0 %v3278
    %v7070 = vpop.f32.mrf.mxu0
    %v7071 = vadd.f32 0.0, %v7070
    %7072 = vmatmul.f32.gmra.mxu0 %v3280
    %v7073 = vpop.f32.mrf.mxu0
    %v7074 = vadd.f32 0.0, %v7073
    %7075 = vmatmul.f32.gmra.mxu0 %v3282
    %v7076 = vpop.f32.mrf.mxu0
    %v7077 = vadd.f32 0.0, %v7076
    %7078 = vmatmul.f32.gmra.mxu0 %v3284
    %v7079 = vpop.f32.mrf.mxu0
    %v7080 = vadd.f32 0.0, %v7079
    %7081 = vmatmul.f32.gmra.mxu0 %v3286
    %v7082 = vpop.f32.mrf.mxu0
    %v7083 = vadd.f32 0.0, %v7082
    %7084 = vmatmul.f32.gmra.mxu0 %v3288
    %v7085 = vpop.f32.mrf.mxu0
    %v7086 = vadd.f32 0.0, %v7085
    %7087 = vmatmul.f32.gmra.mxu0 %v3290
    %v7088 = vpop.f32.mrf.mxu0
    %v7089 = vadd.f32 0.0, %v7088
    %7090 = vmatmul.f32.gmra.mxu0 %v3292
    %v7091 = vpop.f32.mrf.mxu0
    %v7092 = vadd.f32 0.0, %v7091
    %7093 = vmatmul.f32.gmra.mxu0 %v3294
    %v7094 = vpop.f32.mrf.mxu0
    %v7095 = vadd.f32 0.0, %v7094
    %7096 = vmatmul.f32.gmra.mxu0 %v3296
    %v7097 = vpop.f32.mrf.mxu0
    %v7098 = vadd.f32 0.0, %v7097
    %7099 = vmatmul.f32.gmra.mxu0 %v3298
    %v7100 = vpop.f32.mrf.mxu0
    %v7101 = vadd.f32 0.0, %v7100
    %7102 = vmatmul.f32.gmra.mxu0 %v3300
    %v7103 = vpop.f32.mrf.mxu0
    %v7104 = vadd.f32 0.0, %v7103
    %7105 = vmatmul.f32.gmra.mxu0 %v3302
    %v7106 = vpop.f32.mrf.mxu0
    %v7107 = vadd.f32 0.0, %v7106
    %7108 = vmatmul.f32.gmra.mxu0 %v3304
    %v7109 = vpop.f32.mrf.mxu0
    %v7110 = vadd.f32 0.0, %v7109
    %7111 = vmatmul.f32.gmra.mxu0 %v3306
    %v7112 = vpop.f32.mrf.mxu0
    %v7113 = vadd.f32 0.0, %v7112
    %7114 = vmatmul.f32.gmra.mxu0 %v3308
    %v7115 = vpop.f32.mrf.mxu0
    %v7116 = vadd.f32 0.0, %v7115
    %7117 = vmatmul.f32.gmra.mxu0 %v3310
    %v7118 = vpop.f32.mrf.mxu0
    %v7119 = vadd.f32 0.0, %v7118
    %7120 = vmatmul.f32.gmra.mxu0 %v3312
    %v7121 = vpop.f32.mrf.mxu0
    %v7122 = vadd.f32 0.0, %v7121
    %7123 = vmatmul.f32.gmra.mxu0 %v3314
    %v7124 = vpop.f32.mrf.mxu0
    %v7125 = vadd.f32 0.0, %v7124
    %7126 = vmatmul.f32.gmra.mxu0 %v3316
    %v7127 = vpop.f32.mrf.mxu0
    %v7128 = vadd.f32 0.0, %v7127
    %7129 = vmatmul.f32.gmra.mxu0 %v3318
    %v7130 = vpop.f32.mrf.mxu0
    %v7131 = vadd.f32 0.0, %v7130
    %7132 = vmatmul.f32.gmra.mxu0 %v3320
    %v7133 = vpop.f32.mrf.mxu0
    %v7134 = vadd.f32 0.0, %v7133
    %7135 = vmatmul.f32.gmra.mxu0 %v3322
    %v7136 = vpop.f32.mrf.mxu0
    %v7137 = vadd.f32 0.0, %v7136
    %7138 = vmatmul.f32.gmra.mxu0 %v6352
    %v7139 = vpop.f32.mrf.mxu0
    %v7140 = vadd.f32 0.0, %v7139
    %7141 = vmatmul.f32.gmra.mxu0 %v6355
    %v7142 = vpop.f32.mrf.mxu0
    %v7143 = vadd.f32 0.0, %v7142
    %7144 = vdwg.mxu0
    %v7145 = vadd.f32 %v6053, %v6378
    %v7146 = vadd.f32 %v6054, %v6381
    %v7147 = vadd.f32 %v6055, %v6384
    %v7148 = vadd.f32 %v6056, %v6387
    %v7149 = vadd.f32 %v6057, %v6390
    %v7150 = vadd.f32 %v6058, %v6393
    %v7151 = vadd.f32 %v6059, %v6396
    %v7152 = vadd.f32 %v6060, %v6399
    %v7153 = vadd.f32 %v6061, %v6402
    %v7154 = vadd.f32 %v6062, %v6405
    %v7155 = vadd.f32 %v6063, %v6408
    %v7156 = vadd.f32 %v6064, %v6411
    %v7157 = vadd.f32 %v6065, %v6414
    %v7158 = vadd.f32 %v6066, %v6417
    %v7159 = vadd.f32 %v6067, %v6420
    %v7160 = vadd.f32 %v6068, %v6423
    %v7161 = vadd.f32 %v6069, %v6426
    %v7162 = vadd.f32 %v6070, %v6429
    %v7163 = vadd.f32 %v6071, %v6432
    %v7164 = vadd.f32 %v6072, %v6435
    %v7165 = vadd.f32 %v6073, %v6438
    %v7166 = vadd.f32 %v6074, %v6441
    %v7167 = vadd.f32 %v6075, %v6444
    %v7168 = vadd.f32 %v6076, %v6447
    %v7169 = vadd.f32 %v6077, %v6450
    %v7170 = vadd.f32 %v6078, %v6453
    %v7171 = vadd.f32 %v6079, %v6456
    %v7172 = vadd.f32 %v6080, %v6459
    %v7173 = vadd.f32 %v6081, %v6462
    %v7174 = vadd.f32 %v6082, %v6465
    %v7175 = vadd.f32 %v6083, %v6468
    %v7176 = vadd.f32 %v6084, %v6471
    %v7177 = vadd.f32 %v6085, %v6474
    %v7178 = vadd.f32 %v6086, %v6477
    %v7179 = vadd.f32 %v6087, %v6480
    %v7180 = vadd.f32 %v6088, %v6483
    %v7181 = vadd.f32 %v6089, %v6486
    %v7182 = vadd.f32 %v6090, %v6489
    %v7183 = vadd.f32 %v6091, %v6492
    %v7184 = vadd.f32 %v6092, %v6495
    %v7185 = vadd.f32 %v6093, %v6498
    %v7186 = vadd.f32 %v6094, %v6501
    %v7187 = vadd.f32 %v6095, %v6504
    %v7188 = vadd.f32 %v6096, %v6507
    %v7189 = vadd.f32 %v6097, %v6510
    %v7190 = vadd.f32 %v6098, %v6513
    %v7191 = vadd.f32 %v6099, %v6516
    %v7192 = vadd.f32 %v6100, %v6519
    %v7193 = vadd.f32 %v6101, %v6522
    %v7194 = vadd.f32 %v6102, %v6525
    %v7195 = vadd.f32 %v6103, %v6528
    %v7196 = vadd.f32 %v6104, %v6531
    %v7197 = vadd.f32 %v6105, %v6534
    %v7198 = vadd.f32 %v6106, %v6537
    %v7199 = vadd.f32 %v6107, %v6540
    %v7200 = vadd.f32 %v6108, %v6543
    %v7201 = vadd.f32 %v6109, %v6546
    %v7202 = vadd.f32 %v6110, %v6549
    %v7203 = vadd.f32 %v6111, %v6552
    %v7204 = vadd.f32 %v6112, %v6555
    %v7205 = vadd.f32 %v6113, %v6558
    %v7206 = vadd.f32 %v6114, %v6561
    %v7207 = vadd.f32 %v6115, %v6564
    %v7208 = vadd.f32 %v6116, %v6567
    %v7209 = vadd.f32 %v6117, %v6570
    %v7210 = vadd.f32 %v6118, %v6573
    %v7211 = vadd.f32 %v6119, %v6576
    %v7212 = vadd.f32 %v6120, %v6579
    %v7213 = vadd.f32 %v6121, %v6582
    %v7214 = vadd.f32 %v6122, %v6585
    %v7215 = vadd.f32 %v6123, %v6588
    %v7216 = vadd.f32 %v6124, %v6591
    %v7217 = vadd.f32 %v6125, %v6594
    %v7218 = vadd.f32 %v6126, %v6597
    %v7219 = vadd.f32 %v6127, %v6600
    %v7220 = vadd.f32 %v6128, %v6603
    %v7221 = vadd.f32 %v6129, %v6606
    %v7222 = vadd.f32 %v6130, %v6609
    %v7223 = vadd.f32 %v6131, %v6612
    %v7224 = vadd.f32 %v6132, %v6615
    %v7225 = vadd.f32 %v6133, %v6618
    %v7226 = vadd.f32 %v6134, %v6621
    %v7227 = vadd.f32 %v6135, %v6624
    %v7228 = vadd.f32 %v6136, %v6627
    %v7229 = vadd.f32 %v6137, %v6630
    %v7230 = vadd.f32 %v6138, %v6633
    %v7231 = vadd.f32 %v6139, %v6636
    %v7232 = vadd.f32 %v6140, %v6639
    %v7233 = vadd.f32 %v6141, %v6642
    %v7234 = vadd.f32 %v6142, %v6645
    %v7235 = vadd.f32 %v6143, %v6648
    %v7236 = vadd.f32 %v6144, %v6651
    %v7237 = vadd.f32 %v6145, %v6654
    %v7238 = vadd.f32 %v6146, %v6657
    %v7239 = vadd.f32 %v6147, %v6660
    %v7240 = vadd.f32 %v6148, %v6663
    %v7241 = vadd.f32 %v6149, %v6666
    %v7242 = vadd.f32 %v6150, %v6669
    %v7243 = vadd.f32 %v6151, %v6672
    %v7244 = vadd.f32 %v6152, %v6675
    %v7245 = vadd.f32 %v6153, %v6678
    %v7246 = vadd.f32 %v6154, %v6681
    %v7247 = vadd.f32 %v6155, %v6684
    %v7248 = vadd.f32 %v6156, %v6687
    %v7249 = vadd.f32 %v6157, %v6690
    %v7250 = vadd.f32 %v6158, %v6693
    %v7251 = vadd.f32 %v6159, %v6696
    %v7252 = vadd.f32 %v6160, %v6699
    %v7253 = vadd.f32 %v6161, %v6702
    %v7254 = vadd.f32 %v6162, %v6705
    %v7255 = vadd.f32 %v6163, %v6708
    %v7256 = vadd.f32 %v6164, %v6711
    %v7257 = vadd.f32 %v6165, %v6714
    %v7258 = vadd.f32 %v6166, %v6717
    %v7259 = vadd.f32 %v6167, %v6720
    %v7260 = vadd.f32 %v6168, %v6723
    %v7261 = vadd.f32 %v6169, %v6726
    %v7262 = vadd.f32 %v6170, %v6729
    %v7263 = vadd.f32 %v6171, %v6732
    %v7264 = vadd.f32 %v6172, %v6735
    %v7265 = vadd.f32 %v6173, %v6738
    %v7266 = vadd.f32 %v6174, %v6741
    %v7267 = vadd.f32 %v6175, %v6744
    %v7268 = vadd.f32 %v6176, %v6747
    %v7269 = vadd.f32 %v6177, %v6750
    %v7270 = vadd.f32 %v6178, %v6753
    %v7271 = vadd.f32 %v6179, %v6756
    %v7272 = vadd.f32 %v6180, %v6759
    %v7273 = vadd.f32 %v6181, %v6762
    %v7274 = vadd.f32 %v6182, %v6765
    %v7275 = vadd.f32 %v6183, %v6768
    %v7276 = vadd.f32 %v6184, %v6771
    %v7277 = vadd.f32 %v6185, %v6774
    %v7278 = vadd.f32 %v6186, %v6777
    %v7279 = vadd.f32 %v6187, %v6780
    %v7280 = vadd.f32 %v6188, %v6783
    %v7281 = vadd.f32 %v6189, %v6786
    %v7282 = vadd.f32 %v6190, %v6789
    %v7283 = vadd.f32 %v6191, %v6792
    %v7284 = vadd.f32 %v6192, %v6795
    %v7285 = vadd.f32 %v6193, %v6798
    %v7286 = vadd.f32 %v6194, %v6801
    %v7287 = vadd.f32 %v6195, %v6804
    %v7288 = vadd.f32 %v6196, %v6807
    %v7289 = vadd.f32 %v6197, %v6810
    %v7290 = vadd.f32 %v6198, %v6813
    %v7291 = vadd.f32 %v6199, %v6816
    %v7292 = vadd.f32 %v6200, %v6819
    %v7293 = vadd.f32 %v6201, %v6822
    %v7294 = vadd.f32 %v6202, %v6825
    %v7295 = vadd.f32 %v6203, %v6828
    %v7296 = vadd.f32 %v6204, %v6831
    %v7297 = vadd.f32 %v6205, %v6834
    %v7298 = vadd.f32 %v6206, %v6837
    %v7299 = vadd.f32 %v6207, %v6840
    %v7300 = vadd.f32 %v6208, %v6843
    %v7301 = vadd.f32 %v6209, %v6846
    %v7302 = vadd.f32 %v6210, %v6849
    %v7303 = vadd.f32 %v6211, %v6852
    %v7304 = vadd.f32 %v6212, %v6855
    %v7305 = vadd.f32 %v6213, %v6858
    %v7306 = vadd.f32 %v6214, %v6861
    %v7307 = vadd.f32 %v6215, %v6864
    %v7308 = vadd.f32 %v6216, %v6867
    %v7309 = vadd.f32 %v6217, %v6870
    %v7310 = vadd.f32 %v6218, %v6873
    %v7311 = vadd.f32 %v6219, %v6876
    %v7312 = vadd.f32 %v6220, %v6879
    %v7313 = vadd.f32 %v6221, %v6882
    %v7314 = vadd.f32 %v6222, %v6885
    %v7315 = vadd.f32 %v6223, %v6888
    %v7316 = vadd.f32 %v6224, %v6891
    %v7317 = vadd.f32 %v6225, %v6894
    %v7318 = vadd.f32 %v6226, %v6897
    %v7319 = vadd.f32 %v6227, %v6900
    %v7320 = vadd.f32 %v6228, %v6903
    %v7321 = vadd.f32 %v6229, %v6906
    %v7322 = vadd.f32 %v6230, %v6909
    %v7323 = vadd.f32 %v6231, %v6912
    %v7324 = vadd.f32 %v6232, %v6915
    %v7325 = vadd.f32 %v6233, %v6918
    %v7326 = vadd.f32 %v6234, %v6921
    %v7327 = vadd.f32 %v6235, %v6924
    %v7328 = vadd.f32 %v6236, %v6927
    %v7329 = vadd.f32 %v6237, %v6930
    %v7330 = vadd.f32 %v6238, %v6933
    %v7331 = vadd.f32 %v6239, %v6936
    %v7332 = vadd.f32 %v6240, %v6939
    %v7333 = vadd.f32 %v6241, %v6942
    %v7334 = vadd.f32 %v6242, %v6945
    %v7335 = vadd.f32 %v6243, %v6948
    %v7336 = vadd.f32 %v6244, %v6951
    %v7337 = vadd.f32 %v6245, %v6954
    %v7338 = vadd.f32 %v6246, %v6957
    %v7339 = vadd.f32 %v6247, %v6960
    %v7340 = vadd.f32 %v6248, %v6963
    %v7341 = vadd.f32 %v6249, %v6966
    %v7342 = vadd.f32 %v6250, %v6969
    %v7343 = vadd.f32 %v6251, %v6972
    %v7344 = vadd.f32 %v6252, %v6975
    %v7345 = vadd.f32 %v6253, %v6978
    %v7346 = vadd.f32 %v6254, %v6981
    %v7347 = vadd.f32 %v6255, %v6984
    %v7348 = vadd.f32 %v6256, %v6987
    %v7349 = vadd.f32 %v6257, %v6990
    %v7350 = vadd.f32 %v6258, %v6993
    %v7351 = vadd.f32 %v6259, %v6996
    %v7352 = vadd.f32 %v6260, %v6999
    %v7353 = vadd.f32 %v6261, %v7002
    %v7354 = vadd.f32 %v6262, %v7005
    %v7355 = vadd.f32 %v6263, %v7008
    %v7356 = vadd.f32 %v6264, %v7011
    %v7357 = vadd.f32 %v6265, %v7014
    %v7358 = vadd.f32 %v6266, %v7017
    %v7359 = vadd.f32 %v6267, %v7020
    %v7360 = vadd.f32 %v6268, %v7023
    %v7361 = vadd.f32 %v6269, %v7026
    %v7362 = vadd.f32 %v6270, %v7029
    %v7363 = vadd.f32 %v6271, %v7032
    %v7364 = vadd.f32 %v6272, %v7035
    %v7365 = vadd.f32 %v6273, %v7038
    %v7366 = vadd.f32 %v6274, %v7041
    %v7367 = vadd.f32 %v6275, %v7044
    %v7368 = vadd.f32 %v6276, %v7047
    %v7369 = vadd.f32 %v6277, %v7050
    %v7370 = vadd.f32 %v6278, %v7053
    %v7371 = vadd.f32 %v6279, %v7056
    %v7372 = vadd.f32 %v6280, %v7059
    %v7373 = vadd.f32 %v6281, %v7062
    %v7374 = vadd.f32 %v6282, %v7065
    %v7375 = vadd.f32 %v6283, %v7068
    %v7376 = vadd.f32 %v6284, %v7071
    %v7377 = vadd.f32 %v6285, %v7074
    %v7378 = vadd.f32 %v6286, %v7077
    %v7379 = vadd.f32 %v6287, %v7080
    %v7380 = vadd.f32 %v6288, %v7083
    %v7381 = vadd.f32 %v6289, %v7086
    %v7382 = vadd.f32 %v6290, %v7089
    %v7383 = vadd.f32 %v6291, %v7092
    %v7384 = vadd.f32 %v6292, %v7095
    %v7385 = vadd.f32 %v6293, %v7098
    %v7386 = vadd.f32 %v6294, %v7101
    %v7387 = vadd.f32 %v6295, %v7104
    %v7388 = vadd.f32 %v6296, %v7107
    %v7389 = vadd.f32 %v6297, %v7110
    %v7390 = vadd.f32 %v6298, %v7113
    %v7391 = vadd.f32 %v6299, %v7116
    %v7392 = vadd.f32 %v6300, %v7119
    %v7393 = vadd.f32 %v6301, %v7122
    %v7394 = vadd.f32 %v6302, %v7125
    %v7395 = vadd.f32 %v6303, %v7128
    %v7396 = vadd.f32 %v6304, %v7131
    %v7397 = vadd.f32 %v6305, %v7134
    %v7398 = vadd.f32 %v6306, %v7137
    %v7399 = vadd.f32 %v6307, %v7140
    %v7400 = vadd.f32 %v6308, %v7143
    %v7409 = vrot.slane %v92, 1
    %v7410 = vrot.slane %v93, 1
    %v7411 = vsel %vm869, %v7409, %v7410
    %v7412 = vrot.slane %v94, 1
    %v7413 = vsel %vm869, %v7410, %v7412
    %v7414 = vrot.slane %v146, 1
    %v7415 = vrot.slane %v147, 1
    %v7416 = vsel %vm869, %v7414, %v7415
    %v7417 = vrot.slane %v148, 1
    %v7418 = vsel %vm869, %v7415, %v7417
    %v7419 = vrot.slane %v200, 1
    %v7420 = vrot.slane %v201, 1
    %v7421 = vsel %vm869, %v7419, %v7420
    %v7422 = vrot.slane %v202, 1
    %v7423 = vsel %vm869, %v7420, %v7422
    %v7424 = vrot.slane %v254, 1
    %v7425 = vrot.slane %v255, 1
    %v7426 = vsel %vm869, %v7424, %v7425
    %v7427 = vrot.slane %v256, 1
    %v7428 = vsel %vm869, %v7425, %v7427
    %v7429 = vrot.slane %v308, 1
    %v7430 = vrot.slane %v309, 1
    %v7431 = vsel %vm869, %v7429, %v7430
    %v7432 = vrot.slane %v310, 1
    %v7433 = vsel %vm869, %v7430, %v7432
    %v7434 = vrot.slane %v362, 1
    %v7435 = vrot.slane %v363, 1
    %v7436 = vsel %vm869, %v7434, %v7435
    %v7437 = vrot.slane %v364, 1
    %v7438 = vsel %vm869, %v7435, %v7437
    %v7439 = vrot.slane %v416, 1
    %v7440 = vrot.slane %v417, 1
    %v7441 = vsel %vm869, %v7439, %v7440
    %v7442 = vrot.slane %v418, 1
    %v7443 = vsel %vm869, %v7440, %v7442
    %v7444 = vrot.slane %v470, 1
    %v7445 = vrot.slane %v471, 1
    %v7446 = vsel %vm869, %v7444, %v7445
    %v7447 = vrot.slane %v472, 1
    %v7448 = vsel %vm869, %v7445, %v7447
    %v7449 = vsel %vm1510, %v7411, 0
    %v7451 = vsel %vm1510, %v7413, 0
    %v7453 = vsel %vm1510, %v7416, 0
    %v7455 = vsel %vm1510, %v7418, 0
    %v7457 = vsel %vm1510, %v7421, 0
    %v7459 = vsel %vm1510, %v7423, 0
    %v7461 = vsel %vm1510, %v7426, 0
    %v7463 = vsel %vm1510, %v7428, 0
    %v7465 = vsel %vm1510, %v7431, 0
    %v7467 = vsel %vm1510, %v7433, 0
    %v7469 = vsel %vm1510, %v7436, 0
    %v7471 = vsel %vm1510, %v7438, 0
    %v7473 = vsel %vm1510, %v7441, 0
    %v7475 = vsel %vm1510, %v7443, 0
    %v7477 = vsel %vm1510, %v7446, 0
    %v7479 = vsel %vm1510, %v7448, 0
    %v7482 = vsel %vm2023, %v480, 0
    %7484 = vmatpush.msra.mxu0 0.0
    %7485 = vmatpush.msra.mxu0 0.0
    %7486 = vmatpush.msra.mxu0 0.0
    %7487 = vmatpush.msra.mxu0 0.0
    %7488 = vmatpush.msra.mxu0 0.0
    %7489 = vmatpush.msra.mxu0 0.0
    %7490 = vmatpush.msra.mxu0 0.0
    %7491 = vmatpush.msra.mxu0 0.0
    %7492 = vmatpush.msra.mxu0 0.0
    %7493 = vmatpush.msra.mxu0 0.0
    %7494 = vmatpush.msra.mxu0 0.0
    %7495 = vmatpush.msra.mxu0 0.0
    %7496 = vmatpush.msra.mxu0 0.0
    %7497 = vmatpush.msra.mxu0 0.0
    %7498 = vmatpush.msra.mxu0 0.0
    %7499 = vmatpush.msra.mxu0 %v7482
    %7500 = vmatmul.f32.gmra.mxu0 %v1515
    %v7501 = vpop.f32.mrf.mxu0
    %v7502 = vadd.f32 0.0, %v7501
    %7503 = vmatmul.f32.gmra.mxu0 %v1517
    %v7504 = vpop.f32.mrf.mxu0
    %v7505 = vadd.f32 0.0, %v7504
    %7506 = vmatmul.f32.gmra.mxu0 %v1519
    %v7507 = vpop.f32.mrf.mxu0
    %v7508 = vadd.f32 0.0, %v7507
    %7509 = vmatmul.f32.gmra.mxu0 %v1521
    %v7510 = vpop.f32.mrf.mxu0
    %v7511 = vadd.f32 0.0, %v7510
    %7512 = vmatmul.f32.gmra.mxu0 %v1523
    %v7513 = vpop.f32.mrf.mxu0
    %v7514 = vadd.f32 0.0, %v7513
    %7515 = vmatmul.f32.gmra.mxu0 %v1525
    %v7516 = vpop.f32.mrf.mxu0
    %v7517 = vadd.f32 0.0, %v7516
    %7518 = vmatmul.f32.gmra.mxu0 %v1527
    %v7519 = vpop.f32.mrf.mxu0
    %v7520 = vadd.f32 0.0, %v7519
    %7521 = vmatmul.f32.gmra.mxu0 %v1529
    %v7522 = vpop.f32.mrf.mxu0
    %v7523 = vadd.f32 0.0, %v7522
    %7524 = vmatmul.f32.gmra.mxu0 %v1531
    %v7525 = vpop.f32.mrf.mxu0
    %v7526 = vadd.f32 0.0, %v7525
    %7527 = vmatmul.f32.gmra.mxu0 %v1533
    %v7528 = vpop.f32.mrf.mxu0
    %v7529 = vadd.f32 0.0, %v7528
    %7530 = vmatmul.f32.gmra.mxu0 %v1535
    %v7531 = vpop.f32.mrf.mxu0
    %v7532 = vadd.f32 0.0, %v7531
    %7533 = vmatmul.f32.gmra.mxu0 %v1537
    %v7534 = vpop.f32.mrf.mxu0
    %v7535 = vadd.f32 0.0, %v7534
    %7536 = vmatmul.f32.gmra.mxu0 %v1539
    %v7537 = vpop.f32.mrf.mxu0
    %v7538 = vadd.f32 0.0, %v7537
    %7539 = vmatmul.f32.gmra.mxu0 %v1541
    %v7540 = vpop.f32.mrf.mxu0
    %v7541 = vadd.f32 0.0, %v7540
    %7542 = vmatmul.f32.gmra.mxu0 %v1543
    %v7543 = vpop.f32.mrf.mxu0
    %v7544 = vadd.f32 0.0, %v7543
    %7545 = vmatmul.f32.gmra.mxu0 %v1545
    %v7546 = vpop.f32.mrf.mxu0
    %v7547 = vadd.f32 0.0, %v7546
    %7548 = vmatmul.f32.gmra.mxu0 %v1547
    %v7549 = vpop.f32.mrf.mxu0
    %v7550 = vadd.f32 0.0, %v7549
    %7551 = vmatmul.f32.gmra.mxu0 %v1549
    %v7552 = vpop.f32.mrf.mxu0
    %v7553 = vadd.f32 0.0, %v7552
    %7554 = vmatmul.f32.gmra.mxu0 %v1551
    %v7555 = vpop.f32.mrf.mxu0
    %v7556 = vadd.f32 0.0, %v7555
    %7557 = vmatmul.f32.gmra.mxu0 %v1553
    %v7558 = vpop.f32.mrf.mxu0
    %v7559 = vadd.f32 0.0, %v7558
    %7560 = vmatmul.f32.gmra.mxu0 %v1555
    %v7561 = vpop.f32.mrf.mxu0
    %v7562 = vadd.f32 0.0, %v7561
    %7563 = vmatmul.f32.gmra.mxu0 %v1557
    %v7564 = vpop.f32.mrf.mxu0
    %v7565 = vadd.f32 0.0, %v7564
    %7566 = vmatmul.f32.gmra.mxu0 %v1559
    %v7567 = vpop.f32.mrf.mxu0
    %v7568 = vadd.f32 0.0, %v7567
    %7569 = vmatmul.f32.gmra.mxu0 %v1561
    %v7570 = vpop.f32.mrf.mxu0
    %v7571 = vadd.f32 0.0, %v7570
    %7572 = vmatmul.f32.gmra.mxu0 %v1563
    %v7573 = vpop.f32.mrf.mxu0
    %v7574 = vadd.f32 0.0, %v7573
    %7575 = vmatmul.f32.gmra.mxu0 %v1565
    %v7576 = vpop.f32.mrf.mxu0
    %v7577 = vadd.f32 0.0, %v7576
    %7578 = vmatmul.f32.gmra.mxu0 %v1567
    %v7579 = vpop.f32.mrf.mxu0
    %v7580 = vadd.f32 0.0, %v7579
    %7581 = vmatmul.f32.gmra.mxu0 %v1569
    %v7582 = vpop.f32.mrf.mxu0
    %v7583 = vadd.f32 0.0, %v7582
    %7584 = vmatmul.f32.gmra.mxu0 %v1571
    %v7585 = vpop.f32.mrf.mxu0
    %v7586 = vadd.f32 0.0, %v7585
    %7587 = vmatmul.f32.gmra.mxu0 %v1573
    %v7588 = vpop.f32.mrf.mxu0
    %v7589 = vadd.f32 0.0, %v7588
    %7590 = vmatmul.f32.gmra.mxu0 %v7449
    %v7591 = vpop.f32.mrf.mxu0
    %v7592 = vadd.f32 0.0, %v7591
    %7593 = vmatmul.f32.gmra.mxu0 %v7451
    %v7594 = vpop.f32.mrf.mxu0
    %v7595 = vadd.f32 0.0, %v7594
    %7596 = vmatmul.f32.gmra.mxu0 %v1579
    %v7597 = vpop.f32.mrf.mxu0
    %v7598 = vadd.f32 0.0, %v7597
    %7599 = vmatmul.f32.gmra.mxu0 %v1581
    %v7600 = vpop.f32.mrf.mxu0
    %v7601 = vadd.f32 0.0, %v7600
    %7602 = vmatmul.f32.gmra.mxu0 %v1583
    %v7603 = vpop.f32.mrf.mxu0
    %v7604 = vadd.f32 0.0, %v7603
    %7605 = vmatmul.f32.gmra.mxu0 %v1585
    %v7606 = vpop.f32.mrf.mxu0
    %v7607 = vadd.f32 0.0, %v7606
    %7608 = vmatmul.f32.gmra.mxu0 %v1587
    %v7609 = vpop.f32.mrf.mxu0
    %v7610 = vadd.f32 0.0, %v7609
    %7611 = vmatmul.f32.gmra.mxu0 %v1589
    %v7612 = vpop.f32.mrf.mxu0
    %v7613 = vadd.f32 0.0, %v7612
    %7614 = vmatmul.f32.gmra.mxu0 %v1591
    %v7615 = vpop.f32.mrf.mxu0
    %v7616 = vadd.f32 0.0, %v7615
    %7617 = vmatmul.f32.gmra.mxu0 %v1593
    %v7618 = vpop.f32.mrf.mxu0
    %v7619 = vadd.f32 0.0, %v7618
    %7620 = vmatmul.f32.gmra.mxu0 %v1595
    %v7621 = vpop.f32.mrf.mxu0
    %v7622 = vadd.f32 0.0, %v7621
    %7623 = vmatmul.f32.gmra.mxu0 %v1597
    %v7624 = vpop.f32.mrf.mxu0
    %v7625 = vadd.f32 0.0, %v7624
    %7626 = vmatmul.f32.gmra.mxu0 %v1599
    %v7627 = vpop.f32.mrf.mxu0
    %v7628 = vadd.f32 0.0, %v7627
    %7629 = vmatmul.f32.gmra.mxu0 %v1601
    %v7630 = vpop.f32.mrf.mxu0
    %v7631 = vadd.f32 0.0, %v7630
    %7632 = vmatmul.f32.gmra.mxu0 %v1603
    %v7633 = vpop.f32.mrf.mxu0
    %v7634 = vadd.f32 0.0, %v7633
    %7635 = vmatmul.f32.gmra.mxu0 %v1605
    %v7636 = vpop.f32.mrf.mxu0
    %v7637 = vadd.f32 0.0, %v7636
    %7638 = vmatmul.f32.gmra.mxu0 %v1607
    %v7639 = vpop.f32.mrf.mxu0
    %v7640 = vadd.f32 0.0, %v7639
    %7641 = vmatmul.f32.gmra.mxu0 %v1609
    %v7642 = vpop.f32.mrf.mxu0
    %v7643 = vadd.f32 0.0, %v7642
    %7644 = vmatmul.f32.gmra.mxu0 %v1611
    %v7645 = vpop.f32.mrf.mxu0
    %v7646 = vadd.f32 0.0, %v7645
    %7647 = vmatmul.f32.gmra.mxu0 %v1613
    %v7648 = vpop.f32.mrf.mxu0
    %v7649 = vadd.f32 0.0, %v7648
    %7650 = vmatmul.f32.gmra.mxu0 %v1615
    %v7651 = vpop.f32.mrf.mxu0
    %v7652 = vadd.f32 0.0, %v7651
    %7653 = vmatmul.f32.gmra.mxu0 %v1617
    %v7654 = vpop.f32.mrf.mxu0
    %v7655 = vadd.f32 0.0, %v7654
    %7656 = vmatmul.f32.gmra.mxu0 %v1619
    %v7657 = vpop.f32.mrf.mxu0
    %v7658 = vadd.f32 0.0, %v7657
    %7659 = vmatmul.f32.gmra.mxu0 %v1621
    %v7660 = vpop.f32.mrf.mxu0
    %v7661 = vadd.f32 0.0, %v7660
    %7662 = vmatmul.f32.gmra.mxu0 %v1623
    %v7663 = vpop.f32.mrf.mxu0
    %v7664 = vadd.f32 0.0, %v7663
    %7665 = vmatmul.f32.gmra.mxu0 %v1625
    %v7666 = vpop.f32.mrf.mxu0
    %v7667 = vadd.f32 0.0, %v7666
    %7668 = vmatmul.f32.gmra.mxu0 %v1627
    %v7669 = vpop.f32.mrf.mxu0
    %v7670 = vadd.f32 0.0, %v7669
    %7671 = vmatmul.f32.gmra.mxu0 %v1629
    %v7672 = vpop.f32.mrf.mxu0
    %v7673 = vadd.f32 0.0, %v7672
    %7674 = vmatmul.f32.gmra.mxu0 %v1631
    %v7675 = vpop.f32.mrf.mxu0
    %v7676 = vadd.f32 0.0, %v7675
    %7677 = vmatmul.f32.gmra.mxu0 %v1633
    %v7678 = vpop.f32.mrf.mxu0
    %v7679 = vadd.f32 0.0, %v7678
    %7680 = vmatmul.f32.gmra.mxu0 %v1635
    %v7681 = vpop.f32.mrf.mxu0
    %v7682 = vadd.f32 0.0, %v7681
    %7683 = vmatmul.f32.gmra.mxu0 %v1637
    %v7684 = vpop.f32.mrf.mxu0
    %v7685 = vadd.f32 0.0, %v7684
    %7686 = vmatmul.f32.gmra.mxu0 %v7453
    %v7687 = vpop.f32.mrf.mxu0
    %v7688 = vadd.f32 0.0, %v7687
    %7689 = vmatmul.f32.gmra.mxu0 %v7455
    %v7690 = vpop.f32.mrf.mxu0
    %v7691 = vadd.f32 0.0, %v7690
    %7692 = vmatmul.f32.gmra.mxu0 %v1643
    %v7693 = vpop.f32.mrf.mxu0
    %v7694 = vadd.f32 0.0, %v7693
    %7695 = vmatmul.f32.gmra.mxu0 %v1645
    %v7696 = vpop.f32.mrf.mxu0
    %v7697 = vadd.f32 0.0, %v7696
    %7698 = vmatmul.f32.gmra.mxu0 %v1647
    %v7699 = vpop.f32.mrf.mxu0
    %v7700 = vadd.f32 0.0, %v7699
    %7701 = vmatmul.f32.gmra.mxu0 %v1649
    %v7702 = vpop.f32.mrf.mxu0
    %v7703 = vadd.f32 0.0, %v7702
    %7704 = vmatmul.f32.gmra.mxu0 %v1651
    %v7705 = vpop.f32.mrf.mxu0
    %v7706 = vadd.f32 0.0, %v7705
    %7707 = vmatmul.f32.gmra.mxu0 %v1653
    %v7708 = vpop.f32.mrf.mxu0
    %v7709 = vadd.f32 0.0, %v7708
    %7710 = vmatmul.f32.gmra.mxu0 %v1655
    %v7711 = vpop.f32.mrf.mxu0
    %v7712 = vadd.f32 0.0, %v7711
    %7713 = vmatmul.f32.gmra.mxu0 %v1657
    %v7714 = vpop.f32.mrf.mxu0
    %v7715 = vadd.f32 0.0, %v7714
    %7716 = vmatmul.f32.gmra.mxu0 %v1659
    %v7717 = vpop.f32.mrf.mxu0
    %v7718 = vadd.f32 0.0, %v7717
    %7719 = vmatmul.f32.gmra.mxu0 %v1661
    %v7720 = vpop.f32.mrf.mxu0
    %v7721 = vadd.f32 0.0, %v7720
    %7722 = vmatmul.f32.gmra.mxu0 %v1663
    %v7723 = vpop.f32.mrf.mxu0
    %v7724 = vadd.f32 0.0, %v7723
    %7725 = vmatmul.f32.gmra.mxu0 %v1665
    %v7726 = vpop.f32.mrf.mxu0
    %v7727 = vadd.f32 0.0, %v7726
    %7728 = vmatmul.f32.gmra.mxu0 %v1667
    %v7729 = vpop.f32.mrf.mxu0
    %v7730 = vadd.f32 0.0, %v7729
    %7731 = vmatmul.f32.gmra.mxu0 %v1669
    %v7732 = vpop.f32.mrf.mxu0
    %v7733 = vadd.f32 0.0, %v7732
    %7734 = vmatmul.f32.gmra.mxu0 %v1671
    %v7735 = vpop.f32.mrf.mxu0
    %v7736 = vadd.f32 0.0, %v7735
    %7737 = vmatmul.f32.gmra.mxu0 %v1673
    %v7738 = vpop.f32.mrf.mxu0
    %v7739 = vadd.f32 0.0, %v7738
    %7740 = vmatmul.f32.gmra.mxu0 %v1675
    %v7741 = vpop.f32.mrf.mxu0
    %v7742 = vadd.f32 0.0, %v7741
    %7743 = vmatmul.f32.gmra.mxu0 %v1677
    %v7744 = vpop.f32.mrf.mxu0
    %v7745 = vadd.f32 0.0, %v7744
    %7746 = vmatmul.f32.gmra.mxu0 %v1679
    %v7747 = vpop.f32.mrf.mxu0
    %v7748 = vadd.f32 0.0, %v7747
    %7749 = vmatmul.f32.gmra.mxu0 %v1681
    %v7750 = vpop.f32.mrf.mxu0
    %v7751 = vadd.f32 0.0, %v7750
    %7752 = vmatmul.f32.gmra.mxu0 %v1683
    %v7753 = vpop.f32.mrf.mxu0
    %v7754 = vadd.f32 0.0, %v7753
    %7755 = vmatmul.f32.gmra.mxu0 %v1685
    %v7756 = vpop.f32.mrf.mxu0
    %v7757 = vadd.f32 0.0, %v7756
    %7758 = vmatmul.f32.gmra.mxu0 %v1687
    %v7759 = vpop.f32.mrf.mxu0
    %v7760 = vadd.f32 0.0, %v7759
    %7761 = vmatmul.f32.gmra.mxu0 %v1689
    %v7762 = vpop.f32.mrf.mxu0
    %v7763 = vadd.f32 0.0, %v7762
    %7764 = vmatmul.f32.gmra.mxu0 %v1691
    %v7765 = vpop.f32.mrf.mxu0
    %v7766 = vadd.f32 0.0, %v7765
    %7767 = vmatmul.f32.gmra.mxu0 %v1693
    %v7768 = vpop.f32.mrf.mxu0
    %v7769 = vadd.f32 0.0, %v7768
    %7770 = vmatmul.f32.gmra.mxu0 %v1695
    %v7771 = vpop.f32.mrf.mxu0
    %v7772 = vadd.f32 0.0, %v7771
    %7773 = vmatmul.f32.gmra.mxu0 %v1697
    %v7774 = vpop.f32.mrf.mxu0
    %v7775 = vadd.f32 0.0, %v7774
    %7776 = vmatmul.f32.gmra.mxu0 %v1699
    %v7777 = vpop.f32.mrf.mxu0
    %v7778 = vadd.f32 0.0, %v7777
    %7779 = vmatmul.f32.gmra.mxu0 %v1701
    %v7780 = vpop.f32.mrf.mxu0
    %v7781 = vadd.f32 0.0, %v7780
    %7782 = vmatmul.f32.gmra.mxu0 %v7457
    %v7783 = vpop.f32.mrf.mxu0
    %v7784 = vadd.f32 0.0, %v7783
    %7785 = vmatmul.f32.gmra.mxu0 %v7459
    %v7786 = vpop.f32.mrf.mxu0
    %v7787 = vadd.f32 0.0, %v7786
    %7788 = vmatmul.f32.gmra.mxu0 %v1707
    %v7789 = vpop.f32.mrf.mxu0
    %v7790 = vadd.f32 0.0, %v7789
    %7791 = vmatmul.f32.gmra.mxu0 %v1709
    %v7792 = vpop.f32.mrf.mxu0
    %v7793 = vadd.f32 0.0, %v7792
    %7794 = vmatmul.f32.gmra.mxu0 %v1711
    %v7795 = vpop.f32.mrf.mxu0
    %v7796 = vadd.f32 0.0, %v7795
    %7797 = vmatmul.f32.gmra.mxu0 %v1713
    %v7798 = vpop.f32.mrf.mxu0
    %v7799 = vadd.f32 0.0, %v7798
    %7800 = vmatmul.f32.gmra.mxu0 %v1715
    %v7801 = vpop.f32.mrf.mxu0
    %v7802 = vadd.f32 0.0, %v7801
    %7803 = vmatmul.f32.gmra.mxu0 %v1717
    %v7804 = vpop.f32.mrf.mxu0
    %v7805 = vadd.f32 0.0, %v7804
    %7806 = vmatmul.f32.gmra.mxu0 %v1719
    %v7807 = vpop.f32.mrf.mxu0
    %v7808 = vadd.f32 0.0, %v7807
    %7809 = vmatmul.f32.gmra.mxu0 %v1721
    %v7810 = vpop.f32.mrf.mxu0
    %v7811 = vadd.f32 0.0, %v7810
    %7812 = vmatmul.f32.gmra.mxu0 %v1723
    %v7813 = vpop.f32.mrf.mxu0
    %v7814 = vadd.f32 0.0, %v7813
    %7815 = vmatmul.f32.gmra.mxu0 %v1725
    %v7816 = vpop.f32.mrf.mxu0
    %v7817 = vadd.f32 0.0, %v7816
    %7818 = vmatmul.f32.gmra.mxu0 %v1727
    %v7819 = vpop.f32.mrf.mxu0
    %v7820 = vadd.f32 0.0, %v7819
    %7821 = vmatmul.f32.gmra.mxu0 %v1729
    %v7822 = vpop.f32.mrf.mxu0
    %v7823 = vadd.f32 0.0, %v7822
    %7824 = vmatmul.f32.gmra.mxu0 %v1731
    %v7825 = vpop.f32.mrf.mxu0
    %v7826 = vadd.f32 0.0, %v7825
    %7827 = vmatmul.f32.gmra.mxu0 %v1733
    %v7828 = vpop.f32.mrf.mxu0
    %v7829 = vadd.f32 0.0, %v7828
    %7830 = vmatmul.f32.gmra.mxu0 %v1735
    %v7831 = vpop.f32.mrf.mxu0
    %v7832 = vadd.f32 0.0, %v7831
    %7833 = vmatmul.f32.gmra.mxu0 %v1737
    %v7834 = vpop.f32.mrf.mxu0
    %v7835 = vadd.f32 0.0, %v7834
    %7836 = vmatmul.f32.gmra.mxu0 %v1739
    %v7837 = vpop.f32.mrf.mxu0
    %v7838 = vadd.f32 0.0, %v7837
    %7839 = vmatmul.f32.gmra.mxu0 %v1741
    %v7840 = vpop.f32.mrf.mxu0
    %v7841 = vadd.f32 0.0, %v7840
    %7842 = vmatmul.f32.gmra.mxu0 %v1743
    %v7843 = vpop.f32.mrf.mxu0
    %v7844 = vadd.f32 0.0, %v7843
    %7845 = vmatmul.f32.gmra.mxu0 %v1745
    %v7846 = vpop.f32.mrf.mxu0
    %v7847 = vadd.f32 0.0, %v7846
    %7848 = vmatmul.f32.gmra.mxu0 %v1747
    %v7849 = vpop.f32.mrf.mxu0
    %v7850 = vadd.f32 0.0, %v7849
    %7851 = vmatmul.f32.gmra.mxu0 %v1749
    %v7852 = vpop.f32.mrf.mxu0
    %v7853 = vadd.f32 0.0, %v7852
    %7854 = vmatmul.f32.gmra.mxu0 %v1751
    %v7855 = vpop.f32.mrf.mxu0
    %v7856 = vadd.f32 0.0, %v7855
    %7857 = vmatmul.f32.gmra.mxu0 %v1753
    %v7858 = vpop.f32.mrf.mxu0
    %v7859 = vadd.f32 0.0, %v7858
    %7860 = vmatmul.f32.gmra.mxu0 %v1755
    %v7861 = vpop.f32.mrf.mxu0
    %v7862 = vadd.f32 0.0, %v7861
    %7863 = vmatmul.f32.gmra.mxu0 %v1757
    %v7864 = vpop.f32.mrf.mxu0
    %v7865 = vadd.f32 0.0, %v7864
    %7866 = vmatmul.f32.gmra.mxu0 %v1759
    %v7867 = vpop.f32.mrf.mxu0
    %v7868 = vadd.f32 0.0, %v7867
    %7869 = vmatmul.f32.gmra.mxu0 %v1761
    %v7870 = vpop.f32.mrf.mxu0
    %v7871 = vadd.f32 0.0, %v7870
    %7872 = vmatmul.f32.gmra.mxu0 %v1763
    %v7873 = vpop.f32.mrf.mxu0
    %v7874 = vadd.f32 0.0, %v7873
    %7875 = vmatmul.f32.gmra.mxu0 %v1765
    %v7876 = vpop.f32.mrf.mxu0
    %v7877 = vadd.f32 0.0, %v7876
    %7878 = vmatmul.f32.gmra.mxu0 %v7461
    %v7879 = vpop.f32.mrf.mxu0
    %v7880 = vadd.f32 0.0, %v7879
    %7881 = vmatmul.f32.gmra.mxu0 %v7463
    %v7882 = vpop.f32.mrf.mxu0
    %v7883 = vadd.f32 0.0, %v7882
    %7884 = vmatmul.f32.gmra.mxu0 %v1771
    %v7885 = vpop.f32.mrf.mxu0
    %v7886 = vadd.f32 0.0, %v7885
    %7887 = vmatmul.f32.gmra.mxu0 %v1773
    %v7888 = vpop.f32.mrf.mxu0
    %v7889 = vadd.f32 0.0, %v7888
    %7890 = vmatmul.f32.gmra.mxu0 %v1775
    %v7891 = vpop.f32.mrf.mxu0
    %v7892 = vadd.f32 0.0, %v7891
    %7893 = vmatmul.f32.gmra.mxu0 %v1777
    %v7894 = vpop.f32.mrf.mxu0
    %v7895 = vadd.f32 0.0, %v7894
    %7896 = vmatmul.f32.gmra.mxu0 %v1779
    %v7897 = vpop.f32.mrf.mxu0
    %v7898 = vadd.f32 0.0, %v7897
    %7899 = vmatmul.f32.gmra.mxu0 %v1781
    %v7900 = vpop.f32.mrf.mxu0
    %v7901 = vadd.f32 0.0, %v7900
    %7902 = vmatmul.f32.gmra.mxu0 %v1783
    %v7903 = vpop.f32.mrf.mxu0
    %v7904 = vadd.f32 0.0, %v7903
    %7905 = vmatmul.f32.gmra.mxu0 %v1785
    %v7906 = vpop.f32.mrf.mxu0
    %v7907 = vadd.f32 0.0, %v7906
    %7908 = vmatmul.f32.gmra.mxu0 %v1787
    %v7909 = vpop.f32.mrf.mxu0
    %v7910 = vadd.f32 0.0, %v7909
    %7911 = vmatmul.f32.gmra.mxu0 %v1789
    %v7912 = vpop.f32.mrf.mxu0
    %v7913 = vadd.f32 0.0, %v7912
    %7914 = vmatmul.f32.gmra.mxu0 %v1791
    %v7915 = vpop.f32.mrf.mxu0
    %v7916 = vadd.f32 0.0, %v7915
    %7917 = vmatmul.f32.gmra.mxu0 %v1793
    %v7918 = vpop.f32.mrf.mxu0
    %v7919 = vadd.f32 0.0, %v7918
    %7920 = vmatmul.f32.gmra.mxu0 %v1795
    %v7921 = vpop.f32.mrf.mxu0
    %v7922 = vadd.f32 0.0, %v7921
    %7923 = vmatmul.f32.gmra.mxu0 %v1797
    %v7924 = vpop.f32.mrf.mxu0
    %v7925 = vadd.f32 0.0, %v7924
    %7926 = vmatmul.f32.gmra.mxu0 %v1799
    %v7927 = vpop.f32.mrf.mxu0
    %v7928 = vadd.f32 0.0, %v7927
    %7929 = vmatmul.f32.gmra.mxu0 %v1801
    %v7930 = vpop.f32.mrf.mxu0
    %v7931 = vadd.f32 0.0, %v7930
    %7932 = vmatmul.f32.gmra.mxu0 %v1803
    %v7933 = vpop.f32.mrf.mxu0
    %v7934 = vadd.f32 0.0, %v7933
    %7935 = vmatmul.f32.gmra.mxu0 %v1805
    %v7936 = vpop.f32.mrf.mxu0
    %v7937 = vadd.f32 0.0, %v7936
    %7938 = vmatmul.f32.gmra.mxu0 %v1807
    %v7939 = vpop.f32.mrf.mxu0
    %v7940 = vadd.f32 0.0, %v7939
    %7941 = vmatmul.f32.gmra.mxu0 %v1809
    %v7942 = vpop.f32.mrf.mxu0
    %v7943 = vadd.f32 0.0, %v7942
    %7944 = vmatmul.f32.gmra.mxu0 %v1811
    %v7945 = vpop.f32.mrf.mxu0
    %v7946 = vadd.f32 0.0, %v7945
    %7947 = vmatmul.f32.gmra.mxu0 %v1813
    %v7948 = vpop.f32.mrf.mxu0
    %v7949 = vadd.f32 0.0, %v7948
    %7950 = vmatmul.f32.gmra.mxu0 %v1815
    %v7951 = vpop.f32.mrf.mxu0
    %v7952 = vadd.f32 0.0, %v7951
    %7953 = vmatmul.f32.gmra.mxu0 %v1817
    %v7954 = vpop.f32.mrf.mxu0
    %v7955 = vadd.f32 0.0, %v7954
    %7956 = vmatmul.f32.gmra.mxu0 %v1819
    %v7957 = vpop.f32.mrf.mxu0
    %v7958 = vadd.f32 0.0, %v7957
    %7959 = vmatmul.f32.gmra.mxu0 %v1821
    %v7960 = vpop.f32.mrf.mxu0
    %v7961 = vadd.f32 0.0, %v7960
    %7962 = vmatmul.f32.gmra.mxu0 %v1823
    %v7963 = vpop.f32.mrf.mxu0
    %v7964 = vadd.f32 0.0, %v7963
    %7965 = vmatmul.f32.gmra.mxu0 %v1825
    %v7966 = vpop.f32.mrf.mxu0
    %v7967 = vadd.f32 0.0, %v7966
    %7968 = vmatmul.f32.gmra.mxu0 %v1827
    %v7969 = vpop.f32.mrf.mxu0
    %v7970 = vadd.f32 0.0, %v7969
    %7971 = vmatmul.f32.gmra.mxu0 %v1829
    %v7972 = vpop.f32.mrf.mxu0
    %v7973 = vadd.f32 0.0, %v7972
    %7974 = vmatmul.f32.gmra.mxu0 %v7465
    %v7975 = vpop.f32.mrf.mxu0
    %v7976 = vadd.f32 0.0, %v7975
    %7977 = vmatmul.f32.gmra.mxu0 %v7467
    %v7978 = vpop.f32.mrf.mxu0
    %v7979 = vadd.f32 0.0, %v7978
    %7980 = vmatmul.f32.gmra.mxu0 %v1835
    %v7981 = vpop.f32.mrf.mxu0
    %v7982 = vadd.f32 0.0, %v7981
    %7983 = vmatmul.f32.gmra.mxu0 %v1837
    %v7984 = vpop.f32.mrf.mxu0
    %v7985 = vadd.f32 0.0, %v7984
    %7986 = vmatmul.f32.gmra.mxu0 %v1839
    %v7987 = vpop.f32.mrf.mxu0
    %v7988 = vadd.f32 0.0, %v7987
    %7989 = vmatmul.f32.gmra.mxu0 %v1841
    %v7990 = vpop.f32.mrf.mxu0
    %v7991 = vadd.f32 0.0, %v7990
    %7992 = vmatmul.f32.gmra.mxu0 %v1843
    %v7993 = vpop.f32.mrf.mxu0
    %v7994 = vadd.f32 0.0, %v7993
    %7995 = vmatmul.f32.gmra.mxu0 %v1845
    %v7996 = vpop.f32.mrf.mxu0
    %v7997 = vadd.f32 0.0, %v7996
    %7998 = vmatmul.f32.gmra.mxu0 %v1847
    %v7999 = vpop.f32.mrf.mxu0
    %v8000 = vadd.f32 0.0, %v7999
    %8001 = vmatmul.f32.gmra.mxu0 %v1849
    %v8002 = vpop.f32.mrf.mxu0
    %v8003 = vadd.f32 0.0, %v8002
    %8004 = vmatmul.f32.gmra.mxu0 %v1851
    %v8005 = vpop.f32.mrf.mxu0
    %v8006 = vadd.f32 0.0, %v8005
    %8007 = vmatmul.f32.gmra.mxu0 %v1853
    %v8008 = vpop.f32.mrf.mxu0
    %v8009 = vadd.f32 0.0, %v8008
    %8010 = vmatmul.f32.gmra.mxu0 %v1855
    %v8011 = vpop.f32.mrf.mxu0
    %v8012 = vadd.f32 0.0, %v8011
    %8013 = vmatmul.f32.gmra.mxu0 %v1857
    %v8014 = vpop.f32.mrf.mxu0
    %v8015 = vadd.f32 0.0, %v8014
    %8016 = vmatmul.f32.gmra.mxu0 %v1859
    %v8017 = vpop.f32.mrf.mxu0
    %v8018 = vadd.f32 0.0, %v8017
    %8019 = vmatmul.f32.gmra.mxu0 %v1861
    %v8020 = vpop.f32.mrf.mxu0
    %v8021 = vadd.f32 0.0, %v8020
    %8022 = vmatmul.f32.gmra.mxu0 %v1863
    %v8023 = vpop.f32.mrf.mxu0
    %v8024 = vadd.f32 0.0, %v8023
    %8025 = vmatmul.f32.gmra.mxu0 %v1865
    %v8026 = vpop.f32.mrf.mxu0
    %v8027 = vadd.f32 0.0, %v8026
    %8028 = vmatmul.f32.gmra.mxu0 %v1867
    %v8029 = vpop.f32.mrf.mxu0
    %v8030 = vadd.f32 0.0, %v8029
    %8031 = vmatmul.f32.gmra.mxu0 %v1869
    %v8032 = vpop.f32.mrf.mxu0
    %v8033 = vadd.f32 0.0, %v8032
    %8034 = vmatmul.f32.gmra.mxu0 %v1871
    %v8035 = vpop.f32.mrf.mxu0
    %v8036 = vadd.f32 0.0, %v8035
    %8037 = vmatmul.f32.gmra.mxu0 %v1873
    %v8038 = vpop.f32.mrf.mxu0
    %v8039 = vadd.f32 0.0, %v8038
    %8040 = vmatmul.f32.gmra.mxu0 %v1875
    %v8041 = vpop.f32.mrf.mxu0
    %v8042 = vadd.f32 0.0, %v8041
    %8043 = vmatmul.f32.gmra.mxu0 %v1877
    %v8044 = vpop.f32.mrf.mxu0
    %v8045 = vadd.f32 0.0, %v8044
    %8046 = vmatmul.f32.gmra.mxu0 %v1879
    %v8047 = vpop.f32.mrf.mxu0
    %v8048 = vadd.f32 0.0, %v8047
    %8049 = vmatmul.f32.gmra.mxu0 %v1881
    %v8050 = vpop.f32.mrf.mxu0
    %v8051 = vadd.f32 0.0, %v8050
    %8052 = vmatmul.f32.gmra.mxu0 %v1883
    %v8053 = vpop.f32.mrf.mxu0
    %v8054 = vadd.f32 0.0, %v8053
    %8055 = vmatmul.f32.gmra.mxu0 %v1885
    %v8056 = vpop.f32.mrf.mxu0
    %v8057 = vadd.f32 0.0, %v8056
    %8058 = vmatmul.f32.gmra.mxu0 %v1887
    %v8059 = vpop.f32.mrf.mxu0
    %v8060 = vadd.f32 0.0, %v8059
    %8061 = vmatmul.f32.gmra.mxu0 %v1889
    %v8062 = vpop.f32.mrf.mxu0
    %v8063 = vadd.f32 0.0, %v8062
    %8064 = vmatmul.f32.gmra.mxu0 %v1891
    %v8065 = vpop.f32.mrf.mxu0
    %v8066 = vadd.f32 0.0, %v8065
    %8067 = vmatmul.f32.gmra.mxu0 %v1893
    %v8068 = vpop.f32.mrf.mxu0
    %v8069 = vadd.f32 0.0, %v8068
    %8070 = vmatmul.f32.gmra.mxu0 %v7469
    %v8071 = vpop.f32.mrf.mxu0
    %v8072 = vadd.f32 0.0, %v8071
    %8073 = vmatmul.f32.gmra.mxu0 %v7471
    %v8074 = vpop.f32.mrf.mxu0
    %v8075 = vadd.f32 0.0, %v8074
    %8076 = vmatmul.f32.gmra.mxu0 %v1899
    %v8077 = vpop.f32.mrf.mxu0
    %v8078 = vadd.f32 0.0, %v8077
    %8079 = vmatmul.f32.gmra.mxu0 %v1901
    %v8080 = vpop.f32.mrf.mxu0
    %v8081 = vadd.f32 0.0, %v8080
    %8082 = vmatmul.f32.gmra.mxu0 %v1903
    %v8083 = vpop.f32.mrf.mxu0
    %v8084 = vadd.f32 0.0, %v8083
    %8085 = vmatmul.f32.gmra.mxu0 %v1905
    %v8086 = vpop.f32.mrf.mxu0
    %v8087 = vadd.f32 0.0, %v8086
    %8088 = vmatmul.f32.gmra.mxu0 %v1907
    %v8089 = vpop.f32.mrf.mxu0
    %v8090 = vadd.f32 0.0, %v8089
    %8091 = vmatmul.f32.gmra.mxu0 %v1909
    %v8092 = vpop.f32.mrf.mxu0
    %v8093 = vadd.f32 0.0, %v8092
    %8094 = vmatmul.f32.gmra.mxu0 %v1911
    %v8095 = vpop.f32.mrf.mxu0
    %v8096 = vadd.f32 0.0, %v8095
    %8097 = vmatmul.f32.gmra.mxu0 %v1913
    %v8098 = vpop.f32.mrf.mxu0
    %v8099 = vadd.f32 0.0, %v8098
    %8100 = vmatmul.f32.gmra.mxu0 %v1915
    %v8101 = vpop.f32.mrf.mxu0
    %v8102 = vadd.f32 0.0, %v8101
    %8103 = vmatmul.f32.gmra.mxu0 %v1917
    %v8104 = vpop.f32.mrf.mxu0
    %v8105 = vadd.f32 0.0, %v8104
    %8106 = vmatmul.f32.gmra.mxu0 %v1919
    %v8107 = vpop.f32.mrf.mxu0
    %v8108 = vadd.f32 0.0, %v8107
    %8109 = vmatmul.f32.gmra.mxu0 %v1921
    %v8110 = vpop.f32.mrf.mxu0
    %v8111 = vadd.f32 0.0, %v8110
    %8112 = vmatmul.f32.gmra.mxu0 %v1923
    %v8113 = vpop.f32.mrf.mxu0
    %v8114 = vadd.f32 0.0, %v8113
    %8115 = vmatmul.f32.gmra.mxu0 %v1925
    %v8116 = vpop.f32.mrf.mxu0
    %v8117 = vadd.f32 0.0, %v8116
    %8118 = vmatmul.f32.gmra.mxu0 %v1927
    %v8119 = vpop.f32.mrf.mxu0
    %v8120 = vadd.f32 0.0, %v8119
    %8121 = vmatmul.f32.gmra.mxu0 %v1929
    %v8122 = vpop.f32.mrf.mxu0
    %v8123 = vadd.f32 0.0, %v8122
    %8124 = vmatmul.f32.gmra.mxu0 %v1931
    %v8125 = vpop.f32.mrf.mxu0
    %v8126 = vadd.f32 0.0, %v8125
    %8127 = vmatmul.f32.gmra.mxu0 %v1933
    %v8128 = vpop.f32.mrf.mxu0
    %v8129 = vadd.f32 0.0, %v8128
    %8130 = vmatmul.f32.gmra.mxu0 %v1935
    %v8131 = vpop.f32.mrf.mxu0
    %v8132 = vadd.f32 0.0, %v8131
    %8133 = vmatmul.f32.gmra.mxu0 %v1937
    %v8134 = vpop.f32.mrf.mxu0
    %v8135 = vadd.f32 0.0, %v8134
    %8136 = vmatmul.f32.gmra.mxu0 %v1939
    %v8137 = vpop.f32.mrf.mxu0
    %v8138 = vadd.f32 0.0, %v8137
    %8139 = vmatmul.f32.gmra.mxu0 %v1941
    %v8140 = vpop.f32.mrf.mxu0
    %v8141 = vadd.f32 0.0, %v8140
    %8142 = vmatmul.f32.gmra.mxu0 %v1943
    %v8143 = vpop.f32.mrf.mxu0
    %v8144 = vadd.f32 0.0, %v8143
    %8145 = vmatmul.f32.gmra.mxu0 %v1945
    %v8146 = vpop.f32.mrf.mxu0
    %v8147 = vadd.f32 0.0, %v8146
    %8148 = vmatmul.f32.gmra.mxu0 %v1947
    %v8149 = vpop.f32.mrf.mxu0
    %v8150 = vadd.f32 0.0, %v8149
    %8151 = vmatmul.f32.gmra.mxu0 %v1949
    %v8152 = vpop.f32.mrf.mxu0
    %v8153 = vadd.f32 0.0, %v8152
    %8154 = vmatmul.f32.gmra.mxu0 %v1951
    %v8155 = vpop.f32.mrf.mxu0
    %v8156 = vadd.f32 0.0, %v8155
    %8157 = vmatmul.f32.gmra.mxu0 %v1953
    %v8158 = vpop.f32.mrf.mxu0
    %v8159 = vadd.f32 0.0, %v8158
    %8160 = vmatmul.f32.gmra.mxu0 %v1955
    %v8161 = vpop.f32.mrf.mxu0
    %v8162 = vadd.f32 0.0, %v8161
    %8163 = vmatmul.f32.gmra.mxu0 %v1957
    %v8164 = vpop.f32.mrf.mxu0
    %v8165 = vadd.f32 0.0, %v8164
    %8166 = vmatmul.f32.gmra.mxu0 %v7473
    %v8167 = vpop.f32.mrf.mxu0
    %v8168 = vadd.f32 0.0, %v8167
    %8169 = vmatmul.f32.gmra.mxu0 %v7475
    %v8170 = vpop.f32.mrf.mxu0
    %v8171 = vadd.f32 0.0, %v8170
    %8172 = vmatmul.f32.gmra.mxu0 %v1963
    %v8173 = vpop.f32.mrf.mxu0
    %v8174 = vadd.f32 0.0, %v8173
    %8175 = vmatmul.f32.gmra.mxu0 %v1965
    %v8176 = vpop.f32.mrf.mxu0
    %v8177 = vadd.f32 0.0, %v8176
    %8178 = vmatmul.f32.gmra.mxu0 %v1967
    %v8179 = vpop.f32.mrf.mxu0
    %v8180 = vadd.f32 0.0, %v8179
    %8181 = vmatmul.f32.gmra.mxu0 %v1969
    %v8182 = vpop.f32.mrf.mxu0
    %v8183 = vadd.f32 0.0, %v8182
    %8184 = vmatmul.f32.gmra.mxu0 %v1971
    %v8185 = vpop.f32.mrf.mxu0
    %v8186 = vadd.f32 0.0, %v8185
    %8187 = vmatmul.f32.gmra.mxu0 %v1973
    %v8188 = vpop.f32.mrf.mxu0
    %v8189 = vadd.f32 0.0, %v8188
    %8190 = vmatmul.f32.gmra.mxu0 %v1975
    %v8191 = vpop.f32.mrf.mxu0
    %v8192 = vadd.f32 0.0, %v8191
    %8193 = vmatmul.f32.gmra.mxu0 %v1977
    %v8194 = vpop.f32.mrf.mxu0
    %v8195 = vadd.f32 0.0, %v8194
    %8196 = vmatmul.f32.gmra.mxu0 %v1979
    %v8197 = vpop.f32.mrf.mxu0
    %v8198 = vadd.f32 0.0, %v8197
    %8199 = vmatmul.f32.gmra.mxu0 %v1981
    %v8200 = vpop.f32.mrf.mxu0
    %v8201 = vadd.f32 0.0, %v8200
    %8202 = vmatmul.f32.gmra.mxu0 %v1983
    %v8203 = vpop.f32.mrf.mxu0
    %v8204 = vadd.f32 0.0, %v8203
    %8205 = vmatmul.f32.gmra.mxu0 %v1985
    %v8206 = vpop.f32.mrf.mxu0
    %v8207 = vadd.f32 0.0, %v8206
    %8208 = vmatmul.f32.gmra.mxu0 %v1987
    %v8209 = vpop.f32.mrf.mxu0
    %v8210 = vadd.f32 0.0, %v8209
    %8211 = vmatmul.f32.gmra.mxu0 %v1989
    %v8212 = vpop.f32.mrf.mxu0
    %v8213 = vadd.f32 0.0, %v8212
    %8214 = vmatmul.f32.gmra.mxu0 %v1991
    %v8215 = vpop.f32.mrf.mxu0
    %v8216 = vadd.f32 0.0, %v8215
    %8217 = vmatmul.f32.gmra.mxu0 %v1993
    %v8218 = vpop.f32.mrf.mxu0
    %v8219 = vadd.f32 0.0, %v8218
    %8220 = vmatmul.f32.gmra.mxu0 %v1995
    %v8221 = vpop.f32.mrf.mxu0
    %v8222 = vadd.f32 0.0, %v8221
    %8223 = vmatmul.f32.gmra.mxu0 %v1997
    %v8224 = vpop.f32.mrf.mxu0
    %v8225 = vadd.f32 0.0, %v8224
    %8226 = vmatmul.f32.gmra.mxu0 %v1999
    %v8227 = vpop.f32.mrf.mxu0
    %v8228 = vadd.f32 0.0, %v8227
    %8229 = vmatmul.f32.gmra.mxu0 %v2001
    %v8230 = vpop.f32.mrf.mxu0
    %v8231 = vadd.f32 0.0, %v8230
    %8232 = vmatmul.f32.gmra.mxu0 %v2003
    %v8233 = vpop.f32.mrf.mxu0
    %v8234 = vadd.f32 0.0, %v8233
    %8235 = vmatmul.f32.gmra.mxu0 %v2005
    %v8236 = vpop.f32.mrf.mxu0
    %v8237 = vadd.f32 0.0, %v8236
    %8238 = vmatmul.f32.gmra.mxu0 %v2007
    %v8239 = vpop.f32.mrf.mxu0
    %v8240 = vadd.f32 0.0, %v8239
    %8241 = vmatmul.f32.gmra.mxu0 %v2009
    %v8242 = vpop.f32.mrf.mxu0
    %v8243 = vadd.f32 0.0, %v8242
    %8244 = vmatmul.f32.gmra.mxu0 %v2011
    %v8245 = vpop.f32.mrf.mxu0
    %v8246 = vadd.f32 0.0, %v8245
    %8247 = vmatmul.f32.gmra.mxu0 %v2013
    %v8248 = vpop.f32.mrf.mxu0
    %v8249 = vadd.f32 0.0, %v8248
    %8250 = vmatmul.f32.gmra.mxu0 %v2015
    %v8251 = vpop.f32.mrf.mxu0
    %v8252 = vadd.f32 0.0, %v8251
    %8253 = vmatmul.f32.gmra.mxu0 %v2017
    %v8254 = vpop.f32.mrf.mxu0
    %v8255 = vadd.f32 0.0, %v8254
    %8256 = vmatmul.f32.gmra.mxu0 %v2019
    %v8257 = vpop.f32.mrf.mxu0
    %v8258 = vadd.f32 0.0, %v8257
    %8259 = vmatmul.f32.gmra.mxu0 %v2021
    %v8260 = vpop.f32.mrf.mxu0
    %v8261 = vadd.f32 0.0, %v8260
    %8262 = vmatmul.f32.gmra.mxu0 %v7477
    %v8263 = vpop.f32.mrf.mxu0
    %v8264 = vadd.f32 0.0, %v8263
    %8265 = vmatmul.f32.gmra.mxu0 %v7479
    %v8266 = vpop.f32.mrf.mxu0
    %v8267 = vadd.f32 0.0, %v8266
    %8268 = vdwg.mxu0
    %v8269 = vadd.f32 %v7145, %v7502
    %v8270 = vadd.f32 %v7146, %v7505
    %v8271 = vadd.f32 %v7147, %v7508
    %v8272 = vadd.f32 %v7148, %v7511
    %v8273 = vadd.f32 %v7149, %v7514
    %v8274 = vadd.f32 %v7150, %v7517
    %v8275 = vadd.f32 %v7151, %v7520
    %v8276 = vadd.f32 %v7152, %v7523
    %v8277 = vadd.f32 %v7153, %v7526
    %v8278 = vadd.f32 %v7154, %v7529
    %v8279 = vadd.f32 %v7155, %v7532
    %v8280 = vadd.f32 %v7156, %v7535
    %v8281 = vadd.f32 %v7157, %v7538
    %v8282 = vadd.f32 %v7158, %v7541
    %v8283 = vadd.f32 %v7159, %v7544
    %v8284 = vadd.f32 %v7160, %v7547
    %v8285 = vadd.f32 %v7161, %v7550
    %v8286 = vadd.f32 %v7162, %v7553
    %v8287 = vadd.f32 %v7163, %v7556
    %v8288 = vadd.f32 %v7164, %v7559
    %v8289 = vadd.f32 %v7165, %v7562
    %v8290 = vadd.f32 %v7166, %v7565
    %v8291 = vadd.f32 %v7167, %v7568
    %v8292 = vadd.f32 %v7168, %v7571
    %v8293 = vadd.f32 %v7169, %v7574
    %v8294 = vadd.f32 %v7170, %v7577
    %v8295 = vadd.f32 %v7171, %v7580
    %v8296 = vadd.f32 %v7172, %v7583
    %v8297 = vadd.f32 %v7173, %v7586
    %v8298 = vadd.f32 %v7174, %v7589
    %v8299 = vadd.f32 %v7175, %v7592
    %v8300 = vadd.f32 %v7176, %v7595
    %v8301 = vadd.f32 %v7177, %v7598
    %v8302 = vadd.f32 %v7178, %v7601
    %v8303 = vadd.f32 %v7179, %v7604
    %v8304 = vadd.f32 %v7180, %v7607
    %v8305 = vadd.f32 %v7181, %v7610
    %v8306 = vadd.f32 %v7182, %v7613
    %v8307 = vadd.f32 %v7183, %v7616
    %v8308 = vadd.f32 %v7184, %v7619
    %v8309 = vadd.f32 %v7185, %v7622
    %v8310 = vadd.f32 %v7186, %v7625
    %v8311 = vadd.f32 %v7187, %v7628
    %v8312 = vadd.f32 %v7188, %v7631
    %v8313 = vadd.f32 %v7189, %v7634
    %v8314 = vadd.f32 %v7190, %v7637
    %v8315 = vadd.f32 %v7191, %v7640
    %v8316 = vadd.f32 %v7192, %v7643
    %v8317 = vadd.f32 %v7193, %v7646
    %v8318 = vadd.f32 %v7194, %v7649
    %v8319 = vadd.f32 %v7195, %v7652
    %v8320 = vadd.f32 %v7196, %v7655
    %v8321 = vadd.f32 %v7197, %v7658
    %v8322 = vadd.f32 %v7198, %v7661
    %v8323 = vadd.f32 %v7199, %v7664
    %v8324 = vadd.f32 %v7200, %v7667
    %v8325 = vadd.f32 %v7201, %v7670
    %v8326 = vadd.f32 %v7202, %v7673
    %v8327 = vadd.f32 %v7203, %v7676
    %v8328 = vadd.f32 %v7204, %v7679
    %v8329 = vadd.f32 %v7205, %v7682
    %v8330 = vadd.f32 %v7206, %v7685
    %v8331 = vadd.f32 %v7207, %v7688
    %v8332 = vadd.f32 %v7208, %v7691
    %v8333 = vadd.f32 %v7209, %v7694
    %v8334 = vadd.f32 %v7210, %v7697
    %v8335 = vadd.f32 %v7211, %v7700
    %v8336 = vadd.f32 %v7212, %v7703
    %v8337 = vadd.f32 %v7213, %v7706
    %v8338 = vadd.f32 %v7214, %v7709
    %v8339 = vadd.f32 %v7215, %v7712
    %v8340 = vadd.f32 %v7216, %v7715
    %v8341 = vadd.f32 %v7217, %v7718
    %v8342 = vadd.f32 %v7218, %v7721
    %v8343 = vadd.f32 %v7219, %v7724
    %v8344 = vadd.f32 %v7220, %v7727
    %v8345 = vadd.f32 %v7221, %v7730
    %v8346 = vadd.f32 %v7222, %v7733
    %v8347 = vadd.f32 %v7223, %v7736
    %v8348 = vadd.f32 %v7224, %v7739
    %v8349 = vadd.f32 %v7225, %v7742
    %v8350 = vadd.f32 %v7226, %v7745
    %v8351 = vadd.f32 %v7227, %v7748
    %v8352 = vadd.f32 %v7228, %v7751
    %v8353 = vadd.f32 %v7229, %v7754
    %v8354 = vadd.f32 %v7230, %v7757
    %v8355 = vadd.f32 %v7231, %v7760
    %v8356 = vadd.f32 %v7232, %v7763
    %v8357 = vadd.f32 %v7233, %v7766
    %v8358 = vadd.f32 %v7234, %v7769
    %v8359 = vadd.f32 %v7235, %v7772
    %v8360 = vadd.f32 %v7236, %v7775
    %v8361 = vadd.f32 %v7237, %v7778
    %v8362 = vadd.f32 %v7238, %v7781
    %v8363 = vadd.f32 %v7239, %v7784
    %v8364 = vadd.f32 %v7240, %v7787
    %v8365 = vadd.f32 %v7241, %v7790
    %v8366 = vadd.f32 %v7242, %v7793
    %v8367 = vadd.f32 %v7243, %v7796
    %v8368 = vadd.f32 %v7244, %v7799
    %v8369 = vadd.f32 %v7245, %v7802
    %v8370 = vadd.f32 %v7246, %v7805
    %v8371 = vadd.f32 %v7247, %v7808
    %v8372 = vadd.f32 %v7248, %v7811
    %v8373 = vadd.f32 %v7249, %v7814
    %v8374 = vadd.f32 %v7250, %v7817
    %v8375 = vadd.f32 %v7251, %v7820
    %v8376 = vadd.f32 %v7252, %v7823
    %v8377 = vadd.f32 %v7253, %v7826
    %v8378 = vadd.f32 %v7254, %v7829
    %v8379 = vadd.f32 %v7255, %v7832
    %v8380 = vadd.f32 %v7256, %v7835
    %v8381 = vadd.f32 %v7257, %v7838
    %v8382 = vadd.f32 %v7258, %v7841
    %v8383 = vadd.f32 %v7259, %v7844
    %v8384 = vadd.f32 %v7260, %v7847
    %v8385 = vadd.f32 %v7261, %v7850
    %v8386 = vadd.f32 %v7262, %v7853
    %v8387 = vadd.f32 %v7263, %v7856
    %v8388 = vadd.f32 %v7264, %v7859
    %v8389 = vadd.f32 %v7265, %v7862
    %v8390 = vadd.f32 %v7266, %v7865
    %v8391 = vadd.f32 %v7267, %v7868
    %v8392 = vadd.f32 %v7268, %v7871
    %v8393 = vadd.f32 %v7269, %v7874
    %v8394 = vadd.f32 %v7270, %v7877
    %v8395 = vadd.f32 %v7271, %v7880
    %v8396 = vadd.f32 %v7272, %v7883
    %v8397 = vadd.f32 %v7273, %v7886
    %v8398 = vadd.f32 %v7274, %v7889
    %v8399 = vadd.f32 %v7275, %v7892
    %v8400 = vadd.f32 %v7276, %v7895
    %v8401 = vadd.f32 %v7277, %v7898
    %v8402 = vadd.f32 %v7278, %v7901
    %v8403 = vadd.f32 %v7279, %v7904
    %v8404 = vadd.f32 %v7280, %v7907
    %v8405 = vadd.f32 %v7281, %v7910
    %v8406 = vadd.f32 %v7282, %v7913
    %v8407 = vadd.f32 %v7283, %v7916
    %v8408 = vadd.f32 %v7284, %v7919
    %v8409 = vadd.f32 %v7285, %v7922
    %v8410 = vadd.f32 %v7286, %v7925
    %v8411 = vadd.f32 %v7287, %v7928
    %v8412 = vadd.f32 %v7288, %v7931
    %v8413 = vadd.f32 %v7289, %v7934
    %v8414 = vadd.f32 %v7290, %v7937
    %v8415 = vadd.f32 %v7291, %v7940
    %v8416 = vadd.f32 %v7292, %v7943
    %v8417 = vadd.f32 %v7293, %v7946
    %v8418 = vadd.f32 %v7294, %v7949
    %v8419 = vadd.f32 %v7295, %v7952
    %v8420 = vadd.f32 %v7296, %v7955
    %v8421 = vadd.f32 %v7297, %v7958
    %v8422 = vadd.f32 %v7298, %v7961
    %v8423 = vadd.f32 %v7299, %v7964
    %v8424 = vadd.f32 %v7300, %v7967
    %v8425 = vadd.f32 %v7301, %v7970
    %v8426 = vadd.f32 %v7302, %v7973
    %v8427 = vadd.f32 %v7303, %v7976
    %v8428 = vadd.f32 %v7304, %v7979
    %v8429 = vadd.f32 %v7305, %v7982
    %v8430 = vadd.f32 %v7306, %v7985
    %v8431 = vadd.f32 %v7307, %v7988
    %v8432 = vadd.f32 %v7308, %v7991
    %v8433 = vadd.f32 %v7309, %v7994
    %v8434 = vadd.f32 %v7310, %v7997
    %v8435 = vadd.f32 %v7311, %v8000
    %v8436 = vadd.f32 %v7312, %v8003
    %v8437 = vadd.f32 %v7313, %v8006
    %v8438 = vadd.f32 %v7314, %v8009
    %v8439 = vadd.f32 %v7315, %v8012
    %v8440 = vadd.f32 %v7316, %v8015
    %v8441 = vadd.f32 %v7317, %v8018
    %v8442 = vadd.f32 %v7318, %v8021
    %v8443 = vadd.f32 %v7319, %v8024
    %v8444 = vadd.f32 %v7320, %v8027
    %v8445 = vadd.f32 %v7321, %v8030
    %v8446 = vadd.f32 %v7322, %v8033
    %v8447 = vadd.f32 %v7323, %v8036
    %v8448 = vadd.f32 %v7324, %v8039
    %v8449 = vadd.f32 %v7325, %v8042
    %v8450 = vadd.f32 %v7326, %v8045
    %v8451 = vadd.f32 %v7327, %v8048
    %v8452 = vadd.f32 %v7328, %v8051
    %v8453 = vadd.f32 %v7329, %v8054
    %v8454 = vadd.f32 %v7330, %v8057
    %v8455 = vadd.f32 %v7331, %v8060
    %v8456 = vadd.f32 %v7332, %v8063
    %v8457 = vadd.f32 %v7333, %v8066
    %v8458 = vadd.f32 %v7334, %v8069
    %v8459 = vadd.f32 %v7335, %v8072
    %v8460 = vadd.f32 %v7336, %v8075
    %v8461 = vadd.f32 %v7337, %v8078
    %v8462 = vadd.f32 %v7338, %v8081
    %v8463 = vadd.f32 %v7339, %v8084
    %v8464 = vadd.f32 %v7340, %v8087
    %v8465 = vadd.f32 %v7341, %v8090
    %v8466 = vadd.f32 %v7342, %v8093
    %v8467 = vadd.f32 %v7343, %v8096
    %v8468 = vadd.f32 %v7344, %v8099
    %v8469 = vadd.f32 %v7345, %v8102
    %v8470 = vadd.f32 %v7346, %v8105
    %v8471 = vadd.f32 %v7347, %v8108
    %v8472 = vadd.f32 %v7348, %v8111
    %v8473 = vadd.f32 %v7349, %v8114
    %v8474 = vadd.f32 %v7350, %v8117
    %v8475 = vadd.f32 %v7351, %v8120
    %v8476 = vadd.f32 %v7352, %v8123
    %v8477 = vadd.f32 %v7353, %v8126
    %v8478 = vadd.f32 %v7354, %v8129
    %v8479 = vadd.f32 %v7355, %v8132
    %v8480 = vadd.f32 %v7356, %v8135
    %v8481 = vadd.f32 %v7357, %v8138
    %v8482 = vadd.f32 %v7358, %v8141
    %v8483 = vadd.f32 %v7359, %v8144
    %v8484 = vadd.f32 %v7360, %v8147
    %v8485 = vadd.f32 %v7361, %v8150
    %v8486 = vadd.f32 %v7362, %v8153
    %v8487 = vadd.f32 %v7363, %v8156
    %v8488 = vadd.f32 %v7364, %v8159
    %v8489 = vadd.f32 %v7365, %v8162
    %v8490 = vadd.f32 %v7366, %v8165
    %v8491 = vadd.f32 %v7367, %v8168
    %v8492 = vadd.f32 %v7368, %v8171
    %v8493 = vadd.f32 %v7369, %v8174
    %v8494 = vadd.f32 %v7370, %v8177
    %v8495 = vadd.f32 %v7371, %v8180
    %v8496 = vadd.f32 %v7372, %v8183
    %v8497 = vadd.f32 %v7373, %v8186
    %v8498 = vadd.f32 %v7374, %v8189
    %v8499 = vadd.f32 %v7375, %v8192
    %v8500 = vadd.f32 %v7376, %v8195
    %v8501 = vadd.f32 %v7377, %v8198
    %v8502 = vadd.f32 %v7378, %v8201
    %v8503 = vadd.f32 %v7379, %v8204
    %v8504 = vadd.f32 %v7380, %v8207
    %v8505 = vadd.f32 %v7381, %v8210
    %v8506 = vadd.f32 %v7382, %v8213
    %v8507 = vadd.f32 %v7383, %v8216
    %v8508 = vadd.f32 %v7384, %v8219
    %v8509 = vadd.f32 %v7385, %v8222
    %v8510 = vadd.f32 %v7386, %v8225
    %v8511 = vadd.f32 %v7387, %v8228
    %v8512 = vadd.f32 %v7388, %v8231
    %v8513 = vadd.f32 %v7389, %v8234
    %v8514 = vadd.f32 %v7390, %v8237
    %v8515 = vadd.f32 %v7391, %v8240
    %v8516 = vadd.f32 %v7392, %v8243
    %v8517 = vadd.f32 %v7393, %v8246
    %v8518 = vadd.f32 %v7394, %v8249
    %v8519 = vadd.f32 %v7395, %v8252
    %v8520 = vadd.f32 %v7396, %v8255
    %v8521 = vadd.f32 %v7397, %v8258
    %v8522 = vadd.f32 %v7398, %v8261
    %v8523 = vadd.f32 %v7399, %v8264
    %v8524 = vadd.f32 %v7400, %v8267
    %v8525 = vrot.slane %v92, 2
    %v8526 = vrot.slane %v93, 2
    %v8527 = vsel %vm4112, %v8525, %v8526
    %v8528 = vrot.slane %v94, 2
    %v8529 = vsel %vm4112, %v8526, %v8528
    %v8530 = vrot.slane %v146, 2
    %v8531 = vrot.slane %v147, 2
    %v8532 = vsel %vm4112, %v8530, %v8531
    %v8533 = vrot.slane %v148, 2
    %v8534 = vsel %vm4112, %v8531, %v8533
    %v8535 = vrot.slane %v200, 2
    %v8536 = vrot.slane %v201, 2
    %v8537 = vsel %vm4112, %v8535, %v8536
    %v8538 = vrot.slane %v202, 2
    %v8539 = vsel %vm4112, %v8536, %v8538
    %v8540 = vrot.slane %v254, 2
    %v8541 = vrot.slane %v255, 2
    %v8542 = vsel %vm4112, %v8540, %v8541
    %v8543 = vrot.slane %v256, 2
    %v8544 = vsel %vm4112, %v8541, %v8543
    %v8545 = vrot.slane %v308, 2
    %v8546 = vrot.slane %v309, 2
    %v8547 = vsel %vm4112, %v8545, %v8546
    %v8548 = vrot.slane %v310, 2
    %v8549 = vsel %vm4112, %v8546, %v8548
    %v8550 = vrot.slane %v362, 2
    %v8551 = vrot.slane %v363, 2
    %v8552 = vsel %vm4112, %v8550, %v8551
    %v8553 = vrot.slane %v364, 2
    %v8554 = vsel %vm4112, %v8551, %v8553
    %v8555 = vrot.slane %v416, 2
    %v8556 = vrot.slane %v417, 2
    %v8557 = vsel %vm4112, %v8555, %v8556
    %v8558 = vrot.slane %v418, 2
    %v8559 = vsel %vm4112, %v8556, %v8558
    %v8560 = vrot.slane %v470, 2
    %v8561 = vrot.slane %v471, 2
    %v8562 = vsel %vm4112, %v8560, %v8561
    %v8563 = vrot.slane %v472, 2
    %v8564 = vsel %vm4112, %v8561, %v8563
    %v8565 = vsel %vm1510, %v8527, 0
    %v8567 = vsel %vm1510, %v8529, 0
    %v8569 = vsel %vm1510, %v8532, 0
    %v8571 = vsel %vm1510, %v8534, 0
    %v8573 = vsel %vm1510, %v8537, 0
    %v8575 = vsel %vm1510, %v8539, 0
    %v8577 = vsel %vm1510, %v8542, 0
    %v8579 = vsel %vm1510, %v8544, 0
    %v8581 = vsel %vm1510, %v8547, 0
    %v8583 = vsel %vm1510, %v8549, 0
    %v8585 = vsel %vm1510, %v8552, 0
    %v8587 = vsel %vm1510, %v8554, 0
    %v8589 = vsel %vm1510, %v8557, 0
    %v8591 = vsel %vm1510, %v8559, 0
    %v8593 = vsel %vm1510, %v8562, 0
    %v8595 = vsel %vm1510, %v8564, 0
    %v8598 = vsel %vm2023, %v481, 0
    %8600 = vmatpush.msra.mxu0 0.0
    %8601 = vmatpush.msra.mxu0 0.0
    %8602 = vmatpush.msra.mxu0 0.0
    %8603 = vmatpush.msra.mxu0 0.0
    %8604 = vmatpush.msra.mxu0 0.0
    %8605 = vmatpush.msra.mxu0 0.0
    %8606 = vmatpush.msra.mxu0 0.0
    %8607 = vmatpush.msra.mxu0 0.0
    %8608 = vmatpush.msra.mxu0 0.0
    %8609 = vmatpush.msra.mxu0 0.0
    %8610 = vmatpush.msra.mxu0 0.0
    %8611 = vmatpush.msra.mxu0 0.0
    %8612 = vmatpush.msra.mxu0 0.0
    %8613 = vmatpush.msra.mxu0 0.0
    %8614 = vmatpush.msra.mxu0 0.0
    %8615 = vmatpush.msra.mxu0 %v8598
    %8616 = vmatmul.f32.gmra.mxu0 %v4757
    %v8617 = vpop.f32.mrf.mxu0
    %v8618 = vadd.f32 0.0, %v8617
    %8619 = vmatmul.f32.gmra.mxu0 %v4759
    %v8620 = vpop.f32.mrf.mxu0
    %v8621 = vadd.f32 0.0, %v8620
    %8622 = vmatmul.f32.gmra.mxu0 %v4761
    %v8623 = vpop.f32.mrf.mxu0
    %v8624 = vadd.f32 0.0, %v8623
    %8625 = vmatmul.f32.gmra.mxu0 %v4763
    %v8626 = vpop.f32.mrf.mxu0
    %v8627 = vadd.f32 0.0, %v8626
    %8628 = vmatmul.f32.gmra.mxu0 %v4765
    %v8629 = vpop.f32.mrf.mxu0
    %v8630 = vadd.f32 0.0, %v8629
    %8631 = vmatmul.f32.gmra.mxu0 %v4767
    %v8632 = vpop.f32.mrf.mxu0
    %v8633 = vadd.f32 0.0, %v8632
    %8634 = vmatmul.f32.gmra.mxu0 %v4769
    %v8635 = vpop.f32.mrf.mxu0
    %v8636 = vadd.f32 0.0, %v8635
    %8637 = vmatmul.f32.gmra.mxu0 %v4771
    %v8638 = vpop.f32.mrf.mxu0
    %v8639 = vadd.f32 0.0, %v8638
    %8640 = vmatmul.f32.gmra.mxu0 %v4773
    %v8641 = vpop.f32.mrf.mxu0
    %v8642 = vadd.f32 0.0, %v8641
    %8643 = vmatmul.f32.gmra.mxu0 %v4775
    %v8644 = vpop.f32.mrf.mxu0
    %v8645 = vadd.f32 0.0, %v8644
    %8646 = vmatmul.f32.gmra.mxu0 %v4777
    %v8647 = vpop.f32.mrf.mxu0
    %v8648 = vadd.f32 0.0, %v8647
    %8649 = vmatmul.f32.gmra.mxu0 %v4779
    %v8650 = vpop.f32.mrf.mxu0
    %v8651 = vadd.f32 0.0, %v8650
    %8652 = vmatmul.f32.gmra.mxu0 %v4781
    %v8653 = vpop.f32.mrf.mxu0
    %v8654 = vadd.f32 0.0, %v8653
    %8655 = vmatmul.f32.gmra.mxu0 %v4783
    %v8656 = vpop.f32.mrf.mxu0
    %v8657 = vadd.f32 0.0, %v8656
    %8658 = vmatmul.f32.gmra.mxu0 %v4785
    %v8659 = vpop.f32.mrf.mxu0
    %v8660 = vadd.f32 0.0, %v8659
    %8661 = vmatmul.f32.gmra.mxu0 %v4787
    %v8662 = vpop.f32.mrf.mxu0
    %v8663 = vadd.f32 0.0, %v8662
    %8664 = vmatmul.f32.gmra.mxu0 %v4789
    %v8665 = vpop.f32.mrf.mxu0
    %v8666 = vadd.f32 0.0, %v8665
    %8667 = vmatmul.f32.gmra.mxu0 %v4791
    %v8668 = vpop.f32.mrf.mxu0
    %v8669 = vadd.f32 0.0, %v8668
    %8670 = vmatmul.f32.gmra.mxu0 %v4793
    %v8671 = vpop.f32.mrf.mxu0
    %v8672 = vadd.f32 0.0, %v8671
    %8673 = vmatmul.f32.gmra.mxu0 %v4795
    %v8674 = vpop.f32.mrf.mxu0
    %v8675 = vadd.f32 0.0, %v8674
    %8676 = vmatmul.f32.gmra.mxu0 %v4797
    %v8677 = vpop.f32.mrf.mxu0
    %v8678 = vadd.f32 0.0, %v8677
    %8679 = vmatmul.f32.gmra.mxu0 %v4799
    %v8680 = vpop.f32.mrf.mxu0
    %v8681 = vadd.f32 0.0, %v8680
    %8682 = vmatmul.f32.gmra.mxu0 %v4801
    %v8683 = vpop.f32.mrf.mxu0
    %v8684 = vadd.f32 0.0, %v8683
    %8685 = vmatmul.f32.gmra.mxu0 %v4803
    %v8686 = vpop.f32.mrf.mxu0
    %v8687 = vadd.f32 0.0, %v8686
    %8688 = vmatmul.f32.gmra.mxu0 %v4805
    %v8689 = vpop.f32.mrf.mxu0
    %v8690 = vadd.f32 0.0, %v8689
    %8691 = vmatmul.f32.gmra.mxu0 %v4807
    %v8692 = vpop.f32.mrf.mxu0
    %v8693 = vadd.f32 0.0, %v8692
    %8694 = vmatmul.f32.gmra.mxu0 %v4809
    %v8695 = vpop.f32.mrf.mxu0
    %v8696 = vadd.f32 0.0, %v8695
    %8697 = vmatmul.f32.gmra.mxu0 %v4811
    %v8698 = vpop.f32.mrf.mxu0
    %v8699 = vadd.f32 0.0, %v8698
    %8700 = vmatmul.f32.gmra.mxu0 %v4813
    %v8701 = vpop.f32.mrf.mxu0
    %v8702 = vadd.f32 0.0, %v8701
    %8703 = vmatmul.f32.gmra.mxu0 %v4815
    %v8704 = vpop.f32.mrf.mxu0
    %v8705 = vadd.f32 0.0, %v8704
    %8706 = vmatmul.f32.gmra.mxu0 %v8565
    %v8707 = vpop.f32.mrf.mxu0
    %v8708 = vadd.f32 0.0, %v8707
    %8709 = vmatmul.f32.gmra.mxu0 %v8567
    %v8710 = vpop.f32.mrf.mxu0
    %v8711 = vadd.f32 0.0, %v8710
    %8712 = vmatmul.f32.gmra.mxu0 %v4821
    %v8713 = vpop.f32.mrf.mxu0
    %v8714 = vadd.f32 0.0, %v8713
    %8715 = vmatmul.f32.gmra.mxu0 %v4823
    %v8716 = vpop.f32.mrf.mxu0
    %v8717 = vadd.f32 0.0, %v8716
    %8718 = vmatmul.f32.gmra.mxu0 %v4825
    %v8719 = vpop.f32.mrf.mxu0
    %v8720 = vadd.f32 0.0, %v8719
    %8721 = vmatmul.f32.gmra.mxu0 %v4827
    %v8722 = vpop.f32.mrf.mxu0
    %v8723 = vadd.f32 0.0, %v8722
    %8724 = vmatmul.f32.gmra.mxu0 %v4829
    %v8725 = vpop.f32.mrf.mxu0
    %v8726 = vadd.f32 0.0, %v8725
    %8727 = vmatmul.f32.gmra.mxu0 %v4831
    %v8728 = vpop.f32.mrf.mxu0
    %v8729 = vadd.f32 0.0, %v8728
    %8730 = vmatmul.f32.gmra.mxu0 %v4833
    %v8731 = vpop.f32.mrf.mxu0
    %v8732 = vadd.f32 0.0, %v8731
    %8733 = vmatmul.f32.gmra.mxu0 %v4835
    %v8734 = vpop.f32.mrf.mxu0
    %v8735 = vadd.f32 0.0, %v8734
    %8736 = vmatmul.f32.gmra.mxu0 %v4837
    %v8737 = vpop.f32.mrf.mxu0
    %v8738 = vadd.f32 0.0, %v8737
    %8739 = vmatmul.f32.gmra.mxu0 %v4839
    %v8740 = vpop.f32.mrf.mxu0
    %v8741 = vadd.f32 0.0, %v8740
    %8742 = vmatmul.f32.gmra.mxu0 %v4841
    %v8743 = vpop.f32.mrf.mxu0
    %v8744 = vadd.f32 0.0, %v8743
    %8745 = vmatmul.f32.gmra.mxu0 %v4843
    %v8746 = vpop.f32.mrf.mxu0
    %v8747 = vadd.f32 0.0, %v8746
    %8748 = vmatmul.f32.gmra.mxu0 %v4845
    %v8749 = vpop.f32.mrf.mxu0
    %v8750 = vadd.f32 0.0, %v8749
    %8751 = vmatmul.f32.gmra.mxu0 %v4847
    %v8752 = vpop.f32.mrf.mxu0
    %v8753 = vadd.f32 0.0, %v8752
    %8754 = vmatmul.f32.gmra.mxu0 %v4849
    %v8755 = vpop.f32.mrf.mxu0
    %v8756 = vadd.f32 0.0, %v8755
    %8757 = vmatmul.f32.gmra.mxu0 %v4851
    %v8758 = vpop.f32.mrf.mxu0
    %v8759 = vadd.f32 0.0, %v8758
    %8760 = vmatmul.f32.gmra.mxu0 %v4853
    %v8761 = vpop.f32.mrf.mxu0
    %v8762 = vadd.f32 0.0, %v8761
    %8763 = vmatmul.f32.gmra.mxu0 %v4855
    %v8764 = vpop.f32.mrf.mxu0
    %v8765 = vadd.f32 0.0, %v8764
    %8766 = vmatmul.f32.gmra.mxu0 %v4857
    %v8767 = vpop.f32.mrf.mxu0
    %v8768 = vadd.f32 0.0, %v8767
    %8769 = vmatmul.f32.gmra.mxu0 %v4859
    %v8770 = vpop.f32.mrf.mxu0
    %v8771 = vadd.f32 0.0, %v8770
    %8772 = vmatmul.f32.gmra.mxu0 %v4861
    %v8773 = vpop.f32.mrf.mxu0
    %v8774 = vadd.f32 0.0, %v8773
    %8775 = vmatmul.f32.gmra.mxu0 %v4863
    %v8776 = vpop.f32.mrf.mxu0
    %v8777 = vadd.f32 0.0, %v8776
    %8778 = vmatmul.f32.gmra.mxu0 %v4865
    %v8779 = vpop.f32.mrf.mxu0
    %v8780 = vadd.f32 0.0, %v8779
    %8781 = vmatmul.f32.gmra.mxu0 %v4867
    %v8782 = vpop.f32.mrf.mxu0
    %v8783 = vadd.f32 0.0, %v8782
    %8784 = vmatmul.f32.gmra.mxu0 %v4869
    %v8785 = vpop.f32.mrf.mxu0
    %v8786 = vadd.f32 0.0, %v8785
    %8787 = vmatmul.f32.gmra.mxu0 %v4871
    %v8788 = vpop.f32.mrf.mxu0
    %v8789 = vadd.f32 0.0, %v8788
    %8790 = vmatmul.f32.gmra.mxu0 %v4873
    %v8791 = vpop.f32.mrf.mxu0
    %v8792 = vadd.f32 0.0, %v8791
    %8793 = vmatmul.f32.gmra.mxu0 %v4875
    %v8794 = vpop.f32.mrf.mxu0
    %v8795 = vadd.f32 0.0, %v8794
    %8796 = vmatmul.f32.gmra.mxu0 %v4877
    %v8797 = vpop.f32.mrf.mxu0
    %v8798 = vadd.f32 0.0, %v8797
    %8799 = vmatmul.f32.gmra.mxu0 %v4879
    %v8800 = vpop.f32.mrf.mxu0
    %v8801 = vadd.f32 0.0, %v8800
    %8802 = vmatmul.f32.gmra.mxu0 %v8569
    %v8803 = vpop.f32.mrf.mxu0
    %v8804 = vadd.f32 0.0, %v8803
    %8805 = vmatmul.f32.gmra.mxu0 %v8571
    %v8806 = vpop.f32.mrf.mxu0
    %v8807 = vadd.f32 0.0, %v8806
    %8808 = vmatmul.f32.gmra.mxu0 %v4885
    %v8809 = vpop.f32.mrf.mxu0
    %v8810 = vadd.f32 0.0, %v8809
    %8811 = vmatmul.f32.gmra.mxu0 %v4887
    %v8812 = vpop.f32.mrf.mxu0
    %v8813 = vadd.f32 0.0, %v8812
    %8814 = vmatmul.f32.gmra.mxu0 %v4889
    %v8815 = vpop.f32.mrf.mxu0
    %v8816 = vadd.f32 0.0, %v8815
    %8817 = vmatmul.f32.gmra.mxu0 %v4891
    %v8818 = vpop.f32.mrf.mxu0
    %v8819 = vadd.f32 0.0, %v8818
    %8820 = vmatmul.f32.gmra.mxu0 %v4893
    %v8821 = vpop.f32.mrf.mxu0
    %v8822 = vadd.f32 0.0, %v8821
    %8823 = vmatmul.f32.gmra.mxu0 %v4895
    %v8824 = vpop.f32.mrf.mxu0
    %v8825 = vadd.f32 0.0, %v8824
    %8826 = vmatmul.f32.gmra.mxu0 %v4897
    %v8827 = vpop.f32.mrf.mxu0
    %v8828 = vadd.f32 0.0, %v8827
    %8829 = vmatmul.f32.gmra.mxu0 %v4899
    %v8830 = vpop.f32.mrf.mxu0
    %v8831 = vadd.f32 0.0, %v8830
    %8832 = vmatmul.f32.gmra.mxu0 %v4901
    %v8833 = vpop.f32.mrf.mxu0
    %v8834 = vadd.f32 0.0, %v8833
    %8835 = vmatmul.f32.gmra.mxu0 %v4903
    %v8836 = vpop.f32.mrf.mxu0
    %v8837 = vadd.f32 0.0, %v8836
    %8838 = vmatmul.f32.gmra.mxu0 %v4905
    %v8839 = vpop.f32.mrf.mxu0
    %v8840 = vadd.f32 0.0, %v8839
    %8841 = vmatmul.f32.gmra.mxu0 %v4907
    %v8842 = vpop.f32.mrf.mxu0
    %v8843 = vadd.f32 0.0, %v8842
    %8844 = vmatmul.f32.gmra.mxu0 %v4909
    %v8845 = vpop.f32.mrf.mxu0
    %v8846 = vadd.f32 0.0, %v8845
    %8847 = vmatmul.f32.gmra.mxu0 %v4911
    %v8848 = vpop.f32.mrf.mxu0
    %v8849 = vadd.f32 0.0, %v8848
    %8850 = vmatmul.f32.gmra.mxu0 %v4913
    %v8851 = vpop.f32.mrf.mxu0
    %v8852 = vadd.f32 0.0, %v8851
    %8853 = vmatmul.f32.gmra.mxu0 %v4915
    %v8854 = vpop.f32.mrf.mxu0
    %v8855 = vadd.f32 0.0, %v8854
    %8856 = vmatmul.f32.gmra.mxu0 %v4917
    %v8857 = vpop.f32.mrf.mxu0
    %v8858 = vadd.f32 0.0, %v8857
    %8859 = vmatmul.f32.gmra.mxu0 %v4919
    %v8860 = vpop.f32.mrf.mxu0
    %v8861 = vadd.f32 0.0, %v8860
    %8862 = vmatmul.f32.gmra.mxu0 %v4921
    %v8863 = vpop.f32.mrf.mxu0
    %v8864 = vadd.f32 0.0, %v8863
    %8865 = vmatmul.f32.gmra.mxu0 %v4923
    %v8866 = vpop.f32.mrf.mxu0
    %v8867 = vadd.f32 0.0, %v8866
    %8868 = vmatmul.f32.gmra.mxu0 %v4925
    %v8869 = vpop.f32.mrf.mxu0
    %v8870 = vadd.f32 0.0, %v8869
    %8871 = vmatmul.f32.gmra.mxu0 %v4927
    %v8872 = vpop.f32.mrf.mxu0
    %v8873 = vadd.f32 0.0, %v8872
    %8874 = vmatmul.f32.gmra.mxu0 %v4929
    %v8875 = vpop.f32.mrf.mxu0
    %v8876 = vadd.f32 0.0, %v8875
    %8877 = vmatmul.f32.gmra.mxu0 %v4931
    %v8878 = vpop.f32.mrf.mxu0
    %v8879 = vadd.f32 0.0, %v8878
    %8880 = vmatmul.f32.gmra.mxu0 %v4933
    %v8881 = vpop.f32.mrf.mxu0
    %v8882 = vadd.f32 0.0, %v8881
    %8883 = vmatmul.f32.gmra.mxu0 %v4935
    %v8884 = vpop.f32.mrf.mxu0
    %v8885 = vadd.f32 0.0, %v8884
    %8886 = vmatmul.f32.gmra.mxu0 %v4937
    %v8887 = vpop.f32.mrf.mxu0
    %v8888 = vadd.f32 0.0, %v8887
    %8889 = vmatmul.f32.gmra.mxu0 %v4939
    %v8890 = vpop.f32.mrf.mxu0
    %v8891 = vadd.f32 0.0, %v8890
    %8892 = vmatmul.f32.gmra.mxu0 %v4941
    %v8893 = vpop.f32.mrf.mxu0
    %v8894 = vadd.f32 0.0, %v8893
    %8895 = vmatmul.f32.gmra.mxu0 %v4943
    %v8896 = vpop.f32.mrf.mxu0
    %v8897 = vadd.f32 0.0, %v8896
    %8898 = vmatmul.f32.gmra.mxu0 %v8573
    %v8899 = vpop.f32.mrf.mxu0
    %v8900 = vadd.f32 0.0, %v8899
    %8901 = vmatmul.f32.gmra.mxu0 %v8575
    %v8902 = vpop.f32.mrf.mxu0
    %v8903 = vadd.f32 0.0, %v8902
    %8904 = vmatmul.f32.gmra.mxu0 %v4949
    %v8905 = vpop.f32.mrf.mxu0
    %v8906 = vadd.f32 0.0, %v8905
    %8907 = vmatmul.f32.gmra.mxu0 %v4951
    %v8908 = vpop.f32.mrf.mxu0
    %v8909 = vadd.f32 0.0, %v8908
    %8910 = vmatmul.f32.gmra.mxu0 %v4953
    %v8911 = vpop.f32.mrf.mxu0
    %v8912 = vadd.f32 0.0, %v8911
    %8913 = vmatmul.f32.gmra.mxu0 %v4955
    %v8914 = vpop.f32.mrf.mxu0
    %v8915 = vadd.f32 0.0, %v8914
    %8916 = vmatmul.f32.gmra.mxu0 %v4957
    %v8917 = vpop.f32.mrf.mxu0
    %v8918 = vadd.f32 0.0, %v8917
    %8919 = vmatmul.f32.gmra.mxu0 %v4959
    %v8920 = vpop.f32.mrf.mxu0
    %v8921 = vadd.f32 0.0, %v8920
    %8922 = vmatmul.f32.gmra.mxu0 %v4961
    %v8923 = vpop.f32.mrf.mxu0
    %v8924 = vadd.f32 0.0, %v8923
    %8925 = vmatmul.f32.gmra.mxu0 %v4963
    %v8926 = vpop.f32.mrf.mxu0
    %v8927 = vadd.f32 0.0, %v8926
    %8928 = vmatmul.f32.gmra.mxu0 %v4965
    %v8929 = vpop.f32.mrf.mxu0
    %v8930 = vadd.f32 0.0, %v8929
    %8931 = vmatmul.f32.gmra.mxu0 %v4967
    %v8932 = vpop.f32.mrf.mxu0
    %v8933 = vadd.f32 0.0, %v8932
    %8934 = vmatmul.f32.gmra.mxu0 %v4969
    %v8935 = vpop.f32.mrf.mxu0
    %v8936 = vadd.f32 0.0, %v8935
    %8937 = vmatmul.f32.gmra.mxu0 %v4971
    %v8938 = vpop.f32.mrf.mxu0
    %v8939 = vadd.f32 0.0, %v8938
    %8940 = vmatmul.f32.gmra.mxu0 %v4973
    %v8941 = vpop.f32.mrf.mxu0
    %v8942 = vadd.f32 0.0, %v8941
    %8943 = vmatmul.f32.gmra.mxu0 %v4975
    %v8944 = vpop.f32.mrf.mxu0
    %v8945 = vadd.f32 0.0, %v8944
    %8946 = vmatmul.f32.gmra.mxu0 %v4977
    %v8947 = vpop.f32.mrf.mxu0
    %v8948 = vadd.f32 0.0, %v8947
    %8949 = vmatmul.f32.gmra.mxu0 %v4979
    %v8950 = vpop.f32.mrf.mxu0
    %v8951 = vadd.f32 0.0, %v8950
    %8952 = vmatmul.f32.gmra.mxu0 %v4981
    %v8953 = vpop.f32.mrf.mxu0
    %v8954 = vadd.f32 0.0, %v8953
    %8955 = vmatmul.f32.gmra.mxu0 %v4983
    %v8956 = vpop.f32.mrf.mxu0
    %v8957 = vadd.f32 0.0, %v8956
    %8958 = vmatmul.f32.gmra.mxu0 %v4985
    %v8959 = vpop.f32.mrf.mxu0
    %v8960 = vadd.f32 0.0, %v8959
    %8961 = vmatmul.f32.gmra.mxu0 %v4987
    %v8962 = vpop.f32.mrf.mxu0
    %v8963 = vadd.f32 0.0, %v8962
    %8964 = vmatmul.f32.gmra.mxu0 %v4989
    %v8965 = vpop.f32.mrf.mxu0
    %v8966 = vadd.f32 0.0, %v8965
    %8967 = vmatmul.f32.gmra.mxu0 %v4991
    %v8968 = vpop.f32.mrf.mxu0
    %v8969 = vadd.f32 0.0, %v8968
    %8970 = vmatmul.f32.gmra.mxu0 %v4993
    %v8971 = vpop.f32.mrf.mxu0
    %v8972 = vadd.f32 0.0, %v8971
    %8973 = vmatmul.f32.gmra.mxu0 %v4995
    %v8974 = vpop.f32.mrf.mxu0
    %v8975 = vadd.f32 0.0, %v8974
    %8976 = vmatmul.f32.gmra.mxu0 %v4997
    %v8977 = vpop.f32.mrf.mxu0
    %v8978 = vadd.f32 0.0, %v8977
    %8979 = vmatmul.f32.gmra.mxu0 %v4999
    %v8980 = vpop.f32.mrf.mxu0
    %v8981 = vadd.f32 0.0, %v8980
    %8982 = vmatmul.f32.gmra.mxu0 %v5001
    %v8983 = vpop.f32.mrf.mxu0
    %v8984 = vadd.f32 0.0, %v8983
    %8985 = vmatmul.f32.gmra.mxu0 %v5003
    %v8986 = vpop.f32.mrf.mxu0
    %v8987 = vadd.f32 0.0, %v8986
    %8988 = vmatmul.f32.gmra.mxu0 %v5005
    %v8989 = vpop.f32.mrf.mxu0
    %v8990 = vadd.f32 0.0, %v8989
    %8991 = vmatmul.f32.gmra.mxu0 %v5007
    %v8992 = vpop.f32.mrf.mxu0
    %v8993 = vadd.f32 0.0, %v8992
    %8994 = vmatmul.f32.gmra.mxu0 %v8577
    %v8995 = vpop.f32.mrf.mxu0
    %v8996 = vadd.f32 0.0, %v8995
    %8997 = vmatmul.f32.gmra.mxu0 %v8579
    %v8998 = vpop.f32.mrf.mxu0
    %v8999 = vadd.f32 0.0, %v8998
    %9000 = vmatmul.f32.gmra.mxu0 %v5013
    %v9001 = vpop.f32.mrf.mxu0
    %v9002 = vadd.f32 0.0, %v9001
    %9003 = vmatmul.f32.gmra.mxu0 %v5015
    %v9004 = vpop.f32.mrf.mxu0
    %v9005 = vadd.f32 0.0, %v9004
    %9006 = vmatmul.f32.gmra.mxu0 %v5017
    %v9007 = vpop.f32.mrf.mxu0
    %v9008 = vadd.f32 0.0, %v9007
    %9009 = vmatmul.f32.gmra.mxu0 %v5019
    %v9010 = vpop.f32.mrf.mxu0
    %v9011 = vadd.f32 0.0, %v9010
    %9012 = vmatmul.f32.gmra.mxu0 %v5021
    %v9013 = vpop.f32.mrf.mxu0
    %v9014 = vadd.f32 0.0, %v9013
    %9015 = vmatmul.f32.gmra.mxu0 %v5023
    %v9016 = vpop.f32.mrf.mxu0
    %v9017 = vadd.f32 0.0, %v9016
    %9018 = vmatmul.f32.gmra.mxu0 %v5025
    %v9019 = vpop.f32.mrf.mxu0
    %v9020 = vadd.f32 0.0, %v9019
    %9021 = vmatmul.f32.gmra.mxu0 %v5027
    %v9022 = vpop.f32.mrf.mxu0
    %v9023 = vadd.f32 0.0, %v9022
    %9024 = vmatmul.f32.gmra.mxu0 %v5029
    %v9025 = vpop.f32.mrf.mxu0
    %v9026 = vadd.f32 0.0, %v9025
    %9027 = vmatmul.f32.gmra.mxu0 %v5031
    %v9028 = vpop.f32.mrf.mxu0
    %v9029 = vadd.f32 0.0, %v9028
    %9030 = vmatmul.f32.gmra.mxu0 %v5033
    %v9031 = vpop.f32.mrf.mxu0
    %v9032 = vadd.f32 0.0, %v9031
    %9033 = vmatmul.f32.gmra.mxu0 %v5035
    %v9034 = vpop.f32.mrf.mxu0
    %v9035 = vadd.f32 0.0, %v9034
    %9036 = vmatmul.f32.gmra.mxu0 %v5037
    %v9037 = vpop.f32.mrf.mxu0
    %v9038 = vadd.f32 0.0, %v9037
    %9039 = vmatmul.f32.gmra.mxu0 %v5039
    %v9040 = vpop.f32.mrf.mxu0
    %v9041 = vadd.f32 0.0, %v9040
    %9042 = vmatmul.f32.gmra.mxu0 %v5041
    %v9043 = vpop.f32.mrf.mxu0
    %v9044 = vadd.f32 0.0, %v9043
    %9045 = vmatmul.f32.gmra.mxu0 %v5043
    %v9046 = vpop.f32.mrf.mxu0
    %v9047 = vadd.f32 0.0, %v9046
    %9048 = vmatmul.f32.gmra.mxu0 %v5045
    %v9049 = vpop.f32.mrf.mxu0
    %v9050 = vadd.f32 0.0, %v9049
    %9051 = vmatmul.f32.gmra.mxu0 %v5047
    %v9052 = vpop.f32.mrf.mxu0
    %v9053 = vadd.f32 0.0, %v9052
    %9054 = vmatmul.f32.gmra.mxu0 %v5049
    %v9055 = vpop.f32.mrf.mxu0
    %v9056 = vadd.f32 0.0, %v9055
    %9057 = vmatmul.f32.gmra.mxu0 %v5051
    %v9058 = vpop.f32.mrf.mxu0
    %v9059 = vadd.f32 0.0, %v9058
    %9060 = vmatmul.f32.gmra.mxu0 %v5053
    %v9061 = vpop.f32.mrf.mxu0
    %v9062 = vadd.f32 0.0, %v9061
    %9063 = vmatmul.f32.gmra.mxu0 %v5055
    %v9064 = vpop.f32.mrf.mxu0
    %v9065 = vadd.f32 0.0, %v9064
    %9066 = vmatmul.f32.gmra.mxu0 %v5057
    %v9067 = vpop.f32.mrf.mxu0
    %v9068 = vadd.f32 0.0, %v9067
    %9069 = vmatmul.f32.gmra.mxu0 %v5059
    %v9070 = vpop.f32.mrf.mxu0
    %v9071 = vadd.f32 0.0, %v9070
    %9072 = vmatmul.f32.gmra.mxu0 %v5061
    %v9073 = vpop.f32.mrf.mxu0
    %v9074 = vadd.f32 0.0, %v9073
    %9075 = vmatmul.f32.gmra.mxu0 %v5063
    %v9076 = vpop.f32.mrf.mxu0
    %v9077 = vadd.f32 0.0, %v9076
    %9078 = vmatmul.f32.gmra.mxu0 %v5065
    %v9079 = vpop.f32.mrf.mxu0
    %v9080 = vadd.f32 0.0, %v9079
    %9081 = vmatmul.f32.gmra.mxu0 %v5067
    %v9082 = vpop.f32.mrf.mxu0
    %v9083 = vadd.f32 0.0, %v9082
    %9084 = vmatmul.f32.gmra.mxu0 %v5069
    %v9085 = vpop.f32.mrf.mxu0
    %v9086 = vadd.f32 0.0, %v9085
    %9087 = vmatmul.f32.gmra.mxu0 %v5071
    %v9088 = vpop.f32.mrf.mxu0
    %v9089 = vadd.f32 0.0, %v9088
    %9090 = vmatmul.f32.gmra.mxu0 %v8581
    %v9091 = vpop.f32.mrf.mxu0
    %v9092 = vadd.f32 0.0, %v9091
    %9093 = vmatmul.f32.gmra.mxu0 %v8583
    %v9094 = vpop.f32.mrf.mxu0
    %v9095 = vadd.f32 0.0, %v9094
    %9096 = vmatmul.f32.gmra.mxu0 %v5077
    %v9097 = vpop.f32.mrf.mxu0
    %v9098 = vadd.f32 0.0, %v9097
    %9099 = vmatmul.f32.gmra.mxu0 %v5079
    %v9100 = vpop.f32.mrf.mxu0
    %v9101 = vadd.f32 0.0, %v9100
    %9102 = vmatmul.f32.gmra.mxu0 %v5081
    %v9103 = vpop.f32.mrf.mxu0
    %v9104 = vadd.f32 0.0, %v9103
    %9105 = vmatmul.f32.gmra.mxu0 %v5083
    %v9106 = vpop.f32.mrf.mxu0
    %v9107 = vadd.f32 0.0, %v9106
    %9108 = vmatmul.f32.gmra.mxu0 %v5085
    %v9109 = vpop.f32.mrf.mxu0
    %v9110 = vadd.f32 0.0, %v9109
    %9111 = vmatmul.f32.gmra.mxu0 %v5087
    %v9112 = vpop.f32.mrf.mxu0
    %v9113 = vadd.f32 0.0, %v9112
    %9114 = vmatmul.f32.gmra.mxu0 %v5089
    %v9115 = vpop.f32.mrf.mxu0
    %v9116 = vadd.f32 0.0, %v9115
    %9117 = vmatmul.f32.gmra.mxu0 %v5091
    %v9118 = vpop.f32.mrf.mxu0
    %v9119 = vadd.f32 0.0, %v9118
    %9120 = vmatmul.f32.gmra.mxu0 %v5093
    %v9121 = vpop.f32.mrf.mxu0
    %v9122 = vadd.f32 0.0, %v9121
    %9123 = vmatmul.f32.gmra.mxu0 %v5095
    %v9124 = vpop.f32.mrf.mxu0
    %v9125 = vadd.f32 0.0, %v9124
    %9126 = vmatmul.f32.gmra.mxu0 %v5097
    %v9127 = vpop.f32.mrf.mxu0
    %v9128 = vadd.f32 0.0, %v9127
    %9129 = vmatmul.f32.gmra.mxu0 %v5099
    %v9130 = vpop.f32.mrf.mxu0
    %v9131 = vadd.f32 0.0, %v9130
    %9132 = vmatmul.f32.gmra.mxu0 %v5101
    %v9133 = vpop.f32.mrf.mxu0
    %v9134 = vadd.f32 0.0, %v9133
    %9135 = vmatmul.f32.gmra.mxu0 %v5103
    %v9136 = vpop.f32.mrf.mxu0
    %v9137 = vadd.f32 0.0, %v9136
    %9138 = vmatmul.f32.gmra.mxu0 %v5105
    %v9139 = vpop.f32.mrf.mxu0
    %v9140 = vadd.f32 0.0, %v9139
    %9141 = vmatmul.f32.gmra.mxu0 %v5107
    %v9142 = vpop.f32.mrf.mxu0
    %v9143 = vadd.f32 0.0, %v9142
    %9144 = vmatmul.f32.gmra.mxu0 %v5109
    %v9145 = vpop.f32.mrf.mxu0
    %v9146 = vadd.f32 0.0, %v9145
    %9147 = vmatmul.f32.gmra.mxu0 %v5111
    %v9148 = vpop.f32.mrf.mxu0
    %v9149 = vadd.f32 0.0, %v9148
    %9150 = vmatmul.f32.gmra.mxu0 %v5113
    %v9151 = vpop.f32.mrf.mxu0
    %v9152 = vadd.f32 0.0, %v9151
    %9153 = vmatmul.f32.gmra.mxu0 %v5115
    %v9154 = vpop.f32.mrf.mxu0
    %v9155 = vadd.f32 0.0, %v9154
    %9156 = vmatmul.f32.gmra.mxu0 %v5117
    %v9157 = vpop.f32.mrf.mxu0
    %v9158 = vadd.f32 0.0, %v9157
    %9159 = vmatmul.f32.gmra.mxu0 %v5119
    %v9160 = vpop.f32.mrf.mxu0
    %v9161 = vadd.f32 0.0, %v9160
    %9162 = vmatmul.f32.gmra.mxu0 %v5121
    %v9163 = vpop.f32.mrf.mxu0
    %v9164 = vadd.f32 0.0, %v9163
    %9165 = vmatmul.f32.gmra.mxu0 %v5123
    %v9166 = vpop.f32.mrf.mxu0
    %v9167 = vadd.f32 0.0, %v9166
    %9168 = vmatmul.f32.gmra.mxu0 %v5125
    %v9169 = vpop.f32.mrf.mxu0
    %v9170 = vadd.f32 0.0, %v9169
    %9171 = vmatmul.f32.gmra.mxu0 %v5127
    %v9172 = vpop.f32.mrf.mxu0
    %v9173 = vadd.f32 0.0, %v9172
    %9174 = vmatmul.f32.gmra.mxu0 %v5129
    %v9175 = vpop.f32.mrf.mxu0
    %v9176 = vadd.f32 0.0, %v9175
    %9177 = vmatmul.f32.gmra.mxu0 %v5131
    %v9178 = vpop.f32.mrf.mxu0
    %v9179 = vadd.f32 0.0, %v9178
    %9180 = vmatmul.f32.gmra.mxu0 %v5133
    %v9181 = vpop.f32.mrf.mxu0
    %v9182 = vadd.f32 0.0, %v9181
    %9183 = vmatmul.f32.gmra.mxu0 %v5135
    %v9184 = vpop.f32.mrf.mxu0
    %v9185 = vadd.f32 0.0, %v9184
    %9186 = vmatmul.f32.gmra.mxu0 %v8585
    %v9187 = vpop.f32.mrf.mxu0
    %v9188 = vadd.f32 0.0, %v9187
    %9189 = vmatmul.f32.gmra.mxu0 %v8587
    %v9190 = vpop.f32.mrf.mxu0
    %v9191 = vadd.f32 0.0, %v9190
    %9192 = vmatmul.f32.gmra.mxu0 %v5141
    %v9193 = vpop.f32.mrf.mxu0
    %v9194 = vadd.f32 0.0, %v9193
    %9195 = vmatmul.f32.gmra.mxu0 %v5143
    %v9196 = vpop.f32.mrf.mxu0
    %v9197 = vadd.f32 0.0, %v9196
    %9198 = vmatmul.f32.gmra.mxu0 %v5145
    %v9199 = vpop.f32.mrf.mxu0
    %v9200 = vadd.f32 0.0, %v9199
    %9201 = vmatmul.f32.gmra.mxu0 %v5147
    %v9202 = vpop.f32.mrf.mxu0
    %v9203 = vadd.f32 0.0, %v9202
    %9204 = vmatmul.f32.gmra.mxu0 %v5149
    %v9205 = vpop.f32.mrf.mxu0
    %v9206 = vadd.f32 0.0, %v9205
    %9207 = vmatmul.f32.gmra.mxu0 %v5151
    %v9208 = vpop.f32.mrf.mxu0
    %v9209 = vadd.f32 0.0, %v9208
    %9210 = vmatmul.f32.gmra.mxu0 %v5153
    %v9211 = vpop.f32.mrf.mxu0
    %v9212 = vadd.f32 0.0, %v9211
    %9213 = vmatmul.f32.gmra.mxu0 %v5155
    %v9214 = vpop.f32.mrf.mxu0
    %v9215 = vadd.f32 0.0, %v9214
    %9216 = vmatmul.f32.gmra.mxu0 %v5157
    %v9217 = vpop.f32.mrf.mxu0
    %v9218 = vadd.f32 0.0, %v9217
    %9219 = vmatmul.f32.gmra.mxu0 %v5159
    %v9220 = vpop.f32.mrf.mxu0
    %v9221 = vadd.f32 0.0, %v9220
    %9222 = vmatmul.f32.gmra.mxu0 %v5161
    %v9223 = vpop.f32.mrf.mxu0
    %v9224 = vadd.f32 0.0, %v9223
    %9225 = vmatmul.f32.gmra.mxu0 %v5163
    %v9226 = vpop.f32.mrf.mxu0
    %v9227 = vadd.f32 0.0, %v9226
    %9228 = vmatmul.f32.gmra.mxu0 %v5165
    %v9229 = vpop.f32.mrf.mxu0
    %v9230 = vadd.f32 0.0, %v9229
    %9231 = vmatmul.f32.gmra.mxu0 %v5167
    %v9232 = vpop.f32.mrf.mxu0
    %v9233 = vadd.f32 0.0, %v9232
    %9234 = vmatmul.f32.gmra.mxu0 %v5169
    %v9235 = vpop.f32.mrf.mxu0
    %v9236 = vadd.f32 0.0, %v9235
    %9237 = vmatmul.f32.gmra.mxu0 %v5171
    %v9238 = vpop.f32.mrf.mxu0
    %v9239 = vadd.f32 0.0, %v9238
    %9240 = vmatmul.f32.gmra.mxu0 %v5173
    %v9241 = vpop.f32.mrf.mxu0
    %v9242 = vadd.f32 0.0, %v9241
    %9243 = vmatmul.f32.gmra.mxu0 %v5175
    %v9244 = vpop.f32.mrf.mxu0
    %v9245 = vadd.f32 0.0, %v9244
    %9246 = vmatmul.f32.gmra.mxu0 %v5177
    %v9247 = vpop.f32.mrf.mxu0
    %v9248 = vadd.f32 0.0, %v9247
    %9249 = vmatmul.f32.gmra.mxu0 %v5179
    %v9250 = vpop.f32.mrf.mxu0
    %v9251 = vadd.f32 0.0, %v9250
    %9252 = vmatmul.f32.gmra.mxu0 %v5181
    %v9253 = vpop.f32.mrf.mxu0
    %v9254 = vadd.f32 0.0, %v9253
    %9255 = vmatmul.f32.gmra.mxu0 %v5183
    %v9256 = vpop.f32.mrf.mxu0
    %v9257 = vadd.f32 0.0, %v9256
    %9258 = vmatmul.f32.gmra.mxu0 %v5185
    %v9259 = vpop.f32.mrf.mxu0
    %v9260 = vadd.f32 0.0, %v9259
    %9261 = vmatmul.f32.gmra.mxu0 %v5187
    %v9262 = vpop.f32.mrf.mxu0
    %v9263 = vadd.f32 0.0, %v9262
    %9264 = vmatmul.f32.gmra.mxu0 %v5189
    %v9265 = vpop.f32.mrf.mxu0
    %v9266 = vadd.f32 0.0, %v9265
    %9267 = vmatmul.f32.gmra.mxu0 %v5191
    %v9268 = vpop.f32.mrf.mxu0
    %v9269 = vadd.f32 0.0, %v9268
    %9270 = vmatmul.f32.gmra.mxu0 %v5193
    %v9271 = vpop.f32.mrf.mxu0
    %v9272 = vadd.f32 0.0, %v9271
    %9273 = vmatmul.f32.gmra.mxu0 %v5195
    %v9274 = vpop.f32.mrf.mxu0
    %v9275 = vadd.f32 0.0, %v9274
    %9276 = vmatmul.f32.gmra.mxu0 %v5197
    %v9277 = vpop.f32.mrf.mxu0
    %v9278 = vadd.f32 0.0, %v9277
    %9279 = vmatmul.f32.gmra.mxu0 %v5199
    %v9280 = vpop.f32.mrf.mxu0
    %v9281 = vadd.f32 0.0, %v9280
    %9282 = vmatmul.f32.gmra.mxu0 %v8589
    %v9283 = vpop.f32.mrf.mxu0
    %v9284 = vadd.f32 0.0, %v9283
    %9285 = vmatmul.f32.gmra.mxu0 %v8591
    %v9286 = vpop.f32.mrf.mxu0
    %v9287 = vadd.f32 0.0, %v9286
    %9288 = vmatmul.f32.gmra.mxu0 %v5205
    %v9289 = vpop.f32.mrf.mxu0
    %v9290 = vadd.f32 0.0, %v9289
    %9291 = vmatmul.f32.gmra.mxu0 %v5207
    %v9292 = vpop.f32.mrf.mxu0
    %v9293 = vadd.f32 0.0, %v9292
    %9294 = vmatmul.f32.gmra.mxu0 %v5209
    %v9295 = vpop.f32.mrf.mxu0
    %v9296 = vadd.f32 0.0, %v9295
    %9297 = vmatmul.f32.gmra.mxu0 %v5211
    %v9298 = vpop.f32.mrf.mxu0
    %v9299 = vadd.f32 0.0, %v9298
    %9300 = vmatmul.f32.gmra.mxu0 %v5213
    %v9301 = vpop.f32.mrf.mxu0
    %v9302 = vadd.f32 0.0, %v9301
    %9303 = vmatmul.f32.gmra.mxu0 %v5215
    %v9304 = vpop.f32.mrf.mxu0
    %v9305 = vadd.f32 0.0, %v9304
    %9306 = vmatmul.f32.gmra.mxu0 %v5217
    %v9307 = vpop.f32.mrf.mxu0
    %v9308 = vadd.f32 0.0, %v9307
    %9309 = vmatmul.f32.gmra.mxu0 %v5219
    %v9310 = vpop.f32.mrf.mxu0
    %v9311 = vadd.f32 0.0, %v9310
    %9312 = vmatmul.f32.gmra.mxu0 %v5221
    %v9313 = vpop.f32.mrf.mxu0
    %v9314 = vadd.f32 0.0, %v9313
    %9315 = vmatmul.f32.gmra.mxu0 %v5223
    %v9316 = vpop.f32.mrf.mxu0
    %v9317 = vadd.f32 0.0, %v9316
    %9318 = vmatmul.f32.gmra.mxu0 %v5225
    %v9319 = vpop.f32.mrf.mxu0
    %v9320 = vadd.f32 0.0, %v9319
    %9321 = vmatmul.f32.gmra.mxu0 %v5227
    %v9322 = vpop.f32.mrf.mxu0
    %v9323 = vadd.f32 0.0, %v9322
    %9324 = vmatmul.f32.gmra.mxu0 %v5229
    %v9325 = vpop.f32.mrf.mxu0
    %v9326 = vadd.f32 0.0, %v9325
    %9327 = vmatmul.f32.gmra.mxu0 %v5231
    %v9328 = vpop.f32.mrf.mxu0
    %v9329 = vadd.f32 0.0, %v9328
    %9330 = vmatmul.f32.gmra.mxu0 %v5233
    %v9331 = vpop.f32.mrf.mxu0
    %v9332 = vadd.f32 0.0, %v9331
    %9333 = vmatmul.f32.gmra.mxu0 %v5235
    %v9334 = vpop.f32.mrf.mxu0
    %v9335 = vadd.f32 0.0, %v9334
    %9336 = vmatmul.f32.gmra.mxu0 %v5237
    %v9337 = vpop.f32.mrf.mxu0
    %v9338 = vadd.f32 0.0, %v9337
    %9339 = vmatmul.f32.gmra.mxu0 %v5239
    %v9340 = vpop.f32.mrf.mxu0
    %v9341 = vadd.f32 0.0, %v9340
    %9342 = vmatmul.f32.gmra.mxu0 %v5241
    %v9343 = vpop.f32.mrf.mxu0
    %v9344 = vadd.f32 0.0, %v9343
    %9345 = vmatmul.f32.gmra.mxu0 %v5243
    %v9346 = vpop.f32.mrf.mxu0
    %v9347 = vadd.f32 0.0, %v9346
    %9348 = vmatmul.f32.gmra.mxu0 %v5245
    %v9349 = vpop.f32.mrf.mxu0
    %v9350 = vadd.f32 0.0, %v9349
    %9351 = vmatmul.f32.gmra.mxu0 %v5247
    %v9352 = vpop.f32.mrf.mxu0
    %v9353 = vadd.f32 0.0, %v9352
    %9354 = vmatmul.f32.gmra.mxu0 %v5249
    %v9355 = vpop.f32.mrf.mxu0
    %v9356 = vadd.f32 0.0, %v9355
    %9357 = vmatmul.f32.gmra.mxu0 %v5251
    %v9358 = vpop.f32.mrf.mxu0
    %v9359 = vadd.f32 0.0, %v9358
    %9360 = vmatmul.f32.gmra.mxu0 %v5253
    %v9361 = vpop.f32.mrf.mxu0
    %v9362 = vadd.f32 0.0, %v9361
    %9363 = vmatmul.f32.gmra.mxu0 %v5255
    %v9364 = vpop.f32.mrf.mxu0
    %v9365 = vadd.f32 0.0, %v9364
    %9366 = vmatmul.f32.gmra.mxu0 %v5257
    %v9367 = vpop.f32.mrf.mxu0
    %v9368 = vadd.f32 0.0, %v9367
    %9369 = vmatmul.f32.gmra.mxu0 %v5259
    %v9370 = vpop.f32.mrf.mxu0
    %v9371 = vadd.f32 0.0, %v9370
    %9372 = vmatmul.f32.gmra.mxu0 %v5261
    %v9373 = vpop.f32.mrf.mxu0
    %v9374 = vadd.f32 0.0, %v9373
    %9375 = vmatmul.f32.gmra.mxu0 %v5263
    %v9376 = vpop.f32.mrf.mxu0
    %v9377 = vadd.f32 0.0, %v9376
    %9378 = vmatmul.f32.gmra.mxu0 %v8593
    %v9379 = vpop.f32.mrf.mxu0
    %v9380 = vadd.f32 0.0, %v9379
    %9381 = vmatmul.f32.gmra.mxu0 %v8595
    %v9382 = vpop.f32.mrf.mxu0
    %v9383 = vadd.f32 0.0, %v9382
    %9384 = vdwg.mxu0
    %v9385 = vadd.f32 %v8269, %v8618
    %v9386 = vadd.f32 %v8270, %v8621
    %v9387 = vadd.f32 %v8271, %v8624
    %v9388 = vadd.f32 %v8272, %v8627
    %v9389 = vadd.f32 %v8273, %v8630
    %v9390 = vadd.f32 %v8274, %v8633
    %v9391 = vadd.f32 %v8275, %v8636
    %v9392 = vadd.f32 %v8276, %v8639
    %v9393 = vadd.f32 %v8277, %v8642
    %v9394 = vadd.f32 %v8278, %v8645
    %v9395 = vadd.f32 %v8279, %v8648
    %v9396 = vadd.f32 %v8280, %v8651
    %v9397 = vadd.f32 %v8281, %v8654
    %v9398 = vadd.f32 %v8282, %v8657
    %v9399 = vadd.f32 %v8283, %v8660
    %v9400 = vadd.f32 %v8284, %v8663
    %v9401 = vadd.f32 %v8285, %v8666
    %v9402 = vadd.f32 %v8286, %v8669
    %v9403 = vadd.f32 %v8287, %v8672
    %v9404 = vadd.f32 %v8288, %v8675
    %v9405 = vadd.f32 %v8289, %v8678
    %v9406 = vadd.f32 %v8290, %v8681
    %v9407 = vadd.f32 %v8291, %v8684
    %v9408 = vadd.f32 %v8292, %v8687
    %v9409 = vadd.f32 %v8293, %v8690
    %v9410 = vadd.f32 %v8294, %v8693
    %v9411 = vadd.f32 %v8295, %v8696
    %v9412 = vadd.f32 %v8296, %v8699
    %v9413 = vadd.f32 %v8297, %v8702
    %v9414 = vadd.f32 %v8298, %v8705
    %v9415 = vadd.f32 %v8299, %v8708
    %v9416 = vadd.f32 %v8300, %v8711
    %v9417 = vadd.f32 %v8301, %v8714
    %v9418 = vadd.f32 %v8302, %v8717
    %v9419 = vadd.f32 %v8303, %v8720
    %v9420 = vadd.f32 %v8304, %v8723
    %v9421 = vadd.f32 %v8305, %v8726
    %v9422 = vadd.f32 %v8306, %v8729
    %v9423 = vadd.f32 %v8307, %v8732
    %v9424 = vadd.f32 %v8308, %v8735
    %v9425 = vadd.f32 %v8309, %v8738
    %v9426 = vadd.f32 %v8310, %v8741
    %v9427 = vadd.f32 %v8311, %v8744
    %v9428 = vadd.f32 %v8312, %v8747
    %v9429 = vadd.f32 %v8313, %v8750
    %v9430 = vadd.f32 %v8314, %v8753
    %v9431 = vadd.f32 %v8315, %v8756
    %v9432 = vadd.f32 %v8316, %v8759
    %v9433 = vadd.f32 %v8317, %v8762
    %v9434 = vadd.f32 %v8318, %v8765
    %v9435 = vadd.f32 %v8319, %v8768
    %v9436 = vadd.f32 %v8320, %v8771
    %v9437 = vadd.f32 %v8321, %v8774
    %v9438 = vadd.f32 %v8322, %v8777
    %v9439 = vadd.f32 %v8323, %v8780
    %v9440 = vadd.f32 %v8324, %v8783
    %v9441 = vadd.f32 %v8325, %v8786
    %v9442 = vadd.f32 %v8326, %v8789
    %v9443 = vadd.f32 %v8327, %v8792
    %v9444 = vadd.f32 %v8328, %v8795
    %v9445 = vadd.f32 %v8329, %v8798
    %v9446 = vadd.f32 %v8330, %v8801
    %v9447 = vadd.f32 %v8331, %v8804
    %v9448 = vadd.f32 %v8332, %v8807
    %v9449 = vadd.f32 %v8333, %v8810
    %v9450 = vadd.f32 %v8334, %v8813
    %v9451 = vadd.f32 %v8335, %v8816
    %v9452 = vadd.f32 %v8336, %v8819
    %v9453 = vadd.f32 %v8337, %v8822
    %v9454 = vadd.f32 %v8338, %v8825
    %v9455 = vadd.f32 %v8339, %v8828
    %v9456 = vadd.f32 %v8340, %v8831
    %v9457 = vadd.f32 %v8341, %v8834
    %v9458 = vadd.f32 %v8342, %v8837
    %v9459 = vadd.f32 %v8343, %v8840
    %v9460 = vadd.f32 %v8344, %v8843
    %v9461 = vadd.f32 %v8345, %v8846
    %v9462 = vadd.f32 %v8346, %v8849
    %v9463 = vadd.f32 %v8347, %v8852
    %v9464 = vadd.f32 %v8348, %v8855
    %v9465 = vadd.f32 %v8349, %v8858
    %v9466 = vadd.f32 %v8350, %v8861
    %v9467 = vadd.f32 %v8351, %v8864
    %v9468 = vadd.f32 %v8352, %v8867
    %v9469 = vadd.f32 %v8353, %v8870
    %v9470 = vadd.f32 %v8354, %v8873
    %v9471 = vadd.f32 %v8355, %v8876
    %v9472 = vadd.f32 %v8356, %v8879
    %v9473 = vadd.f32 %v8357, %v8882
    %v9474 = vadd.f32 %v8358, %v8885
    %v9475 = vadd.f32 %v8359, %v8888
    %v9476 = vadd.f32 %v8360, %v8891
    %v9477 = vadd.f32 %v8361, %v8894
    %v9478 = vadd.f32 %v8362, %v8897
    %v9479 = vadd.f32 %v8363, %v8900
    %v9480 = vadd.f32 %v8364, %v8903
    %v9481 = vadd.f32 %v8365, %v8906
    %v9482 = vadd.f32 %v8366, %v8909
    %v9483 = vadd.f32 %v8367, %v8912
    %v9484 = vadd.f32 %v8368, %v8915
    %v9485 = vadd.f32 %v8369, %v8918
    %v9486 = vadd.f32 %v8370, %v8921
    %v9487 = vadd.f32 %v8371, %v8924
    %v9488 = vadd.f32 %v8372, %v8927
    %v9489 = vadd.f32 %v8373, %v8930
    %v9490 = vadd.f32 %v8374, %v8933
    %v9491 = vadd.f32 %v8375, %v8936
    %v9492 = vadd.f32 %v8376, %v8939
    %v9493 = vadd.f32 %v8377, %v8942
    %v9494 = vadd.f32 %v8378, %v8945
    %v9495 = vadd.f32 %v8379, %v8948
    %v9496 = vadd.f32 %v8380, %v8951
    %v9497 = vadd.f32 %v8381, %v8954
    %v9498 = vadd.f32 %v8382, %v8957
    %v9499 = vadd.f32 %v8383, %v8960
    %v9500 = vadd.f32 %v8384, %v8963
    %v9501 = vadd.f32 %v8385, %v8966
    %v9502 = vadd.f32 %v8386, %v8969
    %v9503 = vadd.f32 %v8387, %v8972
    %v9504 = vadd.f32 %v8388, %v8975
    %v9505 = vadd.f32 %v8389, %v8978
    %v9506 = vadd.f32 %v8390, %v8981
    %v9507 = vadd.f32 %v8391, %v8984
    %v9508 = vadd.f32 %v8392, %v8987
    %v9509 = vadd.f32 %v8393, %v8990
    %v9510 = vadd.f32 %v8394, %v8993
    %v9511 = vadd.f32 %v8395, %v8996
    %v9512 = vadd.f32 %v8396, %v8999
    %v9513 = vadd.f32 %v8397, %v9002
    %v9514 = vadd.f32 %v8398, %v9005
    %v9515 = vadd.f32 %v8399, %v9008
    %v9516 = vadd.f32 %v8400, %v9011
    %v9517 = vadd.f32 %v8401, %v9014
    %v9518 = vadd.f32 %v8402, %v9017
    %v9519 = vadd.f32 %v8403, %v9020
    %v9520 = vadd.f32 %v8404, %v9023
    %v9521 = vadd.f32 %v8405, %v9026
    %v9522 = vadd.f32 %v8406, %v9029
    %v9523 = vadd.f32 %v8407, %v9032
    %v9524 = vadd.f32 %v8408, %v9035
    %v9525 = vadd.f32 %v8409, %v9038
    %v9526 = vadd.f32 %v8410, %v9041
    %v9527 = vadd.f32 %v8411, %v9044
    %v9528 = vadd.f32 %v8412, %v9047
    %v9529 = vadd.f32 %v8413, %v9050
    %v9530 = vadd.f32 %v8414, %v9053
    %v9531 = vadd.f32 %v8415, %v9056
    %v9532 = vadd.f32 %v8416, %v9059
    %v9533 = vadd.f32 %v8417, %v9062
    %v9534 = vadd.f32 %v8418, %v9065
    %v9535 = vadd.f32 %v8419, %v9068
    %v9536 = vadd.f32 %v8420, %v9071
    %v9537 = vadd.f32 %v8421, %v9074
    %v9538 = vadd.f32 %v8422, %v9077
    %v9539 = vadd.f32 %v8423, %v9080
    %v9540 = vadd.f32 %v8424, %v9083
    %v9541 = vadd.f32 %v8425, %v9086
    %v9542 = vadd.f32 %v8426, %v9089
    %v9543 = vadd.f32 %v8427, %v9092
    %v9544 = vadd.f32 %v8428, %v9095
    %v9545 = vadd.f32 %v8429, %v9098
    %v9546 = vadd.f32 %v8430, %v9101
    %v9547 = vadd.f32 %v8431, %v9104
    %v9548 = vadd.f32 %v8432, %v9107
    %v9549 = vadd.f32 %v8433, %v9110
    %v9550 = vadd.f32 %v8434, %v9113
    %v9551 = vadd.f32 %v8435, %v9116
    %v9552 = vadd.f32 %v8436, %v9119
    %v9553 = vadd.f32 %v8437, %v9122
    %v9554 = vadd.f32 %v8438, %v9125
    %v9555 = vadd.f32 %v8439, %v9128
    %v9556 = vadd.f32 %v8440, %v9131
    %v9557 = vadd.f32 %v8441, %v9134
    %v9558 = vadd.f32 %v8442, %v9137
    %v9559 = vadd.f32 %v8443, %v9140
    %v9560 = vadd.f32 %v8444, %v9143
    %v9561 = vadd.f32 %v8445, %v9146
    %v9562 = vadd.f32 %v8446, %v9149
    %v9563 = vadd.f32 %v8447, %v9152
    %v9564 = vadd.f32 %v8448, %v9155
    %v9565 = vadd.f32 %v8449, %v9158
    %v9566 = vadd.f32 %v8450, %v9161
    %v9567 = vadd.f32 %v8451, %v9164
    %v9568 = vadd.f32 %v8452, %v9167
    %v9569 = vadd.f32 %v8453, %v9170
    %v9570 = vadd.f32 %v8454, %v9173
    %v9571 = vadd.f32 %v8455, %v9176
    %v9572 = vadd.f32 %v8456, %v9179
    %v9573 = vadd.f32 %v8457, %v9182
    %v9574 = vadd.f32 %v8458, %v9185
    %v9575 = vadd.f32 %v8459, %v9188
    %v9576 = vadd.f32 %v8460, %v9191
    %v9577 = vadd.f32 %v8461, %v9194
    %v9578 = vadd.f32 %v8462, %v9197
    %v9579 = vadd.f32 %v8463, %v9200
    %v9580 = vadd.f32 %v8464, %v9203
    %v9581 = vadd.f32 %v8465, %v9206
    %v9582 = vadd.f32 %v8466, %v9209
    %v9583 = vadd.f32 %v8467, %v9212
    %v9584 = vadd.f32 %v8468, %v9215
    %v9585 = vadd.f32 %v8469, %v9218
    %v9586 = vadd.f32 %v8470, %v9221
    %v9587 = vadd.f32 %v8471, %v9224
    %v9588 = vadd.f32 %v8472, %v9227
    %v9589 = vadd.f32 %v8473, %v9230
    %v9590 = vadd.f32 %v8474, %v9233
    %v9591 = vadd.f32 %v8475, %v9236
    %v9592 = vadd.f32 %v8476, %v9239
    %v9593 = vadd.f32 %v8477, %v9242
    %v9594 = vadd.f32 %v8478, %v9245
    %v9595 = vadd.f32 %v8479, %v9248
    %v9596 = vadd.f32 %v8480, %v9251
    %v9597 = vadd.f32 %v8481, %v9254
    %v9598 = vadd.f32 %v8482, %v9257
    %v9599 = vadd.f32 %v8483, %v9260
    %v9600 = vadd.f32 %v8484, %v9263
    %v9601 = vadd.f32 %v8485, %v9266
    %v9602 = vadd.f32 %v8486, %v9269
    %v9603 = vadd.f32 %v8487, %v9272
    %v9604 = vadd.f32 %v8488, %v9275
    %v9605 = vadd.f32 %v8489, %v9278
    %v9606 = vadd.f32 %v8490, %v9281
    %v9607 = vadd.f32 %v8491, %v9284
    %v9608 = vadd.f32 %v8492, %v9287
    %v9609 = vadd.f32 %v8493, %v9290
    %v9610 = vadd.f32 %v8494, %v9293
    %v9611 = vadd.f32 %v8495, %v9296
    %v9612 = vadd.f32 %v8496, %v9299
    %v9613 = vadd.f32 %v8497, %v9302
    %v9614 = vadd.f32 %v8498, %v9305
    %v9615 = vadd.f32 %v8499, %v9308
    %v9616 = vadd.f32 %v8500, %v9311
    %v9617 = vadd.f32 %v8501, %v9314
    %v9618 = vadd.f32 %v8502, %v9317
    %v9619 = vadd.f32 %v8503, %v9320
    %v9620 = vadd.f32 %v8504, %v9323
    %v9621 = vadd.f32 %v8505, %v9326
    %v9622 = vadd.f32 %v8506, %v9329
    %v9623 = vadd.f32 %v8507, %v9332
    %v9624 = vadd.f32 %v8508, %v9335
    %v9625 = vadd.f32 %v8509, %v9338
    %v9626 = vadd.f32 %v8510, %v9341
    %v9627 = vadd.f32 %v8511, %v9344
    %v9628 = vadd.f32 %v8512, %v9347
    %v9629 = vadd.f32 %v8513, %v9350
    %v9630 = vadd.f32 %v8514, %v9353
    %v9631 = vadd.f32 %v8515, %v9356
    %v9632 = vadd.f32 %v8516, %v9359
    %v9633 = vadd.f32 %v8517, %v9362
    %v9634 = vadd.f32 %v8518, %v9365
    %v9635 = vadd.f32 %v8519, %v9368
    %v9636 = vadd.f32 %v8520, %v9371
    %v9637 = vadd.f32 %v8521, %v9374
    %v9638 = vadd.f32 %v8522, %v9377
    %v9639 = vadd.f32 %v8523, %v9380
    %v9640 = vadd.f32 %v8524, %v9383
    %v9642 = vsel %vm1510, %v95, 0
    %v9645 = vsel %vm1510, %v96, 0
    %v9648 = vsel %vm1510, %v149, 0
    %v9651 = vsel %vm1510, %v150, 0
    %v9654 = vsel %vm1510, %v203, 0
    %v9657 = vsel %vm1510, %v204, 0
    %v9660 = vsel %vm1510, %v257, 0
    %v9663 = vsel %vm1510, %v258, 0
    %v9666 = vsel %vm1510, %v311, 0
    %v9669 = vsel %vm1510, %v312, 0
    %v9672 = vsel %vm1510, %v365, 0
    %v9675 = vsel %vm1510, %v366, 0
    %v9678 = vsel %vm1510, %v419, 0
    %v9681 = vsel %vm1510, %v420, 0
    %v9684 = vsel %vm1510, %v473, 0
    %v9687 = vsel %vm1510, %v474, 0
    %v9690 = vsel %vm2023, %v482, 0
    %9692 = vmatpush.msra.mxu0 0.0
    %9693 = vmatpush.msra.mxu0 0.0
    %9694 = vmatpush.msra.mxu0 0.0
    %9695 = vmatpush.msra.mxu0 0.0
    %9696 = vmatpush.msra.mxu0 0.0
    %9697 = vmatpush.msra.mxu0 0.0
    %9698 = vmatpush.msra.mxu0 0.0
    %9699 = vmatpush.msra.mxu0 0.0
    %9700 = vmatpush.msra.mxu0 0.0
    %9701 = vmatpush.msra.mxu0 0.0
    %9702 = vmatpush.msra.mxu0 0.0
    %9703 = vmatpush.msra.mxu0 0.0
    %9704 = vmatpush.msra.mxu0 0.0
    %9705 = vmatpush.msra.mxu0 0.0
    %9706 = vmatpush.msra.mxu0 0.0
    %9707 = vmatpush.msra.mxu0 %v9690
    %9708 = vmatmul.f32.gmra.mxu0 %v2820
    %v9709 = vpop.f32.mrf.mxu0
    %v9710 = vadd.f32 0.0, %v9709
    %9711 = vmatmul.f32.gmra.mxu0 %v2822
    %v9712 = vpop.f32.mrf.mxu0
    %v9713 = vadd.f32 0.0, %v9712
    %9714 = vmatmul.f32.gmra.mxu0 %v2824
    %v9715 = vpop.f32.mrf.mxu0
    %v9716 = vadd.f32 0.0, %v9715
    %9717 = vmatmul.f32.gmra.mxu0 %v2826
    %v9718 = vpop.f32.mrf.mxu0
    %v9719 = vadd.f32 0.0, %v9718
    %9720 = vmatmul.f32.gmra.mxu0 %v2828
    %v9721 = vpop.f32.mrf.mxu0
    %v9722 = vadd.f32 0.0, %v9721
    %9723 = vmatmul.f32.gmra.mxu0 %v2830
    %v9724 = vpop.f32.mrf.mxu0
    %v9725 = vadd.f32 0.0, %v9724
    %9726 = vmatmul.f32.gmra.mxu0 %v2832
    %v9727 = vpop.f32.mrf.mxu0
    %v9728 = vadd.f32 0.0, %v9727
    %9729 = vmatmul.f32.gmra.mxu0 %v2834
    %v9730 = vpop.f32.mrf.mxu0
    %v9731 = vadd.f32 0.0, %v9730
    %9732 = vmatmul.f32.gmra.mxu0 %v2836
    %v9733 = vpop.f32.mrf.mxu0
    %v9734 = vadd.f32 0.0, %v9733
    %9735 = vmatmul.f32.gmra.mxu0 %v2838
    %v9736 = vpop.f32.mrf.mxu0
    %v9737 = vadd.f32 0.0, %v9736
    %9738 = vmatmul.f32.gmra.mxu0 %v2840
    %v9739 = vpop.f32.mrf.mxu0
    %v9740 = vadd.f32 0.0, %v9739
    %9741 = vmatmul.f32.gmra.mxu0 %v2842
    %v9742 = vpop.f32.mrf.mxu0
    %v9743 = vadd.f32 0.0, %v9742
    %9744 = vmatmul.f32.gmra.mxu0 %v2844
    %v9745 = vpop.f32.mrf.mxu0
    %v9746 = vadd.f32 0.0, %v9745
    %9747 = vmatmul.f32.gmra.mxu0 %v2846
    %v9748 = vpop.f32.mrf.mxu0
    %v9749 = vadd.f32 0.0, %v9748
    %9750 = vmatmul.f32.gmra.mxu0 %v2848
    %v9751 = vpop.f32.mrf.mxu0
    %v9752 = vadd.f32 0.0, %v9751
    %9753 = vmatmul.f32.gmra.mxu0 %v2850
    %v9754 = vpop.f32.mrf.mxu0
    %v9755 = vadd.f32 0.0, %v9754
    %9756 = vmatmul.f32.gmra.mxu0 %v2852
    %v9757 = vpop.f32.mrf.mxu0
    %v9758 = vadd.f32 0.0, %v9757
    %9759 = vmatmul.f32.gmra.mxu0 %v2854
    %v9760 = vpop.f32.mrf.mxu0
    %v9761 = vadd.f32 0.0, %v9760
    %9762 = vmatmul.f32.gmra.mxu0 %v2856
    %v9763 = vpop.f32.mrf.mxu0
    %v9764 = vadd.f32 0.0, %v9763
    %9765 = vmatmul.f32.gmra.mxu0 %v2858
    %v9766 = vpop.f32.mrf.mxu0
    %v9767 = vadd.f32 0.0, %v9766
    %9768 = vmatmul.f32.gmra.mxu0 %v2860
    %v9769 = vpop.f32.mrf.mxu0
    %v9770 = vadd.f32 0.0, %v9769
    %9771 = vmatmul.f32.gmra.mxu0 %v2862
    %v9772 = vpop.f32.mrf.mxu0
    %v9773 = vadd.f32 0.0, %v9772
    %9774 = vmatmul.f32.gmra.mxu0 %v2864
    %v9775 = vpop.f32.mrf.mxu0
    %v9776 = vadd.f32 0.0, %v9775
    %9777 = vmatmul.f32.gmra.mxu0 %v2866
    %v9778 = vpop.f32.mrf.mxu0
    %v9779 = vadd.f32 0.0, %v9778
    %9780 = vmatmul.f32.gmra.mxu0 %v2868
    %v9781 = vpop.f32.mrf.mxu0
    %v9782 = vadd.f32 0.0, %v9781
    %9783 = vmatmul.f32.gmra.mxu0 %v2870
    %v9784 = vpop.f32.mrf.mxu0
    %v9785 = vadd.f32 0.0, %v9784
    %9786 = vmatmul.f32.gmra.mxu0 %v2872
    %v9787 = vpop.f32.mrf.mxu0
    %v9788 = vadd.f32 0.0, %v9787
    %9789 = vmatmul.f32.gmra.mxu0 %v2874
    %v9790 = vpop.f32.mrf.mxu0
    %v9791 = vadd.f32 0.0, %v9790
    %9792 = vmatmul.f32.gmra.mxu0 %v6310
    %v9793 = vpop.f32.mrf.mxu0
    %v9794 = vadd.f32 0.0, %v9793
    %9795 = vmatmul.f32.gmra.mxu0 %v6313
    %v9796 = vpop.f32.mrf.mxu0
    %v9797 = vadd.f32 0.0, %v9796
    %9798 = vmatmul.f32.gmra.mxu0 %v9642
    %v9799 = vpop.f32.mrf.mxu0
    %v9800 = vadd.f32 0.0, %v9799
    %9801 = vmatmul.f32.gmra.mxu0 %v9645
    %v9802 = vpop.f32.mrf.mxu0
    %v9803 = vadd.f32 0.0, %v9802
    %9804 = vmatmul.f32.gmra.mxu0 %v2884
    %v9805 = vpop.f32.mrf.mxu0
    %v9806 = vadd.f32 0.0, %v9805
    %9807 = vmatmul.f32.gmra.mxu0 %v2886
    %v9808 = vpop.f32.mrf.mxu0
    %v9809 = vadd.f32 0.0, %v9808
    %9810 = vmatmul.f32.gmra.mxu0 %v2888
    %v9811 = vpop.f32.mrf.mxu0
    %v9812 = vadd.f32 0.0, %v9811
    %9813 = vmatmul.f32.gmra.mxu0 %v2890
    %v9814 = vpop.f32.mrf.mxu0
    %v9815 = vadd.f32 0.0, %v9814
    %9816 = vmatmul.f32.gmra.mxu0 %v2892
    %v9817 = vpop.f32.mrf.mxu0
    %v9818 = vadd.f32 0.0, %v9817
    %9819 = vmatmul.f32.gmra.mxu0 %v2894
    %v9820 = vpop.f32.mrf.mxu0
    %v9821 = vadd.f32 0.0, %v9820
    %9822 = vmatmul.f32.gmra.mxu0 %v2896
    %v9823 = vpop.f32.mrf.mxu0
    %v9824 = vadd.f32 0.0, %v9823
    %9825 = vmatmul.f32.gmra.mxu0 %v2898
    %v9826 = vpop.f32.mrf.mxu0
    %v9827 = vadd.f32 0.0, %v9826
    %9828 = vmatmul.f32.gmra.mxu0 %v2900
    %v9829 = vpop.f32.mrf.mxu0
    %v9830 = vadd.f32 0.0, %v9829
    %9831 = vmatmul.f32.gmra.mxu0 %v2902
    %v9832 = vpop.f32.mrf.mxu0
    %v9833 = vadd.f32 0.0, %v9832
    %9834 = vmatmul.f32.gmra.mxu0 %v2904
    %v9835 = vpop.f32.mrf.mxu0
    %v9836 = vadd.f32 0.0, %v9835
    %9837 = vmatmul.f32.gmra.mxu0 %v2906
    %v9838 = vpop.f32.mrf.mxu0
    %v9839 = vadd.f32 0.0, %v9838
    %9840 = vmatmul.f32.gmra.mxu0 %v2908
    %v9841 = vpop.f32.mrf.mxu0
    %v9842 = vadd.f32 0.0, %v9841
    %9843 = vmatmul.f32.gmra.mxu0 %v2910
    %v9844 = vpop.f32.mrf.mxu0
    %v9845 = vadd.f32 0.0, %v9844
    %9846 = vmatmul.f32.gmra.mxu0 %v2912
    %v9847 = vpop.f32.mrf.mxu0
    %v9848 = vadd.f32 0.0, %v9847
    %9849 = vmatmul.f32.gmra.mxu0 %v2914
    %v9850 = vpop.f32.mrf.mxu0
    %v9851 = vadd.f32 0.0, %v9850
    %9852 = vmatmul.f32.gmra.mxu0 %v2916
    %v9853 = vpop.f32.mrf.mxu0
    %v9854 = vadd.f32 0.0, %v9853
    %9855 = vmatmul.f32.gmra.mxu0 %v2918
    %v9856 = vpop.f32.mrf.mxu0
    %v9857 = vadd.f32 0.0, %v9856
    %9858 = vmatmul.f32.gmra.mxu0 %v2920
    %v9859 = vpop.f32.mrf.mxu0
    %v9860 = vadd.f32 0.0, %v9859
    %9861 = vmatmul.f32.gmra.mxu0 %v2922
    %v9862 = vpop.f32.mrf.mxu0
    %v9863 = vadd.f32 0.0, %v9862
    %9864 = vmatmul.f32.gmra.mxu0 %v2924
    %v9865 = vpop.f32.mrf.mxu0
    %v9866 = vadd.f32 0.0, %v9865
    %9867 = vmatmul.f32.gmra.mxu0 %v2926
    %v9868 = vpop.f32.mrf.mxu0
    %v9869 = vadd.f32 0.0, %v9868
    %9870 = vmatmul.f32.gmra.mxu0 %v2928
    %v9871 = vpop.f32.mrf.mxu0
    %v9872 = vadd.f32 0.0, %v9871
    %9873 = vmatmul.f32.gmra.mxu0 %v2930
    %v9874 = vpop.f32.mrf.mxu0
    %v9875 = vadd.f32 0.0, %v9874
    %9876 = vmatmul.f32.gmra.mxu0 %v2932
    %v9877 = vpop.f32.mrf.mxu0
    %v9878 = vadd.f32 0.0, %v9877
    %9879 = vmatmul.f32.gmra.mxu0 %v2934
    %v9880 = vpop.f32.mrf.mxu0
    %v9881 = vadd.f32 0.0, %v9880
    %9882 = vmatmul.f32.gmra.mxu0 %v2936
    %v9883 = vpop.f32.mrf.mxu0
    %v9884 = vadd.f32 0.0, %v9883
    %9885 = vmatmul.f32.gmra.mxu0 %v2938
    %v9886 = vpop.f32.mrf.mxu0
    %v9887 = vadd.f32 0.0, %v9886
    %9888 = vmatmul.f32.gmra.mxu0 %v6316
    %v9889 = vpop.f32.mrf.mxu0
    %v9890 = vadd.f32 0.0, %v9889
    %9891 = vmatmul.f32.gmra.mxu0 %v6319
    %v9892 = vpop.f32.mrf.mxu0
    %v9893 = vadd.f32 0.0, %v9892
    %9894 = vmatmul.f32.gmra.mxu0 %v9648
    %v9895 = vpop.f32.mrf.mxu0
    %v9896 = vadd.f32 0.0, %v9895
    %9897 = vmatmul.f32.gmra.mxu0 %v9651
    %v9898 = vpop.f32.mrf.mxu0
    %v9899 = vadd.f32 0.0, %v9898
    %9900 = vmatmul.f32.gmra.mxu0 %v2948
    %v9901 = vpop.f32.mrf.mxu0
    %v9902 = vadd.f32 0.0, %v9901
    %9903 = vmatmul.f32.gmra.mxu0 %v2950
    %v9904 = vpop.f32.mrf.mxu0
    %v9905 = vadd.f32 0.0, %v9904
    %9906 = vmatmul.f32.gmra.mxu0 %v2952
    %v9907 = vpop.f32.mrf.mxu0
    %v9908 = vadd.f32 0.0, %v9907
    %9909 = vmatmul.f32.gmra.mxu0 %v2954
    %v9910 = vpop.f32.mrf.mxu0
    %v9911 = vadd.f32 0.0, %v9910
    %9912 = vmatmul.f32.gmra.mxu0 %v2956
    %v9913 = vpop.f32.mrf.mxu0
    %v9914 = vadd.f32 0.0, %v9913
    %9915 = vmatmul.f32.gmra.mxu0 %v2958
    %v9916 = vpop.f32.mrf.mxu0
    %v9917 = vadd.f32 0.0, %v9916
    %9918 = vmatmul.f32.gmra.mxu0 %v2960
    %v9919 = vpop.f32.mrf.mxu0
    %v9920 = vadd.f32 0.0, %v9919
    %9921 = vmatmul.f32.gmra.mxu0 %v2962
    %v9922 = vpop.f32.mrf.mxu0
    %v9923 = vadd.f32 0.0, %v9922
    %9924 = vmatmul.f32.gmra.mxu0 %v2964
    %v9925 = vpop.f32.mrf.mxu0
    %v9926 = vadd.f32 0.0, %v9925
    %9927 = vmatmul.f32.gmra.mxu0 %v2966
    %v9928 = vpop.f32.mrf.mxu0
    %v9929 = vadd.f32 0.0, %v9928
    %9930 = vmatmul.f32.gmra.mxu0 %v2968
    %v9931 = vpop.f32.mrf.mxu0
    %v9932 = vadd.f32 0.0, %v9931
    %9933 = vmatmul.f32.gmra.mxu0 %v2970
    %v9934 = vpop.f32.mrf.mxu0
    %v9935 = vadd.f32 0.0, %v9934
    %9936 = vmatmul.f32.gmra.mxu0 %v2972
    %v9937 = vpop.f32.mrf.mxu0
    %v9938 = vadd.f32 0.0, %v9937
    %9939 = vmatmul.f32.gmra.mxu0 %v2974
    %v9940 = vpop.f32.mrf.mxu0
    %v9941 = vadd.f32 0.0, %v9940
    %9942 = vmatmul.f32.gmra.mxu0 %v2976
    %v9943 = vpop.f32.mrf.mxu0
    %v9944 = vadd.f32 0.0, %v9943
    %9945 = vmatmul.f32.gmra.mxu0 %v2978
    %v9946 = vpop.f32.mrf.mxu0
    %v9947 = vadd.f32 0.0, %v9946
    %9948 = vmatmul.f32.gmra.mxu0 %v2980
    %v9949 = vpop.f32.mrf.mxu0
    %v9950 = vadd.f32 0.0, %v9949
    %9951 = vmatmul.f32.gmra.mxu0 %v2982
    %v9952 = vpop.f32.mrf.mxu0
    %v9953 = vadd.f32 0.0, %v9952
    %9954 = vmatmul.f32.gmra.mxu0 %v2984
    %v9955 = vpop.f32.mrf.mxu0
    %v9956 = vadd.f32 0.0, %v9955
    %9957 = vmatmul.f32.gmra.mxu0 %v2986
    %v9958 = vpop.f32.mrf.mxu0
    %v9959 = vadd.f32 0.0, %v9958
    %9960 = vmatmul.f32.gmra.mxu0 %v2988
    %v9961 = vpop.f32.mrf.mxu0
    %v9962 = vadd.f32 0.0, %v9961
    %9963 = vmatmul.f32.gmra.mxu0 %v2990
    %v9964 = vpop.f32.mrf.mxu0
    %v9965 = vadd.f32 0.0, %v9964
    %9966 = vmatmul.f32.gmra.mxu0 %v2992
    %v9967 = vpop.f32.mrf.mxu0
    %v9968 = vadd.f32 0.0, %v9967
    %9969 = vmatmul.f32.gmra.mxu0 %v2994
    %v9970 = vpop.f32.mrf.mxu0
    %v9971 = vadd.f32 0.0, %v9970
    %9972 = vmatmul.f32.gmra.mxu0 %v2996
    %v9973 = vpop.f32.mrf.mxu0
    %v9974 = vadd.f32 0.0, %v9973
    %9975 = vmatmul.f32.gmra.mxu0 %v2998
    %v9976 = vpop.f32.mrf.mxu0
    %v9977 = vadd.f32 0.0, %v9976
    %9978 = vmatmul.f32.gmra.mxu0 %v3000
    %v9979 = vpop.f32.mrf.mxu0
    %v9980 = vadd.f32 0.0, %v9979
    %9981 = vmatmul.f32.gmra.mxu0 %v3002
    %v9982 = vpop.f32.mrf.mxu0
    %v9983 = vadd.f32 0.0, %v9982
    %9984 = vmatmul.f32.gmra.mxu0 %v6322
    %v9985 = vpop.f32.mrf.mxu0
    %v9986 = vadd.f32 0.0, %v9985
    %9987 = vmatmul.f32.gmra.mxu0 %v6325
    %v9988 = vpop.f32.mrf.mxu0
    %v9989 = vadd.f32 0.0, %v9988
    %9990 = vmatmul.f32.gmra.mxu0 %v9654
    %v9991 = vpop.f32.mrf.mxu0
    %v9992 = vadd.f32 0.0, %v9991
    %9993 = vmatmul.f32.gmra.mxu0 %v9657
    %v9994 = vpop.f32.mrf.mxu0
    %v9995 = vadd.f32 0.0, %v9994
    %9996 = vmatmul.f32.gmra.mxu0 %v3012
    %v9997 = vpop.f32.mrf.mxu0
    %v9998 = vadd.f32 0.0, %v9997
    %9999 = vmatmul.f32.gmra.mxu0 %v3014
    %v10000 = vpop.f32.mrf.mxu0
    %v10001 = vadd.f32 0.0, %v10000
    %10002 = vmatmul.f32.gmra.mxu0 %v3016
    %v10003 = vpop.f32.mrf.mxu0
    %v10004 = vadd.f32 0.0, %v10003
    %10005 = vmatmul.f32.gmra.mxu0 %v3018
    %v10006 = vpop.f32.mrf.mxu0
    %v10007 = vadd.f32 0.0, %v10006
    %10008 = vmatmul.f32.gmra.mxu0 %v3020
    %v10009 = vpop.f32.mrf.mxu0
    %v10010 = vadd.f32 0.0, %v10009
    %10011 = vmatmul.f32.gmra.mxu0 %v3022
    %v10012 = vpop.f32.mrf.mxu0
    %v10013 = vadd.f32 0.0, %v10012
    %10014 = vmatmul.f32.gmra.mxu0 %v3024
    %v10015 = vpop.f32.mrf.mxu0
    %v10016 = vadd.f32 0.0, %v10015
    %10017 = vmatmul.f32.gmra.mxu0 %v3026
    %v10018 = vpop.f32.mrf.mxu0
    %v10019 = vadd.f32 0.0, %v10018
    %10020 = vmatmul.f32.gmra.mxu0 %v3028
    %v10021 = vpop.f32.mrf.mxu0
    %v10022 = vadd.f32 0.0, %v10021
    %10023 = vmatmul.f32.gmra.mxu0 %v3030
    %v10024 = vpop.f32.mrf.mxu0
    %v10025 = vadd.f32 0.0, %v10024
    %10026 = vmatmul.f32.gmra.mxu0 %v3032
    %v10027 = vpop.f32.mrf.mxu0
    %v10028 = vadd.f32 0.0, %v10027
    %10029 = vmatmul.f32.gmra.mxu0 %v3034
    %v10030 = vpop.f32.mrf.mxu0
    %v10031 = vadd.f32 0.0, %v10030
    %10032 = vmatmul.f32.gmra.mxu0 %v3036
    %v10033 = vpop.f32.mrf.mxu0
    %v10034 = vadd.f32 0.0, %v10033
    %10035 = vmatmul.f32.gmra.mxu0 %v3038
    %v10036 = vpop.f32.mrf.mxu0
    %v10037 = vadd.f32 0.0, %v10036
    %10038 = vmatmul.f32.gmra.mxu0 %v3040
    %v10039 = vpop.f32.mrf.mxu0
    %v10040 = vadd.f32 0.0, %v10039
    %10041 = vmatmul.f32.gmra.mxu0 %v3042
    %v10042 = vpop.f32.mrf.mxu0
    %v10043 = vadd.f32 0.0, %v10042
    %10044 = vmatmul.f32.gmra.mxu0 %v3044
    %v10045 = vpop.f32.mrf.mxu0
    %v10046 = vadd.f32 0.0, %v10045
    %10047 = vmatmul.f32.gmra.mxu0 %v3046
    %v10048 = vpop.f32.mrf.mxu0
    %v10049 = vadd.f32 0.0, %v10048
    %10050 = vmatmul.f32.gmra.mxu0 %v3048
    %v10051 = vpop.f32.mrf.mxu0
    %v10052 = vadd.f32 0.0, %v10051
    %10053 = vmatmul.f32.gmra.mxu0 %v3050
    %v10054 = vpop.f32.mrf.mxu0
    %v10055 = vadd.f32 0.0, %v10054
    %10056 = vmatmul.f32.gmra.mxu0 %v3052
    %v10057 = vpop.f32.mrf.mxu0
    %v10058 = vadd.f32 0.0, %v10057
    %10059 = vmatmul.f32.gmra.mxu0 %v3054
    %v10060 = vpop.f32.mrf.mxu0
    %v10061 = vadd.f32 0.0, %v10060
    %10062 = vmatmul.f32.gmra.mxu0 %v3056
    %v10063 = vpop.f32.mrf.mxu0
    %v10064 = vadd.f32 0.0, %v10063
    %10065 = vmatmul.f32.gmra.mxu0 %v3058
    %v10066 = vpop.f32.mrf.mxu0
    %v10067 = vadd.f32 0.0, %v10066
    %10068 = vmatmul.f32.gmra.mxu0 %v3060
    %v10069 = vpop.f32.mrf.mxu0
    %v10070 = vadd.f32 0.0, %v10069
    %10071 = vmatmul.f32.gmra.mxu0 %v3062
    %v10072 = vpop.f32.mrf.mxu0
    %v10073 = vadd.f32 0.0, %v10072
    %10074 = vmatmul.f32.gmra.mxu0 %v3064
    %v10075 = vpop.f32.mrf.mxu0
    %v10076 = vadd.f32 0.0, %v10075
    %10077 = vmatmul.f32.gmra.mxu0 %v3066
    %v10078 = vpop.f32.mrf.mxu0
    %v10079 = vadd.f32 0.0, %v10078
    %10080 = vmatmul.f32.gmra.mxu0 %v6328
    %v10081 = vpop.f32.mrf.mxu0
    %v10082 = vadd.f32 0.0, %v10081
    %10083 = vmatmul.f32.gmra.mxu0 %v6331
    %v10084 = vpop.f32.mrf.mxu0
    %v10085 = vadd.f32 0.0, %v10084
    %10086 = vmatmul.f32.gmra.mxu0 %v9660
    %v10087 = vpop.f32.mrf.mxu0
    %v10088 = vadd.f32 0.0, %v10087
    %10089 = vmatmul.f32.gmra.mxu0 %v9663
    %v10090 = vpop.f32.mrf.mxu0
    %v10091 = vadd.f32 0.0, %v10090
    %10092 = vmatmul.f32.gmra.mxu0 %v3076
    %v10093 = vpop.f32.mrf.mxu0
    %v10094 = vadd.f32 0.0, %v10093
    %10095 = vmatmul.f32.gmra.mxu0 %v3078
    %v10096 = vpop.f32.mrf.mxu0
    %v10097 = vadd.f32 0.0, %v10096
    %10098 = vmatmul.f32.gmra.mxu0 %v3080
    %v10099 = vpop.f32.mrf.mxu0
    %v10100 = vadd.f32 0.0, %v10099
    %10101 = vmatmul.f32.gmra.mxu0 %v3082
    %v10102 = vpop.f32.mrf.mxu0
    %v10103 = vadd.f32 0.0, %v10102
    %10104 = vmatmul.f32.gmra.mxu0 %v3084
    %v10105 = vpop.f32.mrf.mxu0
    %v10106 = vadd.f32 0.0, %v10105
    %10107 = vmatmul.f32.gmra.mxu0 %v3086
    %v10108 = vpop.f32.mrf.mxu0
    %v10109 = vadd.f32 0.0, %v10108
    %10110 = vmatmul.f32.gmra.mxu0 %v3088
    %v10111 = vpop.f32.mrf.mxu0
    %v10112 = vadd.f32 0.0, %v10111
    %10113 = vmatmul.f32.gmra.mxu0 %v3090
    %v10114 = vpop.f32.mrf.mxu0
    %v10115 = vadd.f32 0.0, %v10114
    %10116 = vmatmul.f32.gmra.mxu0 %v3092
    %v10117 = vpop.f32.mrf.mxu0
    %v10118 = vadd.f32 0.0, %v10117
    %10119 = vmatmul.f32.gmra.mxu0 %v3094
    %v10120 = vpop.f32.mrf.mxu0
    %v10121 = vadd.f32 0.0, %v10120
    %10122 = vmatmul.f32.gmra.mxu0 %v3096
    %v10123 = vpop.f32.mrf.mxu0
    %v10124 = vadd.f32 0.0, %v10123
    %10125 = vmatmul.f32.gmra.mxu0 %v3098
    %v10126 = vpop.f32.mrf.mxu0
    %v10127 = vadd.f32 0.0, %v10126
    %10128 = vmatmul.f32.gmra.mxu0 %v3100
    %v10129 = vpop.f32.mrf.mxu0
    %v10130 = vadd.f32 0.0, %v10129
    %10131 = vmatmul.f32.gmra.mxu0 %v3102
    %v10132 = vpop.f32.mrf.mxu0
    %v10133 = vadd.f32 0.0, %v10132
    %10134 = vmatmul.f32.gmra.mxu0 %v3104
    %v10135 = vpop.f32.mrf.mxu0
    %v10136 = vadd.f32 0.0, %v10135
    %10137 = vmatmul.f32.gmra.mxu0 %v3106
    %v10138 = vpop.f32.mrf.mxu0
    %v10139 = vadd.f32 0.0, %v10138
    %10140 = vmatmul.f32.gmra.mxu0 %v3108
    %v10141 = vpop.f32.mrf.mxu0
    %v10142 = vadd.f32 0.0, %v10141
    %10143 = vmatmul.f32.gmra.mxu0 %v3110
    %v10144 = vpop.f32.mrf.mxu0
    %v10145 = vadd.f32 0.0, %v10144
    %10146 = vmatmul.f32.gmra.mxu0 %v3112
    %v10147 = vpop.f32.mrf.mxu0
    %v10148 = vadd.f32 0.0, %v10147
    %10149 = vmatmul.f32.gmra.mxu0 %v3114
    %v10150 = vpop.f32.mrf.mxu0
    %v10151 = vadd.f32 0.0, %v10150
    %10152 = vmatmul.f32.gmra.mxu0 %v3116
    %v10153 = vpop.f32.mrf.mxu0
    %v10154 = vadd.f32 0.0, %v10153
    %10155 = vmatmul.f32.gmra.mxu0 %v3118
    %v10156 = vpop.f32.mrf.mxu0
    %v10157 = vadd.f32 0.0, %v10156
    %10158 = vmatmul.f32.gmra.mxu0 %v3120
    %v10159 = vpop.f32.mrf.mxu0
    %v10160 = vadd.f32 0.0, %v10159
    %10161 = vmatmul.f32.gmra.mxu0 %v3122
    %v10162 = vpop.f32.mrf.mxu0
    %v10163 = vadd.f32 0.0, %v10162
    %10164 = vmatmul.f32.gmra.mxu0 %v3124
    %v10165 = vpop.f32.mrf.mxu0
    %v10166 = vadd.f32 0.0, %v10165
    %10167 = vmatmul.f32.gmra.mxu0 %v3126
    %v10168 = vpop.f32.mrf.mxu0
    %v10169 = vadd.f32 0.0, %v10168
    %10170 = vmatmul.f32.gmra.mxu0 %v3128
    %v10171 = vpop.f32.mrf.mxu0
    %v10172 = vadd.f32 0.0, %v10171
    %10173 = vmatmul.f32.gmra.mxu0 %v3130
    %v10174 = vpop.f32.mrf.mxu0
    %v10175 = vadd.f32 0.0, %v10174
    %10176 = vmatmul.f32.gmra.mxu0 %v6334
    %v10177 = vpop.f32.mrf.mxu0
    %v10178 = vadd.f32 0.0, %v10177
    %10179 = vmatmul.f32.gmra.mxu0 %v6337
    %v10180 = vpop.f32.mrf.mxu0
    %v10181 = vadd.f32 0.0, %v10180
    %10182 = vmatmul.f32.gmra.mxu0 %v9666
    %v10183 = vpop.f32.mrf.mxu0
    %v10184 = vadd.f32 0.0, %v10183
    %10185 = vmatmul.f32.gmra.mxu0 %v9669
    %v10186 = vpop.f32.mrf.mxu0
    %v10187 = vadd.f32 0.0, %v10186
    %10188 = vmatmul.f32.gmra.mxu0 %v3140
    %v10189 = vpop.f32.mrf.mxu0
    %v10190 = vadd.f32 0.0, %v10189
    %10191 = vmatmul.f32.gmra.mxu0 %v3142
    %v10192 = vpop.f32.mrf.mxu0
    %v10193 = vadd.f32 0.0, %v10192
    %10194 = vmatmul.f32.gmra.mxu0 %v3144
    %v10195 = vpop.f32.mrf.mxu0
    %v10196 = vadd.f32 0.0, %v10195
    %10197 = vmatmul.f32.gmra.mxu0 %v3146
    %v10198 = vpop.f32.mrf.mxu0
    %v10199 = vadd.f32 0.0, %v10198
    %10200 = vmatmul.f32.gmra.mxu0 %v3148
    %v10201 = vpop.f32.mrf.mxu0
    %v10202 = vadd.f32 0.0, %v10201
    %10203 = vmatmul.f32.gmra.mxu0 %v3150
    %v10204 = vpop.f32.mrf.mxu0
    %v10205 = vadd.f32 0.0, %v10204
    %10206 = vmatmul.f32.gmra.mxu0 %v3152
    %v10207 = vpop.f32.mrf.mxu0
    %v10208 = vadd.f32 0.0, %v10207
    %10209 = vmatmul.f32.gmra.mxu0 %v3154
    %v10210 = vpop.f32.mrf.mxu0
    %v10211 = vadd.f32 0.0, %v10210
    %10212 = vmatmul.f32.gmra.mxu0 %v3156
    %v10213 = vpop.f32.mrf.mxu0
    %v10214 = vadd.f32 0.0, %v10213
    %10215 = vmatmul.f32.gmra.mxu0 %v3158
    %v10216 = vpop.f32.mrf.mxu0
    %v10217 = vadd.f32 0.0, %v10216
    %10218 = vmatmul.f32.gmra.mxu0 %v3160
    %v10219 = vpop.f32.mrf.mxu0
    %v10220 = vadd.f32 0.0, %v10219
    %10221 = vmatmul.f32.gmra.mxu0 %v3162
    %v10222 = vpop.f32.mrf.mxu0
    %v10223 = vadd.f32 0.0, %v10222
    %10224 = vmatmul.f32.gmra.mxu0 %v3164
    %v10225 = vpop.f32.mrf.mxu0
    %v10226 = vadd.f32 0.0, %v10225
    %10227 = vmatmul.f32.gmra.mxu0 %v3166
    %v10228 = vpop.f32.mrf.mxu0
    %v10229 = vadd.f32 0.0, %v10228
    %10230 = vmatmul.f32.gmra.mxu0 %v3168
    %v10231 = vpop.f32.mrf.mxu0
    %v10232 = vadd.f32 0.0, %v10231
    %10233 = vmatmul.f32.gmra.mxu0 %v3170
    %v10234 = vpop.f32.mrf.mxu0
    %v10235 = vadd.f32 0.0, %v10234
    %10236 = vmatmul.f32.gmra.mxu0 %v3172
    %v10237 = vpop.f32.mrf.mxu0
    %v10238 = vadd.f32 0.0, %v10237
    %10239 = vmatmul.f32.gmra.mxu0 %v3174
    %v10240 = vpop.f32.mrf.mxu0
    %v10241 = vadd.f32 0.0, %v10240
    %10242 = vmatmul.f32.gmra.mxu0 %v3176
    %v10243 = vpop.f32.mrf.mxu0
    %v10244 = vadd.f32 0.0, %v10243
    %10245 = vmatmul.f32.gmra.mxu0 %v3178
    %v10246 = vpop.f32.mrf.mxu0
    %v10247 = vadd.f32 0.0, %v10246
    %10248 = vmatmul.f32.gmra.mxu0 %v3180
    %v10249 = vpop.f32.mrf.mxu0
    %v10250 = vadd.f32 0.0, %v10249
    %10251 = vmatmul.f32.gmra.mxu0 %v3182
    %v10252 = vpop.f32.mrf.mxu0
    %v10253 = vadd.f32 0.0, %v10252
    %10254 = vmatmul.f32.gmra.mxu0 %v3184
    %v10255 = vpop.f32.mrf.mxu0
    %v10256 = vadd.f32 0.0, %v10255
    %10257 = vmatmul.f32.gmra.mxu0 %v3186
    %v10258 = vpop.f32.mrf.mxu0
    %v10259 = vadd.f32 0.0, %v10258
    %10260 = vmatmul.f32.gmra.mxu0 %v3188
    %v10261 = vpop.f32.mrf.mxu0
    %v10262 = vadd.f32 0.0, %v10261
    %10263 = vmatmul.f32.gmra.mxu0 %v3190
    %v10264 = vpop.f32.mrf.mxu0
    %v10265 = vadd.f32 0.0, %v10264
    %10266 = vmatmul.f32.gmra.mxu0 %v3192
    %v10267 = vpop.f32.mrf.mxu0
    %v10268 = vadd.f32 0.0, %v10267
    %10269 = vmatmul.f32.gmra.mxu0 %v3194
    %v10270 = vpop.f32.mrf.mxu0
    %v10271 = vadd.f32 0.0, %v10270
    %10272 = vmatmul.f32.gmra.mxu0 %v6340
    %v10273 = vpop.f32.mrf.mxu0
    %v10274 = vadd.f32 0.0, %v10273
    %10275 = vmatmul.f32.gmra.mxu0 %v6343
    %v10276 = vpop.f32.mrf.mxu0
    %v10277 = vadd.f32 0.0, %v10276
    %10278 = vmatmul.f32.gmra.mxu0 %v9672
    %v10279 = vpop.f32.mrf.mxu0
    %v10280 = vadd.f32 0.0, %v10279
    %10281 = vmatmul.f32.gmra.mxu0 %v9675
    %v10282 = vpop.f32.mrf.mxu0
    %v10283 = vadd.f32 0.0, %v10282
    %10284 = vmatmul.f32.gmra.mxu0 %v3204
    %v10285 = vpop.f32.mrf.mxu0
    %v10286 = vadd.f32 0.0, %v10285
    %10287 = vmatmul.f32.gmra.mxu0 %v3206
    %v10288 = vpop.f32.mrf.mxu0
    %v10289 = vadd.f32 0.0, %v10288
    %10290 = vmatmul.f32.gmra.mxu0 %v3208
    %v10291 = vpop.f32.mrf.mxu0
    %v10292 = vadd.f32 0.0, %v10291
    %10293 = vmatmul.f32.gmra.mxu0 %v3210
    %v10294 = vpop.f32.mrf.mxu0
    %v10295 = vadd.f32 0.0, %v10294
    %10296 = vmatmul.f32.gmra.mxu0 %v3212
    %v10297 = vpop.f32.mrf.mxu0
    %v10298 = vadd.f32 0.0, %v10297
    %10299 = vmatmul.f32.gmra.mxu0 %v3214
    %v10300 = vpop.f32.mrf.mxu0
    %v10301 = vadd.f32 0.0, %v10300
    %10302 = vmatmul.f32.gmra.mxu0 %v3216
    %v10303 = vpop.f32.mrf.mxu0
    %v10304 = vadd.f32 0.0, %v10303
    %10305 = vmatmul.f32.gmra.mxu0 %v3218
    %v10306 = vpop.f32.mrf.mxu0
    %v10307 = vadd.f32 0.0, %v10306
    %10308 = vmatmul.f32.gmra.mxu0 %v3220
    %v10309 = vpop.f32.mrf.mxu0
    %v10310 = vadd.f32 0.0, %v10309
    %10311 = vmatmul.f32.gmra.mxu0 %v3222
    %v10312 = vpop.f32.mrf.mxu0
    %v10313 = vadd.f32 0.0, %v10312
    %10314 = vmatmul.f32.gmra.mxu0 %v3224
    %v10315 = vpop.f32.mrf.mxu0
    %v10316 = vadd.f32 0.0, %v10315
    %10317 = vmatmul.f32.gmra.mxu0 %v3226
    %v10318 = vpop.f32.mrf.mxu0
    %v10319 = vadd.f32 0.0, %v10318
    %10320 = vmatmul.f32.gmra.mxu0 %v3228
    %v10321 = vpop.f32.mrf.mxu0
    %v10322 = vadd.f32 0.0, %v10321
    %10323 = vmatmul.f32.gmra.mxu0 %v3230
    %v10324 = vpop.f32.mrf.mxu0
    %v10325 = vadd.f32 0.0, %v10324
    %10326 = vmatmul.f32.gmra.mxu0 %v3232
    %v10327 = vpop.f32.mrf.mxu0
    %v10328 = vadd.f32 0.0, %v10327
    %10329 = vmatmul.f32.gmra.mxu0 %v3234
    %v10330 = vpop.f32.mrf.mxu0
    %v10331 = vadd.f32 0.0, %v10330
    %10332 = vmatmul.f32.gmra.mxu0 %v3236
    %v10333 = vpop.f32.mrf.mxu0
    %v10334 = vadd.f32 0.0, %v10333
    %10335 = vmatmul.f32.gmra.mxu0 %v3238
    %v10336 = vpop.f32.mrf.mxu0
    %v10337 = vadd.f32 0.0, %v10336
    %10338 = vmatmul.f32.gmra.mxu0 %v3240
    %v10339 = vpop.f32.mrf.mxu0
    %v10340 = vadd.f32 0.0, %v10339
    %10341 = vmatmul.f32.gmra.mxu0 %v3242
    %v10342 = vpop.f32.mrf.mxu0
    %v10343 = vadd.f32 0.0, %v10342
    %10344 = vmatmul.f32.gmra.mxu0 %v3244
    %v10345 = vpop.f32.mrf.mxu0
    %v10346 = vadd.f32 0.0, %v10345
    %10347 = vmatmul.f32.gmra.mxu0 %v3246
    %v10348 = vpop.f32.mrf.mxu0
    %v10349 = vadd.f32 0.0, %v10348
    %10350 = vmatmul.f32.gmra.mxu0 %v3248
    %v10351 = vpop.f32.mrf.mxu0
    %v10352 = vadd.f32 0.0, %v10351
    %10353 = vmatmul.f32.gmra.mxu0 %v3250
    %v10354 = vpop.f32.mrf.mxu0
    %v10355 = vadd.f32 0.0, %v10354
    %10356 = vmatmul.f32.gmra.mxu0 %v3252
    %v10357 = vpop.f32.mrf.mxu0
    %v10358 = vadd.f32 0.0, %v10357
    %10359 = vmatmul.f32.gmra.mxu0 %v3254
    %v10360 = vpop.f32.mrf.mxu0
    %v10361 = vadd.f32 0.0, %v10360
    %10362 = vmatmul.f32.gmra.mxu0 %v3256
    %v10363 = vpop.f32.mrf.mxu0
    %v10364 = vadd.f32 0.0, %v10363
    %10365 = vmatmul.f32.gmra.mxu0 %v3258
    %v10366 = vpop.f32.mrf.mxu0
    %v10367 = vadd.f32 0.0, %v10366
    %10368 = vmatmul.f32.gmra.mxu0 %v6346
    %v10369 = vpop.f32.mrf.mxu0
    %v10370 = vadd.f32 0.0, %v10369
    %10371 = vmatmul.f32.gmra.mxu0 %v6349
    %v10372 = vpop.f32.mrf.mxu0
    %v10373 = vadd.f32 0.0, %v10372
    %10374 = vmatmul.f32.gmra.mxu0 %v9678
    %v10375 = vpop.f32.mrf.mxu0
    %v10376 = vadd.f32 0.0, %v10375
    %10377 = vmatmul.f32.gmra.mxu0 %v9681
    %v10378 = vpop.f32.mrf.mxu0
    %v10379 = vadd.f32 0.0, %v10378
    %10380 = vmatmul.f32.gmra.mxu0 %v3268
    %v10381 = vpop.f32.mrf.mxu0
    %v10382 = vadd.f32 0.0, %v10381
    %10383 = vmatmul.f32.gmra.mxu0 %v3270
    %v10384 = vpop.f32.mrf.mxu0
    %v10385 = vadd.f32 0.0, %v10384
    %10386 = vmatmul.f32.gmra.mxu0 %v3272
    %v10387 = vpop.f32.mrf.mxu0
    %v10388 = vadd.f32 0.0, %v10387
    %10389 = vmatmul.f32.gmra.mxu0 %v3274
    %v10390 = vpop.f32.mrf.mxu0
    %v10391 = vadd.f32 0.0, %v10390
    %10392 = vmatmul.f32.gmra.mxu0 %v3276
    %v10393 = vpop.f32.mrf.mxu0
    %v10394 = vadd.f32 0.0, %v10393
    %10395 = vmatmul.f32.gmra.mxu0 %v3278
    %v10396 = vpop.f32.mrf.mxu0
    %v10397 = vadd.f32 0.0, %v10396
    %10398 = vmatmul.f32.gmra.mxu0 %v3280
    %v10399 = vpop.f32.mrf.mxu0
    %v10400 = vadd.f32 0.0, %v10399
    %10401 = vmatmul.f32.gmra.mxu0 %v3282
    %v10402 = vpop.f32.mrf.mxu0
    %v10403 = vadd.f32 0.0, %v10402
    %10404 = vmatmul.f32.gmra.mxu0 %v3284
    %v10405 = vpop.f32.mrf.mxu0
    %v10406 = vadd.f32 0.0, %v10405
    %10407 = vmatmul.f32.gmra.mxu0 %v3286
    %v10408 = vpop.f32.mrf.mxu0
    %v10409 = vadd.f32 0.0, %v10408
    %10410 = vmatmul.f32.gmra.mxu0 %v3288
    %v10411 = vpop.f32.mrf.mxu0
    %v10412 = vadd.f32 0.0, %v10411
    %10413 = vmatmul.f32.gmra.mxu0 %v3290
    %v10414 = vpop.f32.mrf.mxu0
    %v10415 = vadd.f32 0.0, %v10414
    %10416 = vmatmul.f32.gmra.mxu0 %v3292
    %v10417 = vpop.f32.mrf.mxu0
    %v10418 = vadd.f32 0.0, %v10417
    %10419 = vmatmul.f32.gmra.mxu0 %v3294
    %v10420 = vpop.f32.mrf.mxu0
    %v10421 = vadd.f32 0.0, %v10420
    %10422 = vmatmul.f32.gmra.mxu0 %v3296
    %v10423 = vpop.f32.mrf.mxu0
    %v10424 = vadd.f32 0.0, %v10423
    %10425 = vmatmul.f32.gmra.mxu0 %v3298
    %v10426 = vpop.f32.mrf.mxu0
    %v10427 = vadd.f32 0.0, %v10426
    %10428 = vmatmul.f32.gmra.mxu0 %v3300
    %v10429 = vpop.f32.mrf.mxu0
    %v10430 = vadd.f32 0.0, %v10429
    %10431 = vmatmul.f32.gmra.mxu0 %v3302
    %v10432 = vpop.f32.mrf.mxu0
    %v10433 = vadd.f32 0.0, %v10432
    %10434 = vmatmul.f32.gmra.mxu0 %v3304
    %v10435 = vpop.f32.mrf.mxu0
    %v10436 = vadd.f32 0.0, %v10435
    %10437 = vmatmul.f32.gmra.mxu0 %v3306
    %v10438 = vpop.f32.mrf.mxu0
    %v10439 = vadd.f32 0.0, %v10438
    %10440 = vmatmul.f32.gmra.mxu0 %v3308
    %v10441 = vpop.f32.mrf.mxu0
    %v10442 = vadd.f32 0.0, %v10441
    %10443 = vmatmul.f32.gmra.mxu0 %v3310
    %v10444 = vpop.f32.mrf.mxu0
    %v10445 = vadd.f32 0.0, %v10444
    %10446 = vmatmul.f32.gmra.mxu0 %v3312
    %v10447 = vpop.f32.mrf.mxu0
    %v10448 = vadd.f32 0.0, %v10447
    %10449 = vmatmul.f32.gmra.mxu0 %v3314
    %v10450 = vpop.f32.mrf.mxu0
    %v10451 = vadd.f32 0.0, %v10450
    %10452 = vmatmul.f32.gmra.mxu0 %v3316
    %v10453 = vpop.f32.mrf.mxu0
    %v10454 = vadd.f32 0.0, %v10453
    %10455 = vmatmul.f32.gmra.mxu0 %v3318
    %v10456 = vpop.f32.mrf.mxu0
    %v10457 = vadd.f32 0.0, %v10456
    %10458 = vmatmul.f32.gmra.mxu0 %v3320
    %v10459 = vpop.f32.mrf.mxu0
    %v10460 = vadd.f32 0.0, %v10459
    %10461 = vmatmul.f32.gmra.mxu0 %v3322
    %v10462 = vpop.f32.mrf.mxu0
    %v10463 = vadd.f32 0.0, %v10462
    %10464 = vmatmul.f32.gmra.mxu0 %v6352
    %v10465 = vpop.f32.mrf.mxu0
    %v10466 = vadd.f32 0.0, %v10465
    %10467 = vmatmul.f32.gmra.mxu0 %v6355
    %v10468 = vpop.f32.mrf.mxu0
    %v10469 = vadd.f32 0.0, %v10468
    %10470 = vmatmul.f32.gmra.mxu0 %v9684
    %v10471 = vpop.f32.mrf.mxu0
    %v10472 = vadd.f32 0.0, %v10471
    %10473 = vmatmul.f32.gmra.mxu0 %v9687
    %v10474 = vpop.f32.mrf.mxu0
    %v10475 = vadd.f32 0.0, %v10474
    %10476 = vdwg.mxu0
    %v10477 = vadd.f32 %v9385, %v9710
    %v10478 = vadd.f32 %v9386, %v9713
    %v10479 = vadd.f32 %v9387, %v9716
    %v10480 = vadd.f32 %v9388, %v9719
    %v10481 = vadd.f32 %v9389, %v9722
    %v10482 = vadd.f32 %v9390, %v9725
    %v10483 = vadd.f32 %v9391, %v9728
    %v10484 = vadd.f32 %v9392, %v9731
    %v10485 = vadd.f32 %v9393, %v9734
    %v10486 = vadd.f32 %v9394, %v9737
    %v10487 = vadd.f32 %v9395, %v9740
    %v10488 = vadd.f32 %v9396, %v9743
    %v10489 = vadd.f32 %v9397, %v9746
    %v10490 = vadd.f32 %v9398, %v9749
    %v10491 = vadd.f32 %v9399, %v9752
    %v10492 = vadd.f32 %v9400, %v9755
    %v10493 = vadd.f32 %v9401, %v9758
    %v10494 = vadd.f32 %v9402, %v9761
    %v10495 = vadd.f32 %v9403, %v9764
    %v10496 = vadd.f32 %v9404, %v9767
    %v10497 = vadd.f32 %v9405, %v9770
    %v10498 = vadd.f32 %v9406, %v9773
    %v10499 = vadd.f32 %v9407, %v9776
    %v10500 = vadd.f32 %v9408, %v9779
    %v10501 = vadd.f32 %v9409, %v9782
    %v10502 = vadd.f32 %v9410, %v9785
    %v10503 = vadd.f32 %v9411, %v9788
    %v10504 = vadd.f32 %v9412, %v9791
    %v10505 = vadd.f32 %v9413, %v9794
    %v10506 = vadd.f32 %v9414, %v9797
    %v10507 = vadd.f32 %v9415, %v9800
    %v10508 = vadd.f32 %v9416, %v9803
    %v10509 = vadd.f32 %v9417, %v9806
    %v10510 = vadd.f32 %v9418, %v9809
    %v10511 = vadd.f32 %v9419, %v9812
    %v10512 = vadd.f32 %v9420, %v9815
    %v10513 = vadd.f32 %v9421, %v9818
    %v10514 = vadd.f32 %v9422, %v9821
    %v10515 = vadd.f32 %v9423, %v9824
    %v10516 = vadd.f32 %v9424, %v9827
    %v10517 = vadd.f32 %v9425, %v9830
    %v10518 = vadd.f32 %v9426, %v9833
    %v10519 = vadd.f32 %v9427, %v9836
    %v10520 = vadd.f32 %v9428, %v9839
    %v10521 = vadd.f32 %v9429, %v9842
    %v10522 = vadd.f32 %v9430, %v9845
    %v10523 = vadd.f32 %v9431, %v9848
    %v10524 = vadd.f32 %v9432, %v9851
    %v10525 = vadd.f32 %v9433, %v9854
    %v10526 = vadd.f32 %v9434, %v9857
    %v10527 = vadd.f32 %v9435, %v9860
    %v10528 = vadd.f32 %v9436, %v9863
    %v10529 = vadd.f32 %v9437, %v9866
    %v10530 = vadd.f32 %v9438, %v9869
    %v10531 = vadd.f32 %v9439, %v9872
    %v10532 = vadd.f32 %v9440, %v9875
    %v10533 = vadd.f32 %v9441, %v9878
    %v10534 = vadd.f32 %v9442, %v9881
    %v10535 = vadd.f32 %v9443, %v9884
    %v10536 = vadd.f32 %v9444, %v9887
    %v10537 = vadd.f32 %v9445, %v9890
    %v10538 = vadd.f32 %v9446, %v9893
    %v10539 = vadd.f32 %v9447, %v9896
    %v10540 = vadd.f32 %v9448, %v9899
    %v10541 = vadd.f32 %v9449, %v9902
    %v10542 = vadd.f32 %v9450, %v9905
    %v10543 = vadd.f32 %v9451, %v9908
    %v10544 = vadd.f32 %v9452, %v9911
    %v10545 = vadd.f32 %v9453, %v9914
    %v10546 = vadd.f32 %v9454, %v9917
    %v10547 = vadd.f32 %v9455, %v9920
    %v10548 = vadd.f32 %v9456, %v9923
    %v10549 = vadd.f32 %v9457, %v9926
    %v10550 = vadd.f32 %v9458, %v9929
    %v10551 = vadd.f32 %v9459, %v9932
    %v10552 = vadd.f32 %v9460, %v9935
    %v10553 = vadd.f32 %v9461, %v9938
    %v10554 = vadd.f32 %v9462, %v9941
    %v10555 = vadd.f32 %v9463, %v9944
    %v10556 = vadd.f32 %v9464, %v9947
    %v10557 = vadd.f32 %v9465, %v9950
    %v10558 = vadd.f32 %v9466, %v9953
    %v10559 = vadd.f32 %v9467, %v9956
    %v10560 = vadd.f32 %v9468, %v9959
    %v10561 = vadd.f32 %v9469, %v9962
    %v10562 = vadd.f32 %v9470, %v9965
    %v10563 = vadd.f32 %v9471, %v9968
    %v10564 = vadd.f32 %v9472, %v9971
    %v10565 = vadd.f32 %v9473, %v9974
    %v10566 = vadd.f32 %v9474, %v9977
    %v10567 = vadd.f32 %v9475, %v9980
    %v10568 = vadd.f32 %v9476, %v9983
    %v10569 = vadd.f32 %v9477, %v9986
    %v10570 = vadd.f32 %v9478, %v9989
    %v10571 = vadd.f32 %v9479, %v9992
    %v10572 = vadd.f32 %v9480, %v9995
    %v10573 = vadd.f32 %v9481, %v9998
    %v10574 = vadd.f32 %v9482, %v10001
    %v10575 = vadd.f32 %v9483, %v10004
    %v10576 = vadd.f32 %v9484, %v10007
    %v10577 = vadd.f32 %v9485, %v10010
    %v10578 = vadd.f32 %v9486, %v10013
    %v10579 = vadd.f32 %v9487, %v10016
    %v10580 = vadd.f32 %v9488, %v10019
    %v10581 = vadd.f32 %v9489, %v10022
    %v10582 = vadd.f32 %v9490, %v10025
    %v10583 = vadd.f32 %v9491, %v10028
    %v10584 = vadd.f32 %v9492, %v10031
    %v10585 = vadd.f32 %v9493, %v10034
    %v10586 = vadd.f32 %v9494, %v10037
    %v10587 = vadd.f32 %v9495, %v10040
    %v10588 = vadd.f32 %v9496, %v10043
    %v10589 = vadd.f32 %v9497, %v10046
    %v10590 = vadd.f32 %v9498, %v10049
    %v10591 = vadd.f32 %v9499, %v10052
    %v10592 = vadd.f32 %v9500, %v10055
    %v10593 = vadd.f32 %v9501, %v10058
    %v10594 = vadd.f32 %v9502, %v10061
    %v10595 = vadd.f32 %v9503, %v10064
    %v10596 = vadd.f32 %v9504, %v10067
    %v10597 = vadd.f32 %v9505, %v10070
    %v10598 = vadd.f32 %v9506, %v10073
    %v10599 = vadd.f32 %v9507, %v10076
    %v10600 = vadd.f32 %v9508, %v10079
    %v10601 = vadd.f32 %v9509, %v10082
    %v10602 = vadd.f32 %v9510, %v10085
    %v10603 = vadd.f32 %v9511, %v10088
    %v10604 = vadd.f32 %v9512, %v10091
    %v10605 = vadd.f32 %v9513, %v10094
    %v10606 = vadd.f32 %v9514, %v10097
    %v10607 = vadd.f32 %v9515, %v10100
    %v10608 = vadd.f32 %v9516, %v10103
    %v10609 = vadd.f32 %v9517, %v10106
    %v10610 = vadd.f32 %v9518, %v10109
    %v10611 = vadd.f32 %v9519, %v10112
    %v10612 = vadd.f32 %v9520, %v10115
    %v10613 = vadd.f32 %v9521, %v10118
    %v10614 = vadd.f32 %v9522, %v10121
    %v10615 = vadd.f32 %v9523, %v10124
    %v10616 = vadd.f32 %v9524, %v10127
    %v10617 = vadd.f32 %v9525, %v10130
    %v10618 = vadd.f32 %v9526, %v10133
    %v10619 = vadd.f32 %v9527, %v10136
    %v10620 = vadd.f32 %v9528, %v10139
    %v10621 = vadd.f32 %v9529, %v10142
    %v10622 = vadd.f32 %v9530, %v10145
    %v10623 = vadd.f32 %v9531, %v10148
    %v10624 = vadd.f32 %v9532, %v10151
    %v10625 = vadd.f32 %v9533, %v10154
    %v10626 = vadd.f32 %v9534, %v10157
    %v10627 = vadd.f32 %v9535, %v10160
    %v10628 = vadd.f32 %v9536, %v10163
    %v10629 = vadd.f32 %v9537, %v10166
    %v10630 = vadd.f32 %v9538, %v10169
    %v10631 = vadd.f32 %v9539, %v10172
    %v10632 = vadd.f32 %v9540, %v10175
    %v10633 = vadd.f32 %v9541, %v10178
    %v10634 = vadd.f32 %v9542, %v10181
    %v10635 = vadd.f32 %v9543, %v10184
    %v10636 = vadd.f32 %v9544, %v10187
    %v10637 = vadd.f32 %v9545, %v10190
    %v10638 = vadd.f32 %v9546, %v10193
    %v10639 = vadd.f32 %v9547, %v10196
    %v10640 = vadd.f32 %v9548, %v10199
    %v10641 = vadd.f32 %v9549, %v10202
    %v10642 = vadd.f32 %v9550, %v10205
    %v10643 = vadd.f32 %v9551, %v10208
    %v10644 = vadd.f32 %v9552, %v10211
    %v10645 = vadd.f32 %v9553, %v10214
    %v10646 = vadd.f32 %v9554, %v10217
    %v10647 = vadd.f32 %v9555, %v10220
    %v10648 = vadd.f32 %v9556, %v10223
    %v10649 = vadd.f32 %v9557, %v10226
    %v10650 = vadd.f32 %v9558, %v10229
    %v10651 = vadd.f32 %v9559, %v10232
    %v10652 = vadd.f32 %v9560, %v10235
    %v10653 = vadd.f32 %v9561, %v10238
    %v10654 = vadd.f32 %v9562, %v10241
    %v10655 = vadd.f32 %v9563, %v10244
    %v10656 = vadd.f32 %v9564, %v10247
    %v10657 = vadd.f32 %v9565, %v10250
    %v10658 = vadd.f32 %v9566, %v10253
    %v10659 = vadd.f32 %v9567, %v10256
    %v10660 = vadd.f32 %v9568, %v10259
    %v10661 = vadd.f32 %v9569, %v10262
    %v10662 = vadd.f32 %v9570, %v10265
    %v10663 = vadd.f32 %v9571, %v10268
    %v10664 = vadd.f32 %v9572, %v10271
    %v10665 = vadd.f32 %v9573, %v10274
    %v10666 = vadd.f32 %v9574, %v10277
    %v10667 = vadd.f32 %v9575, %v10280
    %v10668 = vadd.f32 %v9576, %v10283
    %v10669 = vadd.f32 %v9577, %v10286
    %v10670 = vadd.f32 %v9578, %v10289
    %v10671 = vadd.f32 %v9579, %v10292
    %v10672 = vadd.f32 %v9580, %v10295
    %v10673 = vadd.f32 %v9581, %v10298
    %v10674 = vadd.f32 %v9582, %v10301
    %v10675 = vadd.f32 %v9583, %v10304
    %v10676 = vadd.f32 %v9584, %v10307
    %v10677 = vadd.f32 %v9585, %v10310
    %v10678 = vadd.f32 %v9586, %v10313
    %v10679 = vadd.f32 %v9587, %v10316
    %v10680 = vadd.f32 %v9588, %v10319
    %v10681 = vadd.f32 %v9589, %v10322
    %v10682 = vadd.f32 %v9590, %v10325
    %v10683 = vadd.f32 %v9591, %v10328
    %v10684 = vadd.f32 %v9592, %v10331
    %v10685 = vadd.f32 %v9593, %v10334
    %v10686 = vadd.f32 %v9594, %v10337
    %v10687 = vadd.f32 %v9595, %v10340
    %v10688 = vadd.f32 %v9596, %v10343
    %v10689 = vadd.f32 %v9597, %v10346
    %v10690 = vadd.f32 %v9598, %v10349
    %v10691 = vadd.f32 %v9599, %v10352
    %v10692 = vadd.f32 %v9600, %v10355
    %v10693 = vadd.f32 %v9601, %v10358
    %v10694 = vadd.f32 %v9602, %v10361
    %v10695 = vadd.f32 %v9603, %v10364
    %v10696 = vadd.f32 %v9604, %v10367
    %v10697 = vadd.f32 %v9605, %v10370
    %v10698 = vadd.f32 %v9606, %v10373
    %v10699 = vadd.f32 %v9607, %v10376
    %v10700 = vadd.f32 %v9608, %v10379
    %v10701 = vadd.f32 %v9609, %v10382
    %v10702 = vadd.f32 %v9610, %v10385
    %v10703 = vadd.f32 %v9611, %v10388
    %v10704 = vadd.f32 %v9612, %v10391
    %v10705 = vadd.f32 %v9613, %v10394
    %v10706 = vadd.f32 %v9614, %v10397
    %v10707 = vadd.f32 %v9615, %v10400
    %v10708 = vadd.f32 %v9616, %v10403
    %v10709 = vadd.f32 %v9617, %v10406
    %v10710 = vadd.f32 %v9618, %v10409
    %v10711 = vadd.f32 %v9619, %v10412
    %v10712 = vadd.f32 %v9620, %v10415
    %v10713 = vadd.f32 %v9621, %v10418
    %v10714 = vadd.f32 %v9622, %v10421
    %v10715 = vadd.f32 %v9623, %v10424
    %v10716 = vadd.f32 %v9624, %v10427
    %v10717 = vadd.f32 %v9625, %v10430
    %v10718 = vadd.f32 %v9626, %v10433
    %v10719 = vadd.f32 %v9627, %v10436
    %v10720 = vadd.f32 %v9628, %v10439
    %v10721 = vadd.f32 %v9629, %v10442
    %v10722 = vadd.f32 %v9630, %v10445
    %v10723 = vadd.f32 %v9631, %v10448
    %v10724 = vadd.f32 %v9632, %v10451
    %v10725 = vadd.f32 %v9633, %v10454
    %v10726 = vadd.f32 %v9634, %v10457
    %v10727 = vadd.f32 %v9635, %v10460
    %v10728 = vadd.f32 %v9636, %v10463
    %v10729 = vadd.f32 %v9637, %v10466
    %v10730 = vadd.f32 %v9638, %v10469
    %v10731 = vadd.f32 %v9639, %v10472
    %v10732 = vadd.f32 %v9640, %v10475
    %v10741 = vrot.slane %v95, 1
    %v10742 = vrot.slane %v96, 1
    %v10743 = vsel %vm869, %v10741, %v10742
    %v10744 = vrot.slane %v97, 1
    %v10745 = vsel %vm869, %v10742, %v10744
    %v10746 = vrot.slane %v149, 1
    %v10747 = vrot.slane %v150, 1
    %v10748 = vsel %vm869, %v10746, %v10747
    %v10749 = vrot.slane %v151, 1
    %v10750 = vsel %vm869, %v10747, %v10749
    %v10751 = vrot.slane %v203, 1
    %v10752 = vrot.slane %v204, 1
    %v10753 = vsel %vm869, %v10751, %v10752
    %v10754 = vrot.slane %v205, 1
    %v10755 = vsel %vm869, %v10752, %v10754
    %v10756 = vrot.slane %v257, 1
    %v10757 = vrot.slane %v258, 1
    %v10758 = vsel %vm869, %v10756, %v10757
    %v10759 = vrot.slane %v259, 1
    %v10760 = vsel %vm869, %v10757, %v10759
    %v10761 = vrot.slane %v311, 1
    %v10762 = vrot.slane %v312, 1
    %v10763 = vsel %vm869, %v10761, %v10762
    %v10764 = vrot.slane %v313, 1
    %v10765 = vsel %vm869, %v10762, %v10764
    %v10766 = vrot.slane %v365, 1
    %v10767 = vrot.slane %v366, 1
    %v10768 = vsel %vm869, %v10766, %v10767
    %v10769 = vrot.slane %v367, 1
    %v10770 = vsel %vm869, %v10767, %v10769
    %v10771 = vrot.slane %v419, 1
    %v10772 = vrot.slane %v420, 1
    %v10773 = vsel %vm869, %v10771, %v10772
    %v10774 = vrot.slane %v421, 1
    %v10775 = vsel %vm869, %v10772, %v10774
    %v10776 = vrot.slane %v473, 1
    %v10777 = vrot.slane %v474, 1
    %v10778 = vsel %vm869, %v10776, %v10777
    %v10779 = vrot.slane %v475, 1
    %v10780 = vsel %vm869, %v10777, %v10779
    %v10781 = vsel %vm1510, %v10743, 0
    %v10783 = vsel %vm1510, %v10745, 0
    %v10785 = vsel %vm1510, %v10748, 0
    %v10787 = vsel %vm1510, %v10750, 0
    %v10789 = vsel %vm1510, %v10753, 0
    %v10791 = vsel %vm1510, %v10755, 0
    %v10793 = vsel %vm1510, %v10758, 0
    %v10795 = vsel %vm1510, %v10760, 0
    %v10797 = vsel %vm1510, %v10763, 0
    %v10799 = vsel %vm1510, %v10765, 0
    %v10801 = vsel %vm1510, %v10768, 0
    %v10803 = vsel %vm1510, %v10770, 0
    %v10805 = vsel %vm1510, %v10773, 0
    %v10807 = vsel %vm1510, %v10775, 0
    %v10809 = vsel %vm1510, %v10778, 0
    %v10811 = vsel %vm1510, %v10780, 0
    %v10814 = vsel %vm2023, %v483, 0
    %10816 = vmatpush.msra.mxu0 0.0
    %10817 = vmatpush.msra.mxu0 0.0
    %10818 = vmatpush.msra.mxu0 0.0
    %10819 = vmatpush.msra.mxu0 0.0
    %10820 = vmatpush.msra.mxu0 0.0
    %10821 = vmatpush.msra.mxu0 0.0
    %10822 = vmatpush.msra.mxu0 0.0
    %10823 = vmatpush.msra.mxu0 0.0
    %10824 = vmatpush.msra.mxu0 0.0
    %10825 = vmatpush.msra.mxu0 0.0
    %10826 = vmatpush.msra.mxu0 0.0
    %10827 = vmatpush.msra.mxu0 0.0
    %10828 = vmatpush.msra.mxu0 0.0
    %10829 = vmatpush.msra.mxu0 0.0
    %10830 = vmatpush.msra.mxu0 0.0
    %10831 = vmatpush.msra.mxu0 %v10814
    %10832 = vmatmul.f32.gmra.mxu0 %v1519
    %v10833 = vpop.f32.mrf.mxu0
    %v10834 = vadd.f32 0.0, %v10833
    %10835 = vmatmul.f32.gmra.mxu0 %v1521
    %v10836 = vpop.f32.mrf.mxu0
    %v10837 = vadd.f32 0.0, %v10836
    %10838 = vmatmul.f32.gmra.mxu0 %v1523
    %v10839 = vpop.f32.mrf.mxu0
    %v10840 = vadd.f32 0.0, %v10839
    %10841 = vmatmul.f32.gmra.mxu0 %v1525
    %v10842 = vpop.f32.mrf.mxu0
    %v10843 = vadd.f32 0.0, %v10842
    %10844 = vmatmul.f32.gmra.mxu0 %v1527
    %v10845 = vpop.f32.mrf.mxu0
    %v10846 = vadd.f32 0.0, %v10845
    %10847 = vmatmul.f32.gmra.mxu0 %v1529
    %v10848 = vpop.f32.mrf.mxu0
    %v10849 = vadd.f32 0.0, %v10848
    %10850 = vmatmul.f32.gmra.mxu0 %v1531
    %v10851 = vpop.f32.mrf.mxu0
    %v10852 = vadd.f32 0.0, %v10851
    %10853 = vmatmul.f32.gmra.mxu0 %v1533
    %v10854 = vpop.f32.mrf.mxu0
    %v10855 = vadd.f32 0.0, %v10854
    %10856 = vmatmul.f32.gmra.mxu0 %v1535
    %v10857 = vpop.f32.mrf.mxu0
    %v10858 = vadd.f32 0.0, %v10857
    %10859 = vmatmul.f32.gmra.mxu0 %v1537
    %v10860 = vpop.f32.mrf.mxu0
    %v10861 = vadd.f32 0.0, %v10860
    %10862 = vmatmul.f32.gmra.mxu0 %v1539
    %v10863 = vpop.f32.mrf.mxu0
    %v10864 = vadd.f32 0.0, %v10863
    %10865 = vmatmul.f32.gmra.mxu0 %v1541
    %v10866 = vpop.f32.mrf.mxu0
    %v10867 = vadd.f32 0.0, %v10866
    %10868 = vmatmul.f32.gmra.mxu0 %v1543
    %v10869 = vpop.f32.mrf.mxu0
    %v10870 = vadd.f32 0.0, %v10869
    %10871 = vmatmul.f32.gmra.mxu0 %v1545
    %v10872 = vpop.f32.mrf.mxu0
    %v10873 = vadd.f32 0.0, %v10872
    %10874 = vmatmul.f32.gmra.mxu0 %v1547
    %v10875 = vpop.f32.mrf.mxu0
    %v10876 = vadd.f32 0.0, %v10875
    %10877 = vmatmul.f32.gmra.mxu0 %v1549
    %v10878 = vpop.f32.mrf.mxu0
    %v10879 = vadd.f32 0.0, %v10878
    %10880 = vmatmul.f32.gmra.mxu0 %v1551
    %v10881 = vpop.f32.mrf.mxu0
    %v10882 = vadd.f32 0.0, %v10881
    %10883 = vmatmul.f32.gmra.mxu0 %v1553
    %v10884 = vpop.f32.mrf.mxu0
    %v10885 = vadd.f32 0.0, %v10884
    %10886 = vmatmul.f32.gmra.mxu0 %v1555
    %v10887 = vpop.f32.mrf.mxu0
    %v10888 = vadd.f32 0.0, %v10887
    %10889 = vmatmul.f32.gmra.mxu0 %v1557
    %v10890 = vpop.f32.mrf.mxu0
    %v10891 = vadd.f32 0.0, %v10890
    %10892 = vmatmul.f32.gmra.mxu0 %v1559
    %v10893 = vpop.f32.mrf.mxu0
    %v10894 = vadd.f32 0.0, %v10893
    %10895 = vmatmul.f32.gmra.mxu0 %v1561
    %v10896 = vpop.f32.mrf.mxu0
    %v10897 = vadd.f32 0.0, %v10896
    %10898 = vmatmul.f32.gmra.mxu0 %v1563
    %v10899 = vpop.f32.mrf.mxu0
    %v10900 = vadd.f32 0.0, %v10899
    %10901 = vmatmul.f32.gmra.mxu0 %v1565
    %v10902 = vpop.f32.mrf.mxu0
    %v10903 = vadd.f32 0.0, %v10902
    %10904 = vmatmul.f32.gmra.mxu0 %v1567
    %v10905 = vpop.f32.mrf.mxu0
    %v10906 = vadd.f32 0.0, %v10905
    %10907 = vmatmul.f32.gmra.mxu0 %v1569
    %v10908 = vpop.f32.mrf.mxu0
    %v10909 = vadd.f32 0.0, %v10908
    %10910 = vmatmul.f32.gmra.mxu0 %v1571
    %v10911 = vpop.f32.mrf.mxu0
    %v10912 = vadd.f32 0.0, %v10911
    %10913 = vmatmul.f32.gmra.mxu0 %v1573
    %v10914 = vpop.f32.mrf.mxu0
    %v10915 = vadd.f32 0.0, %v10914
    %10916 = vmatmul.f32.gmra.mxu0 %v7449
    %v10917 = vpop.f32.mrf.mxu0
    %v10918 = vadd.f32 0.0, %v10917
    %10919 = vmatmul.f32.gmra.mxu0 %v7451
    %v10920 = vpop.f32.mrf.mxu0
    %v10921 = vadd.f32 0.0, %v10920
    %10922 = vmatmul.f32.gmra.mxu0 %v10781
    %v10923 = vpop.f32.mrf.mxu0
    %v10924 = vadd.f32 0.0, %v10923
    %10925 = vmatmul.f32.gmra.mxu0 %v10783
    %v10926 = vpop.f32.mrf.mxu0
    %v10927 = vadd.f32 0.0, %v10926
    %10928 = vmatmul.f32.gmra.mxu0 %v1583
    %v10929 = vpop.f32.mrf.mxu0
    %v10930 = vadd.f32 0.0, %v10929
    %10931 = vmatmul.f32.gmra.mxu0 %v1585
    %v10932 = vpop.f32.mrf.mxu0
    %v10933 = vadd.f32 0.0, %v10932
    %10934 = vmatmul.f32.gmra.mxu0 %v1587
    %v10935 = vpop.f32.mrf.mxu0
    %v10936 = vadd.f32 0.0, %v10935
    %10937 = vmatmul.f32.gmra.mxu0 %v1589
    %v10938 = vpop.f32.mrf.mxu0
    %v10939 = vadd.f32 0.0, %v10938
    %10940 = vmatmul.f32.gmra.mxu0 %v1591
    %v10941 = vpop.f32.mrf.mxu0
    %v10942 = vadd.f32 0.0, %v10941
    %10943 = vmatmul.f32.gmra.mxu0 %v1593
    %v10944 = vpop.f32.mrf.mxu0
    %v10945 = vadd.f32 0.0, %v10944
    %10946 = vmatmul.f32.gmra.mxu0 %v1595
    %v10947 = vpop.f32.mrf.mxu0
    %v10948 = vadd.f32 0.0, %v10947
    %10949 = vmatmul.f32.gmra.mxu0 %v1597
    %v10950 = vpop.f32.mrf.mxu0
    %v10951 = vadd.f32 0.0, %v10950
    %10952 = vmatmul.f32.gmra.mxu0 %v1599
    %v10953 = vpop.f32.mrf.mxu0
    %v10954 = vadd.f32 0.0, %v10953
    %10955 = vmatmul.f32.gmra.mxu0 %v1601
    %v10956 = vpop.f32.mrf.mxu0
    %v10957 = vadd.f32 0.0, %v10956
    %10958 = vmatmul.f32.gmra.mxu0 %v1603
    %v10959 = vpop.f32.mrf.mxu0
    %v10960 = vadd.f32 0.0, %v10959
    %10961 = vmatmul.f32.gmra.mxu0 %v1605
    %v10962 = vpop.f32.mrf.mxu0
    %v10963 = vadd.f32 0.0, %v10962
    %10964 = vmatmul.f32.gmra.mxu0 %v1607
    %v10965 = vpop.f32.mrf.mxu0
    %v10966 = vadd.f32 0.0, %v10965
    %10967 = vmatmul.f32.gmra.mxu0 %v1609
    %v10968 = vpop.f32.mrf.mxu0
    %v10969 = vadd.f32 0.0, %v10968
    %10970 = vmatmul.f32.gmra.mxu0 %v1611
    %v10971 = vpop.f32.mrf.mxu0
    %v10972 = vadd.f32 0.0, %v10971
    %10973 = vmatmul.f32.gmra.mxu0 %v1613
    %v10974 = vpop.f32.mrf.mxu0
    %v10975 = vadd.f32 0.0, %v10974
    %10976 = vmatmul.f32.gmra.mxu0 %v1615
    %v10977 = vpop.f32.mrf.mxu0
    %v10978 = vadd.f32 0.0, %v10977
    %10979 = vmatmul.f32.gmra.mxu0 %v1617
    %v10980 = vpop.f32.mrf.mxu0
    %v10981 = vadd.f32 0.0, %v10980
    %10982 = vmatmul.f32.gmra.mxu0 %v1619
    %v10983 = vpop.f32.mrf.mxu0
    %v10984 = vadd.f32 0.0, %v10983
    %10985 = vmatmul.f32.gmra.mxu0 %v1621
    %v10986 = vpop.f32.mrf.mxu0
    %v10987 = vadd.f32 0.0, %v10986
    %10988 = vmatmul.f32.gmra.mxu0 %v1623
    %v10989 = vpop.f32.mrf.mxu0
    %v10990 = vadd.f32 0.0, %v10989
    %10991 = vmatmul.f32.gmra.mxu0 %v1625
    %v10992 = vpop.f32.mrf.mxu0
    %v10993 = vadd.f32 0.0, %v10992
    %10994 = vmatmul.f32.gmra.mxu0 %v1627
    %v10995 = vpop.f32.mrf.mxu0
    %v10996 = vadd.f32 0.0, %v10995
    %10997 = vmatmul.f32.gmra.mxu0 %v1629
    %v10998 = vpop.f32.mrf.mxu0
    %v10999 = vadd.f32 0.0, %v10998
    %11000 = vmatmul.f32.gmra.mxu0 %v1631
    %v11001 = vpop.f32.mrf.mxu0
    %v11002 = vadd.f32 0.0, %v11001
    %11003 = vmatmul.f32.gmra.mxu0 %v1633
    %v11004 = vpop.f32.mrf.mxu0
    %v11005 = vadd.f32 0.0, %v11004
    %11006 = vmatmul.f32.gmra.mxu0 %v1635
    %v11007 = vpop.f32.mrf.mxu0
    %v11008 = vadd.f32 0.0, %v11007
    %11009 = vmatmul.f32.gmra.mxu0 %v1637
    %v11010 = vpop.f32.mrf.mxu0
    %v11011 = vadd.f32 0.0, %v11010
    %11012 = vmatmul.f32.gmra.mxu0 %v7453
    %v11013 = vpop.f32.mrf.mxu0
    %v11014 = vadd.f32 0.0, %v11013
    %11015 = vmatmul.f32.gmra.mxu0 %v7455
    %v11016 = vpop.f32.mrf.mxu0
    %v11017 = vadd.f32 0.0, %v11016
    %11018 = vmatmul.f32.gmra.mxu0 %v10785
    %v11019 = vpop.f32.mrf.mxu0
    %v11020 = vadd.f32 0.0, %v11019
    %11021 = vmatmul.f32.gmra.mxu0 %v10787
    %v11022 = vpop.f32.mrf.mxu0
    %v11023 = vadd.f32 0.0, %v11022
    %11024 = vmatmul.f32.gmra.mxu0 %v1647
    %v11025 = vpop.f32.mrf.mxu0
    %v11026 = vadd.f32 0.0, %v11025
    %11027 = vmatmul.f32.gmra.mxu0 %v1649
    %v11028 = vpop.f32.mrf.mxu0
    %v11029 = vadd.f32 0.0, %v11028
    %11030 = vmatmul.f32.gmra.mxu0 %v1651
    %v11031 = vpop.f32.mrf.mxu0
    %v11032 = vadd.f32 0.0, %v11031
    %11033 = vmatmul.f32.gmra.mxu0 %v1653
    %v11034 = vpop.f32.mrf.mxu0
    %v11035 = vadd.f32 0.0, %v11034
    %11036 = vmatmul.f32.gmra.mxu0 %v1655
    %v11037 = vpop.f32.mrf.mxu0
    %v11038 = vadd.f32 0.0, %v11037
    %11039 = vmatmul.f32.gmra.mxu0 %v1657
    %v11040 = vpop.f32.mrf.mxu0
    %v11041 = vadd.f32 0.0, %v11040
    %11042 = vmatmul.f32.gmra.mxu0 %v1659
    %v11043 = vpop.f32.mrf.mxu0
    %v11044 = vadd.f32 0.0, %v11043
    %11045 = vmatmul.f32.gmra.mxu0 %v1661
    %v11046 = vpop.f32.mrf.mxu0
    %v11047 = vadd.f32 0.0, %v11046
    %11048 = vmatmul.f32.gmra.mxu0 %v1663
    %v11049 = vpop.f32.mrf.mxu0
    %v11050 = vadd.f32 0.0, %v11049
    %11051 = vmatmul.f32.gmra.mxu0 %v1665
    %v11052 = vpop.f32.mrf.mxu0
    %v11053 = vadd.f32 0.0, %v11052
    %11054 = vmatmul.f32.gmra.mxu0 %v1667
    %v11055 = vpop.f32.mrf.mxu0
    %v11056 = vadd.f32 0.0, %v11055
    %11057 = vmatmul.f32.gmra.mxu0 %v1669
    %v11058 = vpop.f32.mrf.mxu0
    %v11059 = vadd.f32 0.0, %v11058
    %11060 = vmatmul.f32.gmra.mxu0 %v1671
    %v11061 = vpop.f32.mrf.mxu0
    %v11062 = vadd.f32 0.0, %v11061
    %11063 = vmatmul.f32.gmra.mxu0 %v1673
    %v11064 = vpop.f32.mrf.mxu0
    %v11065 = vadd.f32 0.0, %v11064
    %11066 = vmatmul.f32.gmra.mxu0 %v1675
    %v11067 = vpop.f32.mrf.mxu0
    %v11068 = vadd.f32 0.0, %v11067
    %11069 = vmatmul.f32.gmra.mxu0 %v1677
    %v11070 = vpop.f32.mrf.mxu0
    %v11071 = vadd.f32 0.0, %v11070
    %11072 = vmatmul.f32.gmra.mxu0 %v1679
    %v11073 = vpop.f32.mrf.mxu0
    %v11074 = vadd.f32 0.0, %v11073
    %11075 = vmatmul.f32.gmra.mxu0 %v1681
    %v11076 = vpop.f32.mrf.mxu0
    %v11077 = vadd.f32 0.0, %v11076
    %11078 = vmatmul.f32.gmra.mxu0 %v1683
    %v11079 = vpop.f32.mrf.mxu0
    %v11080 = vadd.f32 0.0, %v11079
    %11081 = vmatmul.f32.gmra.mxu0 %v1685
    %v11082 = vpop.f32.mrf.mxu0
    %v11083 = vadd.f32 0.0, %v11082
    %11084 = vmatmul.f32.gmra.mxu0 %v1687
    %v11085 = vpop.f32.mrf.mxu0
    %v11086 = vadd.f32 0.0, %v11085
    %11087 = vmatmul.f32.gmra.mxu0 %v1689
    %v11088 = vpop.f32.mrf.mxu0
    %v11089 = vadd.f32 0.0, %v11088
    %11090 = vmatmul.f32.gmra.mxu0 %v1691
    %v11091 = vpop.f32.mrf.mxu0
    %v11092 = vadd.f32 0.0, %v11091
    %11093 = vmatmul.f32.gmra.mxu0 %v1693
    %v11094 = vpop.f32.mrf.mxu0
    %v11095 = vadd.f32 0.0, %v11094
    %11096 = vmatmul.f32.gmra.mxu0 %v1695
    %v11097 = vpop.f32.mrf.mxu0
    %v11098 = vadd.f32 0.0, %v11097
    %11099 = vmatmul.f32.gmra.mxu0 %v1697
    %v11100 = vpop.f32.mrf.mxu0
    %v11101 = vadd.f32 0.0, %v11100
    %11102 = vmatmul.f32.gmra.mxu0 %v1699
    %v11103 = vpop.f32.mrf.mxu0
    %v11104 = vadd.f32 0.0, %v11103
    %11105 = vmatmul.f32.gmra.mxu0 %v1701
    %v11106 = vpop.f32.mrf.mxu0
    %v11107 = vadd.f32 0.0, %v11106
    %11108 = vmatmul.f32.gmra.mxu0 %v7457
    %v11109 = vpop.f32.mrf.mxu0
    %v11110 = vadd.f32 0.0, %v11109
    %11111 = vmatmul.f32.gmra.mxu0 %v7459
    %v11112 = vpop.f32.mrf.mxu0
    %v11113 = vadd.f32 0.0, %v11112
    %11114 = vmatmul.f32.gmra.mxu0 %v10789
    %v11115 = vpop.f32.mrf.mxu0
    %v11116 = vadd.f32 0.0, %v11115
    %11117 = vmatmul.f32.gmra.mxu0 %v10791
    %v11118 = vpop.f32.mrf.mxu0
    %v11119 = vadd.f32 0.0, %v11118
    %11120 = vmatmul.f32.gmra.mxu0 %v1711
    %v11121 = vpop.f32.mrf.mxu0
    %v11122 = vadd.f32 0.0, %v11121
    %11123 = vmatmul.f32.gmra.mxu0 %v1713
    %v11124 = vpop.f32.mrf.mxu0
    %v11125 = vadd.f32 0.0, %v11124
    %11126 = vmatmul.f32.gmra.mxu0 %v1715
    %v11127 = vpop.f32.mrf.mxu0
    %v11128 = vadd.f32 0.0, %v11127
    %11129 = vmatmul.f32.gmra.mxu0 %v1717
    %v11130 = vpop.f32.mrf.mxu0
    %v11131 = vadd.f32 0.0, %v11130
    %11132 = vmatmul.f32.gmra.mxu0 %v1719
    %v11133 = vpop.f32.mrf.mxu0
    %v11134 = vadd.f32 0.0, %v11133
    %11135 = vmatmul.f32.gmra.mxu0 %v1721
    %v11136 = vpop.f32.mrf.mxu0
    %v11137 = vadd.f32 0.0, %v11136
    %11138 = vmatmul.f32.gmra.mxu0 %v1723
    %v11139 = vpop.f32.mrf.mxu0
    %v11140 = vadd.f32 0.0, %v11139
    %11141 = vmatmul.f32.gmra.mxu0 %v1725
    %v11142 = vpop.f32.mrf.mxu0
    %v11143 = vadd.f32 0.0, %v11142
    %11144 = vmatmul.f32.gmra.mxu0 %v1727
    %v11145 = vpop.f32.mrf.mxu0
    %v11146 = vadd.f32 0.0, %v11145
    %11147 = vmatmul.f32.gmra.mxu0 %v1729
    %v11148 = vpop.f32.mrf.mxu0
    %v11149 = vadd.f32 0.0, %v11148
    %11150 = vmatmul.f32.gmra.mxu0 %v1731
    %v11151 = vpop.f32.mrf.mxu0
    %v11152 = vadd.f32 0.0, %v11151
    %11153 = vmatmul.f32.gmra.mxu0 %v1733
    %v11154 = vpop.f32.mrf.mxu0
    %v11155 = vadd.f32 0.0, %v11154
    %11156 = vmatmul.f32.gmra.mxu0 %v1735
    %v11157 = vpop.f32.mrf.mxu0
    %v11158 = vadd.f32 0.0, %v11157
    %11159 = vmatmul.f32.gmra.mxu0 %v1737
    %v11160 = vpop.f32.mrf.mxu0
    %v11161 = vadd.f32 0.0, %v11160
    %11162 = vmatmul.f32.gmra.mxu0 %v1739
    %v11163 = vpop.f32.mrf.mxu0
    %v11164 = vadd.f32 0.0, %v11163
    %11165 = vmatmul.f32.gmra.mxu0 %v1741
    %v11166 = vpop.f32.mrf.mxu0
    %v11167 = vadd.f32 0.0, %v11166
    %11168 = vmatmul.f32.gmra.mxu0 %v1743
    %v11169 = vpop.f32.mrf.mxu0
    %v11170 = vadd.f32 0.0, %v11169
    %11171 = vmatmul.f32.gmra.mxu0 %v1745
    %v11172 = vpop.f32.mrf.mxu0
    %v11173 = vadd.f32 0.0, %v11172
    %11174 = vmatmul.f32.gmra.mxu0 %v1747
    %v11175 = vpop.f32.mrf.mxu0
    %v11176 = vadd.f32 0.0, %v11175
    %11177 = vmatmul.f32.gmra.mxu0 %v1749
    %v11178 = vpop.f32.mrf.mxu0
    %v11179 = vadd.f32 0.0, %v11178
    %11180 = vmatmul.f32.gmra.mxu0 %v1751
    %v11181 = vpop.f32.mrf.mxu0
    %v11182 = vadd.f32 0.0, %v11181
    %11183 = vmatmul.f32.gmra.mxu0 %v1753
    %v11184 = vpop.f32.mrf.mxu0
    %v11185 = vadd.f32 0.0, %v11184
    %11186 = vmatmul.f32.gmra.mxu0 %v1755
    %v11187 = vpop.f32.mrf.mxu0
    %v11188 = vadd.f32 0.0, %v11187
    %11189 = vmatmul.f32.gmra.mxu0 %v1757
    %v11190 = vpop.f32.mrf.mxu0
    %v11191 = vadd.f32 0.0, %v11190
    %11192 = vmatmul.f32.gmra.mxu0 %v1759
    %v11193 = vpop.f32.mrf.mxu0
    %v11194 = vadd.f32 0.0, %v11193
    %11195 = vmatmul.f32.gmra.mxu0 %v1761
    %v11196 = vpop.f32.mrf.mxu0
    %v11197 = vadd.f32 0.0, %v11196
    %11198 = vmatmul.f32.gmra.mxu0 %v1763
    %v11199 = vpop.f32.mrf.mxu0
    %v11200 = vadd.f32 0.0, %v11199
    %11201 = vmatmul.f32.gmra.mxu0 %v1765
    %v11202 = vpop.f32.mrf.mxu0
    %v11203 = vadd.f32 0.0, %v11202
    %11204 = vmatmul.f32.gmra.mxu0 %v7461
    %v11205 = vpop.f32.mrf.mxu0
    %v11206 = vadd.f32 0.0, %v11205
    %11207 = vmatmul.f32.gmra.mxu0 %v7463
    %v11208 = vpop.f32.mrf.mxu0
    %v11209 = vadd.f32 0.0, %v11208
    %11210 = vmatmul.f32.gmra.mxu0 %v10793
    %v11211 = vpop.f32.mrf.mxu0
    %v11212 = vadd.f32 0.0, %v11211
    %11213 = vmatmul.f32.gmra.mxu0 %v10795
    %v11214 = vpop.f32.mrf.mxu0
    %v11215 = vadd.f32 0.0, %v11214
    %11216 = vmatmul.f32.gmra.mxu0 %v1775
    %v11217 = vpop.f32.mrf.mxu0
    %v11218 = vadd.f32 0.0, %v11217
    %11219 = vmatmul.f32.gmra.mxu0 %v1777
    %v11220 = vpop.f32.mrf.mxu0
    %v11221 = vadd.f32 0.0, %v11220
    %11222 = vmatmul.f32.gmra.mxu0 %v1779
    %v11223 = vpop.f32.mrf.mxu0
    %v11224 = vadd.f32 0.0, %v11223
    %11225 = vmatmul.f32.gmra.mxu0 %v1781
    %v11226 = vpop.f32.mrf.mxu0
    %v11227 = vadd.f32 0.0, %v11226
    %11228 = vmatmul.f32.gmra.mxu0 %v1783
    %v11229 = vpop.f32.mrf.mxu0
    %v11230 = vadd.f32 0.0, %v11229
    %11231 = vmatmul.f32.gmra.mxu0 %v1785
    %v11232 = vpop.f32.mrf.mxu0
    %v11233 = vadd.f32 0.0, %v11232
    %11234 = vmatmul.f32.gmra.mxu0 %v1787
    %v11235 = vpop.f32.mrf.mxu0
    %v11236 = vadd.f32 0.0, %v11235
    %11237 = vmatmul.f32.gmra.mxu0 %v1789
    %v11238 = vpop.f32.mrf.mxu0
    %v11239 = vadd.f32 0.0, %v11238
    %11240 = vmatmul.f32.gmra.mxu0 %v1791
    %v11241 = vpop.f32.mrf.mxu0
    %v11242 = vadd.f32 0.0, %v11241
    %11243 = vmatmul.f32.gmra.mxu0 %v1793
    %v11244 = vpop.f32.mrf.mxu0
    %v11245 = vadd.f32 0.0, %v11244
    %11246 = vmatmul.f32.gmra.mxu0 %v1795
    %v11247 = vpop.f32.mrf.mxu0
    %v11248 = vadd.f32 0.0, %v11247
    %11249 = vmatmul.f32.gmra.mxu0 %v1797
    %v11250 = vpop.f32.mrf.mxu0
    %v11251 = vadd.f32 0.0, %v11250
    %11252 = vmatmul.f32.gmra.mxu0 %v1799
    %v11253 = vpop.f32.mrf.mxu0
    %v11254 = vadd.f32 0.0, %v11253
    %11255 = vmatmul.f32.gmra.mxu0 %v1801
    %v11256 = vpop.f32.mrf.mxu0
    %v11257 = vadd.f32 0.0, %v11256
    %11258 = vmatmul.f32.gmra.mxu0 %v1803
    %v11259 = vpop.f32.mrf.mxu0
    %v11260 = vadd.f32 0.0, %v11259
    %11261 = vmatmul.f32.gmra.mxu0 %v1805
    %v11262 = vpop.f32.mrf.mxu0
    %v11263 = vadd.f32 0.0, %v11262
    %11264 = vmatmul.f32.gmra.mxu0 %v1807
    %v11265 = vpop.f32.mrf.mxu0
    %v11266 = vadd.f32 0.0, %v11265
    %11267 = vmatmul.f32.gmra.mxu0 %v1809
    %v11268 = vpop.f32.mrf.mxu0
    %v11269 = vadd.f32 0.0, %v11268
    %11270 = vmatmul.f32.gmra.mxu0 %v1811
    %v11271 = vpop.f32.mrf.mxu0
    %v11272 = vadd.f32 0.0, %v11271
    %11273 = vmatmul.f32.gmra.mxu0 %v1813
    %v11274 = vpop.f32.mrf.mxu0
    %v11275 = vadd.f32 0.0, %v11274
    %11276 = vmatmul.f32.gmra.mxu0 %v1815
    %v11277 = vpop.f32.mrf.mxu0
    %v11278 = vadd.f32 0.0, %v11277
    %11279 = vmatmul.f32.gmra.mxu0 %v1817
    %v11280 = vpop.f32.mrf.mxu0
    %v11281 = vadd.f32 0.0, %v11280
    %11282 = vmatmul.f32.gmra.mxu0 %v1819
    %v11283 = vpop.f32.mrf.mxu0
    %v11284 = vadd.f32 0.0, %v11283
    %11285 = vmatmul.f32.gmra.mxu0 %v1821
    %v11286 = vpop.f32.mrf.mxu0
    %v11287 = vadd.f32 0.0, %v11286
    %11288 = vmatmul.f32.gmra.mxu0 %v1823
    %v11289 = vpop.f32.mrf.mxu0
    %v11290 = vadd.f32 0.0, %v11289
    %11291 = vmatmul.f32.gmra.mxu0 %v1825
    %v11292 = vpop.f32.mrf.mxu0
    %v11293 = vadd.f32 0.0, %v11292
    %11294 = vmatmul.f32.gmra.mxu0 %v1827
    %v11295 = vpop.f32.mrf.mxu0
    %v11296 = vadd.f32 0.0, %v11295
    %11297 = vmatmul.f32.gmra.mxu0 %v1829
    %v11298 = vpop.f32.mrf.mxu0
    %v11299 = vadd.f32 0.0, %v11298
    %11300 = vmatmul.f32.gmra.mxu0 %v7465
    %v11301 = vpop.f32.mrf.mxu0
    %v11302 = vadd.f32 0.0, %v11301
    %11303 = vmatmul.f32.gmra.mxu0 %v7467
    %v11304 = vpop.f32.mrf.mxu0
    %v11305 = vadd.f32 0.0, %v11304
    %11306 = vmatmul.f32.gmra.mxu0 %v10797
    %v11307 = vpop.f32.mrf.mxu0
    %v11308 = vadd.f32 0.0, %v11307
    %11309 = vmatmul.f32.gmra.mxu0 %v10799
    %v11310 = vpop.f32.mrf.mxu0
    %v11311 = vadd.f32 0.0, %v11310
    %11312 = vmatmul.f32.gmra.mxu0 %v1839
    %v11313 = vpop.f32.mrf.mxu0
    %v11314 = vadd.f32 0.0, %v11313
    %11315 = vmatmul.f32.gmra.mxu0 %v1841
    %v11316 = vpop.f32.mrf.mxu0
    %v11317 = vadd.f32 0.0, %v11316
    %11318 = vmatmul.f32.gmra.mxu0 %v1843
    %v11319 = vpop.f32.mrf.mxu0
    %v11320 = vadd.f32 0.0, %v11319
    %11321 = vmatmul.f32.gmra.mxu0 %v1845
    %v11322 = vpop.f32.mrf.mxu0
    %v11323 = vadd.f32 0.0, %v11322
    %11324 = vmatmul.f32.gmra.mxu0 %v1847
    %v11325 = vpop.f32.mrf.mxu0
    %v11326 = vadd.f32 0.0, %v11325
    %11327 = vmatmul.f32.gmra.mxu0 %v1849
    %v11328 = vpop.f32.mrf.mxu0
    %v11329 = vadd.f32 0.0, %v11328
    %11330 = vmatmul.f32.gmra.mxu0 %v1851
    %v11331 = vpop.f32.mrf.mxu0
    %v11332 = vadd.f32 0.0, %v11331
    %11333 = vmatmul.f32.gmra.mxu0 %v1853
    %v11334 = vpop.f32.mrf.mxu0
    %v11335 = vadd.f32 0.0, %v11334
    %11336 = vmatmul.f32.gmra.mxu0 %v1855
    %v11337 = vpop.f32.mrf.mxu0
    %v11338 = vadd.f32 0.0, %v11337
    %11339 = vmatmul.f32.gmra.mxu0 %v1857
    %v11340 = vpop.f32.mrf.mxu0
    %v11341 = vadd.f32 0.0, %v11340
    %11342 = vmatmul.f32.gmra.mxu0 %v1859
    %v11343 = vpop.f32.mrf.mxu0
    %v11344 = vadd.f32 0.0, %v11343
    %11345 = vmatmul.f32.gmra.mxu0 %v1861
    %v11346 = vpop.f32.mrf.mxu0
    %v11347 = vadd.f32 0.0, %v11346
    %11348 = vmatmul.f32.gmra.mxu0 %v1863
    %v11349 = vpop.f32.mrf.mxu0
    %v11350 = vadd.f32 0.0, %v11349
    %11351 = vmatmul.f32.gmra.mxu0 %v1865
    %v11352 = vpop.f32.mrf.mxu0
    %v11353 = vadd.f32 0.0, %v11352
    %11354 = vmatmul.f32.gmra.mxu0 %v1867
    %v11355 = vpop.f32.mrf.mxu0
    %v11356 = vadd.f32 0.0, %v11355
    %11357 = vmatmul.f32.gmra.mxu0 %v1869
    %v11358 = vpop.f32.mrf.mxu0
    %v11359 = vadd.f32 0.0, %v11358
    %11360 = vmatmul.f32.gmra.mxu0 %v1871
    %v11361 = vpop.f32.mrf.mxu0
    %v11362 = vadd.f32 0.0, %v11361
    %11363 = vmatmul.f32.gmra.mxu0 %v1873
    %v11364 = vpop.f32.mrf.mxu0
    %v11365 = vadd.f32 0.0, %v11364
    %11366 = vmatmul.f32.gmra.mxu0 %v1875
    %v11367 = vpop.f32.mrf.mxu0
    %v11368 = vadd.f32 0.0, %v11367
    %11369 = vmatmul.f32.gmra.mxu0 %v1877
    %v11370 = vpop.f32.mrf.mxu0
    %v11371 = vadd.f32 0.0, %v11370
    %11372 = vmatmul.f32.gmra.mxu0 %v1879
    %v11373 = vpop.f32.mrf.mxu0
    %v11374 = vadd.f32 0.0, %v11373
    %11375 = vmatmul.f32.gmra.mxu0 %v1881
    %v11376 = vpop.f32.mrf.mxu0
    %v11377 = vadd.f32 0.0, %v11376
    %11378 = vmatmul.f32.gmra.mxu0 %v1883
    %v11379 = vpop.f32.mrf.mxu0
    %v11380 = vadd.f32 0.0, %v11379
    %11381 = vmatmul.f32.gmra.mxu0 %v1885
    %v11382 = vpop.f32.mrf.mxu0
    %v11383 = vadd.f32 0.0, %v11382
    %11384 = vmatmul.f32.gmra.mxu0 %v1887
    %v11385 = vpop.f32.mrf.mxu0
    %v11386 = vadd.f32 0.0, %v11385
    %11387 = vmatmul.f32.gmra.mxu0 %v1889
    %v11388 = vpop.f32.mrf.mxu0
    %v11389 = vadd.f32 0.0, %v11388
    %11390 = vmatmul.f32.gmra.mxu0 %v1891
    %v11391 = vpop.f32.mrf.mxu0
    %v11392 = vadd.f32 0.0, %v11391
    %11393 = vmatmul.f32.gmra.mxu0 %v1893
    %v11394 = vpop.f32.mrf.mxu0
    %v11395 = vadd.f32 0.0, %v11394
    %11396 = vmatmul.f32.gmra.mxu0 %v7469
    %v11397 = vpop.f32.mrf.mxu0
    %v11398 = vadd.f32 0.0, %v11397
    %11399 = vmatmul.f32.gmra.mxu0 %v7471
    %v11400 = vpop.f32.mrf.mxu0
    %v11401 = vadd.f32 0.0, %v11400
    %11402 = vmatmul.f32.gmra.mxu0 %v10801
    %v11403 = vpop.f32.mrf.mxu0
    %v11404 = vadd.f32 0.0, %v11403
    %11405 = vmatmul.f32.gmra.mxu0 %v10803
    %v11406 = vpop.f32.mrf.mxu0
    %v11407 = vadd.f32 0.0, %v11406
    %11408 = vmatmul.f32.gmra.mxu0 %v1903
    %v11409 = vpop.f32.mrf.mxu0
    %v11410 = vadd.f32 0.0, %v11409
    %11411 = vmatmul.f32.gmra.mxu0 %v1905
    %v11412 = vpop.f32.mrf.mxu0
    %v11413 = vadd.f32 0.0, %v11412
    %11414 = vmatmul.f32.gmra.mxu0 %v1907
    %v11415 = vpop.f32.mrf.mxu0
    %v11416 = vadd.f32 0.0, %v11415
    %11417 = vmatmul.f32.gmra.mxu0 %v1909
    %v11418 = vpop.f32.mrf.mxu0
    %v11419 = vadd.f32 0.0, %v11418
    %11420 = vmatmul.f32.gmra.mxu0 %v1911
    %v11421 = vpop.f32.mrf.mxu0
    %v11422 = vadd.f32 0.0, %v11421
    %11423 = vmatmul.f32.gmra.mxu0 %v1913
    %v11424 = vpop.f32.mrf.mxu0
    %v11425 = vadd.f32 0.0, %v11424
    %11426 = vmatmul.f32.gmra.mxu0 %v1915
    %v11427 = vpop.f32.mrf.mxu0
    %v11428 = vadd.f32 0.0, %v11427
    %11429 = vmatmul.f32.gmra.mxu0 %v1917
    %v11430 = vpop.f32.mrf.mxu0
    %v11431 = vadd.f32 0.0, %v11430
    %11432 = vmatmul.f32.gmra.mxu0 %v1919
    %v11433 = vpop.f32.mrf.mxu0
    %v11434 = vadd.f32 0.0, %v11433
    %11435 = vmatmul.f32.gmra.mxu0 %v1921
    %v11436 = vpop.f32.mrf.mxu0
    %v11437 = vadd.f32 0.0, %v11436
    %11438 = vmatmul.f32.gmra.mxu0 %v1923
    %v11439 = vpop.f32.mrf.mxu0
    %v11440 = vadd.f32 0.0, %v11439
    %11441 = vmatmul.f32.gmra.mxu0 %v1925
    %v11442 = vpop.f32.mrf.mxu0
    %v11443 = vadd.f32 0.0, %v11442
    %11444 = vmatmul.f32.gmra.mxu0 %v1927
    %v11445 = vpop.f32.mrf.mxu0
    %v11446 = vadd.f32 0.0, %v11445
    %11447 = vmatmul.f32.gmra.mxu0 %v1929
    %v11448 = vpop.f32.mrf.mxu0
    %v11449 = vadd.f32 0.0, %v11448
    %11450 = vmatmul.f32.gmra.mxu0 %v1931
    %v11451 = vpop.f32.mrf.mxu0
    %v11452 = vadd.f32 0.0, %v11451
    %11453 = vmatmul.f32.gmra.mxu0 %v1933
    %v11454 = vpop.f32.mrf.mxu0
    %v11455 = vadd.f32 0.0, %v11454
    %11456 = vmatmul.f32.gmra.mxu0 %v1935
    %v11457 = vpop.f32.mrf.mxu0
    %v11458 = vadd.f32 0.0, %v11457
    %11459 = vmatmul.f32.gmra.mxu0 %v1937
    %v11460 = vpop.f32.mrf.mxu0
    %v11461 = vadd.f32 0.0, %v11460
    %11462 = vmatmul.f32.gmra.mxu0 %v1939
    %v11463 = vpop.f32.mrf.mxu0
    %v11464 = vadd.f32 0.0, %v11463
    %11465 = vmatmul.f32.gmra.mxu0 %v1941
    %v11466 = vpop.f32.mrf.mxu0
    %v11467 = vadd.f32 0.0, %v11466
    %11468 = vmatmul.f32.gmra.mxu0 %v1943
    %v11469 = vpop.f32.mrf.mxu0
    %v11470 = vadd.f32 0.0, %v11469
    %11471 = vmatmul.f32.gmra.mxu0 %v1945
    %v11472 = vpop.f32.mrf.mxu0
    %v11473 = vadd.f32 0.0, %v11472
    %11474 = vmatmul.f32.gmra.mxu0 %v1947
    %v11475 = vpop.f32.mrf.mxu0
    %v11476 = vadd.f32 0.0, %v11475
    %11477 = vmatmul.f32.gmra.mxu0 %v1949
    %v11478 = vpop.f32.mrf.mxu0
    %v11479 = vadd.f32 0.0, %v11478
    %11480 = vmatmul.f32.gmra.mxu0 %v1951
    %v11481 = vpop.f32.mrf.mxu0
    %v11482 = vadd.f32 0.0, %v11481
    %11483 = vmatmul.f32.gmra.mxu0 %v1953
    %v11484 = vpop.f32.mrf.mxu0
    %v11485 = vadd.f32 0.0, %v11484
    %11486 = vmatmul.f32.gmra.mxu0 %v1955
    %v11487 = vpop.f32.mrf.mxu0
    %v11488 = vadd.f32 0.0, %v11487
    %11489 = vmatmul.f32.gmra.mxu0 %v1957
    %v11490 = vpop.f32.mrf.mxu0
    %v11491 = vadd.f32 0.0, %v11490
    %11492 = vmatmul.f32.gmra.mxu0 %v7473
    %v11493 = vpop.f32.mrf.mxu0
    %v11494 = vadd.f32 0.0, %v11493
    %11495 = vmatmul.f32.gmra.mxu0 %v7475
    %v11496 = vpop.f32.mrf.mxu0
    %v11497 = vadd.f32 0.0, %v11496
    %11498 = vmatmul.f32.gmra.mxu0 %v10805
    %v11499 = vpop.f32.mrf.mxu0
    %v11500 = vadd.f32 0.0, %v11499
    %11501 = vmatmul.f32.gmra.mxu0 %v10807
    %v11502 = vpop.f32.mrf.mxu0
    %v11503 = vadd.f32 0.0, %v11502
    %11504 = vmatmul.f32.gmra.mxu0 %v1967
    %v11505 = vpop.f32.mrf.mxu0
    %v11506 = vadd.f32 0.0, %v11505
    %11507 = vmatmul.f32.gmra.mxu0 %v1969
    %v11508 = vpop.f32.mrf.mxu0
    %v11509 = vadd.f32 0.0, %v11508
    %11510 = vmatmul.f32.gmra.mxu0 %v1971
    %v11511 = vpop.f32.mrf.mxu0
    %v11512 = vadd.f32 0.0, %v11511
    %11513 = vmatmul.f32.gmra.mxu0 %v1973
    %v11514 = vpop.f32.mrf.mxu0
    %v11515 = vadd.f32 0.0, %v11514
    %11516 = vmatmul.f32.gmra.mxu0 %v1975
    %v11517 = vpop.f32.mrf.mxu0
    %v11518 = vadd.f32 0.0, %v11517
    %11519 = vmatmul.f32.gmra.mxu0 %v1977
    %v11520 = vpop.f32.mrf.mxu0
    %v11521 = vadd.f32 0.0, %v11520
    %11522 = vmatmul.f32.gmra.mxu0 %v1979
    %v11523 = vpop.f32.mrf.mxu0
    %v11524 = vadd.f32 0.0, %v11523
    %11525 = vmatmul.f32.gmra.mxu0 %v1981
    %v11526 = vpop.f32.mrf.mxu0
    %v11527 = vadd.f32 0.0, %v11526
    %11528 = vmatmul.f32.gmra.mxu0 %v1983
    %v11529 = vpop.f32.mrf.mxu0
    %v11530 = vadd.f32 0.0, %v11529
    %11531 = vmatmul.f32.gmra.mxu0 %v1985
    %v11532 = vpop.f32.mrf.mxu0
    %v11533 = vadd.f32 0.0, %v11532
    %11534 = vmatmul.f32.gmra.mxu0 %v1987
    %v11535 = vpop.f32.mrf.mxu0
    %v11536 = vadd.f32 0.0, %v11535
    %11537 = vmatmul.f32.gmra.mxu0 %v1989
    %v11538 = vpop.f32.mrf.mxu0
    %v11539 = vadd.f32 0.0, %v11538
    %11540 = vmatmul.f32.gmra.mxu0 %v1991
    %v11541 = vpop.f32.mrf.mxu0
    %v11542 = vadd.f32 0.0, %v11541
    %11543 = vmatmul.f32.gmra.mxu0 %v1993
    %v11544 = vpop.f32.mrf.mxu0
    %v11545 = vadd.f32 0.0, %v11544
    %11546 = vmatmul.f32.gmra.mxu0 %v1995
    %v11547 = vpop.f32.mrf.mxu0
    %v11548 = vadd.f32 0.0, %v11547
    %11549 = vmatmul.f32.gmra.mxu0 %v1997
    %v11550 = vpop.f32.mrf.mxu0
    %v11551 = vadd.f32 0.0, %v11550
    %11552 = vmatmul.f32.gmra.mxu0 %v1999
    %v11553 = vpop.f32.mrf.mxu0
    %v11554 = vadd.f32 0.0, %v11553
    %11555 = vmatmul.f32.gmra.mxu0 %v2001
    %v11556 = vpop.f32.mrf.mxu0
    %v11557 = vadd.f32 0.0, %v11556
    %11558 = vmatmul.f32.gmra.mxu0 %v2003
    %v11559 = vpop.f32.mrf.mxu0
    %v11560 = vadd.f32 0.0, %v11559
    %11561 = vmatmul.f32.gmra.mxu0 %v2005
    %v11562 = vpop.f32.mrf.mxu0
    %v11563 = vadd.f32 0.0, %v11562
    %11564 = vmatmul.f32.gmra.mxu0 %v2007
    %v11565 = vpop.f32.mrf.mxu0
    %v11566 = vadd.f32 0.0, %v11565
    %11567 = vmatmul.f32.gmra.mxu0 %v2009
    %v11568 = vpop.f32.mrf.mxu0
    %v11569 = vadd.f32 0.0, %v11568
    %11570 = vmatmul.f32.gmra.mxu0 %v2011
    %v11571 = vpop.f32.mrf.mxu0
    %v11572 = vadd.f32 0.0, %v11571
    %11573 = vmatmul.f32.gmra.mxu0 %v2013
    %v11574 = vpop.f32.mrf.mxu0
    %v11575 = vadd.f32 0.0, %v11574
    %11576 = vmatmul.f32.gmra.mxu0 %v2015
    %v11577 = vpop.f32.mrf.mxu0
    %v11578 = vadd.f32 0.0, %v11577
    %11579 = vmatmul.f32.gmra.mxu0 %v2017
    %v11580 = vpop.f32.mrf.mxu0
    %v11581 = vadd.f32 0.0, %v11580
    %11582 = vmatmul.f32.gmra.mxu0 %v2019
    %v11583 = vpop.f32.mrf.mxu0
    %v11584 = vadd.f32 0.0, %v11583
    %11585 = vmatmul.f32.gmra.mxu0 %v2021
    %v11586 = vpop.f32.mrf.mxu0
    %v11587 = vadd.f32 0.0, %v11586
    %11588 = vmatmul.f32.gmra.mxu0 %v7477
    %v11589 = vpop.f32.mrf.mxu0
    %v11590 = vadd.f32 0.0, %v11589
    %11591 = vmatmul.f32.gmra.mxu0 %v7479
    %v11592 = vpop.f32.mrf.mxu0
    %v11593 = vadd.f32 0.0, %v11592
    %11594 = vmatmul.f32.gmra.mxu0 %v10809
    %v11595 = vpop.f32.mrf.mxu0
    %v11596 = vadd.f32 0.0, %v11595
    %11597 = vmatmul.f32.gmra.mxu0 %v10811
    %v11598 = vpop.f32.mrf.mxu0
    %v11599 = vadd.f32 0.0, %v11598
    %11600 = vdwg.mxu0
    %v11601 = vadd.f32 %v10477, %v10834
    %v11602 = vadd.f32 %v10478, %v10837
    %v11603 = vadd.f32 %v10479, %v10840
    %v11604 = vadd.f32 %v10480, %v10843
    %v11605 = vadd.f32 %v10481, %v10846
    %v11606 = vadd.f32 %v10482, %v10849
    %v11607 = vadd.f32 %v10483, %v10852
    %v11608 = vadd.f32 %v10484, %v10855
    %v11609 = vadd.f32 %v10485, %v10858
    %v11610 = vadd.f32 %v10486, %v10861
    %v11611 = vadd.f32 %v10487, %v10864
    %v11612 = vadd.f32 %v10488, %v10867
    %v11613 = vadd.f32 %v10489, %v10870
    %v11614 = vadd.f32 %v10490, %v10873
    %v11615 = vadd.f32 %v10491, %v10876
    %v11616 = vadd.f32 %v10492, %v10879
    %v11617 = vadd.f32 %v10493, %v10882
    %v11618 = vadd.f32 %v10494, %v10885
    %v11619 = vadd.f32 %v10495, %v10888
    %v11620 = vadd.f32 %v10496, %v10891
    %v11621 = vadd.f32 %v10497, %v10894
    %v11622 = vadd.f32 %v10498, %v10897
    %v11623 = vadd.f32 %v10499, %v10900
    %v11624 = vadd.f32 %v10500, %v10903
    %v11625 = vadd.f32 %v10501, %v10906
    %v11626 = vadd.f32 %v10502, %v10909
    %v11627 = vadd.f32 %v10503, %v10912
    %v11628 = vadd.f32 %v10504, %v10915
    %v11629 = vadd.f32 %v10505, %v10918
    %v11630 = vadd.f32 %v10506, %v10921
    %v11631 = vadd.f32 %v10507, %v10924
    %v11632 = vadd.f32 %v10508, %v10927
    %v11633 = vadd.f32 %v10509, %v10930
    %v11634 = vadd.f32 %v10510, %v10933
    %v11635 = vadd.f32 %v10511, %v10936
    %v11636 = vadd.f32 %v10512, %v10939
    %v11637 = vadd.f32 %v10513, %v10942
    %v11638 = vadd.f32 %v10514, %v10945
    %v11639 = vadd.f32 %v10515, %v10948
    %v11640 = vadd.f32 %v10516, %v10951
    %v11641 = vadd.f32 %v10517, %v10954
    %v11642 = vadd.f32 %v10518, %v10957
    %v11643 = vadd.f32 %v10519, %v10960
    %v11644 = vadd.f32 %v10520, %v10963
    %v11645 = vadd.f32 %v10521, %v10966
    %v11646 = vadd.f32 %v10522, %v10969
    %v11647 = vadd.f32 %v10523, %v10972
    %v11648 = vadd.f32 %v10524, %v10975
    %v11649 = vadd.f32 %v10525, %v10978
    %v11650 = vadd.f32 %v10526, %v10981
    %v11651 = vadd.f32 %v10527, %v10984
    %v11652 = vadd.f32 %v10528, %v10987
    %v11653 = vadd.f32 %v10529, %v10990
    %v11654 = vadd.f32 %v10530, %v10993
    %v11655 = vadd.f32 %v10531, %v10996
    %v11656 = vadd.f32 %v10532, %v10999
    %v11657 = vadd.f32 %v10533, %v11002
    %v11658 = vadd.f32 %v10534, %v11005
    %v11659 = vadd.f32 %v10535, %v11008
    %v11660 = vadd.f32 %v10536, %v11011
    %v11661 = vadd.f32 %v10537, %v11014
    %v11662 = vadd.f32 %v10538, %v11017
    %v11663 = vadd.f32 %v10539, %v11020
    %v11664 = vadd.f32 %v10540, %v11023
    %v11665 = vadd.f32 %v10541, %v11026
    %v11666 = vadd.f32 %v10542, %v11029
    %v11667 = vadd.f32 %v10543, %v11032
    %v11668 = vadd.f32 %v10544, %v11035
    %v11669 = vadd.f32 %v10545, %v11038
    %v11670 = vadd.f32 %v10546, %v11041
    %v11671 = vadd.f32 %v10547, %v11044
    %v11672 = vadd.f32 %v10548, %v11047
    %v11673 = vadd.f32 %v10549, %v11050
    %v11674 = vadd.f32 %v10550, %v11053
    %v11675 = vadd.f32 %v10551, %v11056
    %v11676 = vadd.f32 %v10552, %v11059
    %v11677 = vadd.f32 %v10553, %v11062
    %v11678 = vadd.f32 %v10554, %v11065
    %v11679 = vadd.f32 %v10555, %v11068
    %v11680 = vadd.f32 %v10556, %v11071
    %v11681 = vadd.f32 %v10557, %v11074
    %v11682 = vadd.f32 %v10558, %v11077
    %v11683 = vadd.f32 %v10559, %v11080
    %v11684 = vadd.f32 %v10560, %v11083
    %v11685 = vadd.f32 %v10561, %v11086
    %v11686 = vadd.f32 %v10562, %v11089
    %v11687 = vadd.f32 %v10563, %v11092
    %v11688 = vadd.f32 %v10564, %v11095
    %v11689 = vadd.f32 %v10565, %v11098
    %v11690 = vadd.f32 %v10566, %v11101
    %v11691 = vadd.f32 %v10567, %v11104
    %v11692 = vadd.f32 %v10568, %v11107
    %v11693 = vadd.f32 %v10569, %v11110
    %v11694 = vadd.f32 %v10570, %v11113
    %v11695 = vadd.f32 %v10571, %v11116
    %v11696 = vadd.f32 %v10572, %v11119
    %v11697 = vadd.f32 %v10573, %v11122
    %v11698 = vadd.f32 %v10574, %v11125
    %v11699 = vadd.f32 %v10575, %v11128
    %v11700 = vadd.f32 %v10576, %v11131
    %v11701 = vadd.f32 %v10577, %v11134
    %v11702 = vadd.f32 %v10578, %v11137
    %v11703 = vadd.f32 %v10579, %v11140
    %v11704 = vadd.f32 %v10580, %v11143
    %v11705 = vadd.f32 %v10581, %v11146
    %v11706 = vadd.f32 %v10582, %v11149
    %v11707 = vadd.f32 %v10583, %v11152
    %v11708 = vadd.f32 %v10584, %v11155
    %v11709 = vadd.f32 %v10585, %v11158
    %v11710 = vadd.f32 %v10586, %v11161
    %v11711 = vadd.f32 %v10587, %v11164
    %v11712 = vadd.f32 %v10588, %v11167
    %v11713 = vadd.f32 %v10589, %v11170
    %v11714 = vadd.f32 %v10590, %v11173
    %v11715 = vadd.f32 %v10591, %v11176
    %v11716 = vadd.f32 %v10592, %v11179
    %v11717 = vadd.f32 %v10593, %v11182
    %v11718 = vadd.f32 %v10594, %v11185
    %v11719 = vadd.f32 %v10595, %v11188
    %v11720 = vadd.f32 %v10596, %v11191
    %v11721 = vadd.f32 %v10597, %v11194
    %v11722 = vadd.f32 %v10598, %v11197
    %v11723 = vadd.f32 %v10599, %v11200
    %v11724 = vadd.f32 %v10600, %v11203
    %v11725 = vadd.f32 %v10601, %v11206
    %v11726 = vadd.f32 %v10602, %v11209
    %v11727 = vadd.f32 %v10603, %v11212
    %v11728 = vadd.f32 %v10604, %v11215
    %v11729 = vadd.f32 %v10605, %v11218
    %v11730 = vadd.f32 %v10606, %v11221
    %v11731 = vadd.f32 %v10607, %v11224
    %v11732 = vadd.f32 %v10608, %v11227
    %v11733 = vadd.f32 %v10609, %v11230
    %v11734 = vadd.f32 %v10610, %v11233
    %v11735 = vadd.f32 %v10611, %v11236
    %v11736 = vadd.f32 %v10612, %v11239
    %v11737 = vadd.f32 %v10613, %v11242
    %v11738 = vadd.f32 %v10614, %v11245
    %v11739 = vadd.f32 %v10615, %v11248
    %v11740 = vadd.f32 %v10616, %v11251
    %v11741 = vadd.f32 %v10617, %v11254
    %v11742 = vadd.f32 %v10618, %v11257
    %v11743 = vadd.f32 %v10619, %v11260
    %v11744 = vadd.f32 %v10620, %v11263
    %v11745 = vadd.f32 %v10621, %v11266
    %v11746 = vadd.f32 %v10622, %v11269
    %v11747 = vadd.f32 %v10623, %v11272
    %v11748 = vadd.f32 %v10624, %v11275
    %v11749 = vadd.f32 %v10625, %v11278
    %v11750 = vadd.f32 %v10626, %v11281
    %v11751 = vadd.f32 %v10627, %v11284
    %v11752 = vadd.f32 %v10628, %v11287
    %v11753 = vadd.f32 %v10629, %v11290
    %v11754 = vadd.f32 %v10630, %v11293
    %v11755 = vadd.f32 %v10631, %v11296
    %v11756 = vadd.f32 %v10632, %v11299
    %v11757 = vadd.f32 %v10633, %v11302
    %v11758 = vadd.f32 %v10634, %v11305
    %v11759 = vadd.f32 %v10635, %v11308
    %v11760 = vadd.f32 %v10636, %v11311
    %v11761 = vadd.f32 %v10637, %v11314
    %v11762 = vadd.f32 %v10638, %v11317
    %v11763 = vadd.f32 %v10639, %v11320
    %v11764 = vadd.f32 %v10640, %v11323
    %v11765 = vadd.f32 %v10641, %v11326
    %v11766 = vadd.f32 %v10642, %v11329
    %v11767 = vadd.f32 %v10643, %v11332
    %v11768 = vadd.f32 %v10644, %v11335
    %v11769 = vadd.f32 %v10645, %v11338
    %v11770 = vadd.f32 %v10646, %v11341
    %v11771 = vadd.f32 %v10647, %v11344
    %v11772 = vadd.f32 %v10648, %v11347
    %v11773 = vadd.f32 %v10649, %v11350
    %v11774 = vadd.f32 %v10650, %v11353
    %v11775 = vadd.f32 %v10651, %v11356
    %v11776 = vadd.f32 %v10652, %v11359
    %v11777 = vadd.f32 %v10653, %v11362
    %v11778 = vadd.f32 %v10654, %v11365
    %v11779 = vadd.f32 %v10655, %v11368
    %v11780 = vadd.f32 %v10656, %v11371
    %v11781 = vadd.f32 %v10657, %v11374
    %v11782 = vadd.f32 %v10658, %v11377
    %v11783 = vadd.f32 %v10659, %v11380
    %v11784 = vadd.f32 %v10660, %v11383
    %v11785 = vadd.f32 %v10661, %v11386
    %v11786 = vadd.f32 %v10662, %v11389
    %v11787 = vadd.f32 %v10663, %v11392
    %v11788 = vadd.f32 %v10664, %v11395
    %v11789 = vadd.f32 %v10665, %v11398
    %v11790 = vadd.f32 %v10666, %v11401
    %v11791 = vadd.f32 %v10667, %v11404
    %v11792 = vadd.f32 %v10668, %v11407
    %v11793 = vadd.f32 %v10669, %v11410
    %v11794 = vadd.f32 %v10670, %v11413
    %v11795 = vadd.f32 %v10671, %v11416
    %v11796 = vadd.f32 %v10672, %v11419
    %v11797 = vadd.f32 %v10673, %v11422
    %v11798 = vadd.f32 %v10674, %v11425
    %v11799 = vadd.f32 %v10675, %v11428
    %v11800 = vadd.f32 %v10676, %v11431
    %v11801 = vadd.f32 %v10677, %v11434
    %v11802 = vadd.f32 %v10678, %v11437
    %v11803 = vadd.f32 %v10679, %v11440
    %v11804 = vadd.f32 %v10680, %v11443
    %v11805 = vadd.f32 %v10681, %v11446
    %v11806 = vadd.f32 %v10682, %v11449
    %v11807 = vadd.f32 %v10683, %v11452
    %v11808 = vadd.f32 %v10684, %v11455
    %v11809 = vadd.f32 %v10685, %v11458
    %v11810 = vadd.f32 %v10686, %v11461
    %v11811 = vadd.f32 %v10687, %v11464
    %v11812 = vadd.f32 %v10688, %v11467
    %v11813 = vadd.f32 %v10689, %v11470
    %v11814 = vadd.f32 %v10690, %v11473
    %v11815 = vadd.f32 %v10691, %v11476
    %v11816 = vadd.f32 %v10692, %v11479
    %v11817 = vadd.f32 %v10693, %v11482
    %v11818 = vadd.f32 %v10694, %v11485
    %v11819 = vadd.f32 %v10695, %v11488
    %v11820 = vadd.f32 %v10696, %v11491
    %v11821 = vadd.f32 %v10697, %v11494
    %v11822 = vadd.f32 %v10698, %v11497
    %v11823 = vadd.f32 %v10699, %v11500
    %v11824 = vadd.f32 %v10700, %v11503
    %v11825 = vadd.f32 %v10701, %v11506
    %v11826 = vadd.f32 %v10702, %v11509
    %v11827 = vadd.f32 %v10703, %v11512
    %v11828 = vadd.f32 %v10704, %v11515
    %v11829 = vadd.f32 %v10705, %v11518
    %v11830 = vadd.f32 %v10706, %v11521
    %v11831 = vadd.f32 %v10707, %v11524
    %v11832 = vadd.f32 %v10708, %v11527
    %v11833 = vadd.f32 %v10709, %v11530
    %v11834 = vadd.f32 %v10710, %v11533
    %v11835 = vadd.f32 %v10711, %v11536
    %v11836 = vadd.f32 %v10712, %v11539
    %v11837 = vadd.f32 %v10713, %v11542
    %v11838 = vadd.f32 %v10714, %v11545
    %v11839 = vadd.f32 %v10715, %v11548
    %v11840 = vadd.f32 %v10716, %v11551
    %v11841 = vadd.f32 %v10717, %v11554
    %v11842 = vadd.f32 %v10718, %v11557
    %v11843 = vadd.f32 %v10719, %v11560
    %v11844 = vadd.f32 %v10720, %v11563
    %v11845 = vadd.f32 %v10721, %v11566
    %v11846 = vadd.f32 %v10722, %v11569
    %v11847 = vadd.f32 %v10723, %v11572
    %v11848 = vadd.f32 %v10724, %v11575
    %v11849 = vadd.f32 %v10725, %v11578
    %v11850 = vadd.f32 %v10726, %v11581
    %v11851 = vadd.f32 %v10727, %v11584
    %v11852 = vadd.f32 %v10728, %v11587
    %v11853 = vadd.f32 %v10729, %v11590
    %v11854 = vadd.f32 %v10730, %v11593
    %v11855 = vadd.f32 %v10731, %v11596
    %v11856 = vadd.f32 %v10732, %v11599
    %v11857 = vrot.slane %v95, 2
    %v11858 = vrot.slane %v96, 2
    %v11859 = vsel %vm4112, %v11857, %v11858
    %v11860 = vrot.slane %v97, 2
    %v11861 = vsel %vm4112, %v11858, %v11860
    %v11862 = vrot.slane %v149, 2
    %v11863 = vrot.slane %v150, 2
    %v11864 = vsel %vm4112, %v11862, %v11863
    %v11865 = vrot.slane %v151, 2
    %v11866 = vsel %vm4112, %v11863, %v11865
    %v11867 = vrot.slane %v203, 2
    %v11868 = vrot.slane %v204, 2
    %v11869 = vsel %vm4112, %v11867, %v11868
    %v11870 = vrot.slane %v205, 2
    %v11871 = vsel %vm4112, %v11868, %v11870
    %v11872 = vrot.slane %v257, 2
    %v11873 = vrot.slane %v258, 2
    %v11874 = vsel %vm4112, %v11872, %v11873
    %v11875 = vrot.slane %v259, 2
    %v11876 = vsel %vm4112, %v11873, %v11875
    %v11877 = vrot.slane %v311, 2
    %v11878 = vrot.slane %v312, 2
    %v11879 = vsel %vm4112, %v11877, %v11878
    %v11880 = vrot.slane %v313, 2
    %v11881 = vsel %vm4112, %v11878, %v11880
    %v11882 = vrot.slane %v365, 2
    %v11883 = vrot.slane %v366, 2
    %v11884 = vsel %vm4112, %v11882, %v11883
    %v11885 = vrot.slane %v367, 2
    %v11886 = vsel %vm4112, %v11883, %v11885
    %v11887 = vrot.slane %v419, 2
    %v11888 = vrot.slane %v420, 2
    %v11889 = vsel %vm4112, %v11887, %v11888
    %v11890 = vrot.slane %v421, 2
    %v11891 = vsel %vm4112, %v11888, %v11890
    %v11892 = vrot.slane %v473, 2
    %v11893 = vrot.slane %v474, 2
    %v11894 = vsel %vm4112, %v11892, %v11893
    %v11895 = vrot.slane %v475, 2
    %v11896 = vsel %vm4112, %v11893, %v11895
    %v11897 = vsel %vm1510, %v11859, 0
    %v11899 = vsel %vm1510, %v11861, 0
    %v11901 = vsel %vm1510, %v11864, 0
    %v11903 = vsel %vm1510, %v11866, 0
    %v11905 = vsel %vm1510, %v11869, 0
    %v11907 = vsel %vm1510, %v11871, 0
    %v11909 = vsel %vm1510, %v11874, 0
    %v11911 = vsel %vm1510, %v11876, 0
    %v11913 = vsel %vm1510, %v11879, 0
    %v11915 = vsel %vm1510, %v11881, 0
    %v11917 = vsel %vm1510, %v11884, 0
    %v11919 = vsel %vm1510, %v11886, 0
    %v11921 = vsel %vm1510, %v11889, 0
    %v11923 = vsel %vm1510, %v11891, 0
    %v11925 = vsel %vm1510, %v11894, 0
    %v11927 = vsel %vm1510, %v11896, 0
    %v11930 = vsel %vm2023, %v484, 0
    %11932 = vmatpush.msra.mxu0 0.0
    %11933 = vmatpush.msra.mxu0 0.0
    %11934 = vmatpush.msra.mxu0 0.0
    %11935 = vmatpush.msra.mxu0 0.0
    %11936 = vmatpush.msra.mxu0 0.0
    %11937 = vmatpush.msra.mxu0 0.0
    %11938 = vmatpush.msra.mxu0 0.0
    %11939 = vmatpush.msra.mxu0 0.0
    %11940 = vmatpush.msra.mxu0 0.0
    %11941 = vmatpush.msra.mxu0 0.0
    %11942 = vmatpush.msra.mxu0 0.0
    %11943 = vmatpush.msra.mxu0 0.0
    %11944 = vmatpush.msra.mxu0 0.0
    %11945 = vmatpush.msra.mxu0 0.0
    %11946 = vmatpush.msra.mxu0 0.0
    %11947 = vmatpush.msra.mxu0 %v11930
    %11948 = vmatmul.f32.gmra.mxu0 %v4761
    %v11949 = vpop.f32.mrf.mxu0
    %v11950 = vadd.f32 0.0, %v11949
    %11951 = vmatmul.f32.gmra.mxu0 %v4763
    %v11952 = vpop.f32.mrf.mxu0
    %v11953 = vadd.f32 0.0, %v11952
    %11954 = vmatmul.f32.gmra.mxu0 %v4765
    %v11955 = vpop.f32.mrf.mxu0
    %v11956 = vadd.f32 0.0, %v11955
    %11957 = vmatmul.f32.gmra.mxu0 %v4767
    %v11958 = vpop.f32.mrf.mxu0
    %v11959 = vadd.f32 0.0, %v11958
    %11960 = vmatmul.f32.gmra.mxu0 %v4769
    %v11961 = vpop.f32.mrf.mxu0
    %v11962 = vadd.f32 0.0, %v11961
    %11963 = vmatmul.f32.gmra.mxu0 %v4771
    %v11964 = vpop.f32.mrf.mxu0
    %v11965 = vadd.f32 0.0, %v11964
    %11966 = vmatmul.f32.gmra.mxu0 %v4773
    %v11967 = vpop.f32.mrf.mxu0
    %v11968 = vadd.f32 0.0, %v11967
    %11969 = vmatmul.f32.gmra.mxu0 %v4775
    %v11970 = vpop.f32.mrf.mxu0
    %v11971 = vadd.f32 0.0, %v11970
    %11972 = vmatmul.f32.gmra.mxu0 %v4777
    %v11973 = vpop.f32.mrf.mxu0
    %v11974 = vadd.f32 0.0, %v11973
    %11975 = vmatmul.f32.gmra.mxu0 %v4779
    %v11976 = vpop.f32.mrf.mxu0
    %v11977 = vadd.f32 0.0, %v11976
    %11978 = vmatmul.f32.gmra.mxu0 %v4781
    %v11979 = vpop.f32.mrf.mxu0
    %v11980 = vadd.f32 0.0, %v11979
    %11981 = vmatmul.f32.gmra.mxu0 %v4783
    %v11982 = vpop.f32.mrf.mxu0
    %v11983 = vadd.f32 0.0, %v11982
    %11984 = vmatmul.f32.gmra.mxu0 %v4785
    %v11985 = vpop.f32.mrf.mxu0
    %v11986 = vadd.f32 0.0, %v11985
    %11987 = vmatmul.f32.gmra.mxu0 %v4787
    %v11988 = vpop.f32.mrf.mxu0
    %v11989 = vadd.f32 0.0, %v11988
    %11990 = vmatmul.f32.gmra.mxu0 %v4789
    %v11991 = vpop.f32.mrf.mxu0
    %v11992 = vadd.f32 0.0, %v11991
    %11993 = vmatmul.f32.gmra.mxu0 %v4791
    %v11994 = vpop.f32.mrf.mxu0
    %v11995 = vadd.f32 0.0, %v11994
    %11996 = vmatmul.f32.gmra.mxu0 %v4793
    %v11997 = vpop.f32.mrf.mxu0
    %v11998 = vadd.f32 0.0, %v11997
    %11999 = vmatmul.f32.gmra.mxu0 %v4795
    %v12000 = vpop.f32.mrf.mxu0
    %v12001 = vadd.f32 0.0, %v12000
    %12002 = vmatmul.f32.gmra.mxu0 %v4797
    %v12003 = vpop.f32.mrf.mxu0
    %v12004 = vadd.f32 0.0, %v12003
    %12005 = vmatmul.f32.gmra.mxu0 %v4799
    %v12006 = vpop.f32.mrf.mxu0
    %v12007 = vadd.f32 0.0, %v12006
    %12008 = vmatmul.f32.gmra.mxu0 %v4801
    %v12009 = vpop.f32.mrf.mxu0
    %v12010 = vadd.f32 0.0, %v12009
    %12011 = vmatmul.f32.gmra.mxu0 %v4803
    %v12012 = vpop.f32.mrf.mxu0
    %v12013 = vadd.f32 0.0, %v12012
    %12014 = vmatmul.f32.gmra.mxu0 %v4805
    %v12015 = vpop.f32.mrf.mxu0
    %v12016 = vadd.f32 0.0, %v12015
    %12017 = vmatmul.f32.gmra.mxu0 %v4807
    %v12018 = vpop.f32.mrf.mxu0
    %v12019 = vadd.f32 0.0, %v12018
    %12020 = vmatmul.f32.gmra.mxu0 %v4809
    %v12021 = vpop.f32.mrf.mxu0
    %v12022 = vadd.f32 0.0, %v12021
    %12023 = vmatmul.f32.gmra.mxu0 %v4811
    %v12024 = vpop.f32.mrf.mxu0
    %v12025 = vadd.f32 0.0, %v12024
    %12026 = vmatmul.f32.gmra.mxu0 %v4813
    %v12027 = vpop.f32.mrf.mxu0
    %v12028 = vadd.f32 0.0, %v12027
    %12029 = vmatmul.f32.gmra.mxu0 %v4815
    %v12030 = vpop.f32.mrf.mxu0
    %v12031 = vadd.f32 0.0, %v12030
    %12032 = vmatmul.f32.gmra.mxu0 %v8565
    %v12033 = vpop.f32.mrf.mxu0
    %v12034 = vadd.f32 0.0, %v12033
    %12035 = vmatmul.f32.gmra.mxu0 %v8567
    %v12036 = vpop.f32.mrf.mxu0
    %v12037 = vadd.f32 0.0, %v12036
    %12038 = vmatmul.f32.gmra.mxu0 %v11897
    %v12039 = vpop.f32.mrf.mxu0
    %v12040 = vadd.f32 0.0, %v12039
    %12041 = vmatmul.f32.gmra.mxu0 %v11899
    %v12042 = vpop.f32.mrf.mxu0
    %v12043 = vadd.f32 0.0, %v12042
    %12044 = vmatmul.f32.gmra.mxu0 %v4825
    %v12045 = vpop.f32.mrf.mxu0
    %v12046 = vadd.f32 0.0, %v12045
    %12047 = vmatmul.f32.gmra.mxu0 %v4827
    %v12048 = vpop.f32.mrf.mxu0
    %v12049 = vadd.f32 0.0, %v12048
    %12050 = vmatmul.f32.gmra.mxu0 %v4829
    %v12051 = vpop.f32.mrf.mxu0
    %v12052 = vadd.f32 0.0, %v12051
    %12053 = vmatmul.f32.gmra.mxu0 %v4831
    %v12054 = vpop.f32.mrf.mxu0
    %v12055 = vadd.f32 0.0, %v12054
    %12056 = vmatmul.f32.gmra.mxu0 %v4833
    %v12057 = vpop.f32.mrf.mxu0
    %v12058 = vadd.f32 0.0, %v12057
    %12059 = vmatmul.f32.gmra.mxu0 %v4835
    %v12060 = vpop.f32.mrf.mxu0
    %v12061 = vadd.f32 0.0, %v12060
    %12062 = vmatmul.f32.gmra.mxu0 %v4837
    %v12063 = vpop.f32.mrf.mxu0
    %v12064 = vadd.f32 0.0, %v12063
    %12065 = vmatmul.f32.gmra.mxu0 %v4839
    %v12066 = vpop.f32.mrf.mxu0
    %v12067 = vadd.f32 0.0, %v12066
    %12068 = vmatmul.f32.gmra.mxu0 %v4841
    %v12069 = vpop.f32.mrf.mxu0
    %v12070 = vadd.f32 0.0, %v12069
    %12071 = vmatmul.f32.gmra.mxu0 %v4843
    %v12072 = vpop.f32.mrf.mxu0
    %v12073 = vadd.f32 0.0, %v12072
    %12074 = vmatmul.f32.gmra.mxu0 %v4845
    %v12075 = vpop.f32.mrf.mxu0
    %v12076 = vadd.f32 0.0, %v12075
    %12077 = vmatmul.f32.gmra.mxu0 %v4847
    %v12078 = vpop.f32.mrf.mxu0
    %v12079 = vadd.f32 0.0, %v12078
    %12080 = vmatmul.f32.gmra.mxu0 %v4849
    %v12081 = vpop.f32.mrf.mxu0
    %v12082 = vadd.f32 0.0, %v12081
    %12083 = vmatmul.f32.gmra.mxu0 %v4851
    %v12084 = vpop.f32.mrf.mxu0
    %v12085 = vadd.f32 0.0, %v12084
    %12086 = vmatmul.f32.gmra.mxu0 %v4853
    %v12087 = vpop.f32.mrf.mxu0
    %v12088 = vadd.f32 0.0, %v12087
    %12089 = vmatmul.f32.gmra.mxu0 %v4855
    %v12090 = vpop.f32.mrf.mxu0
    %v12091 = vadd.f32 0.0, %v12090
    %12092 = vmatmul.f32.gmra.mxu0 %v4857
    %v12093 = vpop.f32.mrf.mxu0
    %v12094 = vadd.f32 0.0, %v12093
    %12095 = vmatmul.f32.gmra.mxu0 %v4859
    %v12096 = vpop.f32.mrf.mxu0
    %v12097 = vadd.f32 0.0, %v12096
    %12098 = vmatmul.f32.gmra.mxu0 %v4861
    %v12099 = vpop.f32.mrf.mxu0
    %v12100 = vadd.f32 0.0, %v12099
    %12101 = vmatmul.f32.gmra.mxu0 %v4863
    %v12102 = vpop.f32.mrf.mxu0
    %v12103 = vadd.f32 0.0, %v12102
    %12104 = vmatmul.f32.gmra.mxu0 %v4865
    %v12105 = vpop.f32.mrf.mxu0
    %v12106 = vadd.f32 0.0, %v12105
    %12107 = vmatmul.f32.gmra.mxu0 %v4867
    %v12108 = vpop.f32.mrf.mxu0
    %v12109 = vadd.f32 0.0, %v12108
    %12110 = vmatmul.f32.gmra.mxu0 %v4869
    %v12111 = vpop.f32.mrf.mxu0
    %v12112 = vadd.f32 0.0, %v12111
    %12113 = vmatmul.f32.gmra.mxu0 %v4871
    %v12114 = vpop.f32.mrf.mxu0
    %v12115 = vadd.f32 0.0, %v12114
    %12116 = vmatmul.f32.gmra.mxu0 %v4873
    %v12117 = vpop.f32.mrf.mxu0
    %v12118 = vadd.f32 0.0, %v12117
    %12119 = vmatmul.f32.gmra.mxu0 %v4875
    %v12120 = vpop.f32.mrf.mxu0
    %v12121 = vadd.f32 0.0, %v12120
    %12122 = vmatmul.f32.gmra.mxu0 %v4877
    %v12123 = vpop.f32.mrf.mxu0
    %v12124 = vadd.f32 0.0, %v12123
    %12125 = vmatmul.f32.gmra.mxu0 %v4879
    %v12126 = vpop.f32.mrf.mxu0
    %v12127 = vadd.f32 0.0, %v12126
    %12128 = vmatmul.f32.gmra.mxu0 %v8569
    %v12129 = vpop.f32.mrf.mxu0
    %v12130 = vadd.f32 0.0, %v12129
    %12131 = vmatmul.f32.gmra.mxu0 %v8571
    %v12132 = vpop.f32.mrf.mxu0
    %v12133 = vadd.f32 0.0, %v12132
    %12134 = vmatmul.f32.gmra.mxu0 %v11901
    %v12135 = vpop.f32.mrf.mxu0
    %v12136 = vadd.f32 0.0, %v12135
    %12137 = vmatmul.f32.gmra.mxu0 %v11903
    %v12138 = vpop.f32.mrf.mxu0
    %v12139 = vadd.f32 0.0, %v12138
    %12140 = vmatmul.f32.gmra.mxu0 %v4889
    %v12141 = vpop.f32.mrf.mxu0
    %v12142 = vadd.f32 0.0, %v12141
    %12143 = vmatmul.f32.gmra.mxu0 %v4891
    %v12144 = vpop.f32.mrf.mxu0
    %v12145 = vadd.f32 0.0, %v12144
    %12146 = vmatmul.f32.gmra.mxu0 %v4893
    %v12147 = vpop.f32.mrf.mxu0
    %v12148 = vadd.f32 0.0, %v12147
    %12149 = vmatmul.f32.gmra.mxu0 %v4895
    %v12150 = vpop.f32.mrf.mxu0
    %v12151 = vadd.f32 0.0, %v12150
    %12152 = vmatmul.f32.gmra.mxu0 %v4897
    %v12153 = vpop.f32.mrf.mxu0
    %v12154 = vadd.f32 0.0, %v12153
    %12155 = vmatmul.f32.gmra.mxu0 %v4899
    %v12156 = vpop.f32.mrf.mxu0
    %v12157 = vadd.f32 0.0, %v12156
    %12158 = vmatmul.f32.gmra.mxu0 %v4901
    %v12159 = vpop.f32.mrf.mxu0
    %v12160 = vadd.f32 0.0, %v12159
    %12161 = vmatmul.f32.gmra.mxu0 %v4903
    %v12162 = vpop.f32.mrf.mxu0
    %v12163 = vadd.f32 0.0, %v12162
    %12164 = vmatmul.f32.gmra.mxu0 %v4905
    %v12165 = vpop.f32.mrf.mxu0
    %v12166 = vadd.f32 0.0, %v12165
    %12167 = vmatmul.f32.gmra.mxu0 %v4907
    %v12168 = vpop.f32.mrf.mxu0
    %v12169 = vadd.f32 0.0, %v12168
    %12170 = vmatmul.f32.gmra.mxu0 %v4909
    %v12171 = vpop.f32.mrf.mxu0
    %v12172 = vadd.f32 0.0, %v12171
    %12173 = vmatmul.f32.gmra.mxu0 %v4911
    %v12174 = vpop.f32.mrf.mxu0
    %v12175 = vadd.f32 0.0, %v12174
    %12176 = vmatmul.f32.gmra.mxu0 %v4913
    %v12177 = vpop.f32.mrf.mxu0
    %v12178 = vadd.f32 0.0, %v12177
    %12179 = vmatmul.f32.gmra.mxu0 %v4915
    %v12180 = vpop.f32.mrf.mxu0
    %v12181 = vadd.f32 0.0, %v12180
    %12182 = vmatmul.f32.gmra.mxu0 %v4917
    %v12183 = vpop.f32.mrf.mxu0
    %v12184 = vadd.f32 0.0, %v12183
    %12185 = vmatmul.f32.gmra.mxu0 %v4919
    %v12186 = vpop.f32.mrf.mxu0
    %v12187 = vadd.f32 0.0, %v12186
    %12188 = vmatmul.f32.gmra.mxu0 %v4921
    %v12189 = vpop.f32.mrf.mxu0
    %v12190 = vadd.f32 0.0, %v12189
    %12191 = vmatmul.f32.gmra.mxu0 %v4923
    %v12192 = vpop.f32.mrf.mxu0
    %v12193 = vadd.f32 0.0, %v12192
    %12194 = vmatmul.f32.gmra.mxu0 %v4925
    %v12195 = vpop.f32.mrf.mxu0
    %v12196 = vadd.f32 0.0, %v12195
    %12197 = vmatmul.f32.gmra.mxu0 %v4927
    %v12198 = vpop.f32.mrf.mxu0
    %v12199 = vadd.f32 0.0, %v12198
    %12200 = vmatmul.f32.gmra.mxu0 %v4929
    %v12201 = vpop.f32.mrf.mxu0
    %v12202 = vadd.f32 0.0, %v12201
    %12203 = vmatmul.f32.gmra.mxu0 %v4931
    %v12204 = vpop.f32.mrf.mxu0
    %v12205 = vadd.f32 0.0, %v12204
    %12206 = vmatmul.f32.gmra.mxu0 %v4933
    %v12207 = vpop.f32.mrf.mxu0
    %v12208 = vadd.f32 0.0, %v12207
    %12209 = vmatmul.f32.gmra.mxu0 %v4935
    %v12210 = vpop.f32.mrf.mxu0
    %v12211 = vadd.f32 0.0, %v12210
    %12212 = vmatmul.f32.gmra.mxu0 %v4937
    %v12213 = vpop.f32.mrf.mxu0
    %v12214 = vadd.f32 0.0, %v12213
    %12215 = vmatmul.f32.gmra.mxu0 %v4939
    %v12216 = vpop.f32.mrf.mxu0
    %v12217 = vadd.f32 0.0, %v12216
    %12218 = vmatmul.f32.gmra.mxu0 %v4941
    %v12219 = vpop.f32.mrf.mxu0
    %v12220 = vadd.f32 0.0, %v12219
    %12221 = vmatmul.f32.gmra.mxu0 %v4943
    %v12222 = vpop.f32.mrf.mxu0
    %v12223 = vadd.f32 0.0, %v12222
    %12224 = vmatmul.f32.gmra.mxu0 %v8573
    %v12225 = vpop.f32.mrf.mxu0
    %v12226 = vadd.f32 0.0, %v12225
    %12227 = vmatmul.f32.gmra.mxu0 %v8575
    %v12228 = vpop.f32.mrf.mxu0
    %v12229 = vadd.f32 0.0, %v12228
    %12230 = vmatmul.f32.gmra.mxu0 %v11905
    %v12231 = vpop.f32.mrf.mxu0
    %v12232 = vadd.f32 0.0, %v12231
    %12233 = vmatmul.f32.gmra.mxu0 %v11907
    %v12234 = vpop.f32.mrf.mxu0
    %v12235 = vadd.f32 0.0, %v12234
    %12236 = vmatmul.f32.gmra.mxu0 %v4953
    %v12237 = vpop.f32.mrf.mxu0
    %v12238 = vadd.f32 0.0, %v12237
    %12239 = vmatmul.f32.gmra.mxu0 %v4955
    %v12240 = vpop.f32.mrf.mxu0
    %v12241 = vadd.f32 0.0, %v12240
    %12242 = vmatmul.f32.gmra.mxu0 %v4957
    %v12243 = vpop.f32.mrf.mxu0
    %v12244 = vadd.f32 0.0, %v12243
    %12245 = vmatmul.f32.gmra.mxu0 %v4959
    %v12246 = vpop.f32.mrf.mxu0
    %v12247 = vadd.f32 0.0, %v12246
    %12248 = vmatmul.f32.gmra.mxu0 %v4961
    %v12249 = vpop.f32.mrf.mxu0
    %v12250 = vadd.f32 0.0, %v12249
    %12251 = vmatmul.f32.gmra.mxu0 %v4963
    %v12252 = vpop.f32.mrf.mxu0
    %v12253 = vadd.f32 0.0, %v12252
    %12254 = vmatmul.f32.gmra.mxu0 %v4965
    %v12255 = vpop.f32.mrf.mxu0
    %v12256 = vadd.f32 0.0, %v12255
    %12257 = vmatmul.f32.gmra.mxu0 %v4967
    %v12258 = vpop.f32.mrf.mxu0
    %v12259 = vadd.f32 0.0, %v12258
    %12260 = vmatmul.f32.gmra.mxu0 %v4969
    %v12261 = vpop.f32.mrf.mxu0
    %v12262 = vadd.f32 0.0, %v12261
    %12263 = vmatmul.f32.gmra.mxu0 %v4971
    %v12264 = vpop.f32.mrf.mxu0
    %v12265 = vadd.f32 0.0, %v12264
    %12266 = vmatmul.f32.gmra.mxu0 %v4973
    %v12267 = vpop.f32.mrf.mxu0
    %v12268 = vadd.f32 0.0, %v12267
    %12269 = vmatmul.f32.gmra.mxu0 %v4975
    %v12270 = vpop.f32.mrf.mxu0
    %v12271 = vadd.f32 0.0, %v12270
    %12272 = vmatmul.f32.gmra.mxu0 %v4977
    %v12273 = vpop.f32.mrf.mxu0
    %v12274 = vadd.f32 0.0, %v12273
    %12275 = vmatmul.f32.gmra.mxu0 %v4979
    %v12276 = vpop.f32.mrf.mxu0
    %v12277 = vadd.f32 0.0, %v12276
    %12278 = vmatmul.f32.gmra.mxu0 %v4981
    %v12279 = vpop.f32.mrf.mxu0
    %v12280 = vadd.f32 0.0, %v12279
    %12281 = vmatmul.f32.gmra.mxu0 %v4983
    %v12282 = vpop.f32.mrf.mxu0
    %v12283 = vadd.f32 0.0, %v12282
    %12284 = vmatmul.f32.gmra.mxu0 %v4985
    %v12285 = vpop.f32.mrf.mxu0
    %v12286 = vadd.f32 0.0, %v12285
    %12287 = vmatmul.f32.gmra.mxu0 %v4987
    %v12288 = vpop.f32.mrf.mxu0
    %v12289 = vadd.f32 0.0, %v12288
    %12290 = vmatmul.f32.gmra.mxu0 %v4989
    %v12291 = vpop.f32.mrf.mxu0
    %v12292 = vadd.f32 0.0, %v12291
    %12293 = vmatmul.f32.gmra.mxu0 %v4991
    %v12294 = vpop.f32.mrf.mxu0
    %v12295 = vadd.f32 0.0, %v12294
    %12296 = vmatmul.f32.gmra.mxu0 %v4993
    %v12297 = vpop.f32.mrf.mxu0
    %v12298 = vadd.f32 0.0, %v12297
    %12299 = vmatmul.f32.gmra.mxu0 %v4995
    %v12300 = vpop.f32.mrf.mxu0
    %v12301 = vadd.f32 0.0, %v12300
    %12302 = vmatmul.f32.gmra.mxu0 %v4997
    %v12303 = vpop.f32.mrf.mxu0
    %v12304 = vadd.f32 0.0, %v12303
    %12305 = vmatmul.f32.gmra.mxu0 %v4999
    %v12306 = vpop.f32.mrf.mxu0
    %v12307 = vadd.f32 0.0, %v12306
    %12308 = vmatmul.f32.gmra.mxu0 %v5001
    %v12309 = vpop.f32.mrf.mxu0
    %v12310 = vadd.f32 0.0, %v12309
    %12311 = vmatmul.f32.gmra.mxu0 %v5003
    %v12312 = vpop.f32.mrf.mxu0
    %v12313 = vadd.f32 0.0, %v12312
    %12314 = vmatmul.f32.gmra.mxu0 %v5005
    %v12315 = vpop.f32.mrf.mxu0
    %v12316 = vadd.f32 0.0, %v12315
    %12317 = vmatmul.f32.gmra.mxu0 %v5007
    %v12318 = vpop.f32.mrf.mxu0
    %v12319 = vadd.f32 0.0, %v12318
    %12320 = vmatmul.f32.gmra.mxu0 %v8577
    %v12321 = vpop.f32.mrf.mxu0
    %v12322 = vadd.f32 0.0, %v12321
    %12323 = vmatmul.f32.gmra.mxu0 %v8579
    %v12324 = vpop.f32.mrf.mxu0
    %v12325 = vadd.f32 0.0, %v12324
    %12326 = vmatmul.f32.gmra.mxu0 %v11909
    %v12327 = vpop.f32.mrf.mxu0
    %v12328 = vadd.f32 0.0, %v12327
    %12329 = vmatmul.f32.gmra.mxu0 %v11911
    %v12330 = vpop.f32.mrf.mxu0
    %v12331 = vadd.f32 0.0, %v12330
    %12332 = vmatmul.f32.gmra.mxu0 %v5017
    %v12333 = vpop.f32.mrf.mxu0
    %v12334 = vadd.f32 0.0, %v12333
    %12335 = vmatmul.f32.gmra.mxu0 %v5019
    %v12336 = vpop.f32.mrf.mxu0
    %v12337 = vadd.f32 0.0, %v12336
    %12338 = vmatmul.f32.gmra.mxu0 %v5021
    %v12339 = vpop.f32.mrf.mxu0
    %v12340 = vadd.f32 0.0, %v12339
    %12341 = vmatmul.f32.gmra.mxu0 %v5023
    %v12342 = vpop.f32.mrf.mxu0
    %v12343 = vadd.f32 0.0, %v12342
    %12344 = vmatmul.f32.gmra.mxu0 %v5025
    %v12345 = vpop.f32.mrf.mxu0
    %v12346 = vadd.f32 0.0, %v12345
    %12347 = vmatmul.f32.gmra.mxu0 %v5027
    %v12348 = vpop.f32.mrf.mxu0
    %v12349 = vadd.f32 0.0, %v12348
    %12350 = vmatmul.f32.gmra.mxu0 %v5029
    %v12351 = vpop.f32.mrf.mxu0
    %v12352 = vadd.f32 0.0, %v12351
    %12353 = vmatmul.f32.gmra.mxu0 %v5031
    %v12354 = vpop.f32.mrf.mxu0
    %v12355 = vadd.f32 0.0, %v12354
    %12356 = vmatmul.f32.gmra.mxu0 %v5033
    %v12357 = vpop.f32.mrf.mxu0
    %v12358 = vadd.f32 0.0, %v12357
    %12359 = vmatmul.f32.gmra.mxu0 %v5035
    %v12360 = vpop.f32.mrf.mxu0
    %v12361 = vadd.f32 0.0, %v12360
    %12362 = vmatmul.f32.gmra.mxu0 %v5037
    %v12363 = vpop.f32.mrf.mxu0
    %v12364 = vadd.f32 0.0, %v12363
    %12365 = vmatmul.f32.gmra.mxu0 %v5039
    %v12366 = vpop.f32.mrf.mxu0
    %v12367 = vadd.f32 0.0, %v12366
    %12368 = vmatmul.f32.gmra.mxu0 %v5041
    %v12369 = vpop.f32.mrf.mxu0
    %v12370 = vadd.f32 0.0, %v12369
    %12371 = vmatmul.f32.gmra.mxu0 %v5043
    %v12372 = vpop.f32.mrf.mxu0
    %v12373 = vadd.f32 0.0, %v12372
    %12374 = vmatmul.f32.gmra.mxu0 %v5045
    %v12375 = vpop.f32.mrf.mxu0
    %v12376 = vadd.f32 0.0, %v12375
    %12377 = vmatmul.f32.gmra.mxu0 %v5047
    %v12378 = vpop.f32.mrf.mxu0
    %v12379 = vadd.f32 0.0, %v12378
    %12380 = vmatmul.f32.gmra.mxu0 %v5049
    %v12381 = vpop.f32.mrf.mxu0
    %v12382 = vadd.f32 0.0, %v12381
    %12383 = vmatmul.f32.gmra.mxu0 %v5051
    %v12384 = vpop.f32.mrf.mxu0
    %v12385 = vadd.f32 0.0, %v12384
    %12386 = vmatmul.f32.gmra.mxu0 %v5053
    %v12387 = vpop.f32.mrf.mxu0
    %v12388 = vadd.f32 0.0, %v12387
    %12389 = vmatmul.f32.gmra.mxu0 %v5055
    %v12390 = vpop.f32.mrf.mxu0
    %v12391 = vadd.f32 0.0, %v12390
    %12392 = vmatmul.f32.gmra.mxu0 %v5057
    %v12393 = vpop.f32.mrf.mxu0
    %v12394 = vadd.f32 0.0, %v12393
    %12395 = vmatmul.f32.gmra.mxu0 %v5059
    %v12396 = vpop.f32.mrf.mxu0
    %v12397 = vadd.f32 0.0, %v12396
    %12398 = vmatmul.f32.gmra.mxu0 %v5061
    %v12399 = vpop.f32.mrf.mxu0
    %v12400 = vadd.f32 0.0, %v12399
    %12401 = vmatmul.f32.gmra.mxu0 %v5063
    %v12402 = vpop.f32.mrf.mxu0
    %v12403 = vadd.f32 0.0, %v12402
    %12404 = vmatmul.f32.gmra.mxu0 %v5065
    %v12405 = vpop.f32.mrf.mxu0
    %v12406 = vadd.f32 0.0, %v12405
    %12407 = vmatmul.f32.gmra.mxu0 %v5067
    %v12408 = vpop.f32.mrf.mxu0
    %v12409 = vadd.f32 0.0, %v12408
    %12410 = vmatmul.f32.gmra.mxu0 %v5069
    %v12411 = vpop.f32.mrf.mxu0
    %v12412 = vadd.f32 0.0, %v12411
    %12413 = vmatmul.f32.gmra.mxu0 %v5071
    %v12414 = vpop.f32.mrf.mxu0
    %v12415 = vadd.f32 0.0, %v12414
    %12416 = vmatmul.f32.gmra.mxu0 %v8581
    %v12417 = vpop.f32.mrf.mxu0
    %v12418 = vadd.f32 0.0, %v12417
    %12419 = vmatmul.f32.gmra.mxu0 %v8583
    %v12420 = vpop.f32.mrf.mxu0
    %v12421 = vadd.f32 0.0, %v12420
    %12422 = vmatmul.f32.gmra.mxu0 %v11913
    %v12423 = vpop.f32.mrf.mxu0
    %v12424 = vadd.f32 0.0, %v12423
    %12425 = vmatmul.f32.gmra.mxu0 %v11915
    %v12426 = vpop.f32.mrf.mxu0
    %v12427 = vadd.f32 0.0, %v12426
    %12428 = vmatmul.f32.gmra.mxu0 %v5081
    %v12429 = vpop.f32.mrf.mxu0
    %v12430 = vadd.f32 0.0, %v12429
    %12431 = vmatmul.f32.gmra.mxu0 %v5083
    %v12432 = vpop.f32.mrf.mxu0
    %v12433 = vadd.f32 0.0, %v12432
    %12434 = vmatmul.f32.gmra.mxu0 %v5085
    %v12435 = vpop.f32.mrf.mxu0
    %v12436 = vadd.f32 0.0, %v12435
    %12437 = vmatmul.f32.gmra.mxu0 %v5087
    %v12438 = vpop.f32.mrf.mxu0
    %v12439 = vadd.f32 0.0, %v12438
    %12440 = vmatmul.f32.gmra.mxu0 %v5089
    %v12441 = vpop.f32.mrf.mxu0
    %v12442 = vadd.f32 0.0, %v12441
    %12443 = vmatmul.f32.gmra.mxu0 %v5091
    %v12444 = vpop.f32.mrf.mxu0
    %v12445 = vadd.f32 0.0, %v12444
    %12446 = vmatmul.f32.gmra.mxu0 %v5093
    %v12447 = vpop.f32.mrf.mxu0
    %v12448 = vadd.f32 0.0, %v12447
    %12449 = vmatmul.f32.gmra.mxu0 %v5095
    %v12450 = vpop.f32.mrf.mxu0
    %v12451 = vadd.f32 0.0, %v12450
    %12452 = vmatmul.f32.gmra.mxu0 %v5097
    %v12453 = vpop.f32.mrf.mxu0
    %v12454 = vadd.f32 0.0, %v12453
    %12455 = vmatmul.f32.gmra.mxu0 %v5099
    %v12456 = vpop.f32.mrf.mxu0
    %v12457 = vadd.f32 0.0, %v12456
    %12458 = vmatmul.f32.gmra.mxu0 %v5101
    %v12459 = vpop.f32.mrf.mxu0
    %v12460 = vadd.f32 0.0, %v12459
    %12461 = vmatmul.f32.gmra.mxu0 %v5103
    %v12462 = vpop.f32.mrf.mxu0
    %v12463 = vadd.f32 0.0, %v12462
    %12464 = vmatmul.f32.gmra.mxu0 %v5105
    %v12465 = vpop.f32.mrf.mxu0
    %v12466 = vadd.f32 0.0, %v12465
    %12467 = vmatmul.f32.gmra.mxu0 %v5107
    %v12468 = vpop.f32.mrf.mxu0
    %v12469 = vadd.f32 0.0, %v12468
    %12470 = vmatmul.f32.gmra.mxu0 %v5109
    %v12471 = vpop.f32.mrf.mxu0
    %v12472 = vadd.f32 0.0, %v12471
    %12473 = vmatmul.f32.gmra.mxu0 %v5111
    %v12474 = vpop.f32.mrf.mxu0
    %v12475 = vadd.f32 0.0, %v12474
    %12476 = vmatmul.f32.gmra.mxu0 %v5113
    %v12477 = vpop.f32.mrf.mxu0
    %v12478 = vadd.f32 0.0, %v12477
    %12479 = vmatmul.f32.gmra.mxu0 %v5115
    %v12480 = vpop.f32.mrf.mxu0
    %v12481 = vadd.f32 0.0, %v12480
    %12482 = vmatmul.f32.gmra.mxu0 %v5117
    %v12483 = vpop.f32.mrf.mxu0
    %v12484 = vadd.f32 0.0, %v12483
    %12485 = vmatmul.f32.gmra.mxu0 %v5119
    %v12486 = vpop.f32.mrf.mxu0
    %v12487 = vadd.f32 0.0, %v12486
    %12488 = vmatmul.f32.gmra.mxu0 %v5121
    %v12489 = vpop.f32.mrf.mxu0
    %v12490 = vadd.f32 0.0, %v12489
    %12491 = vmatmul.f32.gmra.mxu0 %v5123
    %v12492 = vpop.f32.mrf.mxu0
    %v12493 = vadd.f32 0.0, %v12492
    %12494 = vmatmul.f32.gmra.mxu0 %v5125
    %v12495 = vpop.f32.mrf.mxu0
    %v12496 = vadd.f32 0.0, %v12495
    %12497 = vmatmul.f32.gmra.mxu0 %v5127
    %v12498 = vpop.f32.mrf.mxu0
    %v12499 = vadd.f32 0.0, %v12498
    %12500 = vmatmul.f32.gmra.mxu0 %v5129
    %v12501 = vpop.f32.mrf.mxu0
    %v12502 = vadd.f32 0.0, %v12501
    %12503 = vmatmul.f32.gmra.mxu0 %v5131
    %v12504 = vpop.f32.mrf.mxu0
    %v12505 = vadd.f32 0.0, %v12504
    %12506 = vmatmul.f32.gmra.mxu0 %v5133
    %v12507 = vpop.f32.mrf.mxu0
    %v12508 = vadd.f32 0.0, %v12507
    %12509 = vmatmul.f32.gmra.mxu0 %v5135
    %v12510 = vpop.f32.mrf.mxu0
    %v12511 = vadd.f32 0.0, %v12510
    %12512 = vmatmul.f32.gmra.mxu0 %v8585
    %v12513 = vpop.f32.mrf.mxu0
    %v12514 = vadd.f32 0.0, %v12513
    %12515 = vmatmul.f32.gmra.mxu0 %v8587
    %v12516 = vpop.f32.mrf.mxu0
    %v12517 = vadd.f32 0.0, %v12516
    %12518 = vmatmul.f32.gmra.mxu0 %v11917
    %v12519 = vpop.f32.mrf.mxu0
    %v12520 = vadd.f32 0.0, %v12519
    %12521 = vmatmul.f32.gmra.mxu0 %v11919
    %v12522 = vpop.f32.mrf.mxu0
    %v12523 = vadd.f32 0.0, %v12522
    %12524 = vmatmul.f32.gmra.mxu0 %v5145
    %v12525 = vpop.f32.mrf.mxu0
    %v12526 = vadd.f32 0.0, %v12525
    %12527 = vmatmul.f32.gmra.mxu0 %v5147
    %v12528 = vpop.f32.mrf.mxu0
    %v12529 = vadd.f32 0.0, %v12528
    %12530 = vmatmul.f32.gmra.mxu0 %v5149
    %v12531 = vpop.f32.mrf.mxu0
    %v12532 = vadd.f32 0.0, %v12531
    %12533 = vmatmul.f32.gmra.mxu0 %v5151
    %v12534 = vpop.f32.mrf.mxu0
    %v12535 = vadd.f32 0.0, %v12534
    %12536 = vmatmul.f32.gmra.mxu0 %v5153
    %v12537 = vpop.f32.mrf.mxu0
    %v12538 = vadd.f32 0.0, %v12537
    %12539 = vmatmul.f32.gmra.mxu0 %v5155
    %v12540 = vpop.f32.mrf.mxu0
    %v12541 = vadd.f32 0.0, %v12540
    %12542 = vmatmul.f32.gmra.mxu0 %v5157
    %v12543 = vpop.f32.mrf.mxu0
    %v12544 = vadd.f32 0.0, %v12543
    %12545 = vmatmul.f32.gmra.mxu0 %v5159
    %v12546 = vpop.f32.mrf.mxu0
    %v12547 = vadd.f32 0.0, %v12546
    %12548 = vmatmul.f32.gmra.mxu0 %v5161
    %v12549 = vpop.f32.mrf.mxu0
    %v12550 = vadd.f32 0.0, %v12549
    %12551 = vmatmul.f32.gmra.mxu0 %v5163
    %v12552 = vpop.f32.mrf.mxu0
    %v12553 = vadd.f32 0.0, %v12552
    %12554 = vmatmul.f32.gmra.mxu0 %v5165
    %v12555 = vpop.f32.mrf.mxu0
    %v12556 = vadd.f32 0.0, %v12555
    %12557 = vmatmul.f32.gmra.mxu0 %v5167
    %v12558 = vpop.f32.mrf.mxu0
    %v12559 = vadd.f32 0.0, %v12558
    %12560 = vmatmul.f32.gmra.mxu0 %v5169
    %v12561 = vpop.f32.mrf.mxu0
    %v12562 = vadd.f32 0.0, %v12561
    %12563 = vmatmul.f32.gmra.mxu0 %v5171
    %v12564 = vpop.f32.mrf.mxu0
    %v12565 = vadd.f32 0.0, %v12564
    %12566 = vmatmul.f32.gmra.mxu0 %v5173
    %v12567 = vpop.f32.mrf.mxu0
    %v12568 = vadd.f32 0.0, %v12567
    %12569 = vmatmul.f32.gmra.mxu0 %v5175
    %v12570 = vpop.f32.mrf.mxu0
    %v12571 = vadd.f32 0.0, %v12570
    %12572 = vmatmul.f32.gmra.mxu0 %v5177
    %v12573 = vpop.f32.mrf.mxu0
    %v12574 = vadd.f32 0.0, %v12573
    %12575 = vmatmul.f32.gmra.mxu0 %v5179
    %v12576 = vpop.f32.mrf.mxu0
    %v12577 = vadd.f32 0.0, %v12576
    %12578 = vmatmul.f32.gmra.mxu0 %v5181
    %v12579 = vpop.f32.mrf.mxu0
    %v12580 = vadd.f32 0.0, %v12579
    %12581 = vmatmul.f32.gmra.mxu0 %v5183
    %v12582 = vpop.f32.mrf.mxu0
    %v12583 = vadd.f32 0.0, %v12582
    %12584 = vmatmul.f32.gmra.mxu0 %v5185
    %v12585 = vpop.f32.mrf.mxu0
    %v12586 = vadd.f32 0.0, %v12585
    %12587 = vmatmul.f32.gmra.mxu0 %v5187
    %v12588 = vpop.f32.mrf.mxu0
    %v12589 = vadd.f32 0.0, %v12588
    %12590 = vmatmul.f32.gmra.mxu0 %v5189
    %v12591 = vpop.f32.mrf.mxu0
    %v12592 = vadd.f32 0.0, %v12591
    %12593 = vmatmul.f32.gmra.mxu0 %v5191
    %v12594 = vpop.f32.mrf.mxu0
    %v12595 = vadd.f32 0.0, %v12594
    %12596 = vmatmul.f32.gmra.mxu0 %v5193
    %v12597 = vpop.f32.mrf.mxu0
    %v12598 = vadd.f32 0.0, %v12597
    %12599 = vmatmul.f32.gmra.mxu0 %v5195
    %v12600 = vpop.f32.mrf.mxu0
    %v12601 = vadd.f32 0.0, %v12600
    %12602 = vmatmul.f32.gmra.mxu0 %v5197
    %v12603 = vpop.f32.mrf.mxu0
    %v12604 = vadd.f32 0.0, %v12603
    %12605 = vmatmul.f32.gmra.mxu0 %v5199
    %v12606 = vpop.f32.mrf.mxu0
    %v12607 = vadd.f32 0.0, %v12606
    %12608 = vmatmul.f32.gmra.mxu0 %v8589
    %v12609 = vpop.f32.mrf.mxu0
    %v12610 = vadd.f32 0.0, %v12609
    %12611 = vmatmul.f32.gmra.mxu0 %v8591
    %v12612 = vpop.f32.mrf.mxu0
    %v12613 = vadd.f32 0.0, %v12612
    %12614 = vmatmul.f32.gmra.mxu0 %v11921
    %v12615 = vpop.f32.mrf.mxu0
    %v12616 = vadd.f32 0.0, %v12615
    %12617 = vmatmul.f32.gmra.mxu0 %v11923
    %v12618 = vpop.f32.mrf.mxu0
    %v12619 = vadd.f32 0.0, %v12618
    %12620 = vmatmul.f32.gmra.mxu0 %v5209
    %v12621 = vpop.f32.mrf.mxu0
    %v12622 = vadd.f32 0.0, %v12621
    %12623 = vmatmul.f32.gmra.mxu0 %v5211
    %v12624 = vpop.f32.mrf.mxu0
    %v12625 = vadd.f32 0.0, %v12624
    %12626 = vmatmul.f32.gmra.mxu0 %v5213
    %v12627 = vpop.f32.mrf.mxu0
    %v12628 = vadd.f32 0.0, %v12627
    %12629 = vmatmul.f32.gmra.mxu0 %v5215
    %v12630 = vpop.f32.mrf.mxu0
    %v12631 = vadd.f32 0.0, %v12630
    %12632 = vmatmul.f32.gmra.mxu0 %v5217
    %v12633 = vpop.f32.mrf.mxu0
    %v12634 = vadd.f32 0.0, %v12633
    %12635 = vmatmul.f32.gmra.mxu0 %v5219
    %v12636 = vpop.f32.mrf.mxu0
    %v12637 = vadd.f32 0.0, %v12636
    %12638 = vmatmul.f32.gmra.mxu0 %v5221
    %v12639 = vpop.f32.mrf.mxu0
    %v12640 = vadd.f32 0.0, %v12639
    %12641 = vmatmul.f32.gmra.mxu0 %v5223
    %v12642 = vpop.f32.mrf.mxu0
    %v12643 = vadd.f32 0.0, %v12642
    %12644 = vmatmul.f32.gmra.mxu0 %v5225
    %v12645 = vpop.f32.mrf.mxu0
    %v12646 = vadd.f32 0.0, %v12645
    %12647 = vmatmul.f32.gmra.mxu0 %v5227
    %v12648 = vpop.f32.mrf.mxu0
    %v12649 = vadd.f32 0.0, %v12648
    %12650 = vmatmul.f32.gmra.mxu0 %v5229
    %v12651 = vpop.f32.mrf.mxu0
    %v12652 = vadd.f32 0.0, %v12651
    %12653 = vmatmul.f32.gmra.mxu0 %v5231
    %v12654 = vpop.f32.mrf.mxu0
    %v12655 = vadd.f32 0.0, %v12654
    %12656 = vmatmul.f32.gmra.mxu0 %v5233
    %v12657 = vpop.f32.mrf.mxu0
    %v12658 = vadd.f32 0.0, %v12657
    %12659 = vmatmul.f32.gmra.mxu0 %v5235
    %v12660 = vpop.f32.mrf.mxu0
    %v12661 = vadd.f32 0.0, %v12660
    %12662 = vmatmul.f32.gmra.mxu0 %v5237
    %v12663 = vpop.f32.mrf.mxu0
    %v12664 = vadd.f32 0.0, %v12663
    %12665 = vmatmul.f32.gmra.mxu0 %v5239
    %v12666 = vpop.f32.mrf.mxu0
    %v12667 = vadd.f32 0.0, %v12666
    %12668 = vmatmul.f32.gmra.mxu0 %v5241
    %v12669 = vpop.f32.mrf.mxu0
    %v12670 = vadd.f32 0.0, %v12669
    %12671 = vmatmul.f32.gmra.mxu0 %v5243
    %v12672 = vpop.f32.mrf.mxu0
    %v12673 = vadd.f32 0.0, %v12672
    %12674 = vmatmul.f32.gmra.mxu0 %v5245
    %v12675 = vpop.f32.mrf.mxu0
    %v12676 = vadd.f32 0.0, %v12675
    %12677 = vmatmul.f32.gmra.mxu0 %v5247
    %v12678 = vpop.f32.mrf.mxu0
    %v12679 = vadd.f32 0.0, %v12678
    %12680 = vmatmul.f32.gmra.mxu0 %v5249
    %v12681 = vpop.f32.mrf.mxu0
    %v12682 = vadd.f32 0.0, %v12681
    %12683 = vmatmul.f32.gmra.mxu0 %v5251
    %v12684 = vpop.f32.mrf.mxu0
    %v12685 = vadd.f32 0.0, %v12684
    %12686 = vmatmul.f32.gmra.mxu0 %v5253
    %v12687 = vpop.f32.mrf.mxu0
    %v12688 = vadd.f32 0.0, %v12687
    %12689 = vmatmul.f32.gmra.mxu0 %v5255
    %v12690 = vpop.f32.mrf.mxu0
    %v12691 = vadd.f32 0.0, %v12690
    %12692 = vmatmul.f32.gmra.mxu0 %v5257
    %v12693 = vpop.f32.mrf.mxu0
    %v12694 = vadd.f32 0.0, %v12693
    %12695 = vmatmul.f32.gmra.mxu0 %v5259
    %v12696 = vpop.f32.mrf.mxu0
    %v12697 = vadd.f32 0.0, %v12696
    %12698 = vmatmul.f32.gmra.mxu0 %v5261
    %v12699 = vpop.f32.mrf.mxu0
    %v12700 = vadd.f32 0.0, %v12699
    %12701 = vmatmul.f32.gmra.mxu0 %v5263
    %v12702 = vpop.f32.mrf.mxu0
    %v12703 = vadd.f32 0.0, %v12702
    %12704 = vmatmul.f32.gmra.mxu0 %v8593
    %v12705 = vpop.f32.mrf.mxu0
    %v12706 = vadd.f32 0.0, %v12705
    %12707 = vmatmul.f32.gmra.mxu0 %v8595
    %v12708 = vpop.f32.mrf.mxu0
    %v12709 = vadd.f32 0.0, %v12708
    %12710 = vmatmul.f32.gmra.mxu0 %v11925
    %v12711 = vpop.f32.mrf.mxu0
    %v12712 = vadd.f32 0.0, %v12711
    %12713 = vmatmul.f32.gmra.mxu0 %v11927
    %v12714 = vpop.f32.mrf.mxu0
    %v12715 = vadd.f32 0.0, %v12714
    %12716 = vdwg.mxu0
    %v12717 = vadd.f32 %v11601, %v11950
    %v12718 = vadd.f32 %v11602, %v11953
    %v12719 = vadd.f32 %v11603, %v11956
    %v12720 = vadd.f32 %v11604, %v11959
    %v12721 = vadd.f32 %v11605, %v11962
    %v12722 = vadd.f32 %v11606, %v11965
    %v12723 = vadd.f32 %v11607, %v11968
    %v12724 = vadd.f32 %v11608, %v11971
    %v12725 = vadd.f32 %v11609, %v11974
    %v12726 = vadd.f32 %v11610, %v11977
    %v12727 = vadd.f32 %v11611, %v11980
    %v12728 = vadd.f32 %v11612, %v11983
    %v12729 = vadd.f32 %v11613, %v11986
    %v12730 = vadd.f32 %v11614, %v11989
    %v12731 = vadd.f32 %v11615, %v11992
    %v12732 = vadd.f32 %v11616, %v11995
    %v12733 = vadd.f32 %v11617, %v11998
    %v12734 = vadd.f32 %v11618, %v12001
    %v12735 = vadd.f32 %v11619, %v12004
    %v12736 = vadd.f32 %v11620, %v12007
    %v12737 = vadd.f32 %v11621, %v12010
    %v12738 = vadd.f32 %v11622, %v12013
    %v12739 = vadd.f32 %v11623, %v12016
    %v12740 = vadd.f32 %v11624, %v12019
    %v12741 = vadd.f32 %v11625, %v12022
    %v12742 = vadd.f32 %v11626, %v12025
    %v12743 = vadd.f32 %v11627, %v12028
    %v12744 = vadd.f32 %v11628, %v12031
    %v12745 = vadd.f32 %v11629, %v12034
    %v12746 = vadd.f32 %v11630, %v12037
    %v12747 = vadd.f32 %v11631, %v12040
    %v12748 = vadd.f32 %v11632, %v12043
    %v12749 = vadd.f32 %v11633, %v12046
    %v12750 = vadd.f32 %v11634, %v12049
    %v12751 = vadd.f32 %v11635, %v12052
    %v12752 = vadd.f32 %v11636, %v12055
    %v12753 = vadd.f32 %v11637, %v12058
    %v12754 = vadd.f32 %v11638, %v12061
    %v12755 = vadd.f32 %v11639, %v12064
    %v12756 = vadd.f32 %v11640, %v12067
    %v12757 = vadd.f32 %v11641, %v12070
    %v12758 = vadd.f32 %v11642, %v12073
    %v12759 = vadd.f32 %v11643, %v12076
    %v12760 = vadd.f32 %v11644, %v12079
    %v12761 = vadd.f32 %v11645, %v12082
    %v12762 = vadd.f32 %v11646, %v12085
    %v12763 = vadd.f32 %v11647, %v12088
    %v12764 = vadd.f32 %v11648, %v12091
    %v12765 = vadd.f32 %v11649, %v12094
    %v12766 = vadd.f32 %v11650, %v12097
    %v12767 = vadd.f32 %v11651, %v12100
    %v12768 = vadd.f32 %v11652, %v12103
    %v12769 = vadd.f32 %v11653, %v12106
    %v12770 = vadd.f32 %v11654, %v12109
    %v12771 = vadd.f32 %v11655, %v12112
    %v12772 = vadd.f32 %v11656, %v12115
    %v12773 = vadd.f32 %v11657, %v12118
    %v12774 = vadd.f32 %v11658, %v12121
    %v12775 = vadd.f32 %v11659, %v12124
    %v12776 = vadd.f32 %v11660, %v12127
    %v12777 = vadd.f32 %v11661, %v12130
    %v12778 = vadd.f32 %v11662, %v12133
    %v12779 = vadd.f32 %v11663, %v12136
    %v12780 = vadd.f32 %v11664, %v12139
    %v12781 = vadd.f32 %v11665, %v12142
    %v12782 = vadd.f32 %v11666, %v12145
    %v12783 = vadd.f32 %v11667, %v12148
    %v12784 = vadd.f32 %v11668, %v12151
    %v12785 = vadd.f32 %v11669, %v12154
    %v12786 = vadd.f32 %v11670, %v12157
    %v12787 = vadd.f32 %v11671, %v12160
    %v12788 = vadd.f32 %v11672, %v12163
    %v12789 = vadd.f32 %v11673, %v12166
    %v12790 = vadd.f32 %v11674, %v12169
    %v12791 = vadd.f32 %v11675, %v12172
    %v12792 = vadd.f32 %v11676, %v12175
    %v12793 = vadd.f32 %v11677, %v12178
    %v12794 = vadd.f32 %v11678, %v12181
    %v12795 = vadd.f32 %v11679, %v12184
    %v12796 = vadd.f32 %v11680, %v12187
    %v12797 = vadd.f32 %v11681, %v12190
    %v12798 = vadd.f32 %v11682, %v12193
    %v12799 = vadd.f32 %v11683, %v12196
    %v12800 = vadd.f32 %v11684, %v12199
    %v12801 = vadd.f32 %v11685, %v12202
    %v12802 = vadd.f32 %v11686, %v12205
    %v12803 = vadd.f32 %v11687, %v12208
    %v12804 = vadd.f32 %v11688, %v12211
    %v12805 = vadd.f32 %v11689, %v12214
    %v12806 = vadd.f32 %v11690, %v12217
    %v12807 = vadd.f32 %v11691, %v12220
    %v12808 = vadd.f32 %v11692, %v12223
    %v12809 = vadd.f32 %v11693, %v12226
    %v12810 = vadd.f32 %v11694, %v12229
    %v12811 = vadd.f32 %v11695, %v12232
    %v12812 = vadd.f32 %v11696, %v12235
    %v12813 = vadd.f32 %v11697, %v12238
    %v12814 = vadd.f32 %v11698, %v12241
    %v12815 = vadd.f32 %v11699, %v12244
    %v12816 = vadd.f32 %v11700, %v12247
    %v12817 = vadd.f32 %v11701, %v12250
    %v12818 = vadd.f32 %v11702, %v12253
    %v12819 = vadd.f32 %v11703, %v12256
    %v12820 = vadd.f32 %v11704, %v12259
    %v12821 = vadd.f32 %v11705, %v12262
    %v12822 = vadd.f32 %v11706, %v12265
    %v12823 = vadd.f32 %v11707, %v12268
    %v12824 = vadd.f32 %v11708, %v12271
    %v12825 = vadd.f32 %v11709, %v12274
    %v12826 = vadd.f32 %v11710, %v12277
    %v12827 = vadd.f32 %v11711, %v12280
    %v12828 = vadd.f32 %v11712, %v12283
    %v12829 = vadd.f32 %v11713, %v12286
    %v12830 = vadd.f32 %v11714, %v12289
    %v12831 = vadd.f32 %v11715, %v12292
    %v12832 = vadd.f32 %v11716, %v12295
    %v12833 = vadd.f32 %v11717, %v12298
    %v12834 = vadd.f32 %v11718, %v12301
    %v12835 = vadd.f32 %v11719, %v12304
    %v12836 = vadd.f32 %v11720, %v12307
    %v12837 = vadd.f32 %v11721, %v12310
    %v12838 = vadd.f32 %v11722, %v12313
    %v12839 = vadd.f32 %v11723, %v12316
    %v12840 = vadd.f32 %v11724, %v12319
    %v12841 = vadd.f32 %v11725, %v12322
    %v12842 = vadd.f32 %v11726, %v12325
    %v12843 = vadd.f32 %v11727, %v12328
    %v12844 = vadd.f32 %v11728, %v12331
    %v12845 = vadd.f32 %v11729, %v12334
    %v12846 = vadd.f32 %v11730, %v12337
    %v12847 = vadd.f32 %v11731, %v12340
    %v12848 = vadd.f32 %v11732, %v12343
    %v12849 = vadd.f32 %v11733, %v12346
    %v12850 = vadd.f32 %v11734, %v12349
    %v12851 = vadd.f32 %v11735, %v12352
    %v12852 = vadd.f32 %v11736, %v12355
    %v12853 = vadd.f32 %v11737, %v12358
    %v12854 = vadd.f32 %v11738, %v12361
    %v12855 = vadd.f32 %v11739, %v12364
    %v12856 = vadd.f32 %v11740, %v12367
    %v12857 = vadd.f32 %v11741, %v12370
    %v12858 = vadd.f32 %v11742, %v12373
    %v12859 = vadd.f32 %v11743, %v12376
    %v12860 = vadd.f32 %v11744, %v12379
    %v12861 = vadd.f32 %v11745, %v12382
    %v12862 = vadd.f32 %v11746, %v12385
    %v12863 = vadd.f32 %v11747, %v12388
    %v12864 = vadd.f32 %v11748, %v12391
    %v12865 = vadd.f32 %v11749, %v12394
    %v12866 = vadd.f32 %v11750, %v12397
    %v12867 = vadd.f32 %v11751, %v12400
    %v12868 = vadd.f32 %v11752, %v12403
    %v12869 = vadd.f32 %v11753, %v12406
    %v12870 = vadd.f32 %v11754, %v12409
    %v12871 = vadd.f32 %v11755, %v12412
    %v12872 = vadd.f32 %v11756, %v12415
    %v12873 = vadd.f32 %v11757, %v12418
    %v12874 = vadd.f32 %v11758, %v12421
    %v12875 = vadd.f32 %v11759, %v12424
    %v12876 = vadd.f32 %v11760, %v12427
    %v12877 = vadd.f32 %v11761, %v12430
    %v12878 = vadd.f32 %v11762, %v12433
    %v12879 = vadd.f32 %v11763, %v12436
    %v12880 = vadd.f32 %v11764, %v12439
    %v12881 = vadd.f32 %v11765, %v12442
    %v12882 = vadd.f32 %v11766, %v12445
    %v12883 = vadd.f32 %v11767, %v12448
    %v12884 = vadd.f32 %v11768, %v12451
    %v12885 = vadd.f32 %v11769, %v12454
    %v12886 = vadd.f32 %v11770, %v12457
    %v12887 = vadd.f32 %v11771, %v12460
    %v12888 = vadd.f32 %v11772, %v12463
    %v12889 = vadd.f32 %v11773, %v12466
    %v12890 = vadd.f32 %v11774, %v12469
    %v12891 = vadd.f32 %v11775, %v12472
    %v12892 = vadd.f32 %v11776, %v12475
    %v12893 = vadd.f32 %v11777, %v12478
    %v12894 = vadd.f32 %v11778, %v12481
    %v12895 = vadd.f32 %v11779, %v12484
    %v12896 = vadd.f32 %v11780, %v12487
    %v12897 = vadd.f32 %v11781, %v12490
    %v12898 = vadd.f32 %v11782, %v12493
    %v12899 = vadd.f32 %v11783, %v12496
    %v12900 = vadd.f32 %v11784, %v12499
    %v12901 = vadd.f32 %v11785, %v12502
    %v12902 = vadd.f32 %v11786, %v12505
    %v12903 = vadd.f32 %v11787, %v12508
    %v12904 = vadd.f32 %v11788, %v12511
    %v12905 = vadd.f32 %v11789, %v12514
    %v12906 = vadd.f32 %v11790, %v12517
    %v12907 = vadd.f32 %v11791, %v12520
    %v12908 = vadd.f32 %v11792, %v12523
    %v12909 = vadd.f32 %v11793, %v12526
    %v12910 = vadd.f32 %v11794, %v12529
    %v12911 = vadd.f32 %v11795, %v12532
    %v12912 = vadd.f32 %v11796, %v12535
    %v12913 = vadd.f32 %v11797, %v12538
    %v12914 = vadd.f32 %v11798, %v12541
    %v12915 = vadd.f32 %v11799, %v12544
    %v12916 = vadd.f32 %v11800, %v12547
    %v12917 = vadd.f32 %v11801, %v12550
    %v12918 = vadd.f32 %v11802, %v12553
    %v12919 = vadd.f32 %v11803, %v12556
    %v12920 = vadd.f32 %v11804, %v12559
    %v12921 = vadd.f32 %v11805, %v12562
    %v12922 = vadd.f32 %v11806, %v12565
    %v12923 = vadd.f32 %v11807, %v12568
    %v12924 = vadd.f32 %v11808, %v12571
    %v12925 = vadd.f32 %v11809, %v12574
    %v12926 = vadd.f32 %v11810, %v12577
    %v12927 = vadd.f32 %v11811, %v12580
    %v12928 = vadd.f32 %v11812, %v12583
    %v12929 = vadd.f32 %v11813, %v12586
    %v12930 = vadd.f32 %v11814, %v12589
    %v12931 = vadd.f32 %v11815, %v12592
    %v12932 = vadd.f32 %v11816, %v12595
    %v12933 = vadd.f32 %v11817, %v12598
    %v12934 = vadd.f32 %v11818, %v12601
    %v12935 = vadd.f32 %v11819, %v12604
    %v12936 = vadd.f32 %v11820, %v12607
    %v12937 = vadd.f32 %v11821, %v12610
    %v12938 = vadd.f32 %v11822, %v12613
    %v12939 = vadd.f32 %v11823, %v12616
    %v12940 = vadd.f32 %v11824, %v12619
    %v12941 = vadd.f32 %v11825, %v12622
    %v12942 = vadd.f32 %v11826, %v12625
    %v12943 = vadd.f32 %v11827, %v12628
    %v12944 = vadd.f32 %v11828, %v12631
    %v12945 = vadd.f32 %v11829, %v12634
    %v12946 = vadd.f32 %v11830, %v12637
    %v12947 = vadd.f32 %v11831, %v12640
    %v12948 = vadd.f32 %v11832, %v12643
    %v12949 = vadd.f32 %v11833, %v12646
    %v12950 = vadd.f32 %v11834, %v12649
    %v12951 = vadd.f32 %v11835, %v12652
    %v12952 = vadd.f32 %v11836, %v12655
    %v12953 = vadd.f32 %v11837, %v12658
    %v12954 = vadd.f32 %v11838, %v12661
    %v12955 = vadd.f32 %v11839, %v12664
    %v12956 = vadd.f32 %v11840, %v12667
    %v12957 = vadd.f32 %v11841, %v12670
    %v12958 = vadd.f32 %v11842, %v12673
    %v12959 = vadd.f32 %v11843, %v12676
    %v12960 = vadd.f32 %v11844, %v12679
    %v12961 = vadd.f32 %v11845, %v12682
    %v12962 = vadd.f32 %v11846, %v12685
    %v12963 = vadd.f32 %v11847, %v12688
    %v12964 = vadd.f32 %v11848, %v12691
    %v12965 = vadd.f32 %v11849, %v12694
    %v12966 = vadd.f32 %v11850, %v12697
    %v12967 = vadd.f32 %v11851, %v12700
    %v12968 = vadd.f32 %v11852, %v12703
    %v12969 = vadd.f32 %v11853, %v12706
    %v12970 = vadd.f32 %v11854, %v12709
    %v12971 = vadd.f32 %v11855, %v12712
    %v12972 = vadd.f32 %v11856, %v12715
    %v12973 = vmax.f32 %v12717, 0.0
    %v12974 = vmax.f32 %v12718, 0.0
    %v12975 = vmax.f32 %v12719, 0.0
    %v12976 = vmax.f32 %v12720, 0.0
    %v12977 = vmax.f32 %v12721, 0.0
    %v12978 = vmax.f32 %v12722, 0.0
    %v12979 = vmax.f32 %v12723, 0.0
    %v12980 = vmax.f32 %v12724, 0.0
    %v12981 = vmax.f32 %v12725, 0.0
    %v12982 = vmax.f32 %v12726, 0.0
    %v12983 = vmax.f32 %v12727, 0.0
    %v12984 = vmax.f32 %v12728, 0.0
    %v12985 = vmax.f32 %v12729, 0.0
    %v12986 = vmax.f32 %v12730, 0.0
    %v12987 = vmax.f32 %v12731, 0.0
    %v12988 = vmax.f32 %v12732, 0.0
    %v12989 = vmax.f32 %v12733, 0.0
    %v12990 = vmax.f32 %v12734, 0.0
    %v12991 = vmax.f32 %v12735, 0.0
    %v12992 = vmax.f32 %v12736, 0.0
    %v12993 = vmax.f32 %v12737, 0.0
    %v12994 = vmax.f32 %v12738, 0.0
    %v12995 = vmax.f32 %v12739, 0.0
    %v12996 = vmax.f32 %v12740, 0.0
    %v12997 = vmax.f32 %v12741, 0.0
    %v12998 = vmax.f32 %v12742, 0.0
    %v12999 = vmax.f32 %v12743, 0.0
    %v13000 = vmax.f32 %v12744, 0.0
    %v13001 = vmax.f32 %v12745, 0.0
    %v13002 = vmax.f32 %v12746, 0.0
    %v13003 = vmax.f32 %v12747, 0.0
    %v13004 = vmax.f32 %v12748, 0.0
    %v13005 = vmax.f32 %v12749, 0.0
    %v13006 = vmax.f32 %v12750, 0.0
    %v13007 = vmax.f32 %v12751, 0.0
    %v13008 = vmax.f32 %v12752, 0.0
    %v13009 = vmax.f32 %v12753, 0.0
    %v13010 = vmax.f32 %v12754, 0.0
    %v13011 = vmax.f32 %v12755, 0.0
    %v13012 = vmax.f32 %v12756, 0.0
    %v13013 = vmax.f32 %v12757, 0.0
    %v13014 = vmax.f32 %v12758, 0.0
    %v13015 = vmax.f32 %v12759, 0.0
    %v13016 = vmax.f32 %v12760, 0.0
    %v13017 = vmax.f32 %v12761, 0.0
    %v13018 = vmax.f32 %v12762, 0.0
    %v13019 = vmax.f32 %v12763, 0.0
    %v13020 = vmax.f32 %v12764, 0.0
    %v13021 = vmax.f32 %v12765, 0.0
    %v13022 = vmax.f32 %v12766, 0.0
    %v13023 = vmax.f32 %v12767, 0.0
    %v13024 = vmax.f32 %v12768, 0.0
    %v13025 = vmax.f32 %v12769, 0.0
    %v13026 = vmax.f32 %v12770, 0.0
    %v13027 = vmax.f32 %v12771, 0.0
    %v13028 = vmax.f32 %v12772, 0.0
    %v13029 = vmax.f32 %v12773, 0.0
    %v13030 = vmax.f32 %v12774, 0.0
    %v13031 = vmax.f32 %v12775, 0.0
    %v13032 = vmax.f32 %v12776, 0.0
    %v13033 = vmax.f32 %v12777, 0.0
    %v13034 = vmax.f32 %v12778, 0.0
    %v13035 = vmax.f32 %v12779, 0.0
    %v13036 = vmax.f32 %v12780, 0.0
    %v13037 = vmax.f32 %v12781, 0.0
    %v13038 = vmax.f32 %v12782, 0.0
    %v13039 = vmax.f32 %v12783, 0.0
    %v13040 = vmax.f32 %v12784, 0.0
    %v13041 = vmax.f32 %v12785, 0.0
    %v13042 = vmax.f32 %v12786, 0.0
    %v13043 = vmax.f32 %v12787, 0.0
    %v13044 = vmax.f32 %v12788, 0.0
    %v13045 = vmax.f32 %v12789, 0.0
    %v13046 = vmax.f32 %v12790, 0.0
    %v13047 = vmax.f32 %v12791, 0.0
    %v13048 = vmax.f32 %v12792, 0.0
    %v13049 = vmax.f32 %v12793, 0.0
    %v13050 = vmax.f32 %v12794, 0.0
    %v13051 = vmax.f32 %v12795, 0.0
    %v13052 = vmax.f32 %v12796, 0.0
    %v13053 = vmax.f32 %v12797, 0.0
    %v13054 = vmax.f32 %v12798, 0.0
    %v13055 = vmax.f32 %v12799, 0.0
    %v13056 = vmax.f32 %v12800, 0.0
    %v13057 = vmax.f32 %v12801, 0.0
    %v13058 = vmax.f32 %v12802, 0.0
    %v13059 = vmax.f32 %v12803, 0.0
    %v13060 = vmax.f32 %v12804, 0.0
    %v13061 = vmax.f32 %v12805, 0.0
    %v13062 = vmax.f32 %v12806, 0.0
    %v13063 = vmax.f32 %v12807, 0.0
    %v13064 = vmax.f32 %v12808, 0.0
    %v13065 = vmax.f32 %v12809, 0.0
    %v13066 = vmax.f32 %v12810, 0.0
    %v13067 = vmax.f32 %v12811, 0.0
    %v13068 = vmax.f32 %v12812, 0.0
    %v13069 = vmax.f32 %v12813, 0.0
    %v13070 = vmax.f32 %v12814, 0.0
    %v13071 = vmax.f32 %v12815, 0.0
    %v13072 = vmax.f32 %v12816, 0.0
    %v13073 = vmax.f32 %v12817, 0.0
    %v13074 = vmax.f32 %v12818, 0.0
    %v13075 = vmax.f32 %v12819, 0.0
    %v13076 = vmax.f32 %v12820, 0.0
    %v13077 = vmax.f32 %v12821, 0.0
    %v13078 = vmax.f32 %v12822, 0.0
    %v13079 = vmax.f32 %v12823, 0.0
    %v13080 = vmax.f32 %v12824, 0.0
    %v13081 = vmax.f32 %v12825, 0.0
    %v13082 = vmax.f32 %v12826, 0.0
    %v13083 = vmax.f32 %v12827, 0.0
    %v13084 = vmax.f32 %v12828, 0.0
    %v13085 = vmax.f32 %v12829, 0.0
    %v13086 = vmax.f32 %v12830, 0.0
    %v13087 = vmax.f32 %v12831, 0.0
    %v13088 = vmax.f32 %v12832, 0.0
    %v13089 = vmax.f32 %v12833, 0.0
    %v13090 = vmax.f32 %v12834, 0.0
    %v13091 = vmax.f32 %v12835, 0.0
    %v13092 = vmax.f32 %v12836, 0.0
    %v13093 = vmax.f32 %v12837, 0.0
    %v13094 = vmax.f32 %v12838, 0.0
    %v13095 = vmax.f32 %v12839, 0.0
    %v13096 = vmax.f32 %v12840, 0.0
    %v13097 = vmax.f32 %v12841, 0.0
    %v13098 = vmax.f32 %v12842, 0.0
    %v13099 = vmax.f32 %v12843, 0.0
    %v13100 = vmax.f32 %v12844, 0.0
    %v13101 = vmax.f32 %v12845, 0.0
    %v13102 = vmax.f32 %v12846, 0.0
    %v13103 = vmax.f32 %v12847, 0.0
    %v13104 = vmax.f32 %v12848, 0.0
    %v13105 = vmax.f32 %v12849, 0.0
    %v13106 = vmax.f32 %v12850, 0.0
    %v13107 = vmax.f32 %v12851, 0.0
    %v13108 = vmax.f32 %v12852, 0.0
    %v13109 = vmax.f32 %v12853, 0.0
    %v13110 = vmax.f32 %v12854, 0.0
    %v13111 = vmax.f32 %v12855, 0.0
    %v13112 = vmax.f32 %v12856, 0.0
    %v13113 = vmax.f32 %v12857, 0.0
    %v13114 = vmax.f32 %v12858, 0.0
    %v13115 = vmax.f32 %v12859, 0.0
    %v13116 = vmax.f32 %v12860, 0.0
    %v13117 = vmax.f32 %v12861, 0.0
    %v13118 = vmax.f32 %v12862, 0.0
    %v13119 = vmax.f32 %v12863, 0.0
    %v13120 = vmax.f32 %v12864, 0.0
    %v13121 = vmax.f32 %v12865, 0.0
    %v13122 = vmax.f32 %v12866, 0.0
    %v13123 = vmax.f32 %v12867, 0.0
    %v13124 = vmax.f32 %v12868, 0.0
    %v13125 = vmax.f32 %v12869, 0.0
    %v13126 = vmax.f32 %v12870, 0.0
    %v13127 = vmax.f32 %v12871, 0.0
    %v13128 = vmax.f32 %v12872, 0.0
    %v13129 = vmax.f32 %v12873, 0.0
    %v13130 = vmax.f32 %v12874, 0.0
    %v13131 = vmax.f32 %v12875, 0.0
    %v13132 = vmax.f32 %v12876, 0.0
    %v13133 = vmax.f32 %v12877, 0.0
    %v13134 = vmax.f32 %v12878, 0.0
    %v13135 = vmax.f32 %v12879, 0.0
    %v13136 = vmax.f32 %v12880, 0.0
    %v13137 = vmax.f32 %v12881, 0.0
    %v13138 = vmax.f32 %v12882, 0.0
    %v13139 = vmax.f32 %v12883, 0.0
    %v13140 = vmax.f32 %v12884, 0.0
    %v13141 = vmax.f32 %v12885, 0.0
    %v13142 = vmax.f32 %v12886, 0.0
    %v13143 = vmax.f32 %v12887, 0.0
    %v13144 = vmax.f32 %v12888, 0.0
    %v13145 = vmax.f32 %v12889, 0.0
    %v13146 = vmax.f32 %v12890, 0.0
    %v13147 = vmax.f32 %v12891, 0.0
    %v13148 = vmax.f32 %v12892, 0.0
    %v13149 = vmax.f32 %v12893, 0.0
    %v13150 = vmax.f32 %v12894, 0.0
    %v13151 = vmax.f32 %v12895, 0.0
    %v13152 = vmax.f32 %v12896, 0.0
    %v13153 = vmax.f32 %v12897, 0.0
    %v13154 = vmax.f32 %v12898, 0.0
    %v13155 = vmax.f32 %v12899, 0.0
    %v13156 = vmax.f32 %v12900, 0.0
    %v13157 = vmax.f32 %v12901, 0.0
    %v13158 = vmax.f32 %v12902, 0.0
    %v13159 = vmax.f32 %v12903, 0.0
    %v13160 = vmax.f32 %v12904, 0.0
    %v13161 = vmax.f32 %v12905, 0.0
    %v13162 = vmax.f32 %v12906, 0.0
    %v13163 = vmax.f32 %v12907, 0.0
    %v13164 = vmax.f32 %v12908, 0.0
    %v13165 = vmax.f32 %v12909, 0.0
    %v13166 = vmax.f32 %v12910, 0.0
    %v13167 = vmax.f32 %v12911, 0.0
    %v13168 = vmax.f32 %v12912, 0.0
    %v13169 = vmax.f32 %v12913, 0.0
    %v13170 = vmax.f32 %v12914, 0.0
    %v13171 = vmax.f32 %v12915, 0.0
    %v13172 = vmax.f32 %v12916, 0.0
    %v13173 = vmax.f32 %v12917, 0.0
    %v13174 = vmax.f32 %v12918, 0.0
    %v13175 = vmax.f32 %v12919, 0.0
    %v13176 = vmax.f32 %v12920, 0.0
    %v13177 = vmax.f32 %v12921, 0.0
    %v13178 = vmax.f32 %v12922, 0.0
    %v13179 = vmax.f32 %v12923, 0.0
    %v13180 = vmax.f32 %v12924, 0.0
    %v13181 = vmax.f32 %v12925, 0.0
    %v13182 = vmax.f32 %v12926, 0.0
    %v13183 = vmax.f32 %v12927, 0.0
    %v13184 = vmax.f32 %v12928, 0.0
    %v13185 = vmax.f32 %v12929, 0.0
    %v13186 = vmax.f32 %v12930, 0.0
    %v13187 = vmax.f32 %v12931, 0.0
    %v13188 = vmax.f32 %v12932, 0.0
    %v13189 = vmax.f32 %v12933, 0.0
    %v13190 = vmax.f32 %v12934, 0.0
    %v13191 = vmax.f32 %v12935, 0.0
    %v13192 = vmax.f32 %v12936, 0.0
    %v13193 = vmax.f32 %v12937, 0.0
    %v13194 = vmax.f32 %v12938, 0.0
    %v13195 = vmax.f32 %v12939, 0.0
    %v13196 = vmax.f32 %v12940, 0.0
    %v13197 = vmax.f32 %v12941, 0.0
    %v13198 = vmax.f32 %v12942, 0.0
    %v13199 = vmax.f32 %v12943, 0.0
    %v13200 = vmax.f32 %v12944, 0.0
    %v13201 = vmax.f32 %v12945, 0.0
    %v13202 = vmax.f32 %v12946, 0.0
    %v13203 = vmax.f32 %v12947, 0.0
    %v13204 = vmax.f32 %v12948, 0.0
    %v13205 = vmax.f32 %v12949, 0.0
    %v13206 = vmax.f32 %v12950, 0.0
    %v13207 = vmax.f32 %v12951, 0.0
    %v13208 = vmax.f32 %v12952, 0.0
    %v13209 = vmax.f32 %v12953, 0.0
    %v13210 = vmax.f32 %v12954, 0.0
    %v13211 = vmax.f32 %v12955, 0.0
    %v13212 = vmax.f32 %v12956, 0.0
    %v13213 = vmax.f32 %v12957, 0.0
    %v13214 = vmax.f32 %v12958, 0.0
    %v13215 = vmax.f32 %v12959, 0.0
    %v13216 = vmax.f32 %v12960, 0.0
    %v13217 = vmax.f32 %v12961, 0.0
    %v13218 = vmax.f32 %v12962, 0.0
    %v13219 = vmax.f32 %v12963, 0.0
    %v13220 = vmax.f32 %v12964, 0.0
    %v13221 = vmax.f32 %v12965, 0.0
    %v13222 = vmax.f32 %v12966, 0.0
    %v13223 = vmax.f32 %v12967, 0.0
    %v13224 = vmax.f32 %v12968, 0.0
    %v13225 = vmax.f32 %v12969, 0.0
    %v13226 = vmax.f32 %v12970, 0.0
    %v13227 = vmax.f32 %v12971, 0.0
    %v13228 = vmax.f32 %v12972, 0.0
    %v13229 = vadd.f32 %v12973, %v12974
    %v13230 = vadd.f32 %v13229, %v12975
    %v13231 = vadd.f32 %v13230, %v12976
    %v13232 = vadd.f32 %v13231, %v12977
    %v13233 = vadd.f32 %v13232, %v12978
    %v13234 = vadd.f32 %v13233, %v12979
    %v13235 = vadd.f32 %v13234, %v12980
    %v13236 = vadd.f32 %v13235, %v12981
    %v13237 = vadd.f32 %v13236, %v12982
    %v13238 = vadd.f32 %v13237, %v12983
    %v13239 = vadd.f32 %v13238, %v12984
    %v13240 = vadd.f32 %v13239, %v12985
    %v13241 = vadd.f32 %v13240, %v12986
    %v13242 = vadd.f32 %v13241, %v12987
    %v13243 = vadd.f32 %v13242, %v12988
    %v13244 = vadd.f32 %v13243, %v12989
    %v13245 = vadd.f32 %v13244, %v12990
    %v13246 = vadd.f32 %v13245, %v12991
    %v13247 = vadd.f32 %v13246, %v12992
    %v13248 = vadd.f32 %v13247, %v12993
    %v13249 = vadd.f32 %v13248, %v12994
    %v13250 = vadd.f32 %v13249, %v12995
    %v13251 = vadd.f32 %v13250, %v12996
    %v13252 = vadd.f32 %v13251, %v12997
    %v13253 = vadd.f32 %v13252, %v12998
    %v13254 = vadd.f32 %v13253, %v12999
    %v13255 = vadd.f32 %v13254, %v13000
    %v13256 = vadd.f32 %v13255, %v13001
    %v13257 = vadd.f32 %v13256, %v13002
    %v13258 = vadd.f32 %v13257, %v13003
    %v13259 = vadd.f32 %v13258, %v13004
    %v13260 = vrot.slane %v13259, 4
    %v13261 = vadd.f32 %v13259, %v13260
    %v13262 = vrot.slane %v13261, 2
    %v13263 = vadd.f32 %v13261, %v13262
    %v13264 = vrot.slane %v13263, 1
    %v13265 = vadd.f32 %v13263, %v13264
    %v13266 = vadd.f32 %v13005, %v13006
    %v13267 = vadd.f32 %v13266, %v13007
    %v13268 = vadd.f32 %v13267, %v13008
    %v13269 = vadd.f32 %v13268, %v13009
    %v13270 = vadd.f32 %v13269, %v13010
    %v13271 = vadd.f32 %v13270, %v13011
    %v13272 = vadd.f32 %v13271, %v13012
    %v13273 = vadd.f32 %v13272, %v13013
    %v13274 = vadd.f32 %v13273, %v13014
    %v13275 = vadd.f32 %v13274, %v13015
    %v13276 = vadd.f32 %v13275, %v13016
    %v13277 = vadd.f32 %v13276, %v13017
    %v13278 = vadd.f32 %v13277, %v13018
    %v13279 = vadd.f32 %v13278, %v13019
    %v13280 = vadd.f32 %v13279, %v13020
    %v13281 = vadd.f32 %v13280, %v13021
    %v13282 = vadd.f32 %v13281, %v13022
    %v13283 = vadd.f32 %v13282, %v13023
    %v13284 = vadd.f32 %v13283, %v13024
    %v13285 = vadd.f32 %v13284, %v13025
    %v13286 = vadd.f32 %v13285, %v13026
    %v13287 = vadd.f32 %v13286, %v13027
    %v13288 = vadd.f32 %v13287, %v13028
    %v13289 = vadd.f32 %v13288, %v13029
    %v13290 = vadd.f32 %v13289, %v13030
    %v13291 = vadd.f32 %v13290, %v13031
    %v13292 = vadd.f32 %v13291, %v13032
    %v13293 = vadd.f32 %v13292, %v13033
    %v13294 = vadd.f32 %v13293, %v13034
    %v13295 = vadd.f32 %v13294, %v13035
    %v13296 = vadd.f32 %v13295, %v13036
    %v13297 = vrot.slane %v13296, 4
    %v13298 = vadd.f32 %v13296, %v13297
    %v13299 = vrot.slane %v13298, 2
    %v13300 = vadd.f32 %v13298, %v13299
    %v13301 = vrot.slane %v13300, 1
    %v13302 = vadd.f32 %v13300, %v13301
    %v13303 = vadd.f32 %v13037, %v13038
    %v13304 = vadd.f32 %v13303, %v13039
    %v13305 = vadd.f32 %v13304, %v13040
    %v13306 = vadd.f32 %v13305, %v13041
    %v13307 = vadd.f32 %v13306, %v13042
    %v13308 = vadd.f32 %v13307, %v13043
    %v13309 = vadd.f32 %v13308, %v13044
    %v13310 = vadd.f32 %v13309, %v13045
    %v13311 = vadd.f32 %v13310, %v13046
    %v13312 = vadd.f32 %v13311, %v13047
    %v13313 = vadd.f32 %v13312, %v13048
    %v13314 = vadd.f32 %v13313, %v13049
    %v13315 = vadd.f32 %v13314, %v13050
    %v13316 = vadd.f32 %v13315, %v13051
    %v13317 = vadd.f32 %v13316, %v13052
    %v13318 = vadd.f32 %v13317, %v13053
    %v13319 = vadd.f32 %v13318, %v13054
    %v13320 = vadd.f32 %v13319, %v13055
    %v13321 = vadd.f32 %v13320, %v13056
    %v13322 = vadd.f32 %v13321, %v13057
    %v13323 = vadd.f32 %v13322, %v13058
    %v13324 = vadd.f32 %v13323, %v13059
    %v13325 = vadd.f32 %v13324, %v13060
    %v13326 = vadd.f32 %v13325, %v13061
    %v13327 = vadd.f32 %v13326, %v13062
    %v13328 = vadd.f32 %v13327, %v13063
    %v13329 = vadd.f32 %v13328, %v13064
    %v13330 = vadd.f32 %v13329, %v13065
    %v13331 = vadd.f32 %v13330, %v13066
    %v13332 = vadd.f32 %v13331, %v13067
    %v13333 = vadd.f32 %v13332, %v13068
    %v13334 = vrot.slane %v13333, 4
    %v13335 = vadd.f32 %v13333, %v13334
    %v13336 = vrot.slane %v13335, 2
    %v13337 = vadd.f32 %v13335, %v13336
    %v13338 = vrot.slane %v13337, 1
    %v13339 = vadd.f32 %v13337, %v13338
    %v13340 = vadd.f32 %v13069, %v13070
    %v13341 = vadd.f32 %v13340, %v13071
    %v13342 = vadd.f32 %v13341, %v13072
    %v13343 = vadd.f32 %v13342, %v13073
    %v13344 = vadd.f32 %v13343, %v13074
    %v13345 = vadd.f32 %v13344, %v13075
    %v13346 = vadd.f32 %v13345, %v13076
    %v13347 = vadd.f32 %v13346, %v13077
    %v13348 = vadd.f32 %v13347, %v13078
    %v13349 = vadd.f32 %v13348, %v13079
    %v13350 = vadd.f32 %v13349, %v13080
    %v13351 = vadd.f32 %v13350, %v13081
    %v13352 = vadd.f32 %v13351, %v13082
    %v13353 = vadd.f32 %v13352, %v13083
    %v13354 = vadd.f32 %v13353, %v13084
    %v13355 = vadd.f32 %v13354, %v13085
    %v13356 = vadd.f32 %v13355, %v13086
    %v13357 = vadd.f32 %v13356, %v13087
    %v13358 = vadd.f32 %v13357, %v13088
    %v13359 = vadd.f32 %v13358, %v13089
    %v13360 = vadd.f32 %v13359, %v13090
    %v13361 = vadd.f32 %v13360, %v13091
    %v13362 = vadd.f32 %v13361, %v13092
    %v13363 = vadd.f32 %v13362, %v13093
    %v13364 = vadd.f32 %v13363, %v13094
    %v13365 = vadd.f32 %v13364, %v13095
    %v13366 = vadd.f32 %v13365, %v13096
    %v13367 = vadd.f32 %v13366, %v13097
    %v13368 = vadd.f32 %v13367, %v13098
    %v13369 = vadd.f32 %v13368, %v13099
    %v13370 = vadd.f32 %v13369, %v13100
    %v13371 = vrot.slane %v13370, 4
    %v13372 = vadd.f32 %v13370, %v13371
    %v13373 = vrot.slane %v13372, 2
    %v13374 = vadd.f32 %v13372, %v13373
    %v13375 = vrot.slane %v13374, 1
    %v13376 = vadd.f32 %v13374, %v13375
    %v13377 = vadd.f32 %v13101, %v13102
    %v13378 = vadd.f32 %v13377, %v13103
    %v13379 = vadd.f32 %v13378, %v13104
    %v13380 = vadd.f32 %v13379, %v13105
    %v13381 = vadd.f32 %v13380, %v13106
    %v13382 = vadd.f32 %v13381, %v13107
    %v13383 = vadd.f32 %v13382, %v13108
    %v13384 = vadd.f32 %v13383, %v13109
    %v13385 = vadd.f32 %v13384, %v13110
    %v13386 = vadd.f32 %v13385, %v13111
    %v13387 = vadd.f32 %v13386, %v13112
    %v13388 = vadd.f32 %v13387, %v13113
    %v13389 = vadd.f32 %v13388, %v13114
    %v13390 = vadd.f32 %v13389, %v13115
    %v13391 = vadd.f32 %v13390, %v13116
    %v13392 = vadd.f32 %v13391, %v13117
    %v13393 = vadd.f32 %v13392, %v13118
    %v13394 = vadd.f32 %v13393, %v13119
    %v13395 = vadd.f32 %v13394, %v13120
    %v13396 = vadd.f32 %v13395, %v13121
    %v13397 = vadd.f32 %v13396, %v13122
    %v13398 = vadd.f32 %v13397, %v13123
    %v13399 = vadd.f32 %v13398, %v13124
    %v13400 = vadd.f32 %v13399, %v13125
    %v13401 = vadd.f32 %v13400, %v13126
    %v13402 = vadd.f32 %v13401, %v13127
    %v13403 = vadd.f32 %v13402, %v13128
    %v13404 = vadd.f32 %v13403, %v13129
    %v13405 = vadd.f32 %v13404, %v13130
    %v13406 = vadd.f32 %v13405, %v13131
    %v13407 = vadd.f32 %v13406, %v13132
    %v13408 = vrot.slane %v13407, 4
    %v13409 = vadd.f32 %v13407, %v13408
    %v13410 = vrot.slane %v13409, 2
    %v13411 = vadd.f32 %v13409, %v13410
    %v13412 = vrot.slane %v13411, 1
    %v13413 = vadd.f32 %v13411, %v13412
    %v13414 = vadd.f32 %v13133, %v13134
    %v13415 = vadd.f32 %v13414, %v13135
    %v13416 = vadd.f32 %v13415, %v13136
    %v13417 = vadd.f32 %v13416, %v13137
    %v13418 = vadd.f32 %v13417, %v13138
    %v13419 = vadd.f32 %v13418, %v13139
    %v13420 = vadd.f32 %v13419, %v13140
    %v13421 = vadd.f32 %v13420, %v13141
    %v13422 = vadd.f32 %v13421, %v13142
    %v13423 = vadd.f32 %v13422, %v13143
    %v13424 = vadd.f32 %v13423, %v13144
    %v13425 = vadd.f32 %v13424, %v13145
    %v13426 = vadd.f32 %v13425, %v13146
    %v13427 = vadd.f32 %v13426, %v13147
    %v13428 = vadd.f32 %v13427, %v13148
    %v13429 = vadd.f32 %v13428, %v13149
    %v13430 = vadd.f32 %v13429, %v13150
    %v13431 = vadd.f32 %v13430, %v13151
    %v13432 = vadd.f32 %v13431, %v13152
    %v13433 = vadd.f32 %v13432, %v13153
    %v13434 = vadd.f32 %v13433, %v13154
    %v13435 = vadd.f32 %v13434, %v13155
    %v13436 = vadd.f32 %v13435, %v13156
    %v13437 = vadd.f32 %v13436, %v13157
    %v13438 = vadd.f32 %v13437, %v13158
    %v13439 = vadd.f32 %v13438, %v13159
    %v13440 = vadd.f32 %v13439, %v13160
    %v13441 = vadd.f32 %v13440, %v13161
    %v13442 = vadd.f32 %v13441, %v13162
    %v13443 = vadd.f32 %v13442, %v13163
    %v13444 = vadd.f32 %v13443, %v13164
    %v13445 = vrot.slane %v13444, 4
    %v13446 = vadd.f32 %v13444, %v13445
    %v13447 = vrot.slane %v13446, 2
    %v13448 = vadd.f32 %v13446, %v13447
    %v13449 = vrot.slane %v13448, 1
    %v13450 = vadd.f32 %v13448, %v13449
    %v13451 = vadd.f32 %v13165, %v13166
    %v13452 = vadd.f32 %v13451, %v13167
    %v13453 = vadd.f32 %v13452, %v13168
    %v13454 = vadd.f32 %v13453, %v13169
    %v13455 = vadd.f32 %v13454, %v13170
    %v13456 = vadd.f32 %v13455, %v13171
    %v13457 = vadd.f32 %v13456, %v13172
    %v13458 = vadd.f32 %v13457, %v13173
    %v13459 = vadd.f32 %v13458, %v13174
    %v13460 = vadd.f32 %v13459, %v13175
    %v13461 = vadd.f32 %v13460, %v13176
    %v13462 = vadd.f32 %v13461, %v13177
    %v13463 = vadd.f32 %v13462, %v13178
    %v13464 = vadd.f32 %v13463, %v13179
    %v13465 = vadd.f32 %v13464, %v13180
    %v13466 = vadd.f32 %v13465, %v13181
    %v13467 = vadd.f32 %v13466, %v13182
    %v13468 = vadd.f32 %v13467, %v13183
    %v13469 = vadd.f32 %v13468, %v13184
    %v13470 = vadd.f32 %v13469, %v13185
    %v13471 = vadd.f32 %v13470, %v13186
    %v13472 = vadd.f32 %v13471, %v13187
    %v13473 = vadd.f32 %v13472, %v13188
    %v13474 = vadd.f32 %v13473, %v13189
    %v13475 = vadd.f32 %v13474, %v13190
    %v13476 = vadd.f32 %v13475, %v13191
    %v13477 = vadd.f32 %v13476, %v13192
    %v13478 = vadd.f32 %v13477, %v13193
    %v13479 = vadd.f32 %v13478, %v13194
    %v13480 = vadd.f32 %v13479, %v13195
    %v13481 = vadd.f32 %v13480, %v13196
    %v13482 = vrot.slane %v13481, 4
    %v13483 = vadd.f32 %v13481, %v13482
    %v13484 = vrot.slane %v13483, 2
    %v13485 = vadd.f32 %v13483, %v13484
    %v13486 = vrot.slane %v13485, 1
    %v13487 = vadd.f32 %v13485, %v13486
    %v13488 = vadd.f32 %v13197, %v13198
    %v13489 = vadd.f32 %v13488, %v13199
    %v13490 = vadd.f32 %v13489, %v13200
    %v13491 = vadd.f32 %v13490, %v13201
    %v13492 = vadd.f32 %v13491, %v13202
    %v13493 = vadd.f32 %v13492, %v13203
    %v13494 = vadd.f32 %v13493, %v13204
    %v13495 = vadd.f32 %v13494, %v13205
    %v13496 = vadd.f32 %v13495, %v13206
    %v13497 = vadd.f32 %v13496, %v13207
    %v13498 = vadd.f32 %v13497, %v13208
    %v13499 = vadd.f32 %v13498, %v13209
    %v13500 = vadd.f32 %v13499, %v13210
    %v13501 = vadd.f32 %v13500, %v13211
    %v13502 = vadd.f32 %v13501, %v13212
    %v13503 = vadd.f32 %v13502, %v13213
    %v13504 = vadd.f32 %v13503, %v13214
    %v13505 = vadd.f32 %v13504, %v13215
    %v13506 = vadd.f32 %v13505, %v13216
    %v13507 = vadd.f32 %v13506, %v13217
    %v13508 = vadd.f32 %v13507, %v13218
    %v13509 = vadd.f32 %v13508, %v13219
    %v13510 = vadd.f32 %v13509, %v13220
    %v13511 = vadd.f32 %v13510, %v13221
    %v13512 = vadd.f32 %v13511, %v13222
    %v13513 = vadd.f32 %v13512, %v13223
    %v13514 = vadd.f32 %v13513, %v13224
    %v13515 = vadd.f32 %v13514, %v13225
    %v13516 = vadd.f32 %v13515, %v13226
    %v13517 = vadd.f32 %v13516, %v13227
    %v13518 = vadd.f32 %v13517, %v13228
    %v13519 = vrot.slane %v13518, 4
    %v13520 = vadd.f32 %v13518, %v13519
    %v13521 = vrot.slane %v13520, 2
    %v13522 = vadd.f32 %v13520, %v13521
    %v13523 = vrot.slane %v13522, 1
    %v13524 = vadd.f32 %v13522, %v13523
    %v13525 = vrcp.pop 256.0
    %v13526 = vmul.f32 256.0, %v13525
    %v13527 = vsub.f32 1.0, %v13526
    %v13528 = vmul.f32 %v13525, %v13527
    %v13529 = vadd.f32 %v13525, %v13528
    %vm13530 = vweird.f32 %v13525
    %v13531 = vsel %vm13530, %v13525, %v13529
    %v13532 = vmul.f32 %v13265, %v13531
    %v13533 = vmul.f32 %v13302, %v13531
    %v13534 = vmul.f32 %v13339, %v13531
    %v13535 = vmul.f32 %v13376, %v13531
    %v13536 = vmul.f32 %v13413, %v13531
    %v13537 = vmul.f32 %v13450, %v13531
    %v13538 = vmul.f32 %v13487, %v13531
    %v13539 = vmul.f32 %v13524, %v13531
    %vm13548 = vcmask 1041409
    %v13549 = vsel %vm13548, %v13533, %v13532
    %vm13550 = vcmask 1042434
    %v13551 = vsel %vm13550, %v13534, %v13549
    %vm13552 = vcmask 1043459
    %v13553 = vsel %vm13552, %v13535, %v13551
    %vm13554 = vcmask 1044484
    %v13555 = vsel %vm13554, %v13536, %v13553
    %vm13556 = vcmask 1045509
    %v13557 = vsel %vm13556, %v13537, %v13555
    %vm13558 = vcmask 1046534
    %v13559 = vsel %vm13558, %v13538, %v13557
    %vm13560 = vcmask 1047559
    %v13561 = vsel %vm13560, %v13539, %v13559
    %13563 = vst [vmem:[#allocation2] sm:$0xff] %v13561
    %v13564 = vld [vmem:[%s2] sm:$0xff]
    %v13565 = vld [vmem:[%s2 + $0x8] sm:$0xff]
    %v13566 = vld [vmem:[%s2 + $0x10] sm:$0xff]
    %v13567 = vld [vmem:[%s2 + $0x18] sm:$0xff]
    %v13568 = vld [vmem:[%s2 + $0x20] sm:$0xff]
    %v13569 = vld [vmem:[%s2 + $0x28] sm:$0xff]
    %v13570 = vld [vmem:[%s2 + $0x30] sm:$0xff]
    %v13571 = vld [vmem:[%s2 + $0x38] sm:$0xff]
    %v13572 = vld [vmem:[%s2 + $0x40] sm:$0xff]
    %v13573 = vld [vmem:[%s2 + $0x48] sm:$0xff]
    %v13574 = vld [vmem:[%s2 + $0x50] sm:$0xff]
    %v13575 = vld [vmem:[%s2 + $0x58] sm:$0xff]
    %v13576 = vld [vmem:[%s2 + $0x60] sm:$0xff]
    %v13577 = vld [vmem:[%s2 + $0x68] sm:$0xff]
    %v13578 = vld [vmem:[%s2 + $0x70] sm:$0xff]
    %v13579 = vld [vmem:[%s2 + $0x78] sm:$0xff]
    %v13580 = vld [vmem:[%s3] sm:$0x1]
    %v13581 = vld [vmem:[%s4] sm:$0x1]
    %v13582 = vld [vmem:[%s5] sm:$0x1]
    %v13584 = vperm.slane %v13580, 0
    %13586 = vmatpush.msra.mxu0 %v13579
    %13587 = vmatpush.msra.mxu0 %v13578
    %13588 = vmatpush.msra.mxu0 %v13577
    %13589 = vmatpush.msra.mxu0 %v13576
    %13590 = vmatpush.msra.mxu0 %v13575
    %13591 = vmatpush.msra.mxu0 %v13574
    %13592 = vmatpush.msra.mxu0 %v13573
    %13593 = vmatpush.msra.mxu0 %v13572
    %13594 = vmatpush.msra.mxu0 %v13571
    %13595 = vmatpush.msra.mxu0 %v13570
    %13596 = vmatpush.msra.mxu0 %v13569
    %13597 = vmatpush.msra.mxu0 %v13568
    %13598 = vmatpush.msra.mxu0 %v13567
    %13599 = vmatpush.msra.mxu0 %v13566
    %13600 = vmatpush.msra.mxu0 %v13565
    %13601 = vmatpush.msra.mxu0 %v13564
    %13602 = vmatmul.f32.gmra.mxu0 %v13561
    %v13603 = vpop.f32.mrf.mxu0
    %v13604 = vadd.f32 %v13584, %v13603
    %13605 = vdwg.mxu0
    %v13606 = vrot.slane %v13604, 4
    %v13607 = vadd.f32 %v13604, %v13606
    %v13608 = vrot.slane %v13607, 2
    %v13609 = vadd.f32 %v13607, %v13608
    %v13610 = vrot.slane %v13609, 1
    %v13611 = vadd.f32 %v13609, %v13610
    %v13612 = vrcp.pop 8.0
    %v13613 = vmul.f32 8.0, %v13612
    %v13614 = vsub.f32 1.0, %v13613
    %v13615 = vmul.f32 %v13612, %v13614
    %v13616 = vadd.f32 %v13612, %v13615
    %vm13617 = vweird.f32 %v13612
    %v13618 = vsel %vm13617, %v13612, %v13616
    %v13619 = vmul.f32 %v13611, %v13618
    %v13620 = vmul.f32 %v13604, %v13604
    %v13621 = vrot.slane %v13620, 4
    %v13622 = vadd.f32 %v13620, %v13621
    %v13623 = vrot.slane %v13622, 2
    %v13624 = vadd.f32 %v13622, %v13623
    %v13625 = vrot.slane %v13624, 1
    %v13626 = vadd.f32 %v13624, %v13625
    %v13627 = vmul.f32 %v13626, %v13618
    %v13628 = vmul.f32 %v13619, %v13619
    %v13629 = vsub.f32 %v13627, %v13628
    %v13630 = vmax.f32 %v13629, 0.0
    %v13631 = vsub.f32 %v13604, %v13619
    %v13632 = vadd.f32 %v13630, 1e-05
    %v13633 = vrsqrt.pop %v13632
    %v13634 = vmul.f32 %v13633, %v13632
    %v13635 = vmul.f32 %v13634, %v13633
    %v13636 = vmul.f32 0.5, %v13635
    %v13637 = vsub.f32 1.5, %v13636
    %v13638 = vmul.f32 %v13633, %v13637
    %vm13639 = vweird.f32 %v13632
    %vm13640 = vweird.f32 %v13633
    %vm13641 = vmor %vm13639, %vm13640
    %v13642 = vsel %vm13641, %v13633, %v13638
    %v13643 = vmul.f32 %v13631, %v13642
    %v13645 = vperm.slane %v13581, 0
    %v13647 = vmul.f32 %v13643, %v13645
    %v13649 = vperm.slane %v13582, 0
    %v13651 = vadd.f32 %v13647, %v13649
    %v13652 = vmax.f32 %v13651, 0.0
    %13653 = vst [vmem:[#allocation4] sm:$0xff] %v13652
    %v13654 = vld [vmem:[%s6] sm:$0xff]
    %v13655 = vld [vmem:[%s6 + $0x8] sm:$0xff]
    %v13656 = vld [vmem:[%s6 + $0x10] sm:$0xff]
    %v13657 = vld [vmem:[%s6 + $0x18] sm:$0xff]
    %v13658 = vld [vmem:[%s6 + $0x20] sm:$0xff]
    %v13659 = vld [vmem:[%s6 + $0x28] sm:$0xff]
    %v13660 = vld [vmem:[%s6 + $0x30] sm:$0xff]
    %v13661 = vld [vmem:[%s6 + $0x38] sm:$0xff]
    %v13662 = vld [vmem:[%s6 + $0x40] sm:$0xff]
    %v13663 = vld [vmem:[%s6 + $0x48] sm:$0xff]
    %v13664 = vld [vmem:[%s6 + $0x50] sm:$0xff]
    %v13665 = vld [vmem:[%s6 + $0x58] sm:$0xff]
    %v13666 = vld [vmem:[%s6 + $0x60] sm:$0xff]
    %v13667 = vld [vmem:[%s6 + $0x68] sm:$0xff]
    %v13668 = vld [vmem:[%s6 + $0x70] sm:$0xff]
    %v13669 = vld [vmem:[%s6 + $0x78] sm:$0xff]
    %v13670 = vld [vmem:[%s7] sm:$0x1]
    %v13671 = vld [vmem:[%s8] sm:$0x1]
    %v13672 = vld [vmem:[%s9] sm:$0x1]
    %v13674 = vperm.slane %v13670, 0
    %13676 = vmatpush.msra.mxu0 %v13669
    %13677 = vmatpush.msra.mxu0 %v13668
    %13678 = vmatpush.msra.mxu0 %v13667
    %13679 = vmatpush.msra.mxu0 %v13666
    %13680 = vmatpush.msra.mxu0 %v13665
    %13681 = vmatpush.msra.mxu0 %v13664
    %13682 = vmatpush.msra.mxu0 %v13663
    %13683 = vmatpush.msra.mxu0 %v13662
    %13684 = vmatpush.msra.mxu0 %v13661
    %13685 = vmatpush.msra.mxu0 %v13660
    %13686 = vmatpush.msra.mxu0 %v13659
    %13687 = vmatpush.msra.mxu0 %v13658
    %13688 = vmatpush.msra.mxu0 %v13657
    %13689 = vmatpush.msra.mxu0 %v13656
    %13690 = vmatpush.msra.mxu0 %v13655
    %13691 = vmatpush.msra.mxu0 %v13654
    %13692 = vmatmul.f32.gmra.mxu0 %v13652
    %v13693 = vpop.f32.mrf.mxu0
    %v13694 = vadd.f32 %v13674, %v13693
    %13695 = vdwg.mxu0
    %v13696 = vrot.slane %v13694, 4
    %v13697 = vadd.f32 %v13694, %v13696
    %v13698 = vrot.slane %v13697, 2
    %v13699 = vadd.f32 %v13697, %v13698
    %v13700 = vrot.slane %v13699, 1
    %v13701 = vadd.f32 %v13699, %v13700
    %v13702 = vmul.f32 %v13701, %v13618
    %v13703 = vmul.f32 %v13694, %v13694
    %v13704 = vrot.slane %v13703, 4
    %v13705 = vadd.f32 %v13703, %v13704
    %v13706 = vrot.slane %v13705, 2
    %v13707 = vadd.f32 %v13705, %v13706
    %v13708 = vrot.slane %v13707, 1
    %v13709 = vadd.f32 %v13707, %v13708
    %v13710 = vmul.f32 %v13709, %v13618
    %v13711 = vmul.f32 %v13702, %v13702
    %v13712 = vsub.f32 %v13710, %v13711
    %v13713 = vmax.f32 %v13712, 0.0
    %v13714 = vsub.f32 %v13694, %v13702
    %v13715 = vadd.f32 %v13713, 1e-05
    %v13716 = vrsqrt.pop %v13715
    %v13717 = vmul.f32 %v13716, %v13715
    %v13718 = vmul.f32 %v13717, %v13716
    %v13719 = vmul.f32 0.5, %v13718
    %v13720 = vsub.f32 1.5, %v13719
    %v13721 = vmul.f32 %v13716, %v13720
    %vm13722 = vweird.f32 %v13715
    %vm13723 = vweird.f32 %v13716
    %vm13724 = vmor %vm13722, %vm13723
    %v13725 = vsel %vm13724, %v13716, %v13721
    %v13726 = vmul.f32 %v13714, %v13725
    %v13728 = vperm.slane %v13671, 0
    %v13730 = vmul.f32 %v13726, %v13728
    %v13732 = vperm.slane %v13672, 0
    %v13734 = vadd.f32 %v13730, %v13732
    %v13735 = vmax.f32 %v13734, 0.0
    %13736 = vst [vmem:[#allocation6] sm:$0xff] %v13735
    %v13737 = vld [vmem:[%s10] sm:$0xff]
    %v13738 = vld [vmem:[%s10 + $0x8] sm:$0xff]
    %v13739 = vld [vmem:[%s10 + $0x10] sm:$0xff]
    %v13740 = vld [vmem:[%s10 + $0x18] sm:$0xff]
    %v13741 = vld [vmem:[%s10 + $0x20] sm:$0xff]
    %v13742 = vld [vmem:[%s10 + $0x28] sm:$0xff]
    %v13743 = vld [vmem:[%s10 + $0x30] sm:$0xff]
    %v13744 = vld [vmem:[%s10 + $0x38] sm:$0xff]
    %v13745 = vld [vmem:[%s10 + $0x40] sm:$0xff]
    %v13746 = vld [vmem:[%s10 + $0x48] sm:$0xff]
    %v13747 = vld [vmem:[%s10 + $0x50] sm:$0xff]
    %v13748 = vld [vmem:[%s10 + $0x58] sm:$0xff]
    %v13749 = vld [vmem:[%s10 + $0x60] sm:$0xff]
    %v13750 = vld [vmem:[%s10 + $0x68] sm:$0xff]
    %v13751 = vld [vmem:[%s10 + $0x70] sm:$0xff]
    %v13752 = vld [vmem:[%s10 + $0x78] sm:$0xff]
    %13753 = vmatpush.msra.mxu0 %v13752
    %13754 = vmatpush.msra.mxu0 %v13751
    %13755 = vmatpush.msra.mxu0 %v13750
    %13756 = vmatpush.msra.mxu0 %v13749
    %13757 = vmatpush.msra.mxu0 %v13748
    %13758 = vmatpush.msra.mxu0 %v13747
    %13759 = vmatpush.msra.mxu0 %v13746
    %13760 = vmatpush.msra.mxu0 %v13745
    %13761 = vmatpush.msra.mxu0 %v13744
    %13762 = vmatpush.msra.mxu0 %v13743
    %13763 = vmatpush.msra.mxu0 %v13742
    %13764 = vmatpush.msra.mxu0 %v13741
    %13765 = vmatpush.msra.mxu0 %v13740
    %13766 = vmatpush.msra.mxu0 %v13739
    %13767 = vmatpush.msra.mxu0 %v13738
    %13768 = vmatpush.msra.mxu0 %v13737
    %13769 = vmatmul.f32.gmra.mxu0 %v13735
    %v13770 = vpop.f32.mrf.mxu0
    %v13771 = vadd.f32 0.0, %v13770
    %13772 = vdwg.mxu0
    %13773 = vst [vmem:[%s14] sm:$0xff] %v13771
    // Predicated region
    $region46: #{ssl_forward.1} parent=1 // pred_check
      _
    $region47: #{ssl_forward.1} parent=1 // pred_check_branch
      %13775 = sbr.rel (0) target = $region49
    $region48: #{ssl_forward.1} parent=1 // pred_region
      %13777 = vsyncadd [#allocation3], 0
      %s13779 = sshll.u32 [#allocation2], 4
      %s13780 = int_to_ptr.vmem [resolvable:$true] %s13779
      %s13781 = sshll.u32 %s11, 4
      %s13782 = int_to_ptr.hbm [resolvable:$true] %s13781
      %13784 = dma.vmem_to_hbm [thread:$0]  %s13780, 128, %s13782, [#allocation3]
    $region49: #{ssl_forward.1} parent=1 // pred_fallthru
      _
    // Predicated region
    $region50: #{ssl_forward.1} parent=1 // pred_check
      _
    $region51: #{ssl_forward.1} parent=1 // pred_check_branch
      %13786 = sbr.rel (0) target = $region53
    $region52: #{ssl_forward.1} parent=1 // pred_region
      %13788 = vsyncadd [#allocation5], 0
      %s13790 = sshll.u32 [#allocation4], 4
      %s13791 = int_to_ptr.vmem [resolvable:$true] %s13790
      %s13792 = sshll.u32 %s12, 4
      %s13793 = int_to_ptr.hbm [resolvable:$true] %s13792
      %13795 = dma.vmem_to_hbm [thread:$0]  %s13791, 128, %s13793, [#allocation5]
    $region53: #{ssl_forward.1} parent=1 // pred_fallthru
      _
    // Predicated region
    $region54: #{ssl_forward.1} parent=1 // pred_check
      _
    $region55: #{ssl_forward.1} parent=1 // pred_check_branch
      %13797 = sbr.rel (0) target = $region57
    $region56: #{ssl_forward.1} parent=1 // pred_region
      %13799 = vsyncadd [#allocation5], 0
      %s13801 = sshll.u32 [#allocation6], 4
      %s13802 = int_to_ptr.vmem [resolvable:$true] %s13801
      %s13803 = sshll.u32 %s13, 4
      %s13804 = int_to_ptr.hbm [resolvable:$true] %s13803
      %13806 = dma.vmem_to_hbm [thread:$0]  %s13802, 128, %s13804, [#allocation5]
    $region57: #{ssl_forward.1} parent=1 // pred_fallthru
      _
    // Predicated region
    $region58: #{ssl_forward.1} parent=1 // pred_check
      _
    $region59: #{ssl_forward.1} parent=1 // pred_check_branch
      %13808 = sbr.rel (0) target = $region61
    $region60: #{ssl_forward.1} parent=1 // pred_region
      _
    $region61: #{ssl_forward.1} parent=1 // pred_fallthru
      _
    // Predicated region
    $region62: #{ssl_forward.1} parent=1 // pred_check
      _
    $region63: #{ssl_forward.1} parent=1 // pred_check_branch
      %13810 = sbr.rel (0) target = $region65
    $region64: #{ssl_forward.1} parent=1 // pred_region
      %13812 = dma.done [#allocation3], 128
    $region65: #{ssl_forward.1} parent=1 // pred_fallthru
      _
    // Predicated region
    $region66: #{ssl_forward.1} parent=1 // pred_check
      _
    $region67: #{ssl_forward.1} parent=1 // pred_check_branch
      %13814 = sbr.rel (0) target = $region69
    $region68: #{ssl_forward.1} parent=1 // pred_region
      %13816 = dma.done [#allocation5], 128
    $region69: #{ssl_forward.1} parent=1 // pred_fallthru
      _
    // Predicated region
    $region70: #{ssl_forward.1} parent=1 // pred_check
      _
    $region71: #{ssl_forward.1} parent=1 // pred_check_branch
      %13818 = sbr.rel (0) target = $region73
    $region72: #{ssl_forward.1} parent=1 // pred_region
      %13820 = dma.done [#allocation5], 128
    $region73: #{ssl_forward.1} parent=1 // pred_fallthru
      _
    // Predicated region
    $region74: #{ssl_forward.1} parent=1 // pred_check
      _
    $region75: #{ssl_forward.1} parent=1 // pred_check_branch
      %13822 = sbr.rel (0) target = $region77
    $region76: #{ssl_forward.1} parent=1 // pred_region
      _
    $region77: #{ssl_forward.1} parent=1 // pred_fallthru
      _
    %13823 = vsyncpa [#allocation3], 1
    %13824 = vsyncpa [#allocation5], 1

</llo_original>
